<compile_context>
chip_gen: v6e
topology: v6e:2x2x1
jax: 0.10.0
libtpu: 0.0.40
codegen_flags: <defaults>
</compile_context>

<pallas_src>
import functools

import jax
import jax.numpy as jnp
import numpy as np
from jax.experimental import pallas as pl
from jax.experimental.pallas import tpu as pltpu


def _rup(x, m):
    return (x + m - 1) // m * m


def _choose_tm(M, cap=1024):
    # Largest-ish M tile, capped, and chosen so there are >=2 blocks whenever
    # possible (keeps both v7x TensorCores busy on the "parallel" grid axis).
    return max(8, min(cap, _rup((M + 1) // 2, 8)))


# --------------------------- Pallas kernels ---------------------------------

def _conv_matmul_kernel(x_ref, w_ref, b_ref, o_ref, *, relu):
    """o = maybe_relu(x @ w + b); full-K, full-N block (no reduction axis)."""
    y = jnp.dot(x_ref[...], w_ref[...],
                preferred_element_type=jnp.float32) + b_ref[...]
    if relu:
        y = jnp.maximum(y, 0.0)
    o_ref[...] = y.astype(o_ref.dtype)


def conv_matmul(x, w, b, *, relu, tm=None):
    """maybe_relu(x @ w + b); K and N taken as full blocks (small K/N)."""
    M, K = x.shape
    _, N = w.shape
    tm = _choose_tm(M) if tm is None else tm
    Mp = _rup(M, tm)
    xp = jnp.pad(x.astype(jnp.float32), ((0, Mp - M), (0, 0)))

    out = pl.pallas_call(
        functools.partial(_conv_matmul_kernel, relu=relu),
        out_shape=jax.ShapeDtypeStruct((Mp, N), jnp.float32),
        grid_spec=pltpu.PrefetchScalarGridSpec(
            num_scalar_prefetch=0,
            grid=(Mp // tm,),
            in_specs=[
                pl.BlockSpec((tm, K), lambda i: (i, 0)),
                pl.BlockSpec((K, N), lambda i: (0, 0)),
                pl.BlockSpec((1, N), lambda i: (0, 0)),
            ],
            out_specs=pl.BlockSpec((tm, N), lambda i: (i, 0)),
        ),
        compiler_params=pltpu.CompilerParams(
            dimension_semantics=("parallel",)),
    )(xp, w.astype(jnp.float32), b.reshape(1, N).astype(jnp.float32))
    return out[:M] if Mp != M else out


def _conv_stats_kernel(x_ref, w_ref, b_ref, y_ref, stats_ref, *, m_total):
    """Conv matmul + bias (no activation) and per-block partial BN statistics.

    stats block is (8, N): row 0 = sum over valid rows, row 1 = sum of squares,
    rows 2..7 = 0.  Padded rows (>= m_total) are masked out of the statistics.
    """
    tm = x_ref.shape[0]
    n = w_ref.shape[1]
    y = jnp.dot(x_ref[...], w_ref[...],
                preferred_element_type=jnp.float32) + b_ref[...]
    y_ref[...] = y

    rows = jax.lax.broadcasted_iota(jnp.int32, (tm, 1), 0) + pl.program_id(0) * tm
    valid = rows < m_total
    ym = jnp.where(valid, y, 0.0)
    psum = jnp.sum(ym, axis=0, keepdims=True)        # (1, n)
    psq = jnp.sum(ym * ym, axis=0, keepdims=True)    # (1, n)

    row_idx = jax.lax.broadcasted_iota(jnp.int32, (8, n), 0)
    psum_b = jnp.broadcast_to(psum, (8, n))
    psq_b = jnp.broadcast_to(psq, (8, n))
    stats_ref[...] = jnp.where(row_idx == 0, psum_b,
                               jnp.where(row_idx == 1, psq_b, 0.0))


def conv_matmul_with_stats(x, w, b, *, tm=None):
    """Returns (y = x @ w + b, per-column sum, per-column sum-of-squares)."""
    M, K = x.shape
    _, N = w.shape
    tm = _choose_tm(M) if tm is None else tm
    Mp = _rup(M, tm)
    nblk = Mp // tm
    xp = jnp.pad(x.astype(jnp.float32), ((0, Mp - M), (0, 0)))

    y, stats = pl.pallas_call(
        functools.partial(_conv_stats_kernel, m_total=M),
        out_shape=(jax.ShapeDtypeStruct((Mp, N), jnp.float32),
                   jax.ShapeDtypeStruct((nblk * 8, N), jnp.float32)),
        grid_spec=pltpu.PrefetchScalarGridSpec(
            num_scalar_prefetch=0,
            grid=(nblk,),
            in_specs=[
                pl.BlockSpec((tm, K), lambda i: (i, 0)),
                pl.BlockSpec((K, N), lambda i: (0, 0)),
                pl.BlockSpec((1, N), lambda i: (0, 0)),
            ],
            out_specs=(pl.BlockSpec((tm, N), lambda i: (i, 0)),
                       pl.BlockSpec((8, N), lambda i: (i, 0))),
        ),
        compiler_params=pltpu.CompilerParams(
            dimension_semantics=("parallel",)),
    )(xp, w.astype(jnp.float32), b.reshape(1, N).astype(jnp.float32))

    col_sum = jnp.sum(stats[0::8], axis=0)
    col_sumsq = jnp.sum(stats[1::8], axis=0)
    y = y[:M] if Mp != M else y
    return y, col_sum, col_sumsq


def _affine_relu_kernel(x_ref, scale_ref, shift_ref, o_ref):
    o_ref[...] = jnp.maximum(x_ref[...] * scale_ref[...] + shift_ref[...], 0.0)


def affine_relu(x, scale, shift, *, tm=None):
    """relu(x * scale + shift), per-column scale/shift (BatchNorm epilogue)."""
    M, C = x.shape
    tm = _choose_tm(M) if tm is None else tm
    Mp = _rup(M, tm)
    xp = jnp.pad(x.astype(jnp.float32), ((0, Mp - M), (0, 0)))
    out = pl.pallas_call(
        _affine_relu_kernel,
        out_shape=jax.ShapeDtypeStruct((Mp, C), jnp.float32),
        grid_spec=pltpu.PrefetchScalarGridSpec(
            num_scalar_prefetch=0,
            grid=(Mp // tm,),
            in_specs=[
                pl.BlockSpec((tm, C), lambda i: (i, 0)),
                pl.BlockSpec((1, C), lambda i: (0, 0)),
                pl.BlockSpec((1, C), lambda i: (0, 0)),
            ],
            out_specs=pl.BlockSpec((tm, C), lambda i: (i, 0)),
        ),
        compiler_params=pltpu.CompilerParams(
            dimension_semantics=("parallel",)),
    )(xp, scale.reshape(1, C).astype(jnp.float32),
      shift.reshape(1, C).astype(jnp.float32))
    return out[:M] if Mp != M else out


def _fc_fused_kernel(x_ref, w1_ref, b1_ref, w2_ref, b2_ref, o_ref):
    """o = relu(x @ w1 + b1) @ w2 + b2, everything resident in VMEM."""
    h = jnp.dot(x_ref[...], w1_ref[...],
                preferred_element_type=jnp.float32) + b1_ref[...]
    h = jnp.maximum(h, 0.0)
    o_ref[...] = (jnp.dot(h, w2_ref[...],
                          preferred_element_type=jnp.float32) + b2_ref[...])


def fc_fused(x, w1, b1, w2, b2):
    M, K1 = x.shape
    _, H = w1.shape
    _, N = w2.shape
    Mp = _rup(M, 8)
    xp = jnp.pad(x.astype(jnp.float32), ((0, Mp - M), (0, 0)))
    out = pl.pallas_call(
        _fc_fused_kernel,
        out_shape=jax.ShapeDtypeStruct((Mp, N), jnp.float32),
        grid_spec=pltpu.PrefetchScalarGridSpec(
            num_scalar_prefetch=0,
            grid=(1,),
            in_specs=[
                pl.BlockSpec((Mp, K1), lambda i: (0, 0)),
                pl.BlockSpec((K1, H), lambda i: (0, 0)),
                pl.BlockSpec((1, H), lambda i: (0, 0)),
                pl.BlockSpec((H, N), lambda i: (0, 0)),
                pl.BlockSpec((1, N), lambda i: (0, 0)),
            ],
            out_specs=pl.BlockSpec((Mp, N), lambda i: (0, 0)),
        ),
        compiler_params=pltpu.CompilerParams(
            dimension_semantics=("arbitrary",)),
    )(xp, w1.astype(jnp.float32), b1.reshape(1, H).astype(jnp.float32),
      w2.astype(jnp.float32), b2.reshape(1, N).astype(jnp.float32))
    return out[:M] if Mp != M else out


# --------------------------- glue (plain JAX) -------------------------------

def _im2col(x_nhwc, k, stride, pad):
    """Extract k x k patches. Returns (N*Ho*Wo, k*k*C) with (kh, kw, C) ordering."""
    if pad:
        x_nhwc = jnp.pad(x_nhwc, ((0, 0), (pad, pad), (pad, pad), (0, 0)))
    N, H, W, C = x_nhwc.shape
    Ho = (H - k) // stride + 1
    Wo = (W - k) // stride + 1
    cols = []
    for i in range(k):
        for j in range(k):
            cols.append(x_nhwc[:, i:i + stride * Ho:stride,
                               j:j + stride * Wo:stride, :])
    patches = jnp.stack(cols, axis=3)  # (N, Ho, Wo, k*k, C)
    return patches.reshape(N * Ho * Wo, k * k * C), N, Ho, Wo


def _conv_w_to_mat(w_oihw):
    cout, cin, kh, kw = w_oihw.shape
    return w_oihw.transpose(2, 3, 1, 0).reshape(kh * kw * cin, cout)


def encoder_forward(x_nchw, params):
    x = jnp.transpose(x_nchw, (0, 2, 3, 1)).astype(jnp.float32)  # NHWC

    # conv1: Conv2d(1, 8, 3, stride=2, padding=1) + ReLU
    p, N, H1, W1 = _im2col(x, 3, 2, 1)
    a1 = conv_matmul(p, _conv_w_to_mat(params["conv1_w"]),
                     params["conv1_b"], relu=True)
    a1 = a1.reshape(N, H1, W1, 8)

    # conv2: Conv2d(8, 16, 3, stride=2, padding=1) + BatchNorm2d(16) + ReLU
    p, N, H2, W2 = _im2col(a1, 3, 2, 1)
    y2, csum, csumsq = conv_matmul_with_stats(
        p, _conv_w_to_mat(params["conv2_w"]), params["conv2_b"])
    M2 = y2.shape[0]
    mean = csum / M2
    var = csumsq / M2 - mean * mean          # biased var, torch BN training mode
    inv = params["bn_gamma"] / jnp.sqrt(var + 1e-5)
    a2 = affine_relu(y2, inv, params["bn_beta"] - mean * inv)
    a2 = a2.reshape(N, H2, W2, 16)

    # conv3: Conv2d(16, 32, 3, stride=2, padding=0) + ReLU
    p, N, H3, W3 = _im2col(a2, 3, 2, 0)
    a3 = conv_matmul(p, _conv_w_to_mat(params["conv3_w"]),
                     params["conv3_b"], relu=True)
    a3 = a3.reshape(N, H3, W3, 32)

    # flatten exactly like torch (NCHW order: C outermost)
    flat = jnp.transpose(a3, (0, 3, 1, 2)).reshape(N, 32 * H3 * W3)

    # encoder_lin: Linear(46*7*32, 32) + ReLU; Linear(32, 128) (fused kernel)
    return fc_fused(flat, params["fc1_w"], params["fc1_b"],
                    params["fc2_w"], params["fc2_b"])


# --------------------------- reference & params -----------------------------

def reference_forward(x, params):
    def conv(x, w, b, stride, pad):
        y = jax.lax.conv_general_dilated(
            x, w, (stride, stride), [(pad, pad), (pad, pad)],
            dimension_numbers=("NCHW", "OIHW", "NCHW"))
        return y + b.reshape(1, -1, 1, 1)

    y = jax.nn.relu(conv(x, params["conv1_w"], params["conv1_b"], 2, 1))
    y = conv(y, params["conv2_w"], params["conv2_b"], 2, 1)
    mean = y.mean(axis=(0, 2, 3), keepdims=True)
    var = y.var(axis=(0, 2, 3), keepdims=True)
    y = (y - mean) / jnp.sqrt(var + 1e-5) * params["bn_gamma"].reshape(1, -1, 1, 1) \
        + params["bn_beta"].reshape(1, -1, 1, 1)
    y = jax.nn.relu(y)
    y = jax.nn.relu(conv(y, params["conv3_w"], params["conv3_b"], 2, 0))
    y = y.reshape(y.shape[0], -1)
    y = jax.nn.relu(y @ params["fc1_w"] + params["fc1_b"])
    return y @ params["fc2_w"] + params["fc2_b"]


def init_params(key):
    ks = jax.random.split(key, 10)

    def rn(k, shape, scale):
        return (scale * jax.random.normal(k, shape)).astype(jnp.float32)

    return {
        "conv1_w": rn(ks[0], (8, 1, 3, 3), 0.3),
        "conv1_b": rn(ks[1], (8,), 0.1),
        "conv2_w": rn(ks[2], (16, 8, 3, 3), 0.1),
        "conv2_b": rn(ks[3], (16,), 0.1),
        "conv3_w": rn(ks[4], (32, 16, 3, 3), 0.08),
        "conv3_b": rn(ks[5], (32,), 0.1),
        "bn_gamma": jnp.ones((16,), jnp.float32),   # torch BatchNorm2d default init
        "bn_beta": jnp.zeros((16,), jnp.float32),
        "fc1_w": rn(ks[6], (46 * 7 * 32, 32), 0.01),
        "fc1_b": rn(ks[7], (32,), 0.1),
        "fc2_w": rn(ks[8], (32, 128), 0.1),
        "fc2_b": rn(ks[9], (128,), 0.1),
    }


if __name__ == "__main__":
    key = jax.random.PRNGKey(0)
    pkey, xkey = jax.random.split(key)
    params = init_params(pkey)

    # Smallest spatial input consistent with the module's hard-coded
    # Linear(46*7*32, 32): (H, W) = (372, 60) -> conv stack -> (46, 7, 32).
    x = jax.random.normal(xkey, (2, 1, 372, 60), dtype=jnp.float32)

    fwd = jax.jit(encoder_forward)
    out = fwd(x, params)
    out = jax.block_until_ready(out)
    assert out.shape == (2, 128), out.shape

    ref = reference_forward(x, params)
    np.testing.assert_allclose(np.asarray(out), np.asarray(ref),
                               rtol=2e-2, atol=2e-2)
    print("KERNEL_OK")
</pallas_src>

<mosaic_0001>
module attributes {stable_mosaic.version = 11 : i64} {
  func.func @_conv_matmul_kernel(%arg0: i32, %arg1: memref<1024x9xf32, #tpu.memory_space<vmem>>, %arg2: memref<9x8xf32, #tpu.memory_space<vmem>>, %arg3: memref<1x8xf32, #tpu.memory_space<vmem>>, %arg4: memref<1024x8xf32, #tpu.memory_space<vmem>>) attributes {dimension_semantics = [#tpu.dimension_semantics<parallel>], iteration_bounds = array<i64: 11>, scalar_prefetch = 0 : i64, scratch_operands = 0 : i64, tpu.core_type = #tpu.core_type<tc>, window_params = [{transform_indices = @transform_0, window_bounds = array<i64: 1024, 9>}, {pipeline_mode = #tpu.pipeline_mode<synchronous>, transform_indices = @transform_1, window_bounds = array<i64: 9, 8>}, {pipeline_mode = #tpu.pipeline_mode<synchronous>, transform_indices = @transform_2, window_bounds = array<i64: 1, 8>}, {transform_indices = @transform_3, window_bounds = array<i64: 1024, 8>}]} {
    %c0 = arith.constant 0 : index
    %c0_0 = arith.constant 0 : index
    %0 = vector.load %arg1[%c0, %c0_0] : memref<1024x9xf32, #tpu.memory_space<vmem>>, vector<1024x9xf32>
    %c0_1 = arith.constant 0 : index
    %c0_2 = arith.constant 0 : index
    %1 = vector.load %arg2[%c0_1, %c0_2] : memref<9x8xf32, #tpu.memory_space<vmem>>, vector<9x8xf32>
    %cst = arith.constant dense<0.000000e+00> : vector<1024x8xf32>
    %2 = tpu.matmul %0, %1, %cst {dimension_numbers = #tpu.dot_dimension_numbers<[1], [0], [0], [1], [0, 0, 1, 1], [], []>} : vector<1024x9xf32>, vector<9x8xf32>, vector<1024x8xf32> -> vector<1024x8xf32>
    %c0_3 = arith.constant 0 : index
    %c0_4 = arith.constant 0 : index
    %3 = vector.load %arg3[%c0_3, %c0_4] : memref<1x8xf32, #tpu.memory_space<vmem>>, vector<1x8xf32>
    %4 = vector.broadcast %3 : vector<1x8xf32> to vector<1024x8xf32>
    %5 = arith.addf %2, %4 : vector<1024x8xf32>
    %cst_5 = arith.constant 0.000000e+00 : f32
    %6 = vector.broadcast %cst_5 : f32 to vector<1024x8xf32>
    %7 = arith.maximumf %5, %6 : vector<1024x8xf32>
    %c0_6 = arith.constant 0 : index
    %c0_7 = arith.constant 0 : index
    %8 = vector.load %arg4[%c0_6, %c0_7] : memref<1024x8xf32, #tpu.memory_space<vmem>>, vector<1024x8xf32>
    tpu.vector_store %arg4[%c0_6, %c0_7], %7 {strides = array<i32>} : memref<1024x8xf32, #tpu.memory_space<vmem>>, vector<1024x8xf32>,
    return
  }
  func.func @transform_0(%arg0: i32) -> (i32, i32) {
    %c0_i32 = arith.constant 0 : i32
    %c0_i32_0 = arith.constant 0 : i32
    return %arg0, %c0_i32 : i32, i32
  }
  func.func @transform_1(%arg0: i32) -> (i32, i32) {
    %c0_i32 = arith.constant 0 : i32
    %c0_i32_0 = arith.constant 0 : i32
    %c0_i32_1 = arith.constant 0 : i32
    return %c0_i32, %c0_i32_0 : i32, i32
  }
  func.func @transform_2(%arg0: i32) -> (i32, i32) {
    %c0_i32 = arith.constant 0 : i32
    %c0_i32_0 = arith.constant 0 : i32
    %c0_i32_1 = arith.constant 0 : i32
    return %c0_i32, %c0_i32_0 : i32, i32
  }
  func.func @transform_3(%arg0: i32) -> (i32, i32) {
    %c0_i32 = arith.constant 0 : i32
    %c0_i32_0 = arith.constant 0 : i32
    return %arg0, %c0_i32 : i32, i32
  }
}

module attributes {stable_mosaic.version = 11 : i64} {
  func.func @_conv_stats_kernel(%arg0: i32, %arg1: memref<1024x72xf32, #tpu.memory_space<vmem>>, %arg2: memref<72x16xf32, #tpu.memory_space<vmem>>, %arg3: memref<1x16xf32, #tpu.memory_space<vmem>>, %arg4: memref<1024x16xf32, #tpu.memory_space<vmem>>, %arg5: memref<8x16xf32, #tpu.memory_space<vmem>>) attributes {dimension_semantics = [#tpu.dimension_semantics<parallel>], iteration_bounds = array<i64: 3>, scalar_prefetch = 0 : i64, scratch_operands = 0 : i64, tpu.core_type = #tpu.core_type<tc>, window_params = [{transform_indices = @transform_0, window_bounds = array<i64: 1024, 72>}, {pipeline_mode = #tpu.pipeline_mode<synchronous>, transform_indices = @transform_1, window_bounds = array<i64: 72, 16>}, {pipeline_mode = #tpu.pipeline_mode<synchronous>, transform_indices = @transform_2, window_bounds = array<i64: 1, 16>}, {transform_indices = @transform_3, window_bounds = array<i64: 1024, 16>}, {transform_indices = @transform_4, window_bounds = array<i64: 8, 16>}]} {
    %c0 = arith.constant 0 : index
    %c0_0 = arith.constant 0 : index
    %0 = vector.load %arg1[%c0, %c0_0] : memref<1024x72xf32, #tpu.memory_space<vmem>>, vector<1024x72xf32>
    %c0_1 = arith.constant 0 : index
    %c0_2 = arith.constant 0 : index
    %1 = vector.load %arg2[%c0_1, %c0_2] : memref<72x16xf32, #tpu.memory_space<vmem>>, vector<72x16xf32>
    %cst = arith.constant dense<0.000000e+00> : vector<1024x16xf32>
    %2 = tpu.matmul %0, %1, %cst {dimension_numbers = #tpu.dot_dimension_numbers<[1], [0], [0], [1], [0, 0, 1, 1], [], []>} : vector<1024x72xf32>, vector<72x16xf32>, vector<1024x16xf32> -> vector<1024x16xf32>
    %c0_3 = arith.constant 0 : index
    %c0_4 = arith.constant 0 : index
    %3 = vector.load %arg3[%c0_3, %c0_4] : memref<1x16xf32, #tpu.memory_space<vmem>>, vector<1x16xf32>
    %4 = vector.broadcast %3 : vector<1x16xf32> to vector<1024x16xf32>
    %5 = arith.addf %2, %4 : vector<1024x16xf32>
    %c0_5 = arith.constant 0 : index
    %c0_6 = arith.constant 0 : index
    %6 = vector.load %arg4[%c0_5, %c0_6] : memref<1024x16xf32, #tpu.memory_space<vmem>>, vector<1024x16xf32>
    tpu.vector_store %arg4[%c0_5, %c0_6], %5 {strides = array<i32>} : memref<1024x16xf32, #tpu.memory_space<vmem>>, vector<1024x16xf32>,
    %7 = tpu.iota {dimensions = array<i32: 0>} : vector<1024x1xi32>
    %c1024_i32 = arith.constant 1024 : i32
    %8 = arith.muli %arg0, %c1024_i32 : i32
    %9 = vector.broadcast %8 : i32 to vector<1024x1xi32>
    %10 = arith.addi %7, %9 : vector<1024x1xi32>
    %c2790_i32 = arith.constant 2790 : i32
    %11 = vector.broadcast %c2790_i32 : i32 to vector<1024x1xi32>
    %12 = arith.cmpi slt, %10, %11 : vector<1024x1xi32>
    %cst_7 = arith.constant 0.000000e+00 : f32
    %13 = vector.shape_cast %12 : vector<1024x1xi1> to vector<1024x1xi1>
    %14 = vector.broadcast %13 : vector<1024x1xi1> to vector<1024x16xi1>
    %15 = vector.broadcast %cst_7 : f32 to vector<1024x16xf32>
    %16 = arith.select %14, %5, %15 : vector<1024x16xi1>, vector<1024x16xf32>
    %cst_8 = arith.constant dense<0.000000e+00> : vector<16xf32>
    %17 = vector.multi_reduction <add>, %16, %cst_8 [0] : vector<1024x16xf32> to vector<16xf32>
    %18 = vector.shape_cast %17 : vector<16xf32> to vector<1x16xf32>
    %19 = arith.mulf %16, %16 : vector<1024x16xf32>
    %cst_9 = arith.constant dense<0.000000e+00> : vector<16xf32>
    %20 = vector.multi_reduction <add>, %19, %cst_9 [0] : vector<1024x16xf32> to vector<16xf32>
    %21 = vector.shape_cast %20 : vector<16xf32> to vector<1x16xf32>
    %22 = tpu.iota {dimensions = array<i32: 0>} : vector<8x16xi32>
    %23 = vector.shape_cast %18 : vector<1x16xf32> to vector<1x16xf32>
    %24 = vector.broadcast %23 : vector<1x16xf32> to vector<8x16xf32>
    %25 = vector.shape_cast %21 : vector<1x16xf32> to vector<1x16xf32>
    %26 = vector.broadcast %25 : vector<1x16xf32> to vector<8x16xf32>
    %c0_i32 = arith.constant 0 : i32
    %27 = vector.broadcast %c0_i32 : i32 to vector<8x16xi32>
    %28 = arith.cmpi eq, %22, %27 : vector<8x16xi32>
    %c1_i32 = arith.constant 1 : i32
    %29 = vector.broadcast %c1_i32 : i32 to vector<8x16xi32>
    %30 = arith.cmpi eq, %22, %29 : vector<8x16xi32>
    %cst_10 = arith.constant 0.000000e+00 : f32
    %31 = vector.broadcast %cst_10 : f32 to vector<8x16xf32>
    %32 = arith.select %30, %26, %31 : vector<8x16xi1>, vector<8x16xf32>
    %33 = arith.select %28, %24, %32 : vector<8x16xi1>, vector<8x16xf32>
    %c0_11 = arith.constant 0 : index
    %c0_12 = arith.constant 0 : index
    %34 = vector.load %arg5[%c0_11, %c0_12] : memref<8x16xf32, #tpu.memory_space<vmem>>, vector<8x16xf32>
    tpu.vector_store %arg5[%c0_11, %c0_12], %33 {strides = array<i32>} : memref<8x16xf32, #tpu.memory_space<vmem>>, vector<8x16xf32>,
    return
  }
  func.func @transform_0(%arg0: i32) -> (i32, i32) {
    %c0_i32 = arith.constant 0 : i32
    %c0_i32_0 = arith.constant 0 : i32
    return %arg0, %c0_i32 : i32, i32
  }
  func.func @transform_1(%arg0: i32) -> (i32, i32) {
    %c0_i32 = arith.constant 0 : i32
    %c0_i32_0 = arith.constant 0 : i32
    %c0_i32_1 = arith.constant 0 : i32
    return %c0_i32, %c0_i32_0 : i32, i32
  }
  func.func @transform_2(%arg0: i32) -> (i32, i32) {
    %c0_i32 = arith.constant 0 : i32
    %c0_i32_0 = arith.constant 0 : i32
    %c0_i32_1 = arith.constant 0 : i32
    return %c0_i32, %c0_i32_0 : i32, i32
  }
  func.func @transform_3(%arg0: i32) -> (i32, i32) {
    %c0_i32 = arith.constant 0 : i32
    %c0_i32_0 = arith.constant 0 : i32
    return %arg0, %c0_i32 : i32, i32
  }
  func.func @transform_4(%arg0: i32) -> (i32, i32) {
    %c0_i32 = arith.constant 0 : i32
    %c0_i32_0 = arith.constant 0 : i32
    return %arg0, %c0_i32 : i32, i32
  }
}

module attributes {stable_mosaic.version = 11 : i64} {
  func.func @_affine_relu_kernel(%arg0: i32, %arg1: memref<1024x16xf32, #tpu.memory_space<vmem>>, %arg2: memref<1x16xf32, #tpu.memory_space<vmem>>, %arg3: memref<1x16xf32, #tpu.memory_space<vmem>>, %arg4: memref<1024x16xf32, #tpu.memory_space<vmem>>) attributes {dimension_semantics = [#tpu.dimension_semantics<parallel>], iteration_bounds = array<i64: 3>, scalar_prefetch = 0 : i64, scratch_operands = 0 : i64, tpu.core_type = #tpu.core_type<tc>, window_params = [{transform_indices = @transform_0, window_bounds = array<i64: 1024, 16>}, {pipeline_mode = #tpu.pipeline_mode<synchronous>, transform_indices = @transform_1, window_bounds = array<i64: 1, 16>}, {pipeline_mode = #tpu.pipeline_mode<synchronous>, transform_indices = @transform_2, window_bounds = array<i64: 1, 16>}, {transform_indices = @transform_3, window_bounds = array<i64: 1024, 16>}]} {
    %c0 = arith.constant 0 : index
    %c0_0 = arith.constant 0 : index
    %0 = vector.load %arg1[%c0, %c0_0] : memref<1024x16xf32, #tpu.memory_space<vmem>>, vector<1024x16xf32>
    %c0_1 = arith.constant 0 : index
    %c0_2 = arith.constant 0 : index
    %1 = vector.load %arg2[%c0_1, %c0_2] : memref<1x16xf32, #tpu.memory_space<vmem>>, vector<1x16xf32>
    %2 = vector.broadcast %1 : vector<1x16xf32> to vector<1024x16xf32>
    %3 = arith.mulf %0, %2 : vector<1024x16xf32>
    %c0_3 = arith.constant 0 : index
    %c0_4 = arith.constant 0 : index
    %4 = vector.load %arg3[%c0_3, %c0_4] : memref<1x16xf32, #tpu.memory_space<vmem>>, vector<1x16xf32>
    %5 = vector.broadcast %4 : vector<1x16xf32> to vector<1024x16xf32>
    %6 = arith.addf %3, %5 : vector<1024x16xf32>
    %cst = arith.constant 0.000000e+00 : f32
    %7 = vector.broadcast %cst : f32 to vector<1024x16xf32>
    %8 = arith.maximumf %6, %7 : vector<1024x16xf32>
    %c0_5 = arith.constant 0 : index
    %c0_6 = arith.constant 0 : index
    %9 = vector.load %arg4[%c0_5, %c0_6] : memref<1024x16xf32, #tpu.memory_space<vmem>>, vector<1024x16xf32>
    tpu.vector_store %arg4[%c0_5, %c0_6], %8 {strides = array<i32>} : memref<1024x16xf32, #tpu.memory_space<vmem>>, vector<1024x16xf32>,
    return
  }
  func.func @transform_0(%arg0: i32) -> (i32, i32) {
    %c0_i32 = arith.constant 0 : i32
    %c0_i32_0 = arith.constant 0 : i32
    return %arg0, %c0_i32 : i32, i32
  }
  func.func @transform_1(%arg0: i32) -> (i32, i32) {
    %c0_i32 = arith.constant 0 : i32
    %c0_i32_0 = arith.constant 0 : i32
    %c0_i32_1 = arith.constant 0 : i32
    return %c0_i32, %c0_i32_0 : i32, i32
  }
  func.func @transform_2(%arg0: i32) -> (i32, i32) {
    %c0_i32 = arith.constant 0 : i32
    %c0_i32_0 = arith.constant 0 : i32
    %c0_i32_1 = arith.constant 0 : i32
    return %c0_i32, %c0_i32_0 : i32, i32
  }
  func.func @transform_3(%arg0: i32) -> (i32, i32) {
    %c0_i32 = arith.constant 0 : i32
    %c0_i32_0 = arith.constant 0 : i32
    return %arg0, %c0_i32 : i32, i32
  }
}

module attributes {stable_mosaic.version = 11 : i64} {
  func.func @_conv_matmul_kernel(%arg0: i32, %arg1: memref<328x144xf32, #tpu.memory_space<vmem>>, %arg2: memref<144x32xf32, #tpu.memory_space<vmem>>, %arg3: memref<1x32xf32, #tpu.memory_space<vmem>>, %arg4: memref<328x32xf32, #tpu.memory_space<vmem>>) attributes {dimension_semantics = [#tpu.dimension_semantics<parallel>], iteration_bounds = array<i64: 2>, scalar_prefetch = 0 : i64, scratch_operands = 0 : i64, tpu.core_type = #tpu.core_type<tc>, window_params = [{transform_indices = @transform_0, window_bounds = array<i64: 328, 144>}, {pipeline_mode = #tpu.pipeline_mode<synchronous>, transform_indices = @transform_1, window_bounds = array<i64: 144, 32>}, {pipeline_mode = #tpu.pipeline_mode<synchronous>, transform_indices = @transform_2, window_bounds = array<i64: 1, 32>}, {transform_indices = @transform_3, window_bounds = array<i64: 328, 32>}]} {
    %c0 = arith.constant 0 : index
    %c0_0 = arith.constant 0 : index
    %0 = vector.load %arg1[%c0, %c0_0] : memref<328x144xf32, #tpu.memory_space<vmem>>, vector<328x144xf32>
    %c0_1 = arith.constant 0 : index
    %c0_2 = arith.constant 0 : index
    %1 = vector.load %arg2[%c0_1, %c0_2] : memref<144x32xf32, #tpu.memory_space<vmem>>, vector<144x32xf32>
    %cst = arith.constant dense<0.000000e+00> : vector<328x32xf32>
    %2 = tpu.matmul %0, %1, %cst {dimension_numbers = #tpu.dot_dimension_numbers<[1], [0], [0], [1], [0, 0, 1, 1], [], []>} : vector<328x144xf32>, vector<144x32xf32>, vector<328x32xf32> -> vector<328x32xf32>
    %c0_3 = arith.constant 0 : index
    %c0_4 = arith.constant 0 : index
    %3 = vector.load %arg3[%c0_3, %c0_4] : memref<1x32xf32, #tpu.memory_space<vmem>>, vector<1x32xf32>
    %4 = vector.broadcast %3 : vector<1x32xf32> to vector<328x32xf32>
    %5 = arith.addf %2, %4 : vector<328x32xf32>
    %cst_5 = arith.constant 0.000000e+00 : f32
    %6 = vector.broadcast %cst_5 : f32 to vector<328x32xf32>
    %7 = arith.maximumf %5, %6 : vector<328x32xf32>
    %c0_6 = arith.constant 0 : index
    %c0_7 = arith.constant 0 : index
    %8 = vector.load %arg4[%c0_6, %c0_7] : memref<328x32xf32, #tpu.memory_space<vmem>>, vector<328x32xf32>
    tpu.vector_store %arg4[%c0_6, %c0_7], %7 {strides = array<i32>} : memref<328x32xf32, #tpu.memory_space<vmem>>, vector<328x32xf32>,
    return
  }
  func.func @transform_0(%arg0: i32) -> (i32, i32) {
    %c0_i32 = arith.constant 0 : i32
    %c0_i32_0 = arith.constant 0 : i32
    return %arg0, %c0_i32 : i32, i32
  }
  func.func @transform_1(%arg0: i32) -> (i32, i32) {
    %c0_i32 = arith.constant 0 : i32
    %c0_i32_0 = arith.constant 0 : i32
    %c0_i32_1 = arith.constant 0 : i32
    return %c0_i32, %c0_i32_0 : i32, i32
  }
  func.func @transform_2(%arg0: i32) -> (i32, i32) {
    %c0_i32 = arith.constant 0 : i32
    %c0_i32_0 = arith.constant 0 : i32
    %c0_i32_1 = arith.constant 0 : i32
    return %c0_i32, %c0_i32_0 : i32, i32
  }
  func.func @transform_3(%arg0: i32) -> (i32, i32) {
    %c0_i32 = arith.constant 0 : i32
    %c0_i32_0 = arith.constant 0 : i32
    return %arg0, %c0_i32 : i32, i32
  }
}

module attributes {stable_mosaic.version = 11 : i64} {
  func.func @_fc_fused_kernel(%arg0: i32, %arg1: memref<8x10304xf32, #tpu.memory_space<vmem>>, %arg2: memref<10304x32xf32, #tpu.memory_space<vmem>>, %arg3: memref<1x32xf32, #tpu.memory_space<vmem>>, %arg4: memref<32x128xf32, #tpu.memory_space<vmem>>, %arg5: memref<1x128xf32, #tpu.memory_space<vmem>>, %arg6: memref<8x128xf32, #tpu.memory_space<vmem>>) attributes {dimension_semantics = [#tpu.dimension_semantics<arbitrary>], iteration_bounds = array<i64: 1>, scalar_prefetch = 0 : i64, scratch_operands = 0 : i64, tpu.core_type = #tpu.core_type<tc>, window_params = [{pipeline_mode = #tpu.pipeline_mode<synchronous>, transform_indices = @transform_0, window_bounds = array<i64: 8, 10304>}, {pipeline_mode = #tpu.pipeline_mode<synchronous>, transform_indices = @transform_1, window_bounds = array<i64: 10304, 32>}, {pipeline_mode = #tpu.pipeline_mode<synchronous>, transform_indices = @transform_2, window_bounds = array<i64: 1, 32>}, {pipeline_mode = #tpu.pipeline_mode<synchronous>, transform_indices = @transform_3, window_bounds = array<i64: 32, 128>}, {pipeline_mode = #tpu.pipeline_mode<synchronous>, transform_indices = @transform_4, window_bounds = array<i64: 1, 128>}, {pipeline_mode = #tpu.pipeline_mode<synchronous>, transform_indices = @transform_5, window_bounds = array<i64: 8, 128>}]} {
    %c0 = arith.constant 0 : index
    %c0_0 = arith.constant 0 : index
    %0 = vector.load %arg1[%c0, %c0_0] : memref<8x10304xf32, #tpu.memory_space<vmem>>, vector<8x10304xf32>
    %c0_1 = arith.constant 0 : index
    %c0_2 = arith.constant 0 : index
    %1 = vector.load %arg2[%c0_1, %c0_2] : memref<10304x32xf32, #tpu.memory_space<vmem>>, vector<10304x32xf32>
    %cst = arith.constant dense<0.000000e+00> : vector<8x32xf32>
    %2 = tpu.matmul %0, %1, %cst {dimension_numbers = #tpu.dot_dimension_numbers<[1], [0], [0], [1], [0, 0, 1, 1], [], []>} : vector<8x10304xf32>, vector<10304x32xf32>, vector<8x32xf32> -> vector<8x32xf32>
    %c0_3 = arith.constant 0 : index
    %c0_4 = arith.constant 0 : index
    %3 = vector.load %arg3[%c0_3, %c0_4] : memref<1x32xf32, #tpu.memory_space<vmem>>, vector<1x32xf32>
    %4 = vector.broadcast %3 : vector<1x32xf32> to vector<8x32xf32>
    %5 = arith.addf %2, %4 : vector<8x32xf32>
    %cst_5 = arith.constant 0.000000e+00 : f32
    %6 = vector.broadcast %cst_5 : f32 to vector<8x32xf32>
    %7 = arith.maximumf %5, %6 : vector<8x32xf32>
    %c0_6 = arith.constant 0 : index
    %c0_7 = arith.constant 0 : index
    %8 = vector.load %arg4[%c0_6, %c0_7] : memref<32x128xf32, #tpu.memory_space<vmem>>, vector<32x128xf32>
    %cst_8 = arith.constant dense<0.000000e+00> : vector<8x128xf32>
    %9 = tpu.matmul %7, %8, %cst_8 {dimension_numbers = #tpu.dot_dimension_numbers<[1], [0], [0], [1], [0, 0, 1, 1], [], []>} : vector<8x32xf32>, vector<32x128xf32>, vector<8x128xf32> -> vector<8x128xf32>
    %c0_9 = arith.constant 0 : index
    %c0_10 = arith.constant 0 : index
    %10 = vector.load %arg5[%c0_9, %c0_10] : memref<1x128xf32, #tpu.memory_space<vmem>>, vector<1x128xf32>
    %11 = vector.broadcast %10 : vector<1x128xf32> to vector<8x128xf32>
    %12 = arith.addf %9, %11 : vector<8x128xf32>
    %c0_11 = arith.constant 0 : index
    %c0_12 = arith.constant 0 : index
    %13 = vector.load %arg6[%c0_11, %c0_12] : memref<8x128xf32, #tpu.memory_space<vmem>>, vector<8x128xf32>
    tpu.vector_store %arg6[%c0_11, %c0_12], %12 {strides = array<i32>} : memref<8x128xf32, #tpu.memory_space<vmem>>, vector<8x128xf32>,
    return
  }
  func.func @transform_0(%arg0: i32) -> (i32, i32) {
    %c0_i32 = arith.constant 0 : i32
    %c0_i32_0 = arith.constant 0 : i32
    %c0_i32_1 = arith.constant 0 : i32
    return %c0_i32, %c0_i32_0 : i32, i32
  }
  func.func @transform_1(%arg0: i32) -> (i32, i32) {
    %c0_i32 = arith.constant 0 : i32
    %c0_i32_0 = arith.constant 0 : i32
    %c0_i32_1 = arith.constant 0 : i32
    return %c0_i32, %c0_i32_0 : i32, i32
  }
  func.func @transform_2(%arg0: i32) -> (i32, i32) {
    %c0_i32 = arith.constant 0 : i32
    %c0_i32_0 = arith.constant 0 : i32
    %c0_i32_1 = arith.constant 0 : i32
    return %c0_i32, %c0_i32_0 : i32, i32
  }
  func.func @transform_3(%arg0: i32) -> (i32, i32) {
    %c0_i32 = arith.constant 0 : i32
    %c0_i32_0 = arith.constant 0 : i32
    %c0_i32_1 = arith.constant 0 : i32
    return %c0_i32, %c0_i32_0 : i32, i32
  }
  func.func @transform_4(%arg0: i32) -> (i32, i32) {
    %c0_i32 = arith.constant 0 : i32
    %c0_i32_0 = arith.constant 0 : i32
    %c0_i32_1 = arith.constant 0 : i32
    return %c0_i32, %c0_i32_0 : i32, i32
  }
  func.func @transform_5(%arg0: i32) -> (i32, i32) {
    %c0_i32 = arith.constant 0 : i32
    %c0_i32_0 = arith.constant 0 : i32
    %c0_i32_1 = arith.constant 0 : i32
    return %c0_i32, %c0_i32_0 : i32, i32
  }
}

</mosaic_0001>

<llo_original>
// kernel: encoder_forward.5
$region0: #{encoder_forward.5}
  #allocation0 [shape = 'u32[]', space=smem, size = 0x4, offset = 0x4, fixed_abs, tag = 'smem constant byte address 0x4 - core index']
  #allocation1 [shape = 'u32[144,128]{1,0:T(1,128)}', space=vmem, size = 0x12000, scoped, tag = 'internal scratch']
  %s0 = inlined_call_operand.vmem [shape: f32[11264,9], index: 0, kind: input, shape index: {}]
  %s1 = inlined_call_operand.vmem [shape: f32[9,8], index: 1, kind: input, shape index: {}]
  %s2 = inlined_call_operand.vmem [shape: f32[1,8], index: 2, kind: input, shape index: {}]
  %s3 = inlined_call_operand.vmem [shape: f32[11264,8], index: 3, kind: output, shape index: {}]
  %s4 = sld [smem:[#allocation0]]
  $region45: #{encoder_forward.5} parent=0
    _
  %s6 = ssub.s32 1, %s4
  %s7 = scalar_select 0, %s6, %s4
  loop: start=0, step=1, limit=13
  $region2: #{encoder_forward.5} parent=0 // loop_pre_header
    _
  $region3: #{encoder_forward.5} parent=0 // loop_header
    %s9 = sphi 0, %s13
    %p10 = scmp.ge.s32.totalorder %s9, 13
    %s19 = sphi 0, %s21
    %s22 = sphi 0, %s19
    %s23 = sphi 0, %s22
    %s39 = sphi 0, %s23
    %s43 = sphi 0, %s43
    %s45 = sphi 0, %s43
    %s46 = sphi 0, %s45
    %s60 = sphi 0, %s46
    %s64 = sphi 0, %s64
    %s66 = sphi 0, %s64
    %s67 = sphi 0, %s66
    %s81 = sphi 0, %s67
    %s87 = sphi 0, %s89
    %s90 = sphi 0, %s87
    %s91 = sphi 0, %s90
    %s107 = sphi 0, %s91
  $region4: #{encoder_forward.5} parent=0 // loop_header_branch
    %12 = sbr.rel (%p10) target = $region8
  $region5: #{encoder_forward.5} parent=0 // loop_body
    %s14 = ssub.s32 %s9, 1
    %s15 = ssub.s32 %s9, 2
    %s16 = sadd.s32 %s9, 1
    %s17 = ssub.s32 %s9, %s16
    %p18 = scmp.eq.s32.totalorder %s17, 0
    %s20 = sadd.s32 %s19, 1
    %s21 = scalar_select %p18, %s19, %s20
    %p24 = pneg %p18
    %p25 = scmp.eq.s32.totalorder %s9, 10
    %p26 = por %p24, %p25
    %p27 = scmp.ne.s32.totalorder %s19, %s22
    %p28 = scmp.eq.s32.totalorder %s9, 0
    %p29 = por %p27, %p28
    %p30 = scmp.ne.s32.totalorder %s19, %s22
    %p31 = scmp.eq.s32.totalorder %s14, 10
    %p32 = por %p30, %p31
    %p33 = scmp.ne.s32.totalorder %s22, %s23
    %p34 = scmp.eq.s32.totalorder %s14, 0
    %p35 = por %p33, %p34
    %p36 = scmp.ne.s32.totalorder %s22, %s23
    %p37 = scmp.eq.s32.totalorder %s15, 10
    %p38 = por %p36, %p37
    %p40 = scmp.ne.s32.totalorder %s23, %s39
    %p41 = scmp.eq.s32.totalorder %s15, 0
    %p42 = por %p40, %p41
    %s44 = sadd.s32 %s43, 1
    %p47 = scmp.eq.s32.totalorder %s9, 10
    %p48 = scmp.ne.s32.totalorder %s43, %s45
    %p49 = scmp.eq.s32.totalorder %s9, 0
    %p50 = por %p48, %p49
    %p51 = scmp.ne.s32.totalorder %s43, %s45
    %p52 = scmp.eq.s32.totalorder %s14, 10
    %p53 = por %p51, %p52
    %p54 = scmp.ne.s32.totalorder %s45, %s46
    %p55 = scmp.eq.s32.totalorder %s14, 0
    %p56 = por %p54, %p55
    %p57 = scmp.ne.s32.totalorder %s45, %s46
    %p58 = scmp.eq.s32.totalorder %s15, 10
    %p59 = por %p57, %p58
    %p61 = scmp.ne.s32.totalorder %s46, %s60
    %p62 = scmp.eq.s32.totalorder %s15, 0
    %p63 = por %p61, %p62
    %s65 = sadd.s32 %s64, 1
    %p68 = scmp.eq.s32.totalorder %s9, 10
    %p69 = scmp.ne.s32.totalorder %s64, %s66
    %p70 = scmp.eq.s32.totalorder %s9, 0
    %p71 = por %p69, %p70
    %p72 = scmp.ne.s32.totalorder %s64, %s66
    %p73 = scmp.eq.s32.totalorder %s14, 10
    %p74 = por %p72, %p73
    %p75 = scmp.ne.s32.totalorder %s66, %s67
    %p76 = scmp.eq.s32.totalorder %s14, 0
    %p77 = por %p75, %p76
    %p78 = scmp.ne.s32.totalorder %s66, %s67
    %p79 = scmp.eq.s32.totalorder %s15, 10
    %p80 = por %p78, %p79
    %p82 = scmp.ne.s32.totalorder %s67, %s81
    %p83 = scmp.eq.s32.totalorder %s15, 0
    %p84 = por %p82, %p83
    %s85 = ssub.s32 %s9, %s16
    %p86 = scmp.eq.s32.totalorder %s85, 0
    %s88 = sadd.s32 %s87, 1
    %s89 = scalar_select %p86, %s87, %s88
    %p92 = pneg %p86
    %p93 = scmp.eq.s32.totalorder %s9, 10
    %p94 = por %p92, %p93
    %p95 = scmp.ne.s32.totalorder %s87, %s90
    %p96 = scmp.eq.s32.totalorder %s9, 0
    %p97 = por %p95, %p96
    %p98 = scmp.ne.s32.totalorder %s87, %s90
    %p99 = scmp.eq.s32.totalorder %s14, 10
    %p100 = por %p98, %p99
    %p101 = scmp.ne.s32.totalorder %s90, %s91
    %p102 = scmp.eq.s32.totalorder %s14, 0
    %p103 = por %p101, %p102
    %p104 = scmp.ne.s32.totalorder %s90, %s91
    %p105 = scmp.eq.s32.totalorder %s15, 10
    %p106 = por %p104, %p105
    %p108 = scmp.ne.s32.totalorder %s91, %s107
    %p109 = scmp.eq.s32.totalorder %s15, 0
    %p110 = por %p108, %p109
    %p111 = scmp.le.s32.totalorder 1, %s9
    %p112 = scmp.lt.s32.totalorder %s9, 12
    %p113 = pnand %p111, %p112
    %p114 = pneg %p113
    // Predicated region
    $region9: #{encoder_forward.5} parent=5 // pred_check
      _
    $region10: #{encoder_forward.5} parent=5 // pred_check_branch
      %116 = sbr.rel (%p113) target = $region12
    $region11: #{encoder_forward.5} parent=5 // pred_region
      %s117 = ssub.s32 %s9, 1
      // Predicated region
      $region13: #{encoder_forward.5} parent=11 // pred_check
        %p118 = pneg %p56
      $region14: #{encoder_forward.5} parent=11 // pred_check_branch
        %120 = sbr.rel (%p118) target = $region16
      $region15: #{encoder_forward.5} parent=11 // pred_region
        _
      $region16: #{encoder_forward.5} parent=11 // pred_fallthru
        _
      // Predicated region
      $region17: #{encoder_forward.5} parent=11 // pred_check
        %p121 = pneg %p77
      $region18: #{encoder_forward.5} parent=11 // pred_check_branch
        %123 = sbr.rel (%p121) target = $region20
      $region19: #{encoder_forward.5} parent=11 // pred_region
        _
      $region20: #{encoder_forward.5} parent=11 // pred_fallthru
        _
    $region12: #{encoder_forward.5} parent=5 // pred_fallthru
      _
    %p124 = scmp.lt.s32.totalorder %s9, 11
    // Predicated region
    $region21: #{encoder_forward.5} parent=5 // pred_check
      %p125 = pneg %p124
    $region22: #{encoder_forward.5} parent=5 // pred_check_branch
      %127 = sbr.rel (%p125) target = $region24
    $region23: #{encoder_forward.5} parent=5 // pred_region
      // Predicated region
      $region25: #{encoder_forward.5} parent=23 // pred_check
        %p128 = pneg %p29
      $region26: #{encoder_forward.5} parent=23 // pred_check_branch
        %130 = sbr.rel (%p128) target = $region28
      $region27: #{encoder_forward.5} parent=23 // pred_region
        %s131 = smul.u32 128, %s9
        %p132 = scmp.lt.s32.totalorder %s131, 1407
        %s133 = scalar_select %p132, %s131, 1407
        %s134 = smul.addr %s133, 8
        %s135 = scalar_lea.vmem %s0, %s134
        %s136 = smul.u32 128, %s9
      $region28: #{encoder_forward.5} parent=23 // pred_fallthru
        _
    $region24: #{encoder_forward.5} parent=5 // pred_fallthru
      _
    %p137 = scmp.le.s32.totalorder 1, %s9
    %p138 = scmp.lt.s32.totalorder %s9, 12
    %p139 = pnand %p137, %p138
    %p140 = pneg %p139
    // Predicated region
    $region29: #{encoder_forward.5} parent=5 // pred_check
      _
    $region30: #{encoder_forward.5} parent=5 // pred_check_branch
      %142 = sbr.rel (%p139) target = $region32
    $region31: #{encoder_forward.5} parent=5 // pred_region
      %s143 = ssub.s32 %s9, 1
      %s144 = smul.u32 128, %s14
      %p145 = scmp.lt.s32.totalorder %s144, 1407
      %s146 = scalar_select %p145, %s144, 1407
      %s147 = smul.addr %s146, 8
      %s148 = scalar_lea.vmem %s0, %s147
      %p149 = pneg %p35
      %p150 = pneg %p32
      %p151 = pneg %p56
      %p152 = pneg %p53
      %p153 = pneg %p77
      %p154 = pneg %p74
      %p155 = pneg %p103
      %p156 = pneg %p100
      %s157 = smul.u32 128, %s14
      %p158 = scmp.lt.s32.totalorder %s157, 1407
      %s159 = scalar_select %p158, %s157, 1407
      %s160 = smul.addr %s159, 8
      %s161 = scalar_lea.vmem %s3, %s160
      %s162 = smul.u32 128, %s14
      %p163 = scmp.lt.s32.totalorder %s162, 1407
      %s164 = scalar_select %p163, %s162, 1407
      %s165 = smul.addr %s164, 8
      %s166 = scalar_lea.vmem %s0, %s165
      %s167 = smul.u32 128, %s14
      %s168 = smul.u32 128, %s14
      %p169 = scmp.lt.s32.totalorder %s168, 1407
      %s170 = scalar_select %p169, %s168, 1407
      %s171 = smul.addr %s170, 8
      %s172 = scalar_lea.vmem %s3, %s171
      %s173 = smul.u32 128, %s14
      %v174 = vld [vmem:[%s166] sm:$0xff]
      %v175 = vld [vmem:[%s166 + $0x8] sm:$0xff]
      %v176 = vld [vmem:[%s166 + $0x10] sm:$0xff]
      %v177 = vld [vmem:[%s166 + $0x18] sm:$0xff]
      %v178 = vld [vmem:[%s166 + $0x20] sm:$0xff]
      %v179 = vld [vmem:[%s166 + $0x28] sm:$0xff]
      %v180 = vld [vmem:[%s166 + $0x30] sm:$0xff]
      %v181 = vld [vmem:[%s166 + $0x38] sm:$0xff]
      %v182 = vld [vmem:[%s166 + $0x40] sm:$0xff]
      %v183 = vld [vmem:[%s166 + $0x48] sm:$0xff]
      %v184 = vld [vmem:[%s166 + $0x50] sm:$0xff]
      %v185 = vld [vmem:[%s166 + $0x58] sm:$0xff]
      %v186 = vld [vmem:[%s166 + $0x60] sm:$0xff]
      %v187 = vld [vmem:[%s166 + $0x68] sm:$0xff]
      %v188 = vld [vmem:[%s166 + $0x70] sm:$0xff]
      %v189 = vld [vmem:[%s166 + $0x78] sm:$0xff]
      %v190 = vld [vmem:[%s166 + $0x80] sm:$0xff]
      %v191 = vld [vmem:[%s166 + $0x88] sm:$0xff]
      %v192 = vld [vmem:[%s166 + $0x90] sm:$0xff]
      %v193 = vld [vmem:[%s166 + $0x98] sm:$0xff]
      %v194 = vld [vmem:[%s166 + $0xa0] sm:$0xff]
      %v195 = vld [vmem:[%s166 + $0xa8] sm:$0xff]
      %v196 = vld [vmem:[%s166 + $0xb0] sm:$0xff]
      %v197 = vld [vmem:[%s166 + $0xb8] sm:$0xff]
      %v198 = vld [vmem:[%s166 + $0xc0] sm:$0xff]
      %v199 = vld [vmem:[%s166 + $0xc8] sm:$0xff]
      %v200 = vld [vmem:[%s166 + $0xd0] sm:$0xff]
      %v201 = vld [vmem:[%s166 + $0xd8] sm:$0xff]
      %v202 = vld [vmem:[%s166 + $0xe0] sm:$0xff]
      %v203 = vld [vmem:[%s166 + $0xe8] sm:$0xff]
      %v204 = vld [vmem:[%s166 + $0xf0] sm:$0xff]
      %v205 = vld [vmem:[%s166 + $0xf8] sm:$0xff]
      %v206 = vld [vmem:[%s166 + $0x100] sm:$0xff]
      %v207 = vld [vmem:[%s166 + $0x108] sm:$0xff]
      %v208 = vld [vmem:[%s166 + $0x110] sm:$0xff]
      %v209 = vld [vmem:[%s166 + $0x118] sm:$0xff]
      %v210 = vld [vmem:[%s166 + $0x120] sm:$0xff]
      %v211 = vld [vmem:[%s166 + $0x128] sm:$0xff]
      %v212 = vld [vmem:[%s166 + $0x130] sm:$0xff]
      %v213 = vld [vmem:[%s166 + $0x138] sm:$0xff]
      %v214 = vld [vmem:[%s166 + $0x140] sm:$0xff]
      %v215 = vld [vmem:[%s166 + $0x148] sm:$0xff]
      %v216 = vld [vmem:[%s166 + $0x150] sm:$0xff]
      %v217 = vld [vmem:[%s166 + $0x158] sm:$0xff]
      %v218 = vld [vmem:[%s166 + $0x160] sm:$0xff]
      %v219 = vld [vmem:[%s166 + $0x168] sm:$0xff]
      %v220 = vld [vmem:[%s166 + $0x170] sm:$0xff]
      %v221 = vld [vmem:[%s166 + $0x178] sm:$0xff]
      %v222 = vld [vmem:[%s166 + $0x180] sm:$0xff]
      %v223 = vld [vmem:[%s166 + $0x188] sm:$0xff]
      %v224 = vld [vmem:[%s166 + $0x190] sm:$0xff]
      %v225 = vld [vmem:[%s166 + $0x198] sm:$0xff]
      %v226 = vld [vmem:[%s166 + $0x1a0] sm:$0xff]
      %v227 = vld [vmem:[%s166 + $0x1a8] sm:$0xff]
      %v228 = vld [vmem:[%s166 + $0x1b0] sm:$0xff]
      %v229 = vld [vmem:[%s166 + $0x1b8] sm:$0xff]
      %v230 = vld [vmem:[%s166 + $0x1c0] sm:$0xff]
      %v231 = vld [vmem:[%s166 + $0x1c8] sm:$0xff]
      %v232 = vld [vmem:[%s166 + $0x1d0] sm:$0xff]
      %v233 = vld [vmem:[%s166 + $0x1d8] sm:$0xff]
      %v234 = vld [vmem:[%s166 + $0x1e0] sm:$0xff]
      %v235 = vld [vmem:[%s166 + $0x1e8] sm:$0xff]
      %v236 = vld [vmem:[%s166 + $0x1f0] sm:$0xff]
      %v237 = vld [vmem:[%s166 + $0x1f8] sm:$0xff]
      %v238 = vld [vmem:[%s166 + $0x200] sm:$0xff]
      %v239 = vld [vmem:[%s166 + $0x208] sm:$0xff]
      %v240 = vld [vmem:[%s166 + $0x210] sm:$0xff]
      %v241 = vld [vmem:[%s166 + $0x218] sm:$0xff]
      %v242 = vld [vmem:[%s166 + $0x220] sm:$0xff]
      %v243 = vld [vmem:[%s166 + $0x228] sm:$0xff]
      %v244 = vld [vmem:[%s166 + $0x230] sm:$0xff]
      %v245 = vld [vmem:[%s166 + $0x238] sm:$0xff]
      %v246 = vld [vmem:[%s166 + $0x240] sm:$0xff]
      %v247 = vld [vmem:[%s166 + $0x248] sm:$0xff]
      %v248 = vld [vmem:[%s166 + $0x250] sm:$0xff]
      %v249 = vld [vmem:[%s166 + $0x258] sm:$0xff]
      %v250 = vld [vmem:[%s166 + $0x260] sm:$0xff]
      %v251 = vld [vmem:[%s166 + $0x268] sm:$0xff]
      %v252 = vld [vmem:[%s166 + $0x270] sm:$0xff]
      %v253 = vld [vmem:[%s166 + $0x278] sm:$0xff]
      %v254 = vld [vmem:[%s166 + $0x280] sm:$0xff]
      %v255 = vld [vmem:[%s166 + $0x288] sm:$0xff]
      %v256 = vld [vmem:[%s166 + $0x290] sm:$0xff]
      %v257 = vld [vmem:[%s166 + $0x298] sm:$0xff]
      %v258 = vld [vmem:[%s166 + $0x2a0] sm:$0xff]
      %v259 = vld [vmem:[%s166 + $0x2a8] sm:$0xff]
      %v260 = vld [vmem:[%s166 + $0x2b0] sm:$0xff]
      %v261 = vld [vmem:[%s166 + $0x2b8] sm:$0xff]
      %v262 = vld [vmem:[%s166 + $0x2c0] sm:$0xff]
      %v263 = vld [vmem:[%s166 + $0x2c8] sm:$0xff]
      %v264 = vld [vmem:[%s166 + $0x2d0] sm:$0xff]
      %v265 = vld [vmem:[%s166 + $0x2d8] sm:$0xff]
      %v266 = vld [vmem:[%s166 + $0x2e0] sm:$0xff]
      %v267 = vld [vmem:[%s166 + $0x2e8] sm:$0xff]
      %v268 = vld [vmem:[%s166 + $0x2f0] sm:$0xff]
      %v269 = vld [vmem:[%s166 + $0x2f8] sm:$0xff]
      %v270 = vld [vmem:[%s166 + $0x300] sm:$0xff]
      %v271 = vld [vmem:[%s166 + $0x308] sm:$0xff]
      %v272 = vld [vmem:[%s166 + $0x310] sm:$0xff]
      %v273 = vld [vmem:[%s166 + $0x318] sm:$0xff]
      %v274 = vld [vmem:[%s166 + $0x320] sm:$0xff]
      %v275 = vld [vmem:[%s166 + $0x328] sm:$0xff]
      %v276 = vld [vmem:[%s166 + $0x330] sm:$0xff]
      %v277 = vld [vmem:[%s166 + $0x338] sm:$0xff]
      %v278 = vld [vmem:[%s166 + $0x340] sm:$0xff]
      %v279 = vld [vmem:[%s166 + $0x348] sm:$0xff]
      %v280 = vld [vmem:[%s166 + $0x350] sm:$0xff]
      %v281 = vld [vmem:[%s166 + $0x358] sm:$0xff]
      %v282 = vld [vmem:[%s166 + $0x360] sm:$0xff]
      %v283 = vld [vmem:[%s166 + $0x368] sm:$0xff]
      %v284 = vld [vmem:[%s166 + $0x370] sm:$0xff]
      %v285 = vld [vmem:[%s166 + $0x378] sm:$0xff]
      %v286 = vld [vmem:[%s166 + $0x380] sm:$0xff]
      %v287 = vld [vmem:[%s166 + $0x388] sm:$0xff]
      %v288 = vld [vmem:[%s166 + $0x390] sm:$0xff]
      %v289 = vld [vmem:[%s166 + $0x398] sm:$0xff]
      %v290 = vld [vmem:[%s166 + $0x3a0] sm:$0xff]
      %v291 = vld [vmem:[%s166 + $0x3a8] sm:$0xff]
      %v292 = vld [vmem:[%s166 + $0x3b0] sm:$0xff]
      %v293 = vld [vmem:[%s166 + $0x3b8] sm:$0xff]
      %v294 = vld [vmem:[%s166 + $0x3c0] sm:$0xff]
      %v295 = vld [vmem:[%s166 + $0x3c8] sm:$0xff]
      %v296 = vld [vmem:[%s166 + $0x3d0] sm:$0xff]
      %v297 = vld [vmem:[%s166 + $0x3d8] sm:$0xff]
      %v298 = vld [vmem:[%s166 + $0x3e0] sm:$0xff]
      %v299 = vld [vmem:[%s166 + $0x3e8] sm:$0xff]
      %v300 = vld [vmem:[%s166 + $0x3f0] sm:$0xff]
      %v301 = vld [vmem:[%s166 + $0x3f8] sm:$0xff]
      %v302 = vld [vmem:[%s1] sm:$0xff]
      %v303 = vld [vmem:[%s1 + $0x8] sm:$0x1]
      %v304 = vld [vmem:[%s2] sm:$0x1]
      %v306 = vlaneseq
      %v307 = vshrl.u32 %v306, 7
      %v308 = vsub.s32 0, %v307
      %v309 = vrot.slane %v304, %v308
      %vm311 = vcmask 72704
      %v313 = vsel %vm311, %v174, 0
      %v316 = vsel %vm311, %v175, 0
      %v319 = vsel %vm311, %v176, 0
      %v322 = vsel %vm311, %v177, 0
      %v325 = vsel %vm311, %v178, 0
      %v328 = vsel %vm311, %v179, 0
      %v331 = vsel %vm311, %v180, 0
      %v334 = vsel %vm311, %v181, 0
      %v337 = vsel %vm311, %v182, 0
      %v340 = vsel %vm311, %v183, 0
      %v343 = vsel %vm311, %v184, 0
      %v346 = vsel %vm311, %v185, 0
      %v349 = vsel %vm311, %v186, 0
      %v352 = vsel %vm311, %v187, 0
      %v355 = vsel %vm311, %v188, 0
      %v358 = vsel %vm311, %v189, 0
      %v361 = vsel %vm311, %v190, 0
      %v364 = vsel %vm311, %v191, 0
      %v367 = vsel %vm311, %v192, 0
      %v370 = vsel %vm311, %v193, 0
      %v373 = vsel %vm311, %v194, 0
      %v376 = vsel %vm311, %v195, 0
      %v379 = vsel %vm311, %v196, 0
      %v382 = vsel %vm311, %v197, 0
      %v385 = vsel %vm311, %v198, 0
      %v388 = vsel %vm311, %v199, 0
      %v391 = vsel %vm311, %v200, 0
      %v394 = vsel %vm311, %v201, 0
      %v397 = vsel %vm311, %v202, 0
      %v400 = vsel %vm311, %v203, 0
      %v403 = vsel %vm311, %v204, 0
      %v406 = vsel %vm311, %v205, 0
      %v409 = vsel %vm311, %v206, 0
      %v412 = vsel %vm311, %v207, 0
      %v415 = vsel %vm311, %v208, 0
      %v418 = vsel %vm311, %v209, 0
      %v421 = vsel %vm311, %v210, 0
      %v424 = vsel %vm311, %v211, 0
      %v427 = vsel %vm311, %v212, 0
      %v430 = vsel %vm311, %v213, 0
      %v433 = vsel %vm311, %v214, 0
      %v436 = vsel %vm311, %v215, 0
      %v439 = vsel %vm311, %v216, 0
      %v442 = vsel %vm311, %v217, 0
      %v445 = vsel %vm311, %v218, 0
      %v448 = vsel %vm311, %v219, 0
      %v451 = vsel %vm311, %v220, 0
      %v454 = vsel %vm311, %v221, 0
      %v457 = vsel %vm311, %v222, 0
      %v460 = vsel %vm311, %v223, 0
      %v463 = vsel %vm311, %v224, 0
      %v466 = vsel %vm311, %v225, 0
      %v469 = vsel %vm311, %v226, 0
      %v472 = vsel %vm311, %v227, 0
      %v475 = vsel %vm311, %v228, 0
      %v478 = vsel %vm311, %v229, 0
      %v481 = vsel %vm311, %v230, 0
      %v484 = vsel %vm311, %v231, 0
      %v487 = vsel %vm311, %v232, 0
      %v490 = vsel %vm311, %v233, 0
      %v493 = vsel %vm311, %v234, 0
      %v496 = vsel %vm311, %v235, 0
      %v499 = vsel %vm311, %v236, 0
      %v502 = vsel %vm311, %v237, 0
      %v505 = vsel %vm311, %v238, 0
      %v508 = vsel %vm311, %v239, 0
      %v511 = vsel %vm311, %v240, 0
      %v514 = vsel %vm311, %v241, 0
      %v517 = vsel %vm311, %v242, 0
      %v520 = vsel %vm311, %v243, 0
      %v523 = vsel %vm311, %v244, 0
      %v526 = vsel %vm311, %v245, 0
      %v529 = vsel %vm311, %v246, 0
      %v532 = vsel %vm311, %v247, 0
      %v535 = vsel %vm311, %v248, 0
      %v538 = vsel %vm311, %v249, 0
      %v541 = vsel %vm311, %v250, 0
      %v544 = vsel %vm311, %v251, 0
      %v547 = vsel %vm311, %v252, 0
      %v550 = vsel %vm311, %v253, 0
      %v553 = vsel %vm311, %v254, 0
      %v556 = vsel %vm311, %v255, 0
      %v559 = vsel %vm311, %v256, 0
      %v562 = vsel %vm311, %v257, 0
      %v565 = vsel %vm311, %v258, 0
      %v568 = vsel %vm311, %v259, 0
      %v571 = vsel %vm311, %v260, 0
      %v574 = vsel %vm311, %v261, 0
      %v577 = vsel %vm311, %v262, 0
      %v580 = vsel %vm311, %v263, 0
      %v583 = vsel %vm311, %v264, 0
      %v586 = vsel %vm311, %v265, 0
      %v589 = vsel %vm311, %v266, 0
      %v592 = vsel %vm311, %v267, 0
      %v595 = vsel %vm311, %v268, 0
      %v598 = vsel %vm311, %v269, 0
      %v601 = vsel %vm311, %v270, 0
      %v604 = vsel %vm311, %v271, 0
      %v607 = vsel %vm311, %v272, 0
      %v610 = vsel %vm311, %v273, 0
      %v613 = vsel %vm311, %v274, 0
      %v616 = vsel %vm311, %v275, 0
      %v619 = vsel %vm311, %v276, 0
      %v622 = vsel %vm311, %v277, 0
      %v625 = vsel %vm311, %v278, 0
      %v628 = vsel %vm311, %v279, 0
      %v631 = vsel %vm311, %v280, 0
      %v634 = vsel %vm311, %v281, 0
      %v637 = vsel %vm311, %v282, 0
      %v640 = vsel %vm311, %v283, 0
      %v643 = vsel %vm311, %v284, 0
      %v646 = vsel %vm311, %v285, 0
      %v649 = vsel %vm311, %v286, 0
      %v652 = vsel %vm311, %v287, 0
      %v655 = vsel %vm311, %v288, 0
      %v658 = vsel %vm311, %v289, 0
      %v661 = vsel %vm311, %v290, 0
      %v664 = vsel %vm311, %v291, 0
      %v667 = vsel %vm311, %v292, 0
      %v670 = vsel %vm311, %v293, 0
      %v673 = vsel %vm311, %v294, 0
      %v676 = vsel %vm311, %v295, 0
      %v679 = vsel %vm311, %v296, 0
      %v682 = vsel %vm311, %v297, 0
      %v685 = vsel %vm311, %v298, 0
      %v688 = vsel %vm311, %v299, 0
      %v691 = vsel %vm311, %v300, 0
      %v694 = vsel %vm311, %v301, 0
      %vm696 = vcmask 1040384
      %v698 = vsel %vm696, %v303, 0
      %700 = vmatprep.subr.mxu0 0.0
      %701 = vmatpush1.msra.mxu0 0.0
      %702 = vmatprep.subr.mxu0 0.0
      %703 = vmatpush1.msra.mxu0 0.0
      %704 = vmatprep.subr.mxu0 0.0
      %705 = vmatpush1.msra.mxu0 0.0
      %706 = vmatprep.subr.mxu0 0.0
      %707 = vmatpush1.msra.mxu0 0.0
      %708 = vmatprep.subr.mxu0 0.0
      %709 = vmatpush1.msra.mxu0 0.0
      %710 = vmatprep.subr.mxu0 0.0
      %711 = vmatpush1.msra.mxu0 0.0
      %712 = vmatprep.subr.mxu0 0.0
      %713 = vmatpush1.msra.mxu0 0.0
      %714 = vmatprep.subr.mxu0 0.0
      %715 = vmatpush1.msra.mxu0 0.0
      %716 = vmatprep.subr.mxu0 0.0
      %717 = vmatpush1.msra.mxu0 0.0
      %718 = vmatprep.subr.mxu0 0.0
      %719 = vmatpush1.msra.mxu0 0.0
      %720 = vmatprep.subr.mxu0 0.0
      %721 = vmatpush1.msra.mxu0 0.0
      %722 = vmatprep.subr.mxu0 0.0
      %723 = vmatpush1.msra.mxu0 0.0
      %724 = vmatprep.subr.mxu0 0.0
      %725 = vmatpush1.msra.mxu0 0.0
      %726 = vmatprep.subr.mxu0 0.0
      %727 = vmatpush1.msra.mxu0 0.0
      %728 = vmatprep.subr.mxu0 0.0
      %729 = vmatpush1.msra.mxu0 %v698
      %730 = vmatprep.subr.mxu0 0.0
      %731 = vmatpush1.msra.mxu0 %v302
      %732 = vmatprep.subr.mxu0 0.0
      %733 = vmatpush2.msra.mxu0 0.0
      %734 = vmatprep.subr.mxu0 0.0
      %735 = vmatpush2.msra.mxu0 0.0
      %736 = vmatprep.subr.mxu0 0.0
      %737 = vmatpush2.msra.mxu0 0.0
      %738 = vmatprep.subr.mxu0 0.0
      %739 = vmatpush2.msra.mxu0 0.0
      %740 = vmatprep.subr.mxu0 0.0
      %741 = vmatpush2.msra.mxu0 0.0
      %742 = vmatprep.subr.mxu0 0.0
      %743 = vmatpush2.msra.mxu0 0.0
      %744 = vmatprep.subr.mxu0 0.0
      %745 = vmatpush2.msra.mxu0 0.0
      %746 = vmatprep.subr.mxu0 0.0
      %747 = vmatpush2.msra.mxu0 0.0
      %748 = vmatprep.subr.mxu0 0.0
      %749 = vmatpush2.msra.mxu0 0.0
      %750 = vmatprep.subr.mxu0 0.0
      %751 = vmatpush2.msra.mxu0 0.0
      %752 = vmatprep.subr.mxu0 0.0
      %753 = vmatpush2.msra.mxu0 0.0
      %754 = vmatprep.subr.mxu0 0.0
      %755 = vmatpush2.msra.mxu0 0.0
      %756 = vmatprep.subr.mxu0 0.0
      %757 = vmatpush2.msra.mxu0 0.0
      %758 = vmatprep.subr.mxu0 0.0
      %759 = vmatpush2.msra.mxu0 0.0
      %760 = vmatprep.subr.mxu0 0.0
      %761 = vmatpush2.msra.mxu0 0.0
      %762 = vmatprep.subr.mxu0 0.0
      %763 = vmatpush2.msra.mxu0 0.0
      %764 = vmatprep.mubr.f32.mxu0 0.0
      %765 = vmatmul.mubr.f32.gmra.mxu0 %v313
      %v766 = vpop.f32.mrf.mxu0
      %v767 = vadd.f32 %v309, %v766
      %v768 = vpop.f32.mrf.mxu0
      %769 = vmatprep.mubr.f32.mxu0 0.0
      %770 = vmatmul.mubr.f32.gmra.mxu0 %v316
      %v771 = vpop.f32.mrf.mxu0
      %v772 = vadd.f32 %v309, %v771
      %v773 = vpop.f32.mrf.mxu0
      %774 = vmatprep.mubr.f32.mxu0 0.0
      %775 = vmatmul.mubr.f32.gmra.mxu0 %v319
      %v776 = vpop.f32.mrf.mxu0
      %v777 = vadd.f32 %v309, %v776
      %v778 = vpop.f32.mrf.mxu0
      %779 = vmatprep.mubr.f32.mxu0 0.0
      %780 = vmatmul.mubr.f32.gmra.mxu0 %v322
      %v781 = vpop.f32.mrf.mxu0
      %v782 = vadd.f32 %v309, %v781
      %v783 = vpop.f32.mrf.mxu0
      %784 = vmatprep.mubr.f32.mxu0 0.0
      %785 = vmatmul.mubr.f32.gmra.mxu0 %v325
      %v786 = vpop.f32.mrf.mxu0
      %v787 = vadd.f32 %v309, %v786
      %v788 = vpop.f32.mrf.mxu0
      %789 = vmatprep.mubr.f32.mxu0 0.0
      %790 = vmatmul.mubr.f32.gmra.mxu0 %v328
      %v791 = vpop.f32.mrf.mxu0
      %v792 = vadd.f32 %v309, %v791
      %v793 = vpop.f32.mrf.mxu0
      %794 = vmatprep.mubr.f32.mxu0 0.0
      %795 = vmatmul.mubr.f32.gmra.mxu0 %v331
      %v796 = vpop.f32.mrf.mxu0
      %v797 = vadd.f32 %v309, %v796
      %v798 = vpop.f32.mrf.mxu0
      %799 = vmatprep.mubr.f32.mxu0 0.0
      %800 = vmatmul.mubr.f32.gmra.mxu0 %v334
      %v801 = vpop.f32.mrf.mxu0
      %v802 = vadd.f32 %v309, %v801
      %v803 = vpop.f32.mrf.mxu0
      %804 = vmatprep.mubr.f32.mxu0 0.0
      %805 = vmatmul.mubr.f32.gmra.mxu0 %v337
      %v806 = vpop.f32.mrf.mxu0
      %v807 = vadd.f32 %v309, %v806
      %v808 = vpop.f32.mrf.mxu0
      %809 = vmatprep.mubr.f32.mxu0 0.0
      %810 = vmatmul.mubr.f32.gmra.mxu0 %v340
      %v811 = vpop.f32.mrf.mxu0
      %v812 = vadd.f32 %v309, %v811
      %v813 = vpop.f32.mrf.mxu0
      %814 = vmatprep.mubr.f32.mxu0 0.0
      %815 = vmatmul.mubr.f32.gmra.mxu0 %v343
      %v816 = vpop.f32.mrf.mxu0
      %v817 = vadd.f32 %v309, %v816
      %v818 = vpop.f32.mrf.mxu0
      %819 = vmatprep.mubr.f32.mxu0 0.0
      %820 = vmatmul.mubr.f32.gmra.mxu0 %v346
      %v821 = vpop.f32.mrf.mxu0
      %v822 = vadd.f32 %v309, %v821
      %v823 = vpop.f32.mrf.mxu0
      %824 = vmatprep.mubr.f32.mxu0 0.0
      %825 = vmatmul.mubr.f32.gmra.mxu0 %v349
      %v826 = vpop.f32.mrf.mxu0
      %v827 = vadd.f32 %v309, %v826
      %v828 = vpop.f32.mrf.mxu0
      %829 = vmatprep.mubr.f32.mxu0 0.0
      %830 = vmatmul.mubr.f32.gmra.mxu0 %v352
      %v831 = vpop.f32.mrf.mxu0
      %v832 = vadd.f32 %v309, %v831
      %v833 = vpop.f32.mrf.mxu0
      %834 = vmatprep.mubr.f32.mxu0 0.0
      %835 = vmatmul.mubr.f32.gmra.mxu0 %v355
      %v836 = vpop.f32.mrf.mxu0
      %v837 = vadd.f32 %v309, %v836
      %v838 = vpop.f32.mrf.mxu0
      %839 = vmatprep.mubr.f32.mxu0 0.0
      %840 = vmatmul.mubr.f32.gmra.mxu0 %v358
      %v841 = vpop.f32.mrf.mxu0
      %v842 = vadd.f32 %v309, %v841
      %v843 = vpop.f32.mrf.mxu0
      %844 = vmatprep.mubr.f32.mxu0 0.0
      %845 = vmatmul.mubr.f32.gmra.mxu0 %v361
      %v846 = vpop.f32.mrf.mxu0
      %v847 = vadd.f32 %v309, %v846
      %v848 = vpop.f32.mrf.mxu0
      %849 = vmatprep.mubr.f32.mxu0 0.0
      %850 = vmatmul.mubr.f32.gmra.mxu0 %v364
      %v851 = vpop.f32.mrf.mxu0
      %v852 = vadd.f32 %v309, %v851
      %v853 = vpop.f32.mrf.mxu0
      %854 = vmatprep.mubr.f32.mxu0 0.0
      %855 = vmatmul.mubr.f32.gmra.mxu0 %v367
      %v856 = vpop.f32.mrf.mxu0
      %v857 = vadd.f32 %v309, %v856
      %v858 = vpop.f32.mrf.mxu0
      %859 = vmatprep.mubr.f32.mxu0 0.0
      %860 = vmatmul.mubr.f32.gmra.mxu0 %v370
      %v861 = vpop.f32.mrf.mxu0
      %v862 = vadd.f32 %v309, %v861
      %v863 = vpop.f32.mrf.mxu0
      %864 = vmatprep.mubr.f32.mxu0 0.0
      %865 = vmatmul.mubr.f32.gmra.mxu0 %v373
      %v866 = vpop.f32.mrf.mxu0
      %v867 = vadd.f32 %v309, %v866
      %v868 = vpop.f32.mrf.mxu0
      %869 = vmatprep.mubr.f32.mxu0 0.0
      %870 = vmatmul.mubr.f32.gmra.mxu0 %v376
      %v871 = vpop.f32.mrf.mxu0
      %v872 = vadd.f32 %v309, %v871
      %v873 = vpop.f32.mrf.mxu0
      %874 = vmatprep.mubr.f32.mxu0 0.0
      %875 = vmatmul.mubr.f32.gmra.mxu0 %v379
      %v876 = vpop.f32.mrf.mxu0
      %v877 = vadd.f32 %v309, %v876
      %v878 = vpop.f32.mrf.mxu0
      %879 = vmatprep.mubr.f32.mxu0 0.0
      %880 = vmatmul.mubr.f32.gmra.mxu0 %v382
      %v881 = vpop.f32.mrf.mxu0
      %v882 = vadd.f32 %v309, %v881
      %v883 = vpop.f32.mrf.mxu0
      %884 = vmatprep.mubr.f32.mxu0 0.0
      %885 = vmatmul.mubr.f32.gmra.mxu0 %v385
      %v886 = vpop.f32.mrf.mxu0
      %v887 = vadd.f32 %v309, %v886
      %v888 = vpop.f32.mrf.mxu0
      %889 = vmatprep.mubr.f32.mxu0 0.0
      %890 = vmatmul.mubr.f32.gmra.mxu0 %v388
      %v891 = vpop.f32.mrf.mxu0
      %v892 = vadd.f32 %v309, %v891
      %v893 = vpop.f32.mrf.mxu0
      %894 = vmatprep.mubr.f32.mxu0 0.0
      %895 = vmatmul.mubr.f32.gmra.mxu0 %v391
      %v896 = vpop.f32.mrf.mxu0
      %v897 = vadd.f32 %v309, %v896
      %v898 = vpop.f32.mrf.mxu0
      %899 = vmatprep.mubr.f32.mxu0 0.0
      %900 = vmatmul.mubr.f32.gmra.mxu0 %v394
      %v901 = vpop.f32.mrf.mxu0
      %v902 = vadd.f32 %v309, %v901
      %v903 = vpop.f32.mrf.mxu0
      %904 = vmatprep.mubr.f32.mxu0 0.0
      %905 = vmatmul.mubr.f32.gmra.mxu0 %v397
      %v906 = vpop.f32.mrf.mxu0
      %v907 = vadd.f32 %v309, %v906
      %v908 = vpop.f32.mrf.mxu0
      %909 = vmatprep.mubr.f32.mxu0 0.0
      %910 = vmatmul.mubr.f32.gmra.mxu0 %v400
      %v911 = vpop.f32.mrf.mxu0
      %v912 = vadd.f32 %v309, %v911
      %v913 = vpop.f32.mrf.mxu0
      %914 = vmatprep.mubr.f32.mxu0 0.0
      %915 = vmatmul.mubr.f32.gmra.mxu0 %v403
      %v916 = vpop.f32.mrf.mxu0
      %v917 = vadd.f32 %v309, %v916
      %v918 = vpop.f32.mrf.mxu0
      %919 = vmatprep.mubr.f32.mxu0 0.0
      %920 = vmatmul.mubr.f32.gmra.mxu0 %v406
      %v921 = vpop.f32.mrf.mxu0
      %v922 = vadd.f32 %v309, %v921
      %v923 = vpop.f32.mrf.mxu0
      %924 = vmatprep.mubr.f32.mxu0 0.0
      %925 = vmatmul.mubr.f32.gmra.mxu0 %v409
      %v926 = vpop.f32.mrf.mxu0
      %v927 = vadd.f32 %v309, %v926
      %v928 = vpop.f32.mrf.mxu0
      %929 = vmatprep.mubr.f32.mxu0 0.0
      %930 = vmatmul.mubr.f32.gmra.mxu0 %v412
      %v931 = vpop.f32.mrf.mxu0
      %v932 = vadd.f32 %v309, %v931
      %v933 = vpop.f32.mrf.mxu0
      %934 = vmatprep.mubr.f32.mxu0 0.0
      %935 = vmatmul.mubr.f32.gmra.mxu0 %v415
      %v936 = vpop.f32.mrf.mxu0
      %v937 = vadd.f32 %v309, %v936
      %v938 = vpop.f32.mrf.mxu0
      %939 = vmatprep.mubr.f32.mxu0 0.0
      %940 = vmatmul.mubr.f32.gmra.mxu0 %v418
      %v941 = vpop.f32.mrf.mxu0
      %v942 = vadd.f32 %v309, %v941
      %v943 = vpop.f32.mrf.mxu0
      %944 = vmatprep.mubr.f32.mxu0 0.0
      %945 = vmatmul.mubr.f32.gmra.mxu0 %v421
      %v946 = vpop.f32.mrf.mxu0
      %v947 = vadd.f32 %v309, %v946
      %v948 = vpop.f32.mrf.mxu0
      %949 = vmatprep.mubr.f32.mxu0 0.0
      %950 = vmatmul.mubr.f32.gmra.mxu0 %v424
      %v951 = vpop.f32.mrf.mxu0
      %v952 = vadd.f32 %v309, %v951
      %v953 = vpop.f32.mrf.mxu0
      %954 = vmatprep.mubr.f32.mxu0 0.0
      %955 = vmatmul.mubr.f32.gmra.mxu0 %v427
      %v956 = vpop.f32.mrf.mxu0
      %v957 = vadd.f32 %v309, %v956
      %v958 = vpop.f32.mrf.mxu0
      %959 = vmatprep.mubr.f32.mxu0 0.0
      %960 = vmatmul.mubr.f32.gmra.mxu0 %v430
      %v961 = vpop.f32.mrf.mxu0
      %v962 = vadd.f32 %v309, %v961
      %v963 = vpop.f32.mrf.mxu0
      %964 = vmatprep.mubr.f32.mxu0 0.0
      %965 = vmatmul.mubr.f32.gmra.mxu0 %v433
      %v966 = vpop.f32.mrf.mxu0
      %v967 = vadd.f32 %v309, %v966
      %v968 = vpop.f32.mrf.mxu0
      %969 = vmatprep.mubr.f32.mxu0 0.0
      %970 = vmatmul.mubr.f32.gmra.mxu0 %v436
      %v971 = vpop.f32.mrf.mxu0
      %v972 = vadd.f32 %v309, %v971
      %v973 = vpop.f32.mrf.mxu0
      %974 = vmatprep.mubr.f32.mxu0 0.0
      %975 = vmatmul.mubr.f32.gmra.mxu0 %v439
      %v976 = vpop.f32.mrf.mxu0
      %v977 = vadd.f32 %v309, %v976
      %v978 = vpop.f32.mrf.mxu0
      %979 = vmatprep.mubr.f32.mxu0 0.0
      %980 = vmatmul.mubr.f32.gmra.mxu0 %v442
      %v981 = vpop.f32.mrf.mxu0
      %v982 = vadd.f32 %v309, %v981
      %v983 = vpop.f32.mrf.mxu0
      %984 = vmatprep.mubr.f32.mxu0 0.0
      %985 = vmatmul.mubr.f32.gmra.mxu0 %v445
      %v986 = vpop.f32.mrf.mxu0
      %v987 = vadd.f32 %v309, %v986
      %v988 = vpop.f32.mrf.mxu0
      %989 = vmatprep.mubr.f32.mxu0 0.0
      %990 = vmatmul.mubr.f32.gmra.mxu0 %v448
      %v991 = vpop.f32.mrf.mxu0
      %v992 = vadd.f32 %v309, %v991
      %v993 = vpop.f32.mrf.mxu0
      %994 = vmatprep.mubr.f32.mxu0 0.0
      %995 = vmatmul.mubr.f32.gmra.mxu0 %v451
      %v996 = vpop.f32.mrf.mxu0
      %v997 = vadd.f32 %v309, %v996
      %v998 = vpop.f32.mrf.mxu0
      %999 = vmatprep.mubr.f32.mxu0 0.0
      %1000 = vmatmul.mubr.f32.gmra.mxu0 %v454
      %v1001 = vpop.f32.mrf.mxu0
      %v1002 = vadd.f32 %v309, %v1001
      %v1003 = vpop.f32.mrf.mxu0
      %1004 = vmatprep.mubr.f32.mxu0 0.0
      %1005 = vmatmul.mubr.f32.gmra.mxu0 %v457
      %v1006 = vpop.f32.mrf.mxu0
      %v1007 = vadd.f32 %v309, %v1006
      %v1008 = vpop.f32.mrf.mxu0
      %1009 = vmatprep.mubr.f32.mxu0 0.0
      %1010 = vmatmul.mubr.f32.gmra.mxu0 %v460
      %v1011 = vpop.f32.mrf.mxu0
      %v1012 = vadd.f32 %v309, %v1011
      %v1013 = vpop.f32.mrf.mxu0
      %1014 = vmatprep.mubr.f32.mxu0 0.0
      %1015 = vmatmul.mubr.f32.gmra.mxu0 %v463
      %v1016 = vpop.f32.mrf.mxu0
      %v1017 = vadd.f32 %v309, %v1016
      %v1018 = vpop.f32.mrf.mxu0
      %1019 = vmatprep.mubr.f32.mxu0 0.0
      %1020 = vmatmul.mubr.f32.gmra.mxu0 %v466
      %v1021 = vpop.f32.mrf.mxu0
      %v1022 = vadd.f32 %v309, %v1021
      %v1023 = vpop.f32.mrf.mxu0
      %1024 = vmatprep.mubr.f32.mxu0 0.0
      %1025 = vmatmul.mubr.f32.gmra.mxu0 %v469
      %v1026 = vpop.f32.mrf.mxu0
      %v1027 = vadd.f32 %v309, %v1026
      %v1028 = vpop.f32.mrf.mxu0
      %1029 = vmatprep.mubr.f32.mxu0 0.0
      %1030 = vmatmul.mubr.f32.gmra.mxu0 %v472
      %v1031 = vpop.f32.mrf.mxu0
      %v1032 = vadd.f32 %v309, %v1031
      %v1033 = vpop.f32.mrf.mxu0
      %1034 = vmatprep.mubr.f32.mxu0 0.0
      %1035 = vmatmul.mubr.f32.gmra.mxu0 %v475
      %v1036 = vpop.f32.mrf.mxu0
      %v1037 = vadd.f32 %v309, %v1036
      %v1038 = vpop.f32.mrf.mxu0
      %1039 = vmatprep.mubr.f32.mxu0 0.0
      %1040 = vmatmul.mubr.f32.gmra.mxu0 %v478
      %v1041 = vpop.f32.mrf.mxu0
      %v1042 = vadd.f32 %v309, %v1041
      %v1043 = vpop.f32.mrf.mxu0
      %1044 = vmatprep.mubr.f32.mxu0 0.0
      %1045 = vmatmul.mubr.f32.gmra.mxu0 %v481
      %v1046 = vpop.f32.mrf.mxu0
      %v1047 = vadd.f32 %v309, %v1046
      %v1048 = vpop.f32.mrf.mxu0
      %1049 = vmatprep.mubr.f32.mxu0 0.0
      %1050 = vmatmul.mubr.f32.gmra.mxu0 %v484
      %v1051 = vpop.f32.mrf.mxu0
      %v1052 = vadd.f32 %v309, %v1051
      %v1053 = vpop.f32.mrf.mxu0
      %1054 = vmatprep.mubr.f32.mxu0 0.0
      %1055 = vmatmul.mubr.f32.gmra.mxu0 %v487
      %v1056 = vpop.f32.mrf.mxu0
      %v1057 = vadd.f32 %v309, %v1056
      %v1058 = vpop.f32.mrf.mxu0
      %1059 = vmatprep.mubr.f32.mxu0 0.0
      %1060 = vmatmul.mubr.f32.gmra.mxu0 %v490
      %v1061 = vpop.f32.mrf.mxu0
      %v1062 = vadd.f32 %v309, %v1061
      %v1063 = vpop.f32.mrf.mxu0
      %1064 = vmatprep.mubr.f32.mxu0 0.0
      %1065 = vmatmul.mubr.f32.gmra.mxu0 %v493
      %v1066 = vpop.f32.mrf.mxu0
      %v1067 = vadd.f32 %v309, %v1066
      %v1068 = vpop.f32.mrf.mxu0
      %1069 = vmatprep.mubr.f32.mxu0 0.0
      %1070 = vmatmul.mubr.f32.gmra.mxu0 %v496
      %v1071 = vpop.f32.mrf.mxu0
      %v1072 = vadd.f32 %v309, %v1071
      %v1073 = vpop.f32.mrf.mxu0
      %1074 = vmatprep.mubr.f32.mxu0 0.0
      %1075 = vmatmul.mubr.f32.gmra.mxu0 %v499
      %v1076 = vpop.f32.mrf.mxu0
      %v1077 = vadd.f32 %v309, %v1076
      %v1078 = vpop.f32.mrf.mxu0
      %1079 = vmatprep.mubr.f32.mxu0 0.0
      %1080 = vmatmul.mubr.f32.gmra.mxu0 %v502
      %v1081 = vpop.f32.mrf.mxu0
      %v1082 = vadd.f32 %v309, %v1081
      %v1083 = vpop.f32.mrf.mxu0
      %1084 = vmatprep.mubr.f32.mxu0 0.0
      %1085 = vmatmul.mubr.f32.gmra.mxu0 %v505
      %v1086 = vpop.f32.mrf.mxu0
      %v1087 = vadd.f32 %v309, %v1086
      %v1088 = vpop.f32.mrf.mxu0
      %1089 = vmatprep.mubr.f32.mxu0 0.0
      %1090 = vmatmul.mubr.f32.gmra.mxu0 %v508
      %v1091 = vpop.f32.mrf.mxu0
      %v1092 = vadd.f32 %v309, %v1091
      %v1093 = vpop.f32.mrf.mxu0
      %1094 = vmatprep.mubr.f32.mxu0 0.0
      %1095 = vmatmul.mubr.f32.gmra.mxu0 %v511
      %v1096 = vpop.f32.mrf.mxu0
      %v1097 = vadd.f32 %v309, %v1096
      %v1098 = vpop.f32.mrf.mxu0
      %1099 = vmatprep.mubr.f32.mxu0 0.0
      %1100 = vmatmul.mubr.f32.gmra.mxu0 %v514
      %v1101 = vpop.f32.mrf.mxu0
      %v1102 = vadd.f32 %v309, %v1101
      %v1103 = vpop.f32.mrf.mxu0
      %1104 = vmatprep.mubr.f32.mxu0 0.0
      %1105 = vmatmul.mubr.f32.gmra.mxu0 %v517
      %v1106 = vpop.f32.mrf.mxu0
      %v1107 = vadd.f32 %v309, %v1106
      %v1108 = vpop.f32.mrf.mxu0
      %1109 = vmatprep.mubr.f32.mxu0 0.0
      %1110 = vmatmul.mubr.f32.gmra.mxu0 %v520
      %v1111 = vpop.f32.mrf.mxu0
      %v1112 = vadd.f32 %v309, %v1111
      %v1113 = vpop.f32.mrf.mxu0
      %1114 = vmatprep.mubr.f32.mxu0 0.0
      %1115 = vmatmul.mubr.f32.gmra.mxu0 %v523
      %v1116 = vpop.f32.mrf.mxu0
      %v1117 = vadd.f32 %v309, %v1116
      %v1118 = vpop.f32.mrf.mxu0
      %1119 = vmatprep.mubr.f32.mxu0 0.0
      %1120 = vmatmul.mubr.f32.gmra.mxu0 %v526
      %v1121 = vpop.f32.mrf.mxu0
      %v1122 = vadd.f32 %v309, %v1121
      %v1123 = vpop.f32.mrf.mxu0
      %1124 = vmatprep.mubr.f32.mxu0 0.0
      %1125 = vmatmul.mubr.f32.gmra.mxu0 %v529
      %v1126 = vpop.f32.mrf.mxu0
      %v1127 = vadd.f32 %v309, %v1126
      %v1128 = vpop.f32.mrf.mxu0
      %1129 = vmatprep.mubr.f32.mxu0 0.0
      %1130 = vmatmul.mubr.f32.gmra.mxu0 %v532
      %v1131 = vpop.f32.mrf.mxu0
      %v1132 = vadd.f32 %v309, %v1131
      %v1133 = vpop.f32.mrf.mxu0
      %1134 = vmatprep.mubr.f32.mxu0 0.0
      %1135 = vmatmul.mubr.f32.gmra.mxu0 %v535
      %v1136 = vpop.f32.mrf.mxu0
      %v1137 = vadd.f32 %v309, %v1136
      %v1138 = vpop.f32.mrf.mxu0
      %1139 = vmatprep.mubr.f32.mxu0 0.0
      %1140 = vmatmul.mubr.f32.gmra.mxu0 %v538
      %v1141 = vpop.f32.mrf.mxu0
      %v1142 = vadd.f32 %v309, %v1141
      %v1143 = vpop.f32.mrf.mxu0
      %1144 = vmatprep.mubr.f32.mxu0 0.0
      %1145 = vmatmul.mubr.f32.gmra.mxu0 %v541
      %v1146 = vpop.f32.mrf.mxu0
      %v1147 = vadd.f32 %v309, %v1146
      %v1148 = vpop.f32.mrf.mxu0
      %1149 = vmatprep.mubr.f32.mxu0 0.0
      %1150 = vmatmul.mubr.f32.gmra.mxu0 %v544
      %v1151 = vpop.f32.mrf.mxu0
      %v1152 = vadd.f32 %v309, %v1151
      %v1153 = vpop.f32.mrf.mxu0
      %1154 = vmatprep.mubr.f32.mxu0 0.0
      %1155 = vmatmul.mubr.f32.gmra.mxu0 %v547
      %v1156 = vpop.f32.mrf.mxu0
      %v1157 = vadd.f32 %v309, %v1156
      %v1158 = vpop.f32.mrf.mxu0
      %1159 = vmatprep.mubr.f32.mxu0 0.0
      %1160 = vmatmul.mubr.f32.gmra.mxu0 %v550
      %v1161 = vpop.f32.mrf.mxu0
      %v1162 = vadd.f32 %v309, %v1161
      %v1163 = vpop.f32.mrf.mxu0
      %1164 = vmatprep.mubr.f32.mxu0 0.0
      %1165 = vmatmul.mubr.f32.gmra.mxu0 %v553
      %v1166 = vpop.f32.mrf.mxu0
      %v1167 = vadd.f32 %v309, %v1166
      %v1168 = vpop.f32.mrf.mxu0
      %1169 = vmatprep.mubr.f32.mxu0 0.0
      %1170 = vmatmul.mubr.f32.gmra.mxu0 %v556
      %v1171 = vpop.f32.mrf.mxu0
      %v1172 = vadd.f32 %v309, %v1171
      %v1173 = vpop.f32.mrf.mxu0
      %1174 = vmatprep.mubr.f32.mxu0 0.0
      %1175 = vmatmul.mubr.f32.gmra.mxu0 %v559
      %v1176 = vpop.f32.mrf.mxu0
      %v1177 = vadd.f32 %v309, %v1176
      %v1178 = vpop.f32.mrf.mxu0
      %1179 = vmatprep.mubr.f32.mxu0 0.0
      %1180 = vmatmul.mubr.f32.gmra.mxu0 %v562
      %v1181 = vpop.f32.mrf.mxu0
      %v1182 = vadd.f32 %v309, %v1181
      %v1183 = vpop.f32.mrf.mxu0
      %1184 = vmatprep.mubr.f32.mxu0 0.0
      %1185 = vmatmul.mubr.f32.gmra.mxu0 %v565
      %v1186 = vpop.f32.mrf.mxu0
      %v1187 = vadd.f32 %v309, %v1186
      %v1188 = vpop.f32.mrf.mxu0
      %1189 = vmatprep.mubr.f32.mxu0 0.0
      %1190 = vmatmul.mubr.f32.gmra.mxu0 %v568
      %v1191 = vpop.f32.mrf.mxu0
      %v1192 = vadd.f32 %v309, %v1191
      %v1193 = vpop.f32.mrf.mxu0
      %1194 = vmatprep.mubr.f32.mxu0 0.0
      %1195 = vmatmul.mubr.f32.gmra.mxu0 %v571
      %v1196 = vpop.f32.mrf.mxu0
      %v1197 = vadd.f32 %v309, %v1196
      %v1198 = vpop.f32.mrf.mxu0
      %1199 = vmatprep.mubr.f32.mxu0 0.0
      %1200 = vmatmul.mubr.f32.gmra.mxu0 %v574
      %v1201 = vpop.f32.mrf.mxu0
      %v1202 = vadd.f32 %v309, %v1201
      %v1203 = vpop.f32.mrf.mxu0
      %1204 = vmatprep.mubr.f32.mxu0 0.0
      %1205 = vmatmul.mubr.f32.gmra.mxu0 %v577
      %v1206 = vpop.f32.mrf.mxu0
      %v1207 = vadd.f32 %v309, %v1206
      %v1208 = vpop.f32.mrf.mxu0
      %1209 = vmatprep.mubr.f32.mxu0 0.0
      %1210 = vmatmul.mubr.f32.gmra.mxu0 %v580
      %v1211 = vpop.f32.mrf.mxu0
      %v1212 = vadd.f32 %v309, %v1211
      %v1213 = vpop.f32.mrf.mxu0
      %1214 = vmatprep.mubr.f32.mxu0 0.0
      %1215 = vmatmul.mubr.f32.gmra.mxu0 %v583
      %v1216 = vpop.f32.mrf.mxu0
      %v1217 = vadd.f32 %v309, %v1216
      %v1218 = vpop.f32.mrf.mxu0
      %1219 = vmatprep.mubr.f32.mxu0 0.0
      %1220 = vmatmul.mubr.f32.gmra.mxu0 %v586
      %v1221 = vpop.f32.mrf.mxu0
      %v1222 = vadd.f32 %v309, %v1221
      %v1223 = vpop.f32.mrf.mxu0
      %1224 = vmatprep.mubr.f32.mxu0 0.0
      %1225 = vmatmul.mubr.f32.gmra.mxu0 %v589
      %v1226 = vpop.f32.mrf.mxu0
      %v1227 = vadd.f32 %v309, %v1226
      %v1228 = vpop.f32.mrf.mxu0
      %1229 = vmatprep.mubr.f32.mxu0 0.0
      %1230 = vmatmul.mubr.f32.gmra.mxu0 %v592
      %v1231 = vpop.f32.mrf.mxu0
      %v1232 = vadd.f32 %v309, %v1231
      %v1233 = vpop.f32.mrf.mxu0
      %1234 = vmatprep.mubr.f32.mxu0 0.0
      %1235 = vmatmul.mubr.f32.gmra.mxu0 %v595
      %v1236 = vpop.f32.mrf.mxu0
      %v1237 = vadd.f32 %v309, %v1236
      %v1238 = vpop.f32.mrf.mxu0
      %1239 = vmatprep.mubr.f32.mxu0 0.0
      %1240 = vmatmul.mubr.f32.gmra.mxu0 %v598
      %v1241 = vpop.f32.mrf.mxu0
      %v1242 = vadd.f32 %v309, %v1241
      %v1243 = vpop.f32.mrf.mxu0
      %1244 = vmatprep.mubr.f32.mxu0 0.0
      %1245 = vmatmul.mubr.f32.gmra.mxu0 %v601
      %v1246 = vpop.f32.mrf.mxu0
      %v1247 = vadd.f32 %v309, %v1246
      %v1248 = vpop.f32.mrf.mxu0
      %1249 = vmatprep.mubr.f32.mxu0 0.0
      %1250 = vmatmul.mubr.f32.gmra.mxu0 %v604
      %v1251 = vpop.f32.mrf.mxu0
      %v1252 = vadd.f32 %v309, %v1251
      %v1253 = vpop.f32.mrf.mxu0
      %1254 = vmatprep.mubr.f32.mxu0 0.0
      %1255 = vmatmul.mubr.f32.gmra.mxu0 %v607
      %v1256 = vpop.f32.mrf.mxu0
      %v1257 = vadd.f32 %v309, %v1256
      %v1258 = vpop.f32.mrf.mxu0
      %1259 = vmatprep.mubr.f32.mxu0 0.0
      %1260 = vmatmul.mubr.f32.gmra.mxu0 %v610
      %v1261 = vpop.f32.mrf.mxu0
      %v1262 = vadd.f32 %v309, %v1261
      %v1263 = vpop.f32.mrf.mxu0
      %1264 = vmatprep.mubr.f32.mxu0 0.0
      %1265 = vmatmul.mubr.f32.gmra.mxu0 %v613
      %v1266 = vpop.f32.mrf.mxu0
      %v1267 = vadd.f32 %v309, %v1266
      %v1268 = vpop.f32.mrf.mxu0
      %1269 = vmatprep.mubr.f32.mxu0 0.0
      %1270 = vmatmul.mubr.f32.gmra.mxu0 %v616
      %v1271 = vpop.f32.mrf.mxu0
      %v1272 = vadd.f32 %v309, %v1271
      %v1273 = vpop.f32.mrf.mxu0
      %1274 = vmatprep.mubr.f32.mxu0 0.0
      %1275 = vmatmul.mubr.f32.gmra.mxu0 %v619
      %v1276 = vpop.f32.mrf.mxu0
      %v1277 = vadd.f32 %v309, %v1276
      %v1278 = vpop.f32.mrf.mxu0
      %1279 = vmatprep.mubr.f32.mxu0 0.0
      %1280 = vmatmul.mubr.f32.gmra.mxu0 %v622
      %v1281 = vpop.f32.mrf.mxu0
      %v1282 = vadd.f32 %v309, %v1281
      %v1283 = vpop.f32.mrf.mxu0
      %1284 = vmatprep.mubr.f32.mxu0 0.0
      %1285 = vmatmul.mubr.f32.gmra.mxu0 %v625
      %v1286 = vpop.f32.mrf.mxu0
      %v1287 = vadd.f32 %v309, %v1286
      %v1288 = vpop.f32.mrf.mxu0
      %1289 = vmatprep.mubr.f32.mxu0 0.0
      %1290 = vmatmul.mubr.f32.gmra.mxu0 %v628
      %v1291 = vpop.f32.mrf.mxu0
      %v1292 = vadd.f32 %v309, %v1291
      %v1293 = vpop.f32.mrf.mxu0
      %1294 = vmatprep.mubr.f32.mxu0 0.0
      %1295 = vmatmul.mubr.f32.gmra.mxu0 %v631
      %v1296 = vpop.f32.mrf.mxu0
      %v1297 = vadd.f32 %v309, %v1296
      %v1298 = vpop.f32.mrf.mxu0
      %1299 = vmatprep.mubr.f32.mxu0 0.0
      %1300 = vmatmul.mubr.f32.gmra.mxu0 %v634
      %v1301 = vpop.f32.mrf.mxu0
      %v1302 = vadd.f32 %v309, %v1301
      %v1303 = vpop.f32.mrf.mxu0
      %1304 = vmatprep.mubr.f32.mxu0 0.0
      %1305 = vmatmul.mubr.f32.gmra.mxu0 %v637
      %v1306 = vpop.f32.mrf.mxu0
      %v1307 = vadd.f32 %v309, %v1306
      %v1308 = vpop.f32.mrf.mxu0
      %1309 = vmatprep.mubr.f32.mxu0 0.0
      %1310 = vmatmul.mubr.f32.gmra.mxu0 %v640
      %v1311 = vpop.f32.mrf.mxu0
      %v1312 = vadd.f32 %v309, %v1311
      %v1313 = vpop.f32.mrf.mxu0
      %1314 = vmatprep.mubr.f32.mxu0 0.0
      %1315 = vmatmul.mubr.f32.gmra.mxu0 %v643
      %v1316 = vpop.f32.mrf.mxu0
      %v1317 = vadd.f32 %v309, %v1316
      %v1318 = vpop.f32.mrf.mxu0
      %1319 = vmatprep.mubr.f32.mxu0 0.0
      %1320 = vmatmul.mubr.f32.gmra.mxu0 %v646
      %v1321 = vpop.f32.mrf.mxu0
      %v1322 = vadd.f32 %v309, %v1321
      %v1323 = vpop.f32.mrf.mxu0
      %1324 = vmatprep.mubr.f32.mxu0 0.0
      %1325 = vmatmul.mubr.f32.gmra.mxu0 %v649
      %v1326 = vpop.f32.mrf.mxu0
      %v1327 = vadd.f32 %v309, %v1326
      %v1328 = vpop.f32.mrf.mxu0
      %1329 = vmatprep.mubr.f32.mxu0 0.0
      %1330 = vmatmul.mubr.f32.gmra.mxu0 %v652
      %v1331 = vpop.f32.mrf.mxu0
      %v1332 = vadd.f32 %v309, %v1331
      %v1333 = vpop.f32.mrf.mxu0
      %1334 = vmatprep.mubr.f32.mxu0 0.0
      %1335 = vmatmul.mubr.f32.gmra.mxu0 %v655
      %v1336 = vpop.f32.mrf.mxu0
      %v1337 = vadd.f32 %v309, %v1336
      %v1338 = vpop.f32.mrf.mxu0
      %1339 = vmatprep.mubr.f32.mxu0 0.0
      %1340 = vmatmul.mubr.f32.gmra.mxu0 %v658
      %v1341 = vpop.f32.mrf.mxu0
      %v1342 = vadd.f32 %v309, %v1341
      %v1343 = vpop.f32.mrf.mxu0
      %1344 = vmatprep.mubr.f32.mxu0 0.0
      %1345 = vmatmul.mubr.f32.gmra.mxu0 %v661
      %v1346 = vpop.f32.mrf.mxu0
      %v1347 = vadd.f32 %v309, %v1346
      %v1348 = vpop.f32.mrf.mxu0
      %1349 = vmatprep.mubr.f32.mxu0 0.0
      %1350 = vmatmul.mubr.f32.gmra.mxu0 %v664
      %v1351 = vpop.f32.mrf.mxu0
      %v1352 = vadd.f32 %v309, %v1351
      %v1353 = vpop.f32.mrf.mxu0
      %1354 = vmatprep.mubr.f32.mxu0 0.0
      %1355 = vmatmul.mubr.f32.gmra.mxu0 %v667
      %v1356 = vpop.f32.mrf.mxu0
      %v1357 = vadd.f32 %v309, %v1356
      %v1358 = vpop.f32.mrf.mxu0
      %1359 = vmatprep.mubr.f32.mxu0 0.0
      %1360 = vmatmul.mubr.f32.gmra.mxu0 %v670
      %v1361 = vpop.f32.mrf.mxu0
      %v1362 = vadd.f32 %v309, %v1361
      %v1363 = vpop.f32.mrf.mxu0
      %1364 = vmatprep.mubr.f32.mxu0 0.0
      %1365 = vmatmul.mubr.f32.gmra.mxu0 %v673
      %v1366 = vpop.f32.mrf.mxu0
      %v1367 = vadd.f32 %v309, %v1366
      %v1368 = vpop.f32.mrf.mxu0
      %1369 = vmatprep.mubr.f32.mxu0 0.0
      %1370 = vmatmul.mubr.f32.gmra.mxu0 %v676
      %v1371 = vpop.f32.mrf.mxu0
      %v1372 = vadd.f32 %v309, %v1371
      %v1373 = vpop.f32.mrf.mxu0
      %1374 = vmatprep.mubr.f32.mxu0 0.0
      %1375 = vmatmul.mubr.f32.gmra.mxu0 %v679
      %v1376 = vpop.f32.mrf.mxu0
      %v1377 = vadd.f32 %v309, %v1376
      %v1378 = vpop.f32.mrf.mxu0
      %1379 = vmatprep.mubr.f32.mxu0 0.0
      %1380 = vmatmul.mubr.f32.gmra.mxu0 %v682
      %v1381 = vpop.f32.mrf.mxu0
      %v1382 = vadd.f32 %v309, %v1381
      %v1383 = vpop.f32.mrf.mxu0
      %1384 = vmatprep.mubr.f32.mxu0 0.0
      %1385 = vmatmul.mubr.f32.gmra.mxu0 %v685
      %v1386 = vpop.f32.mrf.mxu0
      %v1387 = vadd.f32 %v309, %v1386
      %v1388 = vpop.f32.mrf.mxu0
      %1389 = vmatprep.mubr.f32.mxu0 0.0
      %1390 = vmatmul.mubr.f32.gmra.mxu0 %v688
      %v1391 = vpop.f32.mrf.mxu0
      %v1392 = vadd.f32 %v309, %v1391
      %v1393 = vpop.f32.mrf.mxu0
      %1394 = vmatprep.mubr.f32.mxu0 0.0
      %1395 = vmatmul.mubr.f32.gmra.mxu0 %v691
      %v1396 = vpop.f32.mrf.mxu0
      %v1397 = vadd.f32 %v309, %v1396
      %v1398 = vpop.f32.mrf.mxu0
      %1399 = vmatprep.mubr.f32.mxu0 0.0
      %1400 = vmatmul.mubr.f32.gmra.mxu0 %v694
      %v1401 = vpop.f32.mrf.mxu0
      %v1402 = vadd.f32 %v309, %v1401
      %v1403 = vpop.f32.mrf.mxu0
      %1404 = vdwg.mxu0
      %v1405 = vmax.f32 %v767, 0.0
      %v1406 = vmax.f32 %v772, 0.0
      %v1407 = vmax.f32 %v777, 0.0
      %v1408 = vmax.f32 %v782, 0.0
      %v1409 = vmax.f32 %v787, 0.0
      %v1410 = vmax.f32 %v792, 0.0
      %v1411 = vmax.f32 %v797, 0.0
      %v1412 = vmax.f32 %v802, 0.0
      %v1413 = vmax.f32 %v807, 0.0
      %v1414 = vmax.f32 %v812, 0.0
      %v1415 = vmax.f32 %v817, 0.0
      %v1416 = vmax.f32 %v822, 0.0
      %v1417 = vmax.f32 %v827, 0.0
      %v1418 = vmax.f32 %v832, 0.0
      %v1419 = vmax.f32 %v837, 0.0
      %v1420 = vmax.f32 %v842, 0.0
      %v1421 = vmax.f32 %v847, 0.0
      %v1422 = vmax.f32 %v852, 0.0
      %v1423 = vmax.f32 %v857, 0.0
      %v1424 = vmax.f32 %v862, 0.0
      %v1425 = vmax.f32 %v867, 0.0
      %v1426 = vmax.f32 %v872, 0.0
      %v1427 = vmax.f32 %v877, 0.0
      %v1428 = vmax.f32 %v882, 0.0
      %v1429 = vmax.f32 %v887, 0.0
      %v1430 = vmax.f32 %v892, 0.0
      %v1431 = vmax.f32 %v897, 0.0
      %v1432 = vmax.f32 %v902, 0.0
      %v1433 = vmax.f32 %v907, 0.0
      %v1434 = vmax.f32 %v912, 0.0
      %v1435 = vmax.f32 %v917, 0.0
      %v1436 = vmax.f32 %v922, 0.0
      %v1437 = vmax.f32 %v927, 0.0
      %v1438 = vmax.f32 %v932, 0.0
      %v1439 = vmax.f32 %v937, 0.0
      %v1440 = vmax.f32 %v942, 0.0
      %v1441 = vmax.f32 %v947, 0.0
      %v1442 = vmax.f32 %v952, 0.0
      %v1443 = vmax.f32 %v957, 0.0
      %v1444 = vmax.f32 %v962, 0.0
      %v1445 = vmax.f32 %v967, 0.0
      %v1446 = vmax.f32 %v972, 0.0
      %v1447 = vmax.f32 %v977, 0.0
      %v1448 = vmax.f32 %v982, 0.0
      %v1449 = vmax.f32 %v987, 0.0
      %v1450 = vmax.f32 %v992, 0.0
      %v1451 = vmax.f32 %v997, 0.0
      %v1452 = vmax.f32 %v1002, 0.0
      %v1453 = vmax.f32 %v1007, 0.0
      %v1454 = vmax.f32 %v1012, 0.0
      %v1455 = vmax.f32 %v1017, 0.0
      %v1456 = vmax.f32 %v1022, 0.0
      %v1457 = vmax.f32 %v1027, 0.0
      %v1458 = vmax.f32 %v1032, 0.0
      %v1459 = vmax.f32 %v1037, 0.0
      %v1460 = vmax.f32 %v1042, 0.0
      %v1461 = vmax.f32 %v1047, 0.0
      %v1462 = vmax.f32 %v1052, 0.0
      %v1463 = vmax.f32 %v1057, 0.0
      %v1464 = vmax.f32 %v1062, 0.0
      %v1465 = vmax.f32 %v1067, 0.0
      %v1466 = vmax.f32 %v1072, 0.0
      %v1467 = vmax.f32 %v1077, 0.0
      %v1468 = vmax.f32 %v1082, 0.0
      %v1469 = vmax.f32 %v1087, 0.0
      %v1470 = vmax.f32 %v1092, 0.0
      %v1471 = vmax.f32 %v1097, 0.0
      %v1472 = vmax.f32 %v1102, 0.0
      %v1473 = vmax.f32 %v1107, 0.0
      %v1474 = vmax.f32 %v1112, 0.0
      %v1475 = vmax.f32 %v1117, 0.0
      %v1476 = vmax.f32 %v1122, 0.0
      %v1477 = vmax.f32 %v1127, 0.0
      %v1478 = vmax.f32 %v1132, 0.0
      %v1479 = vmax.f32 %v1137, 0.0
      %v1480 = vmax.f32 %v1142, 0.0
      %v1481 = vmax.f32 %v1147, 0.0
      %v1482 = vmax.f32 %v1152, 0.0
      %v1483 = vmax.f32 %v1157, 0.0
      %v1484 = vmax.f32 %v1162, 0.0
      %v1485 = vmax.f32 %v1167, 0.0
      %v1486 = vmax.f32 %v1172, 0.0
      %v1487 = vmax.f32 %v1177, 0.0
      %v1488 = vmax.f32 %v1182, 0.0
      %v1489 = vmax.f32 %v1187, 0.0
      %v1490 = vmax.f32 %v1192, 0.0
      %v1491 = vmax.f32 %v1197, 0.0
      %v1492 = vmax.f32 %v1202, 0.0
      %v1493 = vmax.f32 %v1207, 0.0
      %v1494 = vmax.f32 %v1212, 0.0
      %v1495 = vmax.f32 %v1217, 0.0
      %v1496 = vmax.f32 %v1222, 0.0
      %v1497 = vmax.f32 %v1227, 0.0
      %v1498 = vmax.f32 %v1232, 0.0
      %v1499 = vmax.f32 %v1237, 0.0
      %v1500 = vmax.f32 %v1242, 0.0
      %v1501 = vmax.f32 %v1247, 0.0
      %v1502 = vmax.f32 %v1252, 0.0
      %v1503 = vmax.f32 %v1257, 0.0
      %v1504 = vmax.f32 %v1262, 0.0
      %v1505 = vmax.f32 %v1267, 0.0
      %v1506 = vmax.f32 %v1272, 0.0
      %v1507 = vmax.f32 %v1277, 0.0
      %v1508 = vmax.f32 %v1282, 0.0
      %v1509 = vmax.f32 %v1287, 0.0
      %v1510 = vmax.f32 %v1292, 0.0
      %v1511 = vmax.f32 %v1297, 0.0
      %v1512 = vmax.f32 %v1302, 0.0
      %v1513 = vmax.f32 %v1307, 0.0
      %v1514 = vmax.f32 %v1312, 0.0
      %v1515 = vmax.f32 %v1317, 0.0
      %v1516 = vmax.f32 %v1322, 0.0
      %v1517 = vmax.f32 %v1327, 0.0
      %v1518 = vmax.f32 %v1332, 0.0
      %v1519 = vmax.f32 %v1337, 0.0
      %v1520 = vmax.f32 %v1342, 0.0
      %v1521 = vmax.f32 %v1347, 0.0
      %v1522 = vmax.f32 %v1352, 0.0
      %v1523 = vmax.f32 %v1357, 0.0
      %v1524 = vmax.f32 %v1362, 0.0
      %v1525 = vmax.f32 %v1367, 0.0
      %v1526 = vmax.f32 %v1372, 0.0
      %v1527 = vmax.f32 %v1377, 0.0
      %v1528 = vmax.f32 %v1382, 0.0
      %v1529 = vmax.f32 %v1387, 0.0
      %v1530 = vmax.f32 %v1392, 0.0
      %v1531 = vmax.f32 %v1397, 0.0
      %v1532 = vmax.f32 %v1402, 0.0
      %vm1533 = vcmask 64512
      %1534 = vst.msk [vmem:[%s172] sm:$0xff] %vm1533, %v1405
      %1535 = vst.msk [vmem:[%s172 + $0x8] sm:$0xff] %vm1533, %v1406
      %1536 = vst.msk [vmem:[%s172 + $0x10] sm:$0xff] %vm1533, %v1407
      %1537 = vst.msk [vmem:[%s172 + $0x18] sm:$0xff] %vm1533, %v1408
      %1538 = vst.msk [vmem:[%s172 + $0x20] sm:$0xff] %vm1533, %v1409
      %1539 = vst.msk [vmem:[%s172 + $0x28] sm:$0xff] %vm1533, %v1410
      %1540 = vst.msk [vmem:[%s172 + $0x30] sm:$0xff] %vm1533, %v1411
      %1541 = vst.msk [vmem:[%s172 + $0x38] sm:$0xff] %vm1533, %v1412
      %1542 = vst.msk [vmem:[%s172 + $0x40] sm:$0xff] %vm1533, %v1413
      %1543 = vst.msk [vmem:[%s172 + $0x48] sm:$0xff] %vm1533, %v1414
      %1544 = vst.msk [vmem:[%s172 + $0x50] sm:$0xff] %vm1533, %v1415
      %1545 = vst.msk [vmem:[%s172 + $0x58] sm:$0xff] %vm1533, %v1416
      %1546 = vst.msk [vmem:[%s172 + $0x60] sm:$0xff] %vm1533, %v1417
      %1547 = vst.msk [vmem:[%s172 + $0x68] sm:$0xff] %vm1533, %v1418
      %1548 = vst.msk [vmem:[%s172 + $0x70] sm:$0xff] %vm1533, %v1419
      %1549 = vst.msk [vmem:[%s172 + $0x78] sm:$0xff] %vm1533, %v1420
      %1550 = vst.msk [vmem:[%s172 + $0x80] sm:$0xff] %vm1533, %v1421
      %1551 = vst.msk [vmem:[%s172 + $0x88] sm:$0xff] %vm1533, %v1422
      %1552 = vst.msk [vmem:[%s172 + $0x90] sm:$0xff] %vm1533, %v1423
      %1553 = vst.msk [vmem:[%s172 + $0x98] sm:$0xff] %vm1533, %v1424
      %1554 = vst.msk [vmem:[%s172 + $0xa0] sm:$0xff] %vm1533, %v1425
      %1555 = vst.msk [vmem:[%s172 + $0xa8] sm:$0xff] %vm1533, %v1426
      %1556 = vst.msk [vmem:[%s172 + $0xb0] sm:$0xff] %vm1533, %v1427
      %1557 = vst.msk [vmem:[%s172 + $0xb8] sm:$0xff] %vm1533, %v1428
      %1558 = vst.msk [vmem:[%s172 + $0xc0] sm:$0xff] %vm1533, %v1429
      %1559 = vst.msk [vmem:[%s172 + $0xc8] sm:$0xff] %vm1533, %v1430
      %1560 = vst.msk [vmem:[%s172 + $0xd0] sm:$0xff] %vm1533, %v1431
      %1561 = vst.msk [vmem:[%s172 + $0xd8] sm:$0xff] %vm1533, %v1432
      %1562 = vst.msk [vmem:[%s172 + $0xe0] sm:$0xff] %vm1533, %v1433
      %1563 = vst.msk [vmem:[%s172 + $0xe8] sm:$0xff] %vm1533, %v1434
      %1564 = vst.msk [vmem:[%s172 + $0xf0] sm:$0xff] %vm1533, %v1435
      %1565 = vst.msk [vmem:[%s172 + $0xf8] sm:$0xff] %vm1533, %v1436
      %1566 = vst.msk [vmem:[%s172 + $0x100] sm:$0xff] %vm1533, %v1437
      %1567 = vst.msk [vmem:[%s172 + $0x108] sm:$0xff] %vm1533, %v1438
      %1568 = vst.msk [vmem:[%s172 + $0x110] sm:$0xff] %vm1533, %v1439
      %1569 = vst.msk [vmem:[%s172 + $0x118] sm:$0xff] %vm1533, %v1440
      %1570 = vst.msk [vmem:[%s172 + $0x120] sm:$0xff] %vm1533, %v1441
      %1571 = vst.msk [vmem:[%s172 + $0x128] sm:$0xff] %vm1533, %v1442
      %1572 = vst.msk [vmem:[%s172 + $0x130] sm:$0xff] %vm1533, %v1443
      %1573 = vst.msk [vmem:[%s172 + $0x138] sm:$0xff] %vm1533, %v1444
      %1574 = vst.msk [vmem:[%s172 + $0x140] sm:$0xff] %vm1533, %v1445
      %1575 = vst.msk [vmem:[%s172 + $0x148] sm:$0xff] %vm1533, %v1446
      %1576 = vst.msk [vmem:[%s172 + $0x150] sm:$0xff] %vm1533, %v1447
      %1577 = vst.msk [vmem:[%s172 + $0x158] sm:$0xff] %vm1533, %v1448
      %1578 = vst.msk [vmem:[%s172 + $0x160] sm:$0xff] %vm1533, %v1449
      %1579 = vst.msk [vmem:[%s172 + $0x168] sm:$0xff] %vm1533, %v1450
      %1580 = vst.msk [vmem:[%s172 + $0x170] sm:$0xff] %vm1533, %v1451
      %1581 = vst.msk [vmem:[%s172 + $0x178] sm:$0xff] %vm1533, %v1452
      %1582 = vst.msk [vmem:[%s172 + $0x180] sm:$0xff] %vm1533, %v1453
      %1583 = vst.msk [vmem:[%s172 + $0x188] sm:$0xff] %vm1533, %v1454
      %1584 = vst.msk [vmem:[%s172 + $0x190] sm:$0xff] %vm1533, %v1455
      %1585 = vst.msk [vmem:[%s172 + $0x198] sm:$0xff] %vm1533, %v1456
      %1586 = vst.msk [vmem:[%s172 + $0x1a0] sm:$0xff] %vm1533, %v1457
      %1587 = vst.msk [vmem:[%s172 + $0x1a8] sm:$0xff] %vm1533, %v1458
      %1588 = vst.msk [vmem:[%s172 + $0x1b0] sm:$0xff] %vm1533, %v1459
      %1589 = vst.msk [vmem:[%s172 + $0x1b8] sm:$0xff] %vm1533, %v1460
      %1590 = vst.msk [vmem:[%s172 + $0x1c0] sm:$0xff] %vm1533, %v1461
      %1591 = vst.msk [vmem:[%s172 + $0x1c8] sm:$0xff] %vm1533, %v1462
      %1592 = vst.msk [vmem:[%s172 + $0x1d0] sm:$0xff] %vm1533, %v1463
      %1593 = vst.msk [vmem:[%s172 + $0x1d8] sm:$0xff] %vm1533, %v1464
      %1594 = vst.msk [vmem:[%s172 + $0x1e0] sm:$0xff] %vm1533, %v1465
      %1595 = vst.msk [vmem:[%s172 + $0x1e8] sm:$0xff] %vm1533, %v1466
      %1596 = vst.msk [vmem:[%s172 + $0x1f0] sm:$0xff] %vm1533, %v1467
      %1597 = vst.msk [vmem:[%s172 + $0x1f8] sm:$0xff] %vm1533, %v1468
      %1598 = vst.msk [vmem:[%s172 + $0x200] sm:$0xff] %vm1533, %v1469
      %1599 = vst.msk [vmem:[%s172 + $0x208] sm:$0xff] %vm1533, %v1470
      %1600 = vst.msk [vmem:[%s172 + $0x210] sm:$0xff] %vm1533, %v1471
      %1601 = vst.msk [vmem:[%s172 + $0x218] sm:$0xff] %vm1533, %v1472
      %1602 = vst.msk [vmem:[%s172 + $0x220] sm:$0xff] %vm1533, %v1473
      %1603 = vst.msk [vmem:[%s172 + $0x228] sm:$0xff] %vm1533, %v1474
      %1604 = vst.msk [vmem:[%s172 + $0x230] sm:$0xff] %vm1533, %v1475
      %1605 = vst.msk [vmem:[%s172 + $0x238] sm:$0xff] %vm1533, %v1476
      %1606 = vst.msk [vmem:[%s172 + $0x240] sm:$0xff] %vm1533, %v1477
      %1607 = vst.msk [vmem:[%s172 + $0x248] sm:$0xff] %vm1533, %v1478
      %1608 = vst.msk [vmem:[%s172 + $0x250] sm:$0xff] %vm1533, %v1479
      %1609 = vst.msk [vmem:[%s172 + $0x258] sm:$0xff] %vm1533, %v1480
      %1610 = vst.msk [vmem:[%s172 + $0x260] sm:$0xff] %vm1533, %v1481
      %1611 = vst.msk [vmem:[%s172 + $0x268] sm:$0xff] %vm1533, %v1482
      %1612 = vst.msk [vmem:[%s172 + $0x270] sm:$0xff] %vm1533, %v1483
      %1613 = vst.msk [vmem:[%s172 + $0x278] sm:$0xff] %vm1533, %v1484
      %1614 = vst.msk [vmem:[%s172 + $0x280] sm:$0xff] %vm1533, %v1485
      %1615 = vst.msk [vmem:[%s172 + $0x288] sm:$0xff] %vm1533, %v1486
      %1616 = vst.msk [vmem:[%s172 + $0x290] sm:$0xff] %vm1533, %v1487
      %1617 = vst.msk [vmem:[%s172 + $0x298] sm:$0xff] %vm1533, %v1488
      %1618 = vst.msk [vmem:[%s172 + $0x2a0] sm:$0xff] %vm1533, %v1489
      %1619 = vst.msk [vmem:[%s172 + $0x2a8] sm:$0xff] %vm1533, %v1490
      %1620 = vst.msk [vmem:[%s172 + $0x2b0] sm:$0xff] %vm1533, %v1491
      %1621 = vst.msk [vmem:[%s172 + $0x2b8] sm:$0xff] %vm1533, %v1492
      %1622 = vst.msk [vmem:[%s172 + $0x2c0] sm:$0xff] %vm1533, %v1493
      %1623 = vst.msk [vmem:[%s172 + $0x2c8] sm:$0xff] %vm1533, %v1494
      %1624 = vst.msk [vmem:[%s172 + $0x2d0] sm:$0xff] %vm1533, %v1495
      %1625 = vst.msk [vmem:[%s172 + $0x2d8] sm:$0xff] %vm1533, %v1496
      %1626 = vst.msk [vmem:[%s172 + $0x2e0] sm:$0xff] %vm1533, %v1497
      %1627 = vst.msk [vmem:[%s172 + $0x2e8] sm:$0xff] %vm1533, %v1498
      %1628 = vst.msk [vmem:[%s172 + $0x2f0] sm:$0xff] %vm1533, %v1499
      %1629 = vst.msk [vmem:[%s172 + $0x2f8] sm:$0xff] %vm1533, %v1500
      %1630 = vst.msk [vmem:[%s172 + $0x300] sm:$0xff] %vm1533, %v1501
      %1631 = vst.msk [vmem:[%s172 + $0x308] sm:$0xff] %vm1533, %v1502
      %1632 = vst.msk [vmem:[%s172 + $0x310] sm:$0xff] %vm1533, %v1503
      %1633 = vst.msk [vmem:[%s172 + $0x318] sm:$0xff] %vm1533, %v1504
      %1634 = vst.msk [vmem:[%s172 + $0x320] sm:$0xff] %vm1533, %v1505
      %1635 = vst.msk [vmem:[%s172 + $0x328] sm:$0xff] %vm1533, %v1506
      %1636 = vst.msk [vmem:[%s172 + $0x330] sm:$0xff] %vm1533, %v1507
      %1637 = vst.msk [vmem:[%s172 + $0x338] sm:$0xff] %vm1533, %v1508
      %1638 = vst.msk [vmem:[%s172 + $0x340] sm:$0xff] %vm1533, %v1509
      %1639 = vst.msk [vmem:[%s172 + $0x348] sm:$0xff] %vm1533, %v1510
      %1640 = vst.msk [vmem:[%s172 + $0x350] sm:$0xff] %vm1533, %v1511
      %1641 = vst.msk [vmem:[%s172 + $0x358] sm:$0xff] %vm1533, %v1512
      %1642 = vst.msk [vmem:[%s172 + $0x360] sm:$0xff] %vm1533, %v1513
      %1643 = vst.msk [vmem:[%s172 + $0x368] sm:$0xff] %vm1533, %v1514
      %1644 = vst.msk [vmem:[%s172 + $0x370] sm:$0xff] %vm1533, %v1515
      %1645 = vst.msk [vmem:[%s172 + $0x378] sm:$0xff] %vm1533, %v1516
      %1646 = vst.msk [vmem:[%s172 + $0x380] sm:$0xff] %vm1533, %v1517
      %1647 = vst.msk [vmem:[%s172 + $0x388] sm:$0xff] %vm1533, %v1518
      %1648 = vst.msk [vmem:[%s172 + $0x390] sm:$0xff] %vm1533, %v1519
      %1649 = vst.msk [vmem:[%s172 + $0x398] sm:$0xff] %vm1533, %v1520
      %1650 = vst.msk [vmem:[%s172 + $0x3a0] sm:$0xff] %vm1533, %v1521
      %1651 = vst.msk [vmem:[%s172 + $0x3a8] sm:$0xff] %vm1533, %v1522
      %1652 = vst.msk [vmem:[%s172 + $0x3b0] sm:$0xff] %vm1533, %v1523
      %1653 = vst.msk [vmem:[%s172 + $0x3b8] sm:$0xff] %vm1533, %v1524
      %1654 = vst.msk [vmem:[%s172 + $0x3c0] sm:$0xff] %vm1533, %v1525
      %1655 = vst.msk [vmem:[%s172 + $0x3c8] sm:$0xff] %vm1533, %v1526
      %1656 = vst.msk [vmem:[%s172 + $0x3d0] sm:$0xff] %vm1533, %v1527
      %1657 = vst.msk [vmem:[%s172 + $0x3d8] sm:$0xff] %vm1533, %v1528
      %1658 = vst.msk [vmem:[%s172 + $0x3e0] sm:$0xff] %vm1533, %v1529
      %1659 = vst.msk [vmem:[%s172 + $0x3e8] sm:$0xff] %vm1533, %v1530
      %1660 = vst.msk [vmem:[%s172 + $0x3f0] sm:$0xff] %vm1533, %v1531
      %1661 = vst.msk [vmem:[%s172 + $0x3f8] sm:$0xff] %vm1533, %v1532
      %s1662 = smul.u32 128, %s14
      %p1663 = scmp.lt.s32.totalorder %s1662, 1407
      %s1664 = scalar_select %p1663, %s1662, 1407
      %s1665 = smul.addr %s1664, 8
      %s1666 = scalar_lea.vmem %s3, %s1665
      // Predicated region
      $region33: #{encoder_forward.5} parent=31 // pred_check
        %p1667 = pneg %p100
      $region34: #{encoder_forward.5} parent=31 // pred_check_branch
        %1669 = sbr.rel (%p1667) target = $region36
      $region35: #{encoder_forward.5} parent=31 // pred_region
        %s1670 = smul.u32 128, %s14
      $region36: #{encoder_forward.5} parent=31 // pred_fallthru
        _
    $region32: #{encoder_forward.5} parent=5 // pred_fallthru
      _
    %p1671 = scmp.le.s32.totalorder 2, %s9
    // Predicated region
    $region37: #{encoder_forward.5} parent=5 // pred_check
      %p1672 = pneg %p1671
    $region38: #{encoder_forward.5} parent=5 // pred_check_branch
      %1674 = sbr.rel (%p1672) target = $region40
    $region39: #{encoder_forward.5} parent=5 // pred_region
      %s1675 = ssub.s32 %s9, 2
      // Predicated region
      $region41: #{encoder_forward.5} parent=39 // pred_check
        %p1676 = pneg %p106
      $region42: #{encoder_forward.5} parent=39 // pred_check_branch
        %1678 = sbr.rel (%p1676) target = $region44
      $region43: #{encoder_forward.5} parent=39 // pred_region
        %s1679 = smul.u32 128, %s15
        %p1680 = scmp.lt.s32.totalorder %s1679, 1407
        %s1681 = scalar_select %p1680, %s1679, 1407
        %s1682 = smul.addr %s1681, 8
        %s1683 = scalar_lea.vmem %s3, %s1682
      $region44: #{encoder_forward.5} parent=39 // pred_fallthru
        _
    $region40: #{encoder_forward.5} parent=5 // pred_fallthru
      _
  $region6: #{encoder_forward.5} parent=0 // loop_footer
    %s13 = sadd.s32 1, %s9
  $region7: #{encoder_forward.5} parent=0 // loop_footer_branch
    %8 = sbr.rel target = $region3
  $region8: #{encoder_forward.5} parent=0 // loop_exit
    _

// kernel: encoder_forward.7
$region0: #{encoder_forward.7}
  #allocation0 [shape = 'u32[]', space=smem, size = 0x4, offset = 0x4, fixed_abs, tag = 'smem constant byte address 0x4 - core index']
  #allocation1 [shape = 'u32[144,128]{1,0:T(1,128)}', space=vmem, size = 0x12000, scoped, tag = 'internal scratch']
  %s0 = inlined_call_operand.vmem [shape: f32[3072,16], index: 0, kind: input, shape index: {}]
  %s1 = inlined_call_operand.vmem [shape: f32[1,16], index: 1, kind: input, shape index: {}]
  %s2 = inlined_call_operand.vmem [shape: f32[1,16], index: 2, kind: input, shape index: {}]
  %s3 = inlined_call_operand.vmem [shape: f32[3072,16], index: 3, kind: output, shape index: {}]
  %s4 = sld [smem:[#allocation0]]
  $region45: #{encoder_forward.7} parent=0
    _
  %s6 = ssub.s32 1, %s4
  %s7 = scalar_select 0, %s6, %s4
  loop: start=0, step=1, limit=5
  $region2: #{encoder_forward.7} parent=0 // loop_pre_header
    _
  $region3: #{encoder_forward.7} parent=0 // loop_header
    %s9 = sphi 0, %s13
    %p10 = scmp.ge.s32.totalorder %s9, 5
    %s19 = sphi 0, %s21
    %s22 = sphi 0, %s19
    %s23 = sphi 0, %s22
    %s39 = sphi 0, %s23
    %s43 = sphi 0, %s43
    %s45 = sphi 0, %s43
    %s46 = sphi 0, %s45
    %s60 = sphi 0, %s46
    %s64 = sphi 0, %s64
    %s66 = sphi 0, %s64
    %s67 = sphi 0, %s66
    %s81 = sphi 0, %s67
    %s87 = sphi 0, %s89
    %s90 = sphi 0, %s87
    %s91 = sphi 0, %s90
    %s107 = sphi 0, %s91
  $region4: #{encoder_forward.7} parent=0 // loop_header_branch
    %12 = sbr.rel (%p10) target = $region8
  $region5: #{encoder_forward.7} parent=0 // loop_body
    %s14 = ssub.s32 %s9, 1
    %s15 = ssub.s32 %s9, 2
    %s16 = sadd.s32 %s9, 1
    %s17 = ssub.s32 %s9, %s16
    %p18 = scmp.eq.s32.totalorder %s17, 0
    %s20 = sadd.s32 %s19, 1
    %s21 = scalar_select %p18, %s19, %s20
    %p24 = pneg %p18
    %p25 = scmp.eq.s32.totalorder %s9, 2
    %p26 = por %p24, %p25
    %p27 = scmp.ne.s32.totalorder %s19, %s22
    %p28 = scmp.eq.s32.totalorder %s9, 0
    %p29 = por %p27, %p28
    %p30 = scmp.ne.s32.totalorder %s19, %s22
    %p31 = scmp.eq.s32.totalorder %s14, 2
    %p32 = por %p30, %p31
    %p33 = scmp.ne.s32.totalorder %s22, %s23
    %p34 = scmp.eq.s32.totalorder %s14, 0
    %p35 = por %p33, %p34
    %p36 = scmp.ne.s32.totalorder %s22, %s23
    %p37 = scmp.eq.s32.totalorder %s15, 2
    %p38 = por %p36, %p37
    %p40 = scmp.ne.s32.totalorder %s23, %s39
    %p41 = scmp.eq.s32.totalorder %s15, 0
    %p42 = por %p40, %p41
    %s44 = sadd.s32 %s43, 1
    %p47 = scmp.eq.s32.totalorder %s9, 2
    %p48 = scmp.ne.s32.totalorder %s43, %s45
    %p49 = scmp.eq.s32.totalorder %s9, 0
    %p50 = por %p48, %p49
    %p51 = scmp.ne.s32.totalorder %s43, %s45
    %p52 = scmp.eq.s32.totalorder %s14, 2
    %p53 = por %p51, %p52
    %p54 = scmp.ne.s32.totalorder %s45, %s46
    %p55 = scmp.eq.s32.totalorder %s14, 0
    %p56 = por %p54, %p55
    %p57 = scmp.ne.s32.totalorder %s45, %s46
    %p58 = scmp.eq.s32.totalorder %s15, 2
    %p59 = por %p57, %p58
    %p61 = scmp.ne.s32.totalorder %s46, %s60
    %p62 = scmp.eq.s32.totalorder %s15, 0
    %p63 = por %p61, %p62
    %s65 = sadd.s32 %s64, 1
    %p68 = scmp.eq.s32.totalorder %s9, 2
    %p69 = scmp.ne.s32.totalorder %s64, %s66
    %p70 = scmp.eq.s32.totalorder %s9, 0
    %p71 = por %p69, %p70
    %p72 = scmp.ne.s32.totalorder %s64, %s66
    %p73 = scmp.eq.s32.totalorder %s14, 2
    %p74 = por %p72, %p73
    %p75 = scmp.ne.s32.totalorder %s66, %s67
    %p76 = scmp.eq.s32.totalorder %s14, 0
    %p77 = por %p75, %p76
    %p78 = scmp.ne.s32.totalorder %s66, %s67
    %p79 = scmp.eq.s32.totalorder %s15, 2
    %p80 = por %p78, %p79
    %p82 = scmp.ne.s32.totalorder %s67, %s81
    %p83 = scmp.eq.s32.totalorder %s15, 0
    %p84 = por %p82, %p83
    %s85 = ssub.s32 %s9, %s16
    %p86 = scmp.eq.s32.totalorder %s85, 0
    %s88 = sadd.s32 %s87, 1
    %s89 = scalar_select %p86, %s87, %s88
    %p92 = pneg %p86
    %p93 = scmp.eq.s32.totalorder %s9, 2
    %p94 = por %p92, %p93
    %p95 = scmp.ne.s32.totalorder %s87, %s90
    %p96 = scmp.eq.s32.totalorder %s9, 0
    %p97 = por %p95, %p96
    %p98 = scmp.ne.s32.totalorder %s87, %s90
    %p99 = scmp.eq.s32.totalorder %s14, 2
    %p100 = por %p98, %p99
    %p101 = scmp.ne.s32.totalorder %s90, %s91
    %p102 = scmp.eq.s32.totalorder %s14, 0
    %p103 = por %p101, %p102
    %p104 = scmp.ne.s32.totalorder %s90, %s91
    %p105 = scmp.eq.s32.totalorder %s15, 2
    %p106 = por %p104, %p105
    %p108 = scmp.ne.s32.totalorder %s91, %s107
    %p109 = scmp.eq.s32.totalorder %s15, 0
    %p110 = por %p108, %p109
    %p111 = scmp.le.s32.totalorder 1, %s9
    %p112 = scmp.lt.s32.totalorder %s9, 4
    %p113 = pnand %p111, %p112
    %p114 = pneg %p113
    // Predicated region
    $region9: #{encoder_forward.7} parent=5 // pred_check
      _
    $region10: #{encoder_forward.7} parent=5 // pred_check_branch
      %116 = sbr.rel (%p113) target = $region12
    $region11: #{encoder_forward.7} parent=5 // pred_region
      %s117 = ssub.s32 %s9, 1
      // Predicated region
      $region13: #{encoder_forward.7} parent=11 // pred_check
        %p118 = pneg %p56
      $region14: #{encoder_forward.7} parent=11 // pred_check_branch
        %120 = sbr.rel (%p118) target = $region16
      $region15: #{encoder_forward.7} parent=11 // pred_region
        _
      $region16: #{encoder_forward.7} parent=11 // pred_fallthru
        _
      // Predicated region
      $region17: #{encoder_forward.7} parent=11 // pred_check
        %p121 = pneg %p77
      $region18: #{encoder_forward.7} parent=11 // pred_check_branch
        %123 = sbr.rel (%p121) target = $region20
      $region19: #{encoder_forward.7} parent=11 // pred_region
        _
      $region20: #{encoder_forward.7} parent=11 // pred_fallthru
        _
    $region12: #{encoder_forward.7} parent=5 // pred_fallthru
      _
    %p124 = scmp.lt.s32.totalorder %s9, 3
    // Predicated region
    $region21: #{encoder_forward.7} parent=5 // pred_check
      %p125 = pneg %p124
    $region22: #{encoder_forward.7} parent=5 // pred_check_branch
      %127 = sbr.rel (%p125) target = $region24
    $region23: #{encoder_forward.7} parent=5 // pred_region
      // Predicated region
      $region25: #{encoder_forward.7} parent=23 // pred_check
        %p128 = pneg %p29
      $region26: #{encoder_forward.7} parent=23 // pred_check_branch
        %130 = sbr.rel (%p128) target = $region28
      $region27: #{encoder_forward.7} parent=23 // pred_region
        %s131 = smul.u32 128, %s9
        %p132 = scmp.lt.s32.totalorder %s131, 383
        %s133 = scalar_select %p132, %s131, 383
        %s134 = smul.addr %s133, 8
        %s135 = scalar_lea.vmem %s0, %s134
        %s136 = smul.u32 128, %s9
      $region28: #{encoder_forward.7} parent=23 // pred_fallthru
        _
    $region24: #{encoder_forward.7} parent=5 // pred_fallthru
      _
    %p137 = scmp.le.s32.totalorder 1, %s9
    %p138 = scmp.lt.s32.totalorder %s9, 4
    %p139 = pnand %p137, %p138
    %p140 = pneg %p139
    // Predicated region
    $region29: #{encoder_forward.7} parent=5 // pred_check
      _
    $region30: #{encoder_forward.7} parent=5 // pred_check_branch
      %142 = sbr.rel (%p139) target = $region32
    $region31: #{encoder_forward.7} parent=5 // pred_region
      %s143 = ssub.s32 %s9, 1
      %s144 = smul.u32 128, %s14
      %p145 = scmp.lt.s32.totalorder %s144, 383
      %s146 = scalar_select %p145, %s144, 383
      %s147 = smul.addr %s146, 8
      %s148 = scalar_lea.vmem %s0, %s147
      %p149 = pneg %p35
      %p150 = pneg %p32
      %p151 = pneg %p56
      %p152 = pneg %p53
      %p153 = pneg %p77
      %p154 = pneg %p74
      %p155 = pneg %p103
      %p156 = pneg %p100
      %s157 = smul.u32 128, %s14
      %p158 = scmp.lt.s32.totalorder %s157, 383
      %s159 = scalar_select %p158, %s157, 383
      %s160 = smul.addr %s159, 8
      %s161 = scalar_lea.vmem %s3, %s160
      %s162 = smul.u32 128, %s14
      %p163 = scmp.lt.s32.totalorder %s162, 383
      %s164 = scalar_select %p163, %s162, 383
      %s165 = smul.addr %s164, 8
      %s166 = scalar_lea.vmem %s0, %s165
      %s167 = smul.u32 128, %s14
      %s168 = smul.u32 128, %s14
      %p169 = scmp.lt.s32.totalorder %s168, 383
      %s170 = scalar_select %p169, %s168, 383
      %s171 = smul.addr %s170, 8
      %s172 = scalar_lea.vmem %s3, %s171
      %s173 = smul.u32 128, %s14
      %v174 = vld [vmem:[%s166] sm:$0xff]
      %v175 = vld [vmem:[%s166 + $0x8] sm:$0xff]
      %v176 = vld [vmem:[%s166 + $0x10] sm:$0xff]
      %v177 = vld [vmem:[%s166 + $0x18] sm:$0xff]
      %v178 = vld [vmem:[%s166 + $0x20] sm:$0xff]
      %v179 = vld [vmem:[%s166 + $0x28] sm:$0xff]
      %v180 = vld [vmem:[%s166 + $0x30] sm:$0xff]
      %v181 = vld [vmem:[%s166 + $0x38] sm:$0xff]
      %v182 = vld [vmem:[%s166 + $0x40] sm:$0xff]
      %v183 = vld [vmem:[%s166 + $0x48] sm:$0xff]
      %v184 = vld [vmem:[%s166 + $0x50] sm:$0xff]
      %v185 = vld [vmem:[%s166 + $0x58] sm:$0xff]
      %v186 = vld [vmem:[%s166 + $0x60] sm:$0xff]
      %v187 = vld [vmem:[%s166 + $0x68] sm:$0xff]
      %v188 = vld [vmem:[%s166 + $0x70] sm:$0xff]
      %v189 = vld [vmem:[%s166 + $0x78] sm:$0xff]
      %v190 = vld [vmem:[%s166 + $0x80] sm:$0xff]
      %v191 = vld [vmem:[%s166 + $0x88] sm:$0xff]
      %v192 = vld [vmem:[%s166 + $0x90] sm:$0xff]
      %v193 = vld [vmem:[%s166 + $0x98] sm:$0xff]
      %v194 = vld [vmem:[%s166 + $0xa0] sm:$0xff]
      %v195 = vld [vmem:[%s166 + $0xa8] sm:$0xff]
      %v196 = vld [vmem:[%s166 + $0xb0] sm:$0xff]
      %v197 = vld [vmem:[%s166 + $0xb8] sm:$0xff]
      %v198 = vld [vmem:[%s166 + $0xc0] sm:$0xff]
      %v199 = vld [vmem:[%s166 + $0xc8] sm:$0xff]
      %v200 = vld [vmem:[%s166 + $0xd0] sm:$0xff]
      %v201 = vld [vmem:[%s166 + $0xd8] sm:$0xff]
      %v202 = vld [vmem:[%s166 + $0xe0] sm:$0xff]
      %v203 = vld [vmem:[%s166 + $0xe8] sm:$0xff]
      %v204 = vld [vmem:[%s166 + $0xf0] sm:$0xff]
      %v205 = vld [vmem:[%s166 + $0xf8] sm:$0xff]
      %v206 = vld [vmem:[%s166 + $0x100] sm:$0xff]
      %v207 = vld [vmem:[%s166 + $0x108] sm:$0xff]
      %v208 = vld [vmem:[%s166 + $0x110] sm:$0xff]
      %v209 = vld [vmem:[%s166 + $0x118] sm:$0xff]
      %v210 = vld [vmem:[%s166 + $0x120] sm:$0xff]
      %v211 = vld [vmem:[%s166 + $0x128] sm:$0xff]
      %v212 = vld [vmem:[%s166 + $0x130] sm:$0xff]
      %v213 = vld [vmem:[%s166 + $0x138] sm:$0xff]
      %v214 = vld [vmem:[%s166 + $0x140] sm:$0xff]
      %v215 = vld [vmem:[%s166 + $0x148] sm:$0xff]
      %v216 = vld [vmem:[%s166 + $0x150] sm:$0xff]
      %v217 = vld [vmem:[%s166 + $0x158] sm:$0xff]
      %v218 = vld [vmem:[%s166 + $0x160] sm:$0xff]
      %v219 = vld [vmem:[%s166 + $0x168] sm:$0xff]
      %v220 = vld [vmem:[%s166 + $0x170] sm:$0xff]
      %v221 = vld [vmem:[%s166 + $0x178] sm:$0xff]
      %v222 = vld [vmem:[%s166 + $0x180] sm:$0xff]
      %v223 = vld [vmem:[%s166 + $0x188] sm:$0xff]
      %v224 = vld [vmem:[%s166 + $0x190] sm:$0xff]
      %v225 = vld [vmem:[%s166 + $0x198] sm:$0xff]
      %v226 = vld [vmem:[%s166 + $0x1a0] sm:$0xff]
      %v227 = vld [vmem:[%s166 + $0x1a8] sm:$0xff]
      %v228 = vld [vmem:[%s166 + $0x1b0] sm:$0xff]
      %v229 = vld [vmem:[%s166 + $0x1b8] sm:$0xff]
      %v230 = vld [vmem:[%s166 + $0x1c0] sm:$0xff]
      %v231 = vld [vmem:[%s166 + $0x1c8] sm:$0xff]
      %v232 = vld [vmem:[%s166 + $0x1d0] sm:$0xff]
      %v233 = vld [vmem:[%s166 + $0x1d8] sm:$0xff]
      %v234 = vld [vmem:[%s166 + $0x1e0] sm:$0xff]
      %v235 = vld [vmem:[%s166 + $0x1e8] sm:$0xff]
      %v236 = vld [vmem:[%s166 + $0x1f0] sm:$0xff]
      %v237 = vld [vmem:[%s166 + $0x1f8] sm:$0xff]
      %v238 = vld [vmem:[%s166 + $0x200] sm:$0xff]
      %v239 = vld [vmem:[%s166 + $0x208] sm:$0xff]
      %v240 = vld [vmem:[%s166 + $0x210] sm:$0xff]
      %v241 = vld [vmem:[%s166 + $0x218] sm:$0xff]
      %v242 = vld [vmem:[%s166 + $0x220] sm:$0xff]
      %v243 = vld [vmem:[%s166 + $0x228] sm:$0xff]
      %v244 = vld [vmem:[%s166 + $0x230] sm:$0xff]
      %v245 = vld [vmem:[%s166 + $0x238] sm:$0xff]
      %v246 = vld [vmem:[%s166 + $0x240] sm:$0xff]
      %v247 = vld [vmem:[%s166 + $0x248] sm:$0xff]
      %v248 = vld [vmem:[%s166 + $0x250] sm:$0xff]
      %v249 = vld [vmem:[%s166 + $0x258] sm:$0xff]
      %v250 = vld [vmem:[%s166 + $0x260] sm:$0xff]
      %v251 = vld [vmem:[%s166 + $0x268] sm:$0xff]
      %v252 = vld [vmem:[%s166 + $0x270] sm:$0xff]
      %v253 = vld [vmem:[%s166 + $0x278] sm:$0xff]
      %v254 = vld [vmem:[%s166 + $0x280] sm:$0xff]
      %v255 = vld [vmem:[%s166 + $0x288] sm:$0xff]
      %v256 = vld [vmem:[%s166 + $0x290] sm:$0xff]
      %v257 = vld [vmem:[%s166 + $0x298] sm:$0xff]
      %v258 = vld [vmem:[%s166 + $0x2a0] sm:$0xff]
      %v259 = vld [vmem:[%s166 + $0x2a8] sm:$0xff]
      %v260 = vld [vmem:[%s166 + $0x2b0] sm:$0xff]
      %v261 = vld [vmem:[%s166 + $0x2b8] sm:$0xff]
      %v262 = vld [vmem:[%s166 + $0x2c0] sm:$0xff]
      %v263 = vld [vmem:[%s166 + $0x2c8] sm:$0xff]
      %v264 = vld [vmem:[%s166 + $0x2d0] sm:$0xff]
      %v265 = vld [vmem:[%s166 + $0x2d8] sm:$0xff]
      %v266 = vld [vmem:[%s166 + $0x2e0] sm:$0xff]
      %v267 = vld [vmem:[%s166 + $0x2e8] sm:$0xff]
      %v268 = vld [vmem:[%s166 + $0x2f0] sm:$0xff]
      %v269 = vld [vmem:[%s166 + $0x2f8] sm:$0xff]
      %v270 = vld [vmem:[%s166 + $0x300] sm:$0xff]
      %v271 = vld [vmem:[%s166 + $0x308] sm:$0xff]
      %v272 = vld [vmem:[%s166 + $0x310] sm:$0xff]
      %v273 = vld [vmem:[%s166 + $0x318] sm:$0xff]
      %v274 = vld [vmem:[%s166 + $0x320] sm:$0xff]
      %v275 = vld [vmem:[%s166 + $0x328] sm:$0xff]
      %v276 = vld [vmem:[%s166 + $0x330] sm:$0xff]
      %v277 = vld [vmem:[%s166 + $0x338] sm:$0xff]
      %v278 = vld [vmem:[%s166 + $0x340] sm:$0xff]
      %v279 = vld [vmem:[%s166 + $0x348] sm:$0xff]
      %v280 = vld [vmem:[%s166 + $0x350] sm:$0xff]
      %v281 = vld [vmem:[%s166 + $0x358] sm:$0xff]
      %v282 = vld [vmem:[%s166 + $0x360] sm:$0xff]
      %v283 = vld [vmem:[%s166 + $0x368] sm:$0xff]
      %v284 = vld [vmem:[%s166 + $0x370] sm:$0xff]
      %v285 = vld [vmem:[%s166 + $0x378] sm:$0xff]
      %v286 = vld [vmem:[%s166 + $0x380] sm:$0xff]
      %v287 = vld [vmem:[%s166 + $0x388] sm:$0xff]
      %v288 = vld [vmem:[%s166 + $0x390] sm:$0xff]
      %v289 = vld [vmem:[%s166 + $0x398] sm:$0xff]
      %v290 = vld [vmem:[%s166 + $0x3a0] sm:$0xff]
      %v291 = vld [vmem:[%s166 + $0x3a8] sm:$0xff]
      %v292 = vld [vmem:[%s166 + $0x3b0] sm:$0xff]
      %v293 = vld [vmem:[%s166 + $0x3b8] sm:$0xff]
      %v294 = vld [vmem:[%s166 + $0x3c0] sm:$0xff]
      %v295 = vld [vmem:[%s166 + $0x3c8] sm:$0xff]
      %v296 = vld [vmem:[%s166 + $0x3d0] sm:$0xff]
      %v297 = vld [vmem:[%s166 + $0x3d8] sm:$0xff]
      %v298 = vld [vmem:[%s166 + $0x3e0] sm:$0xff]
      %v299 = vld [vmem:[%s166 + $0x3e8] sm:$0xff]
      %v300 = vld [vmem:[%s166 + $0x3f0] sm:$0xff]
      %v301 = vld [vmem:[%s166 + $0x3f8] sm:$0xff]
      %v302 = vld [vmem:[%s1] sm:$0x1]
      %v304 = vlaneseq
      %v305 = vshrl.u32 %v304, 7
      %v306 = vsub.s32 0, %v305
      %v307 = vrot.slane %v302, %v306
      %v309 = vmul.f32 %v174, %v307
      %v310 = vmul.f32 %v175, %v307
      %v311 = vmul.f32 %v176, %v307
      %v312 = vmul.f32 %v177, %v307
      %v313 = vmul.f32 %v178, %v307
      %v314 = vmul.f32 %v179, %v307
      %v315 = vmul.f32 %v180, %v307
      %v316 = vmul.f32 %v181, %v307
      %v317 = vmul.f32 %v182, %v307
      %v318 = vmul.f32 %v183, %v307
      %v319 = vmul.f32 %v184, %v307
      %v320 = vmul.f32 %v185, %v307
      %v321 = vmul.f32 %v186, %v307
      %v322 = vmul.f32 %v187, %v307
      %v323 = vmul.f32 %v188, %v307
      %v324 = vmul.f32 %v189, %v307
      %v325 = vmul.f32 %v190, %v307
      %v326 = vmul.f32 %v191, %v307
      %v327 = vmul.f32 %v192, %v307
      %v328 = vmul.f32 %v193, %v307
      %v329 = vmul.f32 %v194, %v307
      %v330 = vmul.f32 %v195, %v307
      %v331 = vmul.f32 %v196, %v307
      %v332 = vmul.f32 %v197, %v307
      %v333 = vmul.f32 %v198, %v307
      %v334 = vmul.f32 %v199, %v307
      %v335 = vmul.f32 %v200, %v307
      %v336 = vmul.f32 %v201, %v307
      %v337 = vmul.f32 %v202, %v307
      %v338 = vmul.f32 %v203, %v307
      %v339 = vmul.f32 %v204, %v307
      %v340 = vmul.f32 %v205, %v307
      %v341 = vmul.f32 %v206, %v307
      %v342 = vmul.f32 %v207, %v307
      %v343 = vmul.f32 %v208, %v307
      %v344 = vmul.f32 %v209, %v307
      %v345 = vmul.f32 %v210, %v307
      %v346 = vmul.f32 %v211, %v307
      %v347 = vmul.f32 %v212, %v307
      %v348 = vmul.f32 %v213, %v307
      %v349 = vmul.f32 %v214, %v307
      %v350 = vmul.f32 %v215, %v307
      %v351 = vmul.f32 %v216, %v307
      %v352 = vmul.f32 %v217, %v307
      %v353 = vmul.f32 %v218, %v307
      %v354 = vmul.f32 %v219, %v307
      %v355 = vmul.f32 %v220, %v307
      %v356 = vmul.f32 %v221, %v307
      %v357 = vmul.f32 %v222, %v307
      %v358 = vmul.f32 %v223, %v307
      %v359 = vmul.f32 %v224, %v307
      %v360 = vmul.f32 %v225, %v307
      %v361 = vmul.f32 %v226, %v307
      %v362 = vmul.f32 %v227, %v307
      %v363 = vmul.f32 %v228, %v307
      %v364 = vmul.f32 %v229, %v307
      %v365 = vmul.f32 %v230, %v307
      %v366 = vmul.f32 %v231, %v307
      %v367 = vmul.f32 %v232, %v307
      %v368 = vmul.f32 %v233, %v307
      %v369 = vmul.f32 %v234, %v307
      %v370 = vmul.f32 %v235, %v307
      %v371 = vmul.f32 %v236, %v307
      %v372 = vmul.f32 %v237, %v307
      %v373 = vmul.f32 %v238, %v307
      %v374 = vmul.f32 %v239, %v307
      %v375 = vmul.f32 %v240, %v307
      %v376 = vmul.f32 %v241, %v307
      %v377 = vmul.f32 %v242, %v307
      %v378 = vmul.f32 %v243, %v307
      %v379 = vmul.f32 %v244, %v307
      %v380 = vmul.f32 %v245, %v307
      %v381 = vmul.f32 %v246, %v307
      %v382 = vmul.f32 %v247, %v307
      %v383 = vmul.f32 %v248, %v307
      %v384 = vmul.f32 %v249, %v307
      %v385 = vmul.f32 %v250, %v307
      %v386 = vmul.f32 %v251, %v307
      %v387 = vmul.f32 %v252, %v307
      %v388 = vmul.f32 %v253, %v307
      %v389 = vmul.f32 %v254, %v307
      %v390 = vmul.f32 %v255, %v307
      %v391 = vmul.f32 %v256, %v307
      %v392 = vmul.f32 %v257, %v307
      %v393 = vmul.f32 %v258, %v307
      %v394 = vmul.f32 %v259, %v307
      %v395 = vmul.f32 %v260, %v307
      %v396 = vmul.f32 %v261, %v307
      %v397 = vmul.f32 %v262, %v307
      %v398 = vmul.f32 %v263, %v307
      %v399 = vmul.f32 %v264, %v307
      %v400 = vmul.f32 %v265, %v307
      %v401 = vmul.f32 %v266, %v307
      %v402 = vmul.f32 %v267, %v307
      %v403 = vmul.f32 %v268, %v307
      %v404 = vmul.f32 %v269, %v307
      %v405 = vmul.f32 %v270, %v307
      %v406 = vmul.f32 %v271, %v307
      %v407 = vmul.f32 %v272, %v307
      %v408 = vmul.f32 %v273, %v307
      %v409 = vmul.f32 %v274, %v307
      %v410 = vmul.f32 %v275, %v307
      %v411 = vmul.f32 %v276, %v307
      %v412 = vmul.f32 %v277, %v307
      %v413 = vmul.f32 %v278, %v307
      %v414 = vmul.f32 %v279, %v307
      %v415 = vmul.f32 %v280, %v307
      %v416 = vmul.f32 %v281, %v307
      %v417 = vmul.f32 %v282, %v307
      %v418 = vmul.f32 %v283, %v307
      %v419 = vmul.f32 %v284, %v307
      %v420 = vmul.f32 %v285, %v307
      %v421 = vmul.f32 %v286, %v307
      %v422 = vmul.f32 %v287, %v307
      %v423 = vmul.f32 %v288, %v307
      %v424 = vmul.f32 %v289, %v307
      %v425 = vmul.f32 %v290, %v307
      %v426 = vmul.f32 %v291, %v307
      %v427 = vmul.f32 %v292, %v307
      %v428 = vmul.f32 %v293, %v307
      %v429 = vmul.f32 %v294, %v307
      %v430 = vmul.f32 %v295, %v307
      %v431 = vmul.f32 %v296, %v307
      %v432 = vmul.f32 %v297, %v307
      %v433 = vmul.f32 %v298, %v307
      %v434 = vmul.f32 %v299, %v307
      %v435 = vmul.f32 %v300, %v307
      %v436 = vmul.f32 %v301, %v307
      %v437 = vld [vmem:[%s2] sm:$0x1]
      %v439 = vlaneseq
      %v440 = vshrl.u32 %v439, 7
      %v441 = vsub.s32 0, %v440
      %v442 = vrot.slane %v437, %v441
      %v444 = vadd.f32 %v309, %v442
      %v445 = vadd.f32 %v310, %v442
      %v446 = vadd.f32 %v311, %v442
      %v447 = vadd.f32 %v312, %v442
      %v448 = vadd.f32 %v313, %v442
      %v449 = vadd.f32 %v314, %v442
      %v450 = vadd.f32 %v315, %v442
      %v451 = vadd.f32 %v316, %v442
      %v452 = vadd.f32 %v317, %v442
      %v453 = vadd.f32 %v318, %v442
      %v454 = vadd.f32 %v319, %v442
      %v455 = vadd.f32 %v320, %v442
      %v456 = vadd.f32 %v321, %v442
      %v457 = vadd.f32 %v322, %v442
      %v458 = vadd.f32 %v323, %v442
      %v459 = vadd.f32 %v324, %v442
      %v460 = vadd.f32 %v325, %v442
      %v461 = vadd.f32 %v326, %v442
      %v462 = vadd.f32 %v327, %v442
      %v463 = vadd.f32 %v328, %v442
      %v464 = vadd.f32 %v329, %v442
      %v465 = vadd.f32 %v330, %v442
      %v466 = vadd.f32 %v331, %v442
      %v467 = vadd.f32 %v332, %v442
      %v468 = vadd.f32 %v333, %v442
      %v469 = vadd.f32 %v334, %v442
      %v470 = vadd.f32 %v335, %v442
      %v471 = vadd.f32 %v336, %v442
      %v472 = vadd.f32 %v337, %v442
      %v473 = vadd.f32 %v338, %v442
      %v474 = vadd.f32 %v339, %v442
      %v475 = vadd.f32 %v340, %v442
      %v476 = vadd.f32 %v341, %v442
      %v477 = vadd.f32 %v342, %v442
      %v478 = vadd.f32 %v343, %v442
      %v479 = vadd.f32 %v344, %v442
      %v480 = vadd.f32 %v345, %v442
      %v481 = vadd.f32 %v346, %v442
      %v482 = vadd.f32 %v347, %v442
      %v483 = vadd.f32 %v348, %v442
      %v484 = vadd.f32 %v349, %v442
      %v485 = vadd.f32 %v350, %v442
      %v486 = vadd.f32 %v351, %v442
      %v487 = vadd.f32 %v352, %v442
      %v488 = vadd.f32 %v353, %v442
      %v489 = vadd.f32 %v354, %v442
      %v490 = vadd.f32 %v355, %v442
      %v491 = vadd.f32 %v356, %v442
      %v492 = vadd.f32 %v357, %v442
      %v493 = vadd.f32 %v358, %v442
      %v494 = vadd.f32 %v359, %v442
      %v495 = vadd.f32 %v360, %v442
      %v496 = vadd.f32 %v361, %v442
      %v497 = vadd.f32 %v362, %v442
      %v498 = vadd.f32 %v363, %v442
      %v499 = vadd.f32 %v364, %v442
      %v500 = vadd.f32 %v365, %v442
      %v501 = vadd.f32 %v366, %v442
      %v502 = vadd.f32 %v367, %v442
      %v503 = vadd.f32 %v368, %v442
      %v504 = vadd.f32 %v369, %v442
      %v505 = vadd.f32 %v370, %v442
      %v506 = vadd.f32 %v371, %v442
      %v507 = vadd.f32 %v372, %v442
      %v508 = vadd.f32 %v373, %v442
      %v509 = vadd.f32 %v374, %v442
      %v510 = vadd.f32 %v375, %v442
      %v511 = vadd.f32 %v376, %v442
      %v512 = vadd.f32 %v377, %v442
      %v513 = vadd.f32 %v378, %v442
      %v514 = vadd.f32 %v379, %v442
      %v515 = vadd.f32 %v380, %v442
      %v516 = vadd.f32 %v381, %v442
      %v517 = vadd.f32 %v382, %v442
      %v518 = vadd.f32 %v383, %v442
      %v519 = vadd.f32 %v384, %v442
      %v520 = vadd.f32 %v385, %v442
      %v521 = vadd.f32 %v386, %v442
      %v522 = vadd.f32 %v387, %v442
      %v523 = vadd.f32 %v388, %v442
      %v524 = vadd.f32 %v389, %v442
      %v525 = vadd.f32 %v390, %v442
      %v526 = vadd.f32 %v391, %v442
      %v527 = vadd.f32 %v392, %v442
      %v528 = vadd.f32 %v393, %v442
      %v529 = vadd.f32 %v394, %v442
      %v530 = vadd.f32 %v395, %v442
      %v531 = vadd.f32 %v396, %v442
      %v532 = vadd.f32 %v397, %v442
      %v533 = vadd.f32 %v398, %v442
      %v534 = vadd.f32 %v399, %v442
      %v535 = vadd.f32 %v400, %v442
      %v536 = vadd.f32 %v401, %v442
      %v537 = vadd.f32 %v402, %v442
      %v538 = vadd.f32 %v403, %v442
      %v539 = vadd.f32 %v404, %v442
      %v540 = vadd.f32 %v405, %v442
      %v541 = vadd.f32 %v406, %v442
      %v542 = vadd.f32 %v407, %v442
      %v543 = vadd.f32 %v408, %v442
      %v544 = vadd.f32 %v409, %v442
      %v545 = vadd.f32 %v410, %v442
      %v546 = vadd.f32 %v411, %v442
      %v547 = vadd.f32 %v412, %v442
      %v548 = vadd.f32 %v413, %v442
      %v549 = vadd.f32 %v414, %v442
      %v550 = vadd.f32 %v415, %v442
      %v551 = vadd.f32 %v416, %v442
      %v552 = vadd.f32 %v417, %v442
      %v553 = vadd.f32 %v418, %v442
      %v554 = vadd.f32 %v419, %v442
      %v555 = vadd.f32 %v420, %v442
      %v556 = vadd.f32 %v421, %v442
      %v557 = vadd.f32 %v422, %v442
      %v558 = vadd.f32 %v423, %v442
      %v559 = vadd.f32 %v424, %v442
      %v560 = vadd.f32 %v425, %v442
      %v561 = vadd.f32 %v426, %v442
      %v562 = vadd.f32 %v427, %v442
      %v563 = vadd.f32 %v428, %v442
      %v564 = vadd.f32 %v429, %v442
      %v565 = vadd.f32 %v430, %v442
      %v566 = vadd.f32 %v431, %v442
      %v567 = vadd.f32 %v432, %v442
      %v568 = vadd.f32 %v433, %v442
      %v569 = vadd.f32 %v434, %v442
      %v570 = vadd.f32 %v435, %v442
      %v571 = vadd.f32 %v436, %v442
      %v572 = vmax.f32 %v444, 0.0
      %v573 = vmax.f32 %v445, 0.0
      %v574 = vmax.f32 %v446, 0.0
      %v575 = vmax.f32 %v447, 0.0
      %v576 = vmax.f32 %v448, 0.0
      %v577 = vmax.f32 %v449, 0.0
      %v578 = vmax.f32 %v450, 0.0
      %v579 = vmax.f32 %v451, 0.0
      %v580 = vmax.f32 %v452, 0.0
      %v581 = vmax.f32 %v453, 0.0
      %v582 = vmax.f32 %v454, 0.0
      %v583 = vmax.f32 %v455, 0.0
      %v584 = vmax.f32 %v456, 0.0
      %v585 = vmax.f32 %v457, 0.0
      %v586 = vmax.f32 %v458, 0.0
      %v587 = vmax.f32 %v459, 0.0
      %v588 = vmax.f32 %v460, 0.0
      %v589 = vmax.f32 %v461, 0.0
      %v590 = vmax.f32 %v462, 0.0
      %v591 = vmax.f32 %v463, 0.0
      %v592 = vmax.f32 %v464, 0.0
      %v593 = vmax.f32 %v465, 0.0
      %v594 = vmax.f32 %v466, 0.0
      %v595 = vmax.f32 %v467, 0.0
      %v596 = vmax.f32 %v468, 0.0
      %v597 = vmax.f32 %v469, 0.0
      %v598 = vmax.f32 %v470, 0.0
      %v599 = vmax.f32 %v471, 0.0
      %v600 = vmax.f32 %v472, 0.0
      %v601 = vmax.f32 %v473, 0.0
      %v602 = vmax.f32 %v474, 0.0
      %v603 = vmax.f32 %v475, 0.0
      %v604 = vmax.f32 %v476, 0.0
      %v605 = vmax.f32 %v477, 0.0
      %v606 = vmax.f32 %v478, 0.0
      %v607 = vmax.f32 %v479, 0.0
      %v608 = vmax.f32 %v480, 0.0
      %v609 = vmax.f32 %v481, 0.0
      %v610 = vmax.f32 %v482, 0.0
      %v611 = vmax.f32 %v483, 0.0
      %v612 = vmax.f32 %v484, 0.0
      %v613 = vmax.f32 %v485, 0.0
      %v614 = vmax.f32 %v486, 0.0
      %v615 = vmax.f32 %v487, 0.0
      %v616 = vmax.f32 %v488, 0.0
      %v617 = vmax.f32 %v489, 0.0
      %v618 = vmax.f32 %v490, 0.0
      %v619 = vmax.f32 %v491, 0.0
      %v620 = vmax.f32 %v492, 0.0
      %v621 = vmax.f32 %v493, 0.0
      %v622 = vmax.f32 %v494, 0.0
      %v623 = vmax.f32 %v495, 0.0
      %v624 = vmax.f32 %v496, 0.0
      %v625 = vmax.f32 %v497, 0.0
      %v626 = vmax.f32 %v498, 0.0
      %v627 = vmax.f32 %v499, 0.0
      %v628 = vmax.f32 %v500, 0.0
      %v629 = vmax.f32 %v501, 0.0
      %v630 = vmax.f32 %v502, 0.0
      %v631 = vmax.f32 %v503, 0.0
      %v632 = vmax.f32 %v504, 0.0
      %v633 = vmax.f32 %v505, 0.0
      %v634 = vmax.f32 %v506, 0.0
      %v635 = vmax.f32 %v507, 0.0
      %v636 = vmax.f32 %v508, 0.0
      %v637 = vmax.f32 %v509, 0.0
      %v638 = vmax.f32 %v510, 0.0
      %v639 = vmax.f32 %v511, 0.0
      %v640 = vmax.f32 %v512, 0.0
      %v641 = vmax.f32 %v513, 0.0
      %v642 = vmax.f32 %v514, 0.0
      %v643 = vmax.f32 %v515, 0.0
      %v644 = vmax.f32 %v516, 0.0
      %v645 = vmax.f32 %v517, 0.0
      %v646 = vmax.f32 %v518, 0.0
      %v647 = vmax.f32 %v519, 0.0
      %v648 = vmax.f32 %v520, 0.0
      %v649 = vmax.f32 %v521, 0.0
      %v650 = vmax.f32 %v522, 0.0
      %v651 = vmax.f32 %v523, 0.0
      %v652 = vmax.f32 %v524, 0.0
      %v653 = vmax.f32 %v525, 0.0
      %v654 = vmax.f32 %v526, 0.0
      %v655 = vmax.f32 %v527, 0.0
      %v656 = vmax.f32 %v528, 0.0
      %v657 = vmax.f32 %v529, 0.0
      %v658 = vmax.f32 %v530, 0.0
      %v659 = vmax.f32 %v531, 0.0
      %v660 = vmax.f32 %v532, 0.0
      %v661 = vmax.f32 %v533, 0.0
      %v662 = vmax.f32 %v534, 0.0
      %v663 = vmax.f32 %v535, 0.0
      %v664 = vmax.f32 %v536, 0.0
      %v665 = vmax.f32 %v537, 0.0
      %v666 = vmax.f32 %v538, 0.0
      %v667 = vmax.f32 %v539, 0.0
      %v668 = vmax.f32 %v540, 0.0
      %v669 = vmax.f32 %v541, 0.0
      %v670 = vmax.f32 %v542, 0.0
      %v671 = vmax.f32 %v543, 0.0
      %v672 = vmax.f32 %v544, 0.0
      %v673 = vmax.f32 %v545, 0.0
      %v674 = vmax.f32 %v546, 0.0
      %v675 = vmax.f32 %v547, 0.0
      %v676 = vmax.f32 %v548, 0.0
      %v677 = vmax.f32 %v549, 0.0
      %v678 = vmax.f32 %v550, 0.0
      %v679 = vmax.f32 %v551, 0.0
      %v680 = vmax.f32 %v552, 0.0
      %v681 = vmax.f32 %v553, 0.0
      %v682 = vmax.f32 %v554, 0.0
      %v683 = vmax.f32 %v555, 0.0
      %v684 = vmax.f32 %v556, 0.0
      %v685 = vmax.f32 %v557, 0.0
      %v686 = vmax.f32 %v558, 0.0
      %v687 = vmax.f32 %v559, 0.0
      %v688 = vmax.f32 %v560, 0.0
      %v689 = vmax.f32 %v561, 0.0
      %v690 = vmax.f32 %v562, 0.0
      %v691 = vmax.f32 %v563, 0.0
      %v692 = vmax.f32 %v564, 0.0
      %v693 = vmax.f32 %v565, 0.0
      %v694 = vmax.f32 %v566, 0.0
      %v695 = vmax.f32 %v567, 0.0
      %v696 = vmax.f32 %v568, 0.0
      %v697 = vmax.f32 %v569, 0.0
      %v698 = vmax.f32 %v570, 0.0
      %v699 = vmax.f32 %v571, 0.0
      %vm700 = vcmask 130048
      %701 = vst.msk [vmem:[%s172] sm:$0xff] %vm700, %v572
      %702 = vst.msk [vmem:[%s172 + $0x8] sm:$0xff] %vm700, %v573
      %703 = vst.msk [vmem:[%s172 + $0x10] sm:$0xff] %vm700, %v574
      %704 = vst.msk [vmem:[%s172 + $0x18] sm:$0xff] %vm700, %v575
      %705 = vst.msk [vmem:[%s172 + $0x20] sm:$0xff] %vm700, %v576
      %706 = vst.msk [vmem:[%s172 + $0x28] sm:$0xff] %vm700, %v577
      %707 = vst.msk [vmem:[%s172 + $0x30] sm:$0xff] %vm700, %v578
      %708 = vst.msk [vmem:[%s172 + $0x38] sm:$0xff] %vm700, %v579
      %709 = vst.msk [vmem:[%s172 + $0x40] sm:$0xff] %vm700, %v580
      %710 = vst.msk [vmem:[%s172 + $0x48] sm:$0xff] %vm700, %v581
      %711 = vst.msk [vmem:[%s172 + $0x50] sm:$0xff] %vm700, %v582
      %712 = vst.msk [vmem:[%s172 + $0x58] sm:$0xff] %vm700, %v583
      %713 = vst.msk [vmem:[%s172 + $0x60] sm:$0xff] %vm700, %v584
      %714 = vst.msk [vmem:[%s172 + $0x68] sm:$0xff] %vm700, %v585
      %715 = vst.msk [vmem:[%s172 + $0x70] sm:$0xff] %vm700, %v586
      %716 = vst.msk [vmem:[%s172 + $0x78] sm:$0xff] %vm700, %v587
      %717 = vst.msk [vmem:[%s172 + $0x80] sm:$0xff] %vm700, %v588
      %718 = vst.msk [vmem:[%s172 + $0x88] sm:$0xff] %vm700, %v589
      %719 = vst.msk [vmem:[%s172 + $0x90] sm:$0xff] %vm700, %v590
      %720 = vst.msk [vmem:[%s172 + $0x98] sm:$0xff] %vm700, %v591
      %721 = vst.msk [vmem:[%s172 + $0xa0] sm:$0xff] %vm700, %v592
      %722 = vst.msk [vmem:[%s172 + $0xa8] sm:$0xff] %vm700, %v593
      %723 = vst.msk [vmem:[%s172 + $0xb0] sm:$0xff] %vm700, %v594
      %724 = vst.msk [vmem:[%s172 + $0xb8] sm:$0xff] %vm700, %v595
      %725 = vst.msk [vmem:[%s172 + $0xc0] sm:$0xff] %vm700, %v596
      %726 = vst.msk [vmem:[%s172 + $0xc8] sm:$0xff] %vm700, %v597
      %727 = vst.msk [vmem:[%s172 + $0xd0] sm:$0xff] %vm700, %v598
      %728 = vst.msk [vmem:[%s172 + $0xd8] sm:$0xff] %vm700, %v599
      %729 = vst.msk [vmem:[%s172 + $0xe0] sm:$0xff] %vm700, %v600
      %730 = vst.msk [vmem:[%s172 + $0xe8] sm:$0xff] %vm700, %v601
      %731 = vst.msk [vmem:[%s172 + $0xf0] sm:$0xff] %vm700, %v602
      %732 = vst.msk [vmem:[%s172 + $0xf8] sm:$0xff] %vm700, %v603
      %733 = vst.msk [vmem:[%s172 + $0x100] sm:$0xff] %vm700, %v604
      %734 = vst.msk [vmem:[%s172 + $0x108] sm:$0xff] %vm700, %v605
      %735 = vst.msk [vmem:[%s172 + $0x110] sm:$0xff] %vm700, %v606
      %736 = vst.msk [vmem:[%s172 + $0x118] sm:$0xff] %vm700, %v607
      %737 = vst.msk [vmem:[%s172 + $0x120] sm:$0xff] %vm700, %v608
      %738 = vst.msk [vmem:[%s172 + $0x128] sm:$0xff] %vm700, %v609
      %739 = vst.msk [vmem:[%s172 + $0x130] sm:$0xff] %vm700, %v610
      %740 = vst.msk [vmem:[%s172 + $0x138] sm:$0xff] %vm700, %v611
      %741 = vst.msk [vmem:[%s172 + $0x140] sm:$0xff] %vm700, %v612
      %742 = vst.msk [vmem:[%s172 + $0x148] sm:$0xff] %vm700, %v613
      %743 = vst.msk [vmem:[%s172 + $0x150] sm:$0xff] %vm700, %v614
      %744 = vst.msk [vmem:[%s172 + $0x158] sm:$0xff] %vm700, %v615
      %745 = vst.msk [vmem:[%s172 + $0x160] sm:$0xff] %vm700, %v616
      %746 = vst.msk [vmem:[%s172 + $0x168] sm:$0xff] %vm700, %v617
      %747 = vst.msk [vmem:[%s172 + $0x170] sm:$0xff] %vm700, %v618
      %748 = vst.msk [vmem:[%s172 + $0x178] sm:$0xff] %vm700, %v619
      %749 = vst.msk [vmem:[%s172 + $0x180] sm:$0xff] %vm700, %v620
      %750 = vst.msk [vmem:[%s172 + $0x188] sm:$0xff] %vm700, %v621
      %751 = vst.msk [vmem:[%s172 + $0x190] sm:$0xff] %vm700, %v622
      %752 = vst.msk [vmem:[%s172 + $0x198] sm:$0xff] %vm700, %v623
      %753 = vst.msk [vmem:[%s172 + $0x1a0] sm:$0xff] %vm700, %v624
      %754 = vst.msk [vmem:[%s172 + $0x1a8] sm:$0xff] %vm700, %v625
      %755 = vst.msk [vmem:[%s172 + $0x1b0] sm:$0xff] %vm700, %v626
      %756 = vst.msk [vmem:[%s172 + $0x1b8] sm:$0xff] %vm700, %v627
      %757 = vst.msk [vmem:[%s172 + $0x1c0] sm:$0xff] %vm700, %v628
      %758 = vst.msk [vmem:[%s172 + $0x1c8] sm:$0xff] %vm700, %v629
      %759 = vst.msk [vmem:[%s172 + $0x1d0] sm:$0xff] %vm700, %v630
      %760 = vst.msk [vmem:[%s172 + $0x1d8] sm:$0xff] %vm700, %v631
      %761 = vst.msk [vmem:[%s172 + $0x1e0] sm:$0xff] %vm700, %v632
      %762 = vst.msk [vmem:[%s172 + $0x1e8] sm:$0xff] %vm700, %v633
      %763 = vst.msk [vmem:[%s172 + $0x1f0] sm:$0xff] %vm700, %v634
      %764 = vst.msk [vmem:[%s172 + $0x1f8] sm:$0xff] %vm700, %v635
      %765 = vst.msk [vmem:[%s172 + $0x200] sm:$0xff] %vm700, %v636
      %766 = vst.msk [vmem:[%s172 + $0x208] sm:$0xff] %vm700, %v637
      %767 = vst.msk [vmem:[%s172 + $0x210] sm:$0xff] %vm700, %v638
      %768 = vst.msk [vmem:[%s172 + $0x218] sm:$0xff] %vm700, %v639
      %769 = vst.msk [vmem:[%s172 + $0x220] sm:$0xff] %vm700, %v640
      %770 = vst.msk [vmem:[%s172 + $0x228] sm:$0xff] %vm700, %v641
      %771 = vst.msk [vmem:[%s172 + $0x230] sm:$0xff] %vm700, %v642
      %772 = vst.msk [vmem:[%s172 + $0x238] sm:$0xff] %vm700, %v643
      %773 = vst.msk [vmem:[%s172 + $0x240] sm:$0xff] %vm700, %v644
      %774 = vst.msk [vmem:[%s172 + $0x248] sm:$0xff] %vm700, %v645
      %775 = vst.msk [vmem:[%s172 + $0x250] sm:$0xff] %vm700, %v646
      %776 = vst.msk [vmem:[%s172 + $0x258] sm:$0xff] %vm700, %v647
      %777 = vst.msk [vmem:[%s172 + $0x260] sm:$0xff] %vm700, %v648
      %778 = vst.msk [vmem:[%s172 + $0x268] sm:$0xff] %vm700, %v649
      %779 = vst.msk [vmem:[%s172 + $0x270] sm:$0xff] %vm700, %v650
      %780 = vst.msk [vmem:[%s172 + $0x278] sm:$0xff] %vm700, %v651
      %781 = vst.msk [vmem:[%s172 + $0x280] sm:$0xff] %vm700, %v652
      %782 = vst.msk [vmem:[%s172 + $0x288] sm:$0xff] %vm700, %v653
      %783 = vst.msk [vmem:[%s172 + $0x290] sm:$0xff] %vm700, %v654
      %784 = vst.msk [vmem:[%s172 + $0x298] sm:$0xff] %vm700, %v655
      %785 = vst.msk [vmem:[%s172 + $0x2a0] sm:$0xff] %vm700, %v656
      %786 = vst.msk [vmem:[%s172 + $0x2a8] sm:$0xff] %vm700, %v657
      %787 = vst.msk [vmem:[%s172 + $0x2b0] sm:$0xff] %vm700, %v658
      %788 = vst.msk [vmem:[%s172 + $0x2b8] sm:$0xff] %vm700, %v659
      %789 = vst.msk [vmem:[%s172 + $0x2c0] sm:$0xff] %vm700, %v660
      %790 = vst.msk [vmem:[%s172 + $0x2c8] sm:$0xff] %vm700, %v661
      %791 = vst.msk [vmem:[%s172 + $0x2d0] sm:$0xff] %vm700, %v662
      %792 = vst.msk [vmem:[%s172 + $0x2d8] sm:$0xff] %vm700, %v663
      %793 = vst.msk [vmem:[%s172 + $0x2e0] sm:$0xff] %vm700, %v664
      %794 = vst.msk [vmem:[%s172 + $0x2e8] sm:$0xff] %vm700, %v665
      %795 = vst.msk [vmem:[%s172 + $0x2f0] sm:$0xff] %vm700, %v666
      %796 = vst.msk [vmem:[%s172 + $0x2f8] sm:$0xff] %vm700, %v667
      %797 = vst.msk [vmem:[%s172 + $0x300] sm:$0xff] %vm700, %v668
      %798 = vst.msk [vmem:[%s172 + $0x308] sm:$0xff] %vm700, %v669
      %799 = vst.msk [vmem:[%s172 + $0x310] sm:$0xff] %vm700, %v670
      %800 = vst.msk [vmem:[%s172 + $0x318] sm:$0xff] %vm700, %v671
      %801 = vst.msk [vmem:[%s172 + $0x320] sm:$0xff] %vm700, %v672
      %802 = vst.msk [vmem:[%s172 + $0x328] sm:$0xff] %vm700, %v673
      %803 = vst.msk [vmem:[%s172 + $0x330] sm:$0xff] %vm700, %v674
      %804 = vst.msk [vmem:[%s172 + $0x338] sm:$0xff] %vm700, %v675
      %805 = vst.msk [vmem:[%s172 + $0x340] sm:$0xff] %vm700, %v676
      %806 = vst.msk [vmem:[%s172 + $0x348] sm:$0xff] %vm700, %v677
      %807 = vst.msk [vmem:[%s172 + $0x350] sm:$0xff] %vm700, %v678
      %808 = vst.msk [vmem:[%s172 + $0x358] sm:$0xff] %vm700, %v679
      %809 = vst.msk [vmem:[%s172 + $0x360] sm:$0xff] %vm700, %v680
      %810 = vst.msk [vmem:[%s172 + $0x368] sm:$0xff] %vm700, %v681
      %811 = vst.msk [vmem:[%s172 + $0x370] sm:$0xff] %vm700, %v682
      %812 = vst.msk [vmem:[%s172 + $0x378] sm:$0xff] %vm700, %v683
      %813 = vst.msk [vmem:[%s172 + $0x380] sm:$0xff] %vm700, %v684
      %814 = vst.msk [vmem:[%s172 + $0x388] sm:$0xff] %vm700, %v685
      %815 = vst.msk [vmem:[%s172 + $0x390] sm:$0xff] %vm700, %v686
      %816 = vst.msk [vmem:[%s172 + $0x398] sm:$0xff] %vm700, %v687
      %817 = vst.msk [vmem:[%s172 + $0x3a0] sm:$0xff] %vm700, %v688
      %818 = vst.msk [vmem:[%s172 + $0x3a8] sm:$0xff] %vm700, %v689
      %819 = vst.msk [vmem:[%s172 + $0x3b0] sm:$0xff] %vm700, %v690
      %820 = vst.msk [vmem:[%s172 + $0x3b8] sm:$0xff] %vm700, %v691
      %821 = vst.msk [vmem:[%s172 + $0x3c0] sm:$0xff] %vm700, %v692
      %822 = vst.msk [vmem:[%s172 + $0x3c8] sm:$0xff] %vm700, %v693
      %823 = vst.msk [vmem:[%s172 + $0x3d0] sm:$0xff] %vm700, %v694
      %824 = vst.msk [vmem:[%s172 + $0x3d8] sm:$0xff] %vm700, %v695
      %825 = vst.msk [vmem:[%s172 + $0x3e0] sm:$0xff] %vm700, %v696
      %826 = vst.msk [vmem:[%s172 + $0x3e8] sm:$0xff] %vm700, %v697
      %827 = vst.msk [vmem:[%s172 + $0x3f0] sm:$0xff] %vm700, %v698
      %828 = vst.msk [vmem:[%s172 + $0x3f8] sm:$0xff] %vm700, %v699
      %s829 = smul.u32 128, %s14
      %p830 = scmp.lt.s32.totalorder %s829, 383
      %s831 = scalar_select %p830, %s829, 383
      %s832 = smul.addr %s831, 8
      %s833 = scalar_lea.vmem %s3, %s832
      // Predicated region
      $region33: #{encoder_forward.7} parent=31 // pred_check
        %p834 = pneg %p100
      $region34: #{encoder_forward.7} parent=31 // pred_check_branch
        %836 = sbr.rel (%p834) target = $region36
      $region35: #{encoder_forward.7} parent=31 // pred_region
        %s837 = smul.u32 128, %s14
      $region36: #{encoder_forward.7} parent=31 // pred_fallthru
        _
    $region32: #{encoder_forward.7} parent=5 // pred_fallthru
      _
    %p838 = scmp.le.s32.totalorder 2, %s9
    // Predicated region
    $region37: #{encoder_forward.7} parent=5 // pred_check
      %p839 = pneg %p838
    $region38: #{encoder_forward.7} parent=5 // pred_check_branch
      %841 = sbr.rel (%p839) target = $region40
    $region39: #{encoder_forward.7} parent=5 // pred_region
      %s842 = ssub.s32 %s9, 2
      // Predicated region
      $region41: #{encoder_forward.7} parent=39 // pred_check
        %p843 = pneg %p106
      $region42: #{encoder_forward.7} parent=39 // pred_check_branch
        %845 = sbr.rel (%p843) target = $region44
      $region43: #{encoder_forward.7} parent=39 // pred_region
        %s846 = smul.u32 128, %s15
        %p847 = scmp.lt.s32.totalorder %s846, 383
        %s848 = scalar_select %p847, %s846, 383
        %s849 = smul.addr %s848, 8
        %s850 = scalar_lea.vmem %s3, %s849
      $region44: #{encoder_forward.7} parent=39 // pred_fallthru
        _
    $region40: #{encoder_forward.7} parent=5 // pred_fallthru
      _
  $region6: #{encoder_forward.7} parent=0 // loop_footer
    %s13 = sadd.s32 1, %s9
  $region7: #{encoder_forward.7} parent=0 // loop_footer_branch
    %8 = sbr.rel target = $region3
  $region8: #{encoder_forward.7} parent=0 // loop_exit
    _

// kernel: encoder_forward.6
$region0: #{encoder_forward.6}
  #allocation0 [shape = 'u32[]', space=smem, size = 0x4, offset = 0x4, fixed_abs, tag = 'smem constant byte address 0x4 - core index']
  #allocation1 [shape = 'u32[144,128]{1,0:T(1,128)}', space=vmem, size = 0x12000, scoped, tag = 'internal scratch']
  %s0 = inlined_call_operand.vmem [shape: f32[3072,72], index: 0, kind: input, shape index: {}]
  %s1 = inlined_call_operand.vmem [shape: f32[72,16], index: 1, kind: input, shape index: {}]
  %s2 = inlined_call_operand.vmem [shape: f32[1,16], index: 2, kind: input, shape index: {}]
  %s3 = inlined_call_operand.vmem [shape: f32[3072,16], index: 3, kind: output, shape index: {0}]
  %s4 = inlined_call_operand.vmem [shape: f32[24,16], index: 4, kind: output, shape index: {1}]
  %5 = xla_tuple %s3, %s4
  %s6 = sld [smem:[#allocation0]]
  $region53: #{encoder_forward.6} parent=0
    _
  %s8 = ssub.s32 1, %s6
  %s9 = scalar_select 0, %s8, %s6
  loop: start=0, step=1, limit=5
  $region2: #{encoder_forward.6} parent=0 // loop_pre_header
    _
  $region3: #{encoder_forward.6} parent=0 // loop_header
    %s11 = sphi 0, %s15
    %p12 = scmp.ge.s32.totalorder %s11, 5
    %s21 = sphi 0, %s23
    %s24 = sphi 0, %s21
    %s25 = sphi 0, %s24
    %s41 = sphi 0, %s25
    %s45 = sphi 0, %s45
    %s47 = sphi 0, %s45
    %s48 = sphi 0, %s47
    %s62 = sphi 0, %s48
    %s66 = sphi 0, %s66
    %s68 = sphi 0, %s66
    %s69 = sphi 0, %s68
    %s83 = sphi 0, %s69
    %s89 = sphi 0, %s91
    %s92 = sphi 0, %s89
    %s93 = sphi 0, %s92
    %s109 = sphi 0, %s93
    %s115 = sphi 0, %s117
    %s118 = sphi 0, %s115
    %s119 = sphi 0, %s118
    %s135 = sphi 0, %s119
  $region4: #{encoder_forward.6} parent=0 // loop_header_branch
    %14 = sbr.rel (%p12) target = $region8
  $region5: #{encoder_forward.6} parent=0 // loop_body
    %s16 = ssub.s32 %s11, 1
    %s17 = ssub.s32 %s11, 2
    %s18 = sadd.s32 %s11, 1
    %s19 = ssub.s32 %s11, %s18
    %p20 = scmp.eq.s32.totalorder %s19, 0
    %s22 = sadd.s32 %s21, 1
    %s23 = scalar_select %p20, %s21, %s22
    %p26 = pneg %p20
    %p27 = scmp.eq.s32.totalorder %s11, 2
    %p28 = por %p26, %p27
    %p29 = scmp.ne.s32.totalorder %s21, %s24
    %p30 = scmp.eq.s32.totalorder %s11, 0
    %p31 = por %p29, %p30
    %p32 = scmp.ne.s32.totalorder %s21, %s24
    %p33 = scmp.eq.s32.totalorder %s16, 2
    %p34 = por %p32, %p33
    %p35 = scmp.ne.s32.totalorder %s24, %s25
    %p36 = scmp.eq.s32.totalorder %s16, 0
    %p37 = por %p35, %p36
    %p38 = scmp.ne.s32.totalorder %s24, %s25
    %p39 = scmp.eq.s32.totalorder %s17, 2
    %p40 = por %p38, %p39
    %p42 = scmp.ne.s32.totalorder %s25, %s41
    %p43 = scmp.eq.s32.totalorder %s17, 0
    %p44 = por %p42, %p43
    %s46 = sadd.s32 %s45, 1
    %p49 = scmp.eq.s32.totalorder %s11, 2
    %p50 = scmp.ne.s32.totalorder %s45, %s47
    %p51 = scmp.eq.s32.totalorder %s11, 0
    %p52 = por %p50, %p51
    %p53 = scmp.ne.s32.totalorder %s45, %s47
    %p54 = scmp.eq.s32.totalorder %s16, 2
    %p55 = por %p53, %p54
    %p56 = scmp.ne.s32.totalorder %s47, %s48
    %p57 = scmp.eq.s32.totalorder %s16, 0
    %p58 = por %p56, %p57
    %p59 = scmp.ne.s32.totalorder %s47, %s48
    %p60 = scmp.eq.s32.totalorder %s17, 2
    %p61 = por %p59, %p60
    %p63 = scmp.ne.s32.totalorder %s48, %s62
    %p64 = scmp.eq.s32.totalorder %s17, 0
    %p65 = por %p63, %p64
    %s67 = sadd.s32 %s66, 1
    %p70 = scmp.eq.s32.totalorder %s11, 2
    %p71 = scmp.ne.s32.totalorder %s66, %s68
    %p72 = scmp.eq.s32.totalorder %s11, 0
    %p73 = por %p71, %p72
    %p74 = scmp.ne.s32.totalorder %s66, %s68
    %p75 = scmp.eq.s32.totalorder %s16, 2
    %p76 = por %p74, %p75
    %p77 = scmp.ne.s32.totalorder %s68, %s69
    %p78 = scmp.eq.s32.totalorder %s16, 0
    %p79 = por %p77, %p78
    %p80 = scmp.ne.s32.totalorder %s68, %s69
    %p81 = scmp.eq.s32.totalorder %s17, 2
    %p82 = por %p80, %p81
    %p84 = scmp.ne.s32.totalorder %s69, %s83
    %p85 = scmp.eq.s32.totalorder %s17, 0
    %p86 = por %p84, %p85
    %s87 = ssub.s32 %s11, %s18
    %p88 = scmp.eq.s32.totalorder %s87, 0
    %s90 = sadd.s32 %s89, 1
    %s91 = scalar_select %p88, %s89, %s90
    %p94 = pneg %p88
    %p95 = scmp.eq.s32.totalorder %s11, 2
    %p96 = por %p94, %p95
    %p97 = scmp.ne.s32.totalorder %s89, %s92
    %p98 = scmp.eq.s32.totalorder %s11, 0
    %p99 = por %p97, %p98
    %p100 = scmp.ne.s32.totalorder %s89, %s92
    %p101 = scmp.eq.s32.totalorder %s16, 2
    %p102 = por %p100, %p101
    %p103 = scmp.ne.s32.totalorder %s92, %s93
    %p104 = scmp.eq.s32.totalorder %s16, 0
    %p105 = por %p103, %p104
    %p106 = scmp.ne.s32.totalorder %s92, %s93
    %p107 = scmp.eq.s32.totalorder %s17, 2
    %p108 = por %p106, %p107
    %p110 = scmp.ne.s32.totalorder %s93, %s109
    %p111 = scmp.eq.s32.totalorder %s17, 0
    %p112 = por %p110, %p111
    %s113 = ssub.s32 %s11, %s18
    %p114 = scmp.eq.s32.totalorder %s113, 0
    %s116 = sadd.s32 %s115, 1
    %s117 = scalar_select %p114, %s115, %s116
    %p120 = pneg %p114
    %p121 = scmp.eq.s32.totalorder %s11, 2
    %p122 = por %p120, %p121
    %p123 = scmp.ne.s32.totalorder %s115, %s118
    %p124 = scmp.eq.s32.totalorder %s11, 0
    %p125 = por %p123, %p124
    %p126 = scmp.ne.s32.totalorder %s115, %s118
    %p127 = scmp.eq.s32.totalorder %s16, 2
    %p128 = por %p126, %p127
    %p129 = scmp.ne.s32.totalorder %s118, %s119
    %p130 = scmp.eq.s32.totalorder %s16, 0
    %p131 = por %p129, %p130
    %p132 = scmp.ne.s32.totalorder %s118, %s119
    %p133 = scmp.eq.s32.totalorder %s17, 2
    %p134 = por %p132, %p133
    %p136 = scmp.ne.s32.totalorder %s119, %s135
    %p137 = scmp.eq.s32.totalorder %s17, 0
    %p138 = por %p136, %p137
    %p139 = scmp.le.s32.totalorder 1, %s11
    %p140 = scmp.lt.s32.totalorder %s11, 4
    %p141 = pnand %p139, %p140
    %p142 = pneg %p141
    // Predicated region
    $region9: #{encoder_forward.6} parent=5 // pred_check
      _
    $region10: #{encoder_forward.6} parent=5 // pred_check_branch
      %144 = sbr.rel (%p141) target = $region12
    $region11: #{encoder_forward.6} parent=5 // pred_region
      %s145 = ssub.s32 %s11, 1
      // Predicated region
      $region13: #{encoder_forward.6} parent=11 // pred_check
        %p146 = pneg %p58
      $region14: #{encoder_forward.6} parent=11 // pred_check_branch
        %148 = sbr.rel (%p146) target = $region16
      $region15: #{encoder_forward.6} parent=11 // pred_region
        _
      $region16: #{encoder_forward.6} parent=11 // pred_fallthru
        _
      // Predicated region
      $region17: #{encoder_forward.6} parent=11 // pred_check
        %p149 = pneg %p79
      $region18: #{encoder_forward.6} parent=11 // pred_check_branch
        %151 = sbr.rel (%p149) target = $region20
      $region19: #{encoder_forward.6} parent=11 // pred_region
        _
      $region20: #{encoder_forward.6} parent=11 // pred_fallthru
        _
    $region12: #{encoder_forward.6} parent=5 // pred_fallthru
      _
    %p152 = scmp.lt.s32.totalorder %s11, 3
    // Predicated region
    $region21: #{encoder_forward.6} parent=5 // pred_check
      %p153 = pneg %p152
    $region22: #{encoder_forward.6} parent=5 // pred_check_branch
      %155 = sbr.rel (%p153) target = $region24
    $region23: #{encoder_forward.6} parent=5 // pred_region
      // Predicated region
      $region25: #{encoder_forward.6} parent=23 // pred_check
        %p156 = pneg %p31
      $region26: #{encoder_forward.6} parent=23 // pred_check_branch
        %158 = sbr.rel (%p156) target = $region28
      $region27: #{encoder_forward.6} parent=23 // pred_region
        %s159 = smul.u32 128, %s11
        %p160 = scmp.lt.s32.totalorder %s159, 383
        %s161 = scalar_select %p160, %s159, 383
        %s162 = smul.addr %s161, 8
        %s163 = scalar_lea.vmem %s0, %s162
        %s164 = smul.u32 128, %s11
      $region28: #{encoder_forward.6} parent=23 // pred_fallthru
        _
    $region24: #{encoder_forward.6} parent=5 // pred_fallthru
      _
    %p165 = scmp.le.s32.totalorder 1, %s11
    %p166 = scmp.lt.s32.totalorder %s11, 4
    %p167 = pnand %p165, %p166
    %p168 = pneg %p167
    // Predicated region
    $region29: #{encoder_forward.6} parent=5 // pred_check
      _
    $region30: #{encoder_forward.6} parent=5 // pred_check_branch
      %170 = sbr.rel (%p167) target = $region32
    $region31: #{encoder_forward.6} parent=5 // pred_region
      %s171 = ssub.s32 %s11, 1
      %s172 = smul.u32 128, %s16
      %p173 = scmp.lt.s32.totalorder %s172, 383
      %s174 = scalar_select %p173, %s172, 383
      %s175 = smul.addr %s174, 8
      %s176 = scalar_lea.vmem %s0, %s175
      %p177 = pneg %p37
      %p178 = pneg %p34
      %p179 = pneg %p58
      %p180 = pneg %p55
      %p181 = pneg %p79
      %p182 = pneg %p76
      %p183 = pneg %p105
      %p184 = pneg %p102
      %s185 = smul.u32 128, %s16
      %p186 = scmp.lt.s32.totalorder %s185, 383
      %s187 = scalar_select %p186, %s185, 383
      %s188 = smul.addr %s187, 8
      %s189 = scalar_lea.vmem %s3, %s188
      %p190 = pneg %p131
      %p191 = pneg %p128
      %p192 = scmp.lt.s32.totalorder %s16, 2
      %s193 = scalar_select %p192, %s16, 2
      %s194 = smul.addr %s193, 8
      %s195 = scalar_lea.vmem %s4, %s194
      %s196 = smul.u32 128, %s16
      %p197 = scmp.lt.s32.totalorder %s196, 383
      %s198 = scalar_select %p197, %s196, 383
      %s199 = smul.addr %s198, 8
      %s200 = scalar_lea.vmem %s0, %s199
      %s201 = smul.u32 128, %s16
      %s202 = smul.u32 128, %s16
      %p203 = scmp.lt.s32.totalorder %s202, 383
      %s204 = scalar_select %p203, %s202, 383
      %s205 = smul.addr %s204, 8
      %s206 = scalar_lea.vmem %s3, %s205
      %s207 = smul.u32 128, %s16
      %p208 = scmp.lt.s32.totalorder %s16, 2
      %s209 = scalar_select %p208, %s16, 2
      %s210 = smul.addr %s209, 8
      %s211 = scalar_lea.vmem %s4, %s210
      %v212 = vld [vmem:[%s200] sm:$0xff]
      %v213 = vld [vmem:[%s200 + $0x8] sm:$0xff]
      %v214 = vld [vmem:[%s200 + $0x10] sm:$0xff]
      %v215 = vld [vmem:[%s200 + $0x18] sm:$0xff]
      %v216 = vld [vmem:[%s200 + $0x20] sm:$0xff]
      %v217 = vld [vmem:[%s200 + $0x28] sm:$0xff]
      %v218 = vld [vmem:[%s200 + $0x30] sm:$0xff]
      %v219 = vld [vmem:[%s200 + $0x38] sm:$0xff]
      %v220 = vld [vmem:[%s200 + $0x40] sm:$0xff]
      %v221 = vld [vmem:[%s200 + $0x48] sm:$0xff]
      %v222 = vld [vmem:[%s200 + $0x50] sm:$0xff]
      %v223 = vld [vmem:[%s200 + $0x58] sm:$0xff]
      %v224 = vld [vmem:[%s200 + $0x60] sm:$0xff]
      %v225 = vld [vmem:[%s200 + $0x68] sm:$0xff]
      %v226 = vld [vmem:[%s200 + $0x70] sm:$0xff]
      %v227 = vld [vmem:[%s200 + $0x78] sm:$0xff]
      %v228 = vld [vmem:[%s200 + $0x80] sm:$0xff]
      %v229 = vld [vmem:[%s200 + $0x88] sm:$0xff]
      %v230 = vld [vmem:[%s200 + $0x90] sm:$0xff]
      %v231 = vld [vmem:[%s200 + $0x98] sm:$0xff]
      %v232 = vld [vmem:[%s200 + $0xa0] sm:$0xff]
      %v233 = vld [vmem:[%s200 + $0xa8] sm:$0xff]
      %v234 = vld [vmem:[%s200 + $0xb0] sm:$0xff]
      %v235 = vld [vmem:[%s200 + $0xb8] sm:$0xff]
      %v236 = vld [vmem:[%s200 + $0xc0] sm:$0xff]
      %v237 = vld [vmem:[%s200 + $0xc8] sm:$0xff]
      %v238 = vld [vmem:[%s200 + $0xd0] sm:$0xff]
      %v239 = vld [vmem:[%s200 + $0xd8] sm:$0xff]
      %v240 = vld [vmem:[%s200 + $0xe0] sm:$0xff]
      %v241 = vld [vmem:[%s200 + $0xe8] sm:$0xff]
      %v242 = vld [vmem:[%s200 + $0xf0] sm:$0xff]
      %v243 = vld [vmem:[%s200 + $0xf8] sm:$0xff]
      %v244 = vld [vmem:[%s200 + $0x100] sm:$0xff]
      %v245 = vld [vmem:[%s200 + $0x108] sm:$0xff]
      %v246 = vld [vmem:[%s200 + $0x110] sm:$0xff]
      %v247 = vld [vmem:[%s200 + $0x118] sm:$0xff]
      %v248 = vld [vmem:[%s200 + $0x120] sm:$0xff]
      %v249 = vld [vmem:[%s200 + $0x128] sm:$0xff]
      %v250 = vld [vmem:[%s200 + $0x130] sm:$0xff]
      %v251 = vld [vmem:[%s200 + $0x138] sm:$0xff]
      %v252 = vld [vmem:[%s200 + $0x140] sm:$0xff]
      %v253 = vld [vmem:[%s200 + $0x148] sm:$0xff]
      %v254 = vld [vmem:[%s200 + $0x150] sm:$0xff]
      %v255 = vld [vmem:[%s200 + $0x158] sm:$0xff]
      %v256 = vld [vmem:[%s200 + $0x160] sm:$0xff]
      %v257 = vld [vmem:[%s200 + $0x168] sm:$0xff]
      %v258 = vld [vmem:[%s200 + $0x170] sm:$0xff]
      %v259 = vld [vmem:[%s200 + $0x178] sm:$0xff]
      %v260 = vld [vmem:[%s200 + $0x180] sm:$0xff]
      %v261 = vld [vmem:[%s200 + $0x188] sm:$0xff]
      %v262 = vld [vmem:[%s200 + $0x190] sm:$0xff]
      %v263 = vld [vmem:[%s200 + $0x198] sm:$0xff]
      %v264 = vld [vmem:[%s200 + $0x1a0] sm:$0xff]
      %v265 = vld [vmem:[%s200 + $0x1a8] sm:$0xff]
      %v266 = vld [vmem:[%s200 + $0x1b0] sm:$0xff]
      %v267 = vld [vmem:[%s200 + $0x1b8] sm:$0xff]
      %v268 = vld [vmem:[%s200 + $0x1c0] sm:$0xff]
      %v269 = vld [vmem:[%s200 + $0x1c8] sm:$0xff]
      %v270 = vld [vmem:[%s200 + $0x1d0] sm:$0xff]
      %v271 = vld [vmem:[%s200 + $0x1d8] sm:$0xff]
      %v272 = vld [vmem:[%s200 + $0x1e0] sm:$0xff]
      %v273 = vld [vmem:[%s200 + $0x1e8] sm:$0xff]
      %v274 = vld [vmem:[%s200 + $0x1f0] sm:$0xff]
      %v275 = vld [vmem:[%s200 + $0x1f8] sm:$0xff]
      %v276 = vld [vmem:[%s200 + $0x200] sm:$0xff]
      %v277 = vld [vmem:[%s200 + $0x208] sm:$0xff]
      %v278 = vld [vmem:[%s200 + $0x210] sm:$0xff]
      %v279 = vld [vmem:[%s200 + $0x218] sm:$0xff]
      %v280 = vld [vmem:[%s200 + $0x220] sm:$0xff]
      %v281 = vld [vmem:[%s200 + $0x228] sm:$0xff]
      %v282 = vld [vmem:[%s200 + $0x230] sm:$0xff]
      %v283 = vld [vmem:[%s200 + $0x238] sm:$0xff]
      %v284 = vld [vmem:[%s200 + $0x240] sm:$0xff]
      %v285 = vld [vmem:[%s200 + $0x248] sm:$0xff]
      %v286 = vld [vmem:[%s200 + $0x250] sm:$0xff]
      %v287 = vld [vmem:[%s200 + $0x258] sm:$0xff]
      %v288 = vld [vmem:[%s200 + $0x260] sm:$0xff]
      %v289 = vld [vmem:[%s200 + $0x268] sm:$0xff]
      %v290 = vld [vmem:[%s200 + $0x270] sm:$0xff]
      %v291 = vld [vmem:[%s200 + $0x278] sm:$0xff]
      %v292 = vld [vmem:[%s200 + $0x280] sm:$0xff]
      %v293 = vld [vmem:[%s200 + $0x288] sm:$0xff]
      %v294 = vld [vmem:[%s200 + $0x290] sm:$0xff]
      %v295 = vld [vmem:[%s200 + $0x298] sm:$0xff]
      %v296 = vld [vmem:[%s200 + $0x2a0] sm:$0xff]
      %v297 = vld [vmem:[%s200 + $0x2a8] sm:$0xff]
      %v298 = vld [vmem:[%s200 + $0x2b0] sm:$0xff]
      %v299 = vld [vmem:[%s200 + $0x2b8] sm:$0xff]
      %v300 = vld [vmem:[%s200 + $0x2c0] sm:$0xff]
      %v301 = vld [vmem:[%s200 + $0x2c8] sm:$0xff]
      %v302 = vld [vmem:[%s200 + $0x2d0] sm:$0xff]
      %v303 = vld [vmem:[%s200 + $0x2d8] sm:$0xff]
      %v304 = vld [vmem:[%s200 + $0x2e0] sm:$0xff]
      %v305 = vld [vmem:[%s200 + $0x2e8] sm:$0xff]
      %v306 = vld [vmem:[%s200 + $0x2f0] sm:$0xff]
      %v307 = vld [vmem:[%s200 + $0x2f8] sm:$0xff]
      %v308 = vld [vmem:[%s200 + $0x300] sm:$0xff]
      %v309 = vld [vmem:[%s200 + $0x308] sm:$0xff]
      %v310 = vld [vmem:[%s200 + $0x310] sm:$0xff]
      %v311 = vld [vmem:[%s200 + $0x318] sm:$0xff]
      %v312 = vld [vmem:[%s200 + $0x320] sm:$0xff]
      %v313 = vld [vmem:[%s200 + $0x328] sm:$0xff]
      %v314 = vld [vmem:[%s200 + $0x330] sm:$0xff]
      %v315 = vld [vmem:[%s200 + $0x338] sm:$0xff]
      %v316 = vld [vmem:[%s200 + $0x340] sm:$0xff]
      %v317 = vld [vmem:[%s200 + $0x348] sm:$0xff]
      %v318 = vld [vmem:[%s200 + $0x350] sm:$0xff]
      %v319 = vld [vmem:[%s200 + $0x358] sm:$0xff]
      %v320 = vld [vmem:[%s200 + $0x360] sm:$0xff]
      %v321 = vld [vmem:[%s200 + $0x368] sm:$0xff]
      %v322 = vld [vmem:[%s200 + $0x370] sm:$0xff]
      %v323 = vld [vmem:[%s200 + $0x378] sm:$0xff]
      %v324 = vld [vmem:[%s200 + $0x380] sm:$0xff]
      %v325 = vld [vmem:[%s200 + $0x388] sm:$0xff]
      %v326 = vld [vmem:[%s200 + $0x390] sm:$0xff]
      %v327 = vld [vmem:[%s200 + $0x398] sm:$0xff]
      %v328 = vld [vmem:[%s200 + $0x3a0] sm:$0xff]
      %v329 = vld [vmem:[%s200 + $0x3a8] sm:$0xff]
      %v330 = vld [vmem:[%s200 + $0x3b0] sm:$0xff]
      %v331 = vld [vmem:[%s200 + $0x3b8] sm:$0xff]
      %v332 = vld [vmem:[%s200 + $0x3c0] sm:$0xff]
      %v333 = vld [vmem:[%s200 + $0x3c8] sm:$0xff]
      %v334 = vld [vmem:[%s200 + $0x3d0] sm:$0xff]
      %v335 = vld [vmem:[%s200 + $0x3d8] sm:$0xff]
      %v336 = vld [vmem:[%s200 + $0x3e0] sm:$0xff]
      %v337 = vld [vmem:[%s200 + $0x3e8] sm:$0xff]
      %v338 = vld [vmem:[%s200 + $0x3f0] sm:$0xff]
      %v339 = vld [vmem:[%s200 + $0x3f8] sm:$0xff]
      %v340 = vld [vmem:[%s1] sm:$0xff]
      %v341 = vld [vmem:[%s1 + $0x8] sm:$0xff]
      %v342 = vld [vmem:[%s1 + $0x10] sm:$0xff]
      %v343 = vld [vmem:[%s1 + $0x18] sm:$0xff]
      %v344 = vld [vmem:[%s1 + $0x20] sm:$0xff]
      %v345 = vld [vmem:[%s1 + $0x28] sm:$0xff]
      %v346 = vld [vmem:[%s1 + $0x30] sm:$0xff]
      %v347 = vld [vmem:[%s1 + $0x38] sm:$0xff]
      %v348 = vld [vmem:[%s1 + $0x40] sm:$0xff]
      %v349 = vld [vmem:[%s2] sm:$0x1]
      %v351 = vlaneseq
      %v352 = vshrl.u32 %v351, 7
      %v353 = vsub.s32 0, %v352
      %v354 = vrot.slane %v349, %v353
      %vm356 = vcmask 588800
      %v358 = vsel %vm356, %v212, 0
      %v361 = vsel %vm356, %v213, 0
      %v364 = vsel %vm356, %v214, 0
      %v367 = vsel %vm356, %v215, 0
      %v370 = vsel %vm356, %v216, 0
      %v373 = vsel %vm356, %v217, 0
      %v376 = vsel %vm356, %v218, 0
      %v379 = vsel %vm356, %v219, 0
      %v382 = vsel %vm356, %v220, 0
      %v385 = vsel %vm356, %v221, 0
      %v388 = vsel %vm356, %v222, 0
      %v391 = vsel %vm356, %v223, 0
      %v394 = vsel %vm356, %v224, 0
      %v397 = vsel %vm356, %v225, 0
      %v400 = vsel %vm356, %v226, 0
      %v403 = vsel %vm356, %v227, 0
      %v406 = vsel %vm356, %v228, 0
      %v409 = vsel %vm356, %v229, 0
      %v412 = vsel %vm356, %v230, 0
      %v415 = vsel %vm356, %v231, 0
      %v418 = vsel %vm356, %v232, 0
      %v421 = vsel %vm356, %v233, 0
      %v424 = vsel %vm356, %v234, 0
      %v427 = vsel %vm356, %v235, 0
      %v430 = vsel %vm356, %v236, 0
      %v433 = vsel %vm356, %v237, 0
      %v436 = vsel %vm356, %v238, 0
      %v439 = vsel %vm356, %v239, 0
      %v442 = vsel %vm356, %v240, 0
      %v445 = vsel %vm356, %v241, 0
      %v448 = vsel %vm356, %v242, 0
      %v451 = vsel %vm356, %v243, 0
      %v454 = vsel %vm356, %v244, 0
      %v457 = vsel %vm356, %v245, 0
      %v460 = vsel %vm356, %v246, 0
      %v463 = vsel %vm356, %v247, 0
      %v466 = vsel %vm356, %v248, 0
      %v469 = vsel %vm356, %v249, 0
      %v472 = vsel %vm356, %v250, 0
      %v475 = vsel %vm356, %v251, 0
      %v478 = vsel %vm356, %v252, 0
      %v481 = vsel %vm356, %v253, 0
      %v484 = vsel %vm356, %v254, 0
      %v487 = vsel %vm356, %v255, 0
      %v490 = vsel %vm356, %v256, 0
      %v493 = vsel %vm356, %v257, 0
      %v496 = vsel %vm356, %v258, 0
      %v499 = vsel %vm356, %v259, 0
      %v502 = vsel %vm356, %v260, 0
      %v505 = vsel %vm356, %v261, 0
      %v508 = vsel %vm356, %v262, 0
      %v511 = vsel %vm356, %v263, 0
      %v514 = vsel %vm356, %v264, 0
      %v517 = vsel %vm356, %v265, 0
      %v520 = vsel %vm356, %v266, 0
      %v523 = vsel %vm356, %v267, 0
      %v526 = vsel %vm356, %v268, 0
      %v529 = vsel %vm356, %v269, 0
      %v532 = vsel %vm356, %v270, 0
      %v535 = vsel %vm356, %v271, 0
      %v538 = vsel %vm356, %v272, 0
      %v541 = vsel %vm356, %v273, 0
      %v544 = vsel %vm356, %v274, 0
      %v547 = vsel %vm356, %v275, 0
      %v550 = vsel %vm356, %v276, 0
      %v553 = vsel %vm356, %v277, 0
      %v556 = vsel %vm356, %v278, 0
      %v559 = vsel %vm356, %v279, 0
      %v562 = vsel %vm356, %v280, 0
      %v565 = vsel %vm356, %v281, 0
      %v568 = vsel %vm356, %v282, 0
      %v571 = vsel %vm356, %v283, 0
      %v574 = vsel %vm356, %v284, 0
      %v577 = vsel %vm356, %v285, 0
      %v580 = vsel %vm356, %v286, 0
      %v583 = vsel %vm356, %v287, 0
      %v586 = vsel %vm356, %v288, 0
      %v589 = vsel %vm356, %v289, 0
      %v592 = vsel %vm356, %v290, 0
      %v595 = vsel %vm356, %v291, 0
      %v598 = vsel %vm356, %v292, 0
      %v601 = vsel %vm356, %v293, 0
      %v604 = vsel %vm356, %v294, 0
      %v607 = vsel %vm356, %v295, 0
      %v610 = vsel %vm356, %v296, 0
      %v613 = vsel %vm356, %v297, 0
      %v616 = vsel %vm356, %v298, 0
      %v619 = vsel %vm356, %v299, 0
      %v622 = vsel %vm356, %v300, 0
      %v625 = vsel %vm356, %v301, 0
      %v628 = vsel %vm356, %v302, 0
      %v631 = vsel %vm356, %v303, 0
      %v634 = vsel %vm356, %v304, 0
      %v637 = vsel %vm356, %v305, 0
      %v640 = vsel %vm356, %v306, 0
      %v643 = vsel %vm356, %v307, 0
      %v646 = vsel %vm356, %v308, 0
      %v649 = vsel %vm356, %v309, 0
      %v652 = vsel %vm356, %v310, 0
      %v655 = vsel %vm356, %v311, 0
      %v658 = vsel %vm356, %v312, 0
      %v661 = vsel %vm356, %v313, 0
      %v664 = vsel %vm356, %v314, 0
      %v667 = vsel %vm356, %v315, 0
      %v670 = vsel %vm356, %v316, 0
      %v673 = vsel %vm356, %v317, 0
      %v676 = vsel %vm356, %v318, 0
      %v679 = vsel %vm356, %v319, 0
      %v682 = vsel %vm356, %v320, 0
      %v685 = vsel %vm356, %v321, 0
      %v688 = vsel %vm356, %v322, 0
      %v691 = vsel %vm356, %v323, 0
      %v694 = vsel %vm356, %v324, 0
      %v697 = vsel %vm356, %v325, 0
      %v700 = vsel %vm356, %v326, 0
      %v703 = vsel %vm356, %v327, 0
      %v706 = vsel %vm356, %v328, 0
      %v709 = vsel %vm356, %v329, 0
      %v712 = vsel %vm356, %v330, 0
      %v715 = vsel %vm356, %v331, 0
      %v718 = vsel %vm356, %v332, 0
      %v721 = vsel %vm356, %v333, 0
      %v724 = vsel %vm356, %v334, 0
      %v727 = vsel %vm356, %v335, 0
      %v730 = vsel %vm356, %v336, 0
      %v733 = vsel %vm356, %v337, 0
      %v736 = vsel %vm356, %v338, 0
      %v739 = vsel %vm356, %v339, 0
      %741 = vmatprep.subr.mxu0 0.0
      %742 = vmatpush1.msra.mxu0 0.0
      %743 = vmatprep.subr.mxu0 0.0
      %744 = vmatpush1.msra.mxu0 0.0
      %745 = vmatprep.subr.mxu0 0.0
      %746 = vmatpush1.msra.mxu0 0.0
      %747 = vmatprep.subr.mxu0 0.0
      %748 = vmatpush1.msra.mxu0 0.0
      %749 = vmatprep.subr.mxu0 0.0
      %750 = vmatpush1.msra.mxu0 0.0
      %751 = vmatprep.subr.mxu0 0.0
      %752 = vmatpush1.msra.mxu0 0.0
      %753 = vmatprep.subr.mxu0 0.0
      %754 = vmatpush1.msra.mxu0 0.0
      %755 = vmatprep.subr.mxu0 0.0
      %756 = vmatpush1.msra.mxu0 %v348
      %757 = vmatprep.subr.mxu0 0.0
      %758 = vmatpush1.msra.mxu0 %v347
      %759 = vmatprep.subr.mxu0 0.0
      %760 = vmatpush1.msra.mxu0 %v346
      %761 = vmatprep.subr.mxu0 0.0
      %762 = vmatpush1.msra.mxu0 %v345
      %763 = vmatprep.subr.mxu0 0.0
      %764 = vmatpush1.msra.mxu0 %v344
      %765 = vmatprep.subr.mxu0 0.0
      %766 = vmatpush1.msra.mxu0 %v343
      %767 = vmatprep.subr.mxu0 0.0
      %768 = vmatpush1.msra.mxu0 %v342
      %769 = vmatprep.subr.mxu0 0.0
      %770 = vmatpush1.msra.mxu0 %v341
      %771 = vmatprep.subr.mxu0 0.0
      %772 = vmatpush1.msra.mxu0 %v340
      %773 = vmatprep.subr.mxu0 0.0
      %774 = vmatpush2.msra.mxu0 0.0
      %775 = vmatprep.subr.mxu0 0.0
      %776 = vmatpush2.msra.mxu0 0.0
      %777 = vmatprep.subr.mxu0 0.0
      %778 = vmatpush2.msra.mxu0 0.0
      %779 = vmatprep.subr.mxu0 0.0
      %780 = vmatpush2.msra.mxu0 0.0
      %781 = vmatprep.subr.mxu0 0.0
      %782 = vmatpush2.msra.mxu0 0.0
      %783 = vmatprep.subr.mxu0 0.0
      %784 = vmatpush2.msra.mxu0 0.0
      %785 = vmatprep.subr.mxu0 0.0
      %786 = vmatpush2.msra.mxu0 0.0
      %787 = vmatprep.subr.mxu0 0.0
      %788 = vmatpush2.msra.mxu0 0.0
      %789 = vmatprep.subr.mxu0 0.0
      %790 = vmatpush2.msra.mxu0 0.0
      %791 = vmatprep.subr.mxu0 0.0
      %792 = vmatpush2.msra.mxu0 0.0
      %793 = vmatprep.subr.mxu0 0.0
      %794 = vmatpush2.msra.mxu0 0.0
      %795 = vmatprep.subr.mxu0 0.0
      %796 = vmatpush2.msra.mxu0 0.0
      %797 = vmatprep.subr.mxu0 0.0
      %798 = vmatpush2.msra.mxu0 0.0
      %799 = vmatprep.subr.mxu0 0.0
      %800 = vmatpush2.msra.mxu0 0.0
      %801 = vmatprep.subr.mxu0 0.0
      %802 = vmatpush2.msra.mxu0 0.0
      %803 = vmatprep.subr.mxu0 0.0
      %804 = vmatpush2.msra.mxu0 0.0
      %805 = vmatprep.mubr.f32.mxu0 0.0
      %806 = vmatmul.mubr.f32.gmra.mxu0 %v358
      %v807 = vpop.f32.mrf.mxu0
      %v808 = vadd.f32 %v354, %v807
      %v809 = vpop.f32.mrf.mxu0
      %810 = vmatprep.mubr.f32.mxu0 0.0
      %811 = vmatmul.mubr.f32.gmra.mxu0 %v361
      %v812 = vpop.f32.mrf.mxu0
      %v813 = vadd.f32 %v354, %v812
      %v814 = vpop.f32.mrf.mxu0
      %815 = vmatprep.mubr.f32.mxu0 0.0
      %816 = vmatmul.mubr.f32.gmra.mxu0 %v364
      %v817 = vpop.f32.mrf.mxu0
      %v818 = vadd.f32 %v354, %v817
      %v819 = vpop.f32.mrf.mxu0
      %820 = vmatprep.mubr.f32.mxu0 0.0
      %821 = vmatmul.mubr.f32.gmra.mxu0 %v367
      %v822 = vpop.f32.mrf.mxu0
      %v823 = vadd.f32 %v354, %v822
      %v824 = vpop.f32.mrf.mxu0
      %825 = vmatprep.mubr.f32.mxu0 0.0
      %826 = vmatmul.mubr.f32.gmra.mxu0 %v370
      %v827 = vpop.f32.mrf.mxu0
      %v828 = vadd.f32 %v354, %v827
      %v829 = vpop.f32.mrf.mxu0
      %830 = vmatprep.mubr.f32.mxu0 0.0
      %831 = vmatmul.mubr.f32.gmra.mxu0 %v373
      %v832 = vpop.f32.mrf.mxu0
      %v833 = vadd.f32 %v354, %v832
      %v834 = vpop.f32.mrf.mxu0
      %835 = vmatprep.mubr.f32.mxu0 0.0
      %836 = vmatmul.mubr.f32.gmra.mxu0 %v376
      %v837 = vpop.f32.mrf.mxu0
      %v838 = vadd.f32 %v354, %v837
      %v839 = vpop.f32.mrf.mxu0
      %840 = vmatprep.mubr.f32.mxu0 0.0
      %841 = vmatmul.mubr.f32.gmra.mxu0 %v379
      %v842 = vpop.f32.mrf.mxu0
      %v843 = vadd.f32 %v354, %v842
      %v844 = vpop.f32.mrf.mxu0
      %845 = vmatprep.mubr.f32.mxu0 0.0
      %846 = vmatmul.mubr.f32.gmra.mxu0 %v382
      %v847 = vpop.f32.mrf.mxu0
      %v848 = vadd.f32 %v354, %v847
      %v849 = vpop.f32.mrf.mxu0
      %850 = vmatprep.mubr.f32.mxu0 0.0
      %851 = vmatmul.mubr.f32.gmra.mxu0 %v385
      %v852 = vpop.f32.mrf.mxu0
      %v853 = vadd.f32 %v354, %v852
      %v854 = vpop.f32.mrf.mxu0
      %855 = vmatprep.mubr.f32.mxu0 0.0
      %856 = vmatmul.mubr.f32.gmra.mxu0 %v388
      %v857 = vpop.f32.mrf.mxu0
      %v858 = vadd.f32 %v354, %v857
      %v859 = vpop.f32.mrf.mxu0
      %860 = vmatprep.mubr.f32.mxu0 0.0
      %861 = vmatmul.mubr.f32.gmra.mxu0 %v391
      %v862 = vpop.f32.mrf.mxu0
      %v863 = vadd.f32 %v354, %v862
      %v864 = vpop.f32.mrf.mxu0
      %865 = vmatprep.mubr.f32.mxu0 0.0
      %866 = vmatmul.mubr.f32.gmra.mxu0 %v394
      %v867 = vpop.f32.mrf.mxu0
      %v868 = vadd.f32 %v354, %v867
      %v869 = vpop.f32.mrf.mxu0
      %870 = vmatprep.mubr.f32.mxu0 0.0
      %871 = vmatmul.mubr.f32.gmra.mxu0 %v397
      %v872 = vpop.f32.mrf.mxu0
      %v873 = vadd.f32 %v354, %v872
      %v874 = vpop.f32.mrf.mxu0
      %875 = vmatprep.mubr.f32.mxu0 0.0
      %876 = vmatmul.mubr.f32.gmra.mxu0 %v400
      %v877 = vpop.f32.mrf.mxu0
      %v878 = vadd.f32 %v354, %v877
      %v879 = vpop.f32.mrf.mxu0
      %880 = vmatprep.mubr.f32.mxu0 0.0
      %881 = vmatmul.mubr.f32.gmra.mxu0 %v403
      %v882 = vpop.f32.mrf.mxu0
      %v883 = vadd.f32 %v354, %v882
      %v884 = vpop.f32.mrf.mxu0
      %885 = vmatprep.mubr.f32.mxu0 0.0
      %886 = vmatmul.mubr.f32.gmra.mxu0 %v406
      %v887 = vpop.f32.mrf.mxu0
      %v888 = vadd.f32 %v354, %v887
      %v889 = vpop.f32.mrf.mxu0
      %890 = vmatprep.mubr.f32.mxu0 0.0
      %891 = vmatmul.mubr.f32.gmra.mxu0 %v409
      %v892 = vpop.f32.mrf.mxu0
      %v893 = vadd.f32 %v354, %v892
      %v894 = vpop.f32.mrf.mxu0
      %895 = vmatprep.mubr.f32.mxu0 0.0
      %896 = vmatmul.mubr.f32.gmra.mxu0 %v412
      %v897 = vpop.f32.mrf.mxu0
      %v898 = vadd.f32 %v354, %v897
      %v899 = vpop.f32.mrf.mxu0
      %900 = vmatprep.mubr.f32.mxu0 0.0
      %901 = vmatmul.mubr.f32.gmra.mxu0 %v415
      %v902 = vpop.f32.mrf.mxu0
      %v903 = vadd.f32 %v354, %v902
      %v904 = vpop.f32.mrf.mxu0
      %905 = vmatprep.mubr.f32.mxu0 0.0
      %906 = vmatmul.mubr.f32.gmra.mxu0 %v418
      %v907 = vpop.f32.mrf.mxu0
      %v908 = vadd.f32 %v354, %v907
      %v909 = vpop.f32.mrf.mxu0
      %910 = vmatprep.mubr.f32.mxu0 0.0
      %911 = vmatmul.mubr.f32.gmra.mxu0 %v421
      %v912 = vpop.f32.mrf.mxu0
      %v913 = vadd.f32 %v354, %v912
      %v914 = vpop.f32.mrf.mxu0
      %915 = vmatprep.mubr.f32.mxu0 0.0
      %916 = vmatmul.mubr.f32.gmra.mxu0 %v424
      %v917 = vpop.f32.mrf.mxu0
      %v918 = vadd.f32 %v354, %v917
      %v919 = vpop.f32.mrf.mxu0
      %920 = vmatprep.mubr.f32.mxu0 0.0
      %921 = vmatmul.mubr.f32.gmra.mxu0 %v427
      %v922 = vpop.f32.mrf.mxu0
      %v923 = vadd.f32 %v354, %v922
      %v924 = vpop.f32.mrf.mxu0
      %925 = vmatprep.mubr.f32.mxu0 0.0
      %926 = vmatmul.mubr.f32.gmra.mxu0 %v430
      %v927 = vpop.f32.mrf.mxu0
      %v928 = vadd.f32 %v354, %v927
      %v929 = vpop.f32.mrf.mxu0
      %930 = vmatprep.mubr.f32.mxu0 0.0
      %931 = vmatmul.mubr.f32.gmra.mxu0 %v433
      %v932 = vpop.f32.mrf.mxu0
      %v933 = vadd.f32 %v354, %v932
      %v934 = vpop.f32.mrf.mxu0
      %935 = vmatprep.mubr.f32.mxu0 0.0
      %936 = vmatmul.mubr.f32.gmra.mxu0 %v436
      %v937 = vpop.f32.mrf.mxu0
      %v938 = vadd.f32 %v354, %v937
      %v939 = vpop.f32.mrf.mxu0
      %940 = vmatprep.mubr.f32.mxu0 0.0
      %941 = vmatmul.mubr.f32.gmra.mxu0 %v439
      %v942 = vpop.f32.mrf.mxu0
      %v943 = vadd.f32 %v354, %v942
      %v944 = vpop.f32.mrf.mxu0
      %945 = vmatprep.mubr.f32.mxu0 0.0
      %946 = vmatmul.mubr.f32.gmra.mxu0 %v442
      %v947 = vpop.f32.mrf.mxu0
      %v948 = vadd.f32 %v354, %v947
      %v949 = vpop.f32.mrf.mxu0
      %950 = vmatprep.mubr.f32.mxu0 0.0
      %951 = vmatmul.mubr.f32.gmra.mxu0 %v445
      %v952 = vpop.f32.mrf.mxu0
      %v953 = vadd.f32 %v354, %v952
      %v954 = vpop.f32.mrf.mxu0
      %955 = vmatprep.mubr.f32.mxu0 0.0
      %956 = vmatmul.mubr.f32.gmra.mxu0 %v448
      %v957 = vpop.f32.mrf.mxu0
      %v958 = vadd.f32 %v354, %v957
      %v959 = vpop.f32.mrf.mxu0
      %960 = vmatprep.mubr.f32.mxu0 0.0
      %961 = vmatmul.mubr.f32.gmra.mxu0 %v451
      %v962 = vpop.f32.mrf.mxu0
      %v963 = vadd.f32 %v354, %v962
      %v964 = vpop.f32.mrf.mxu0
      %965 = vmatprep.mubr.f32.mxu0 0.0
      %966 = vmatmul.mubr.f32.gmra.mxu0 %v454
      %v967 = vpop.f32.mrf.mxu0
      %v968 = vadd.f32 %v354, %v967
      %v969 = vpop.f32.mrf.mxu0
      %970 = vmatprep.mubr.f32.mxu0 0.0
      %971 = vmatmul.mubr.f32.gmra.mxu0 %v457
      %v972 = vpop.f32.mrf.mxu0
      %v973 = vadd.f32 %v354, %v972
      %v974 = vpop.f32.mrf.mxu0
      %975 = vmatprep.mubr.f32.mxu0 0.0
      %976 = vmatmul.mubr.f32.gmra.mxu0 %v460
      %v977 = vpop.f32.mrf.mxu0
      %v978 = vadd.f32 %v354, %v977
      %v979 = vpop.f32.mrf.mxu0
      %980 = vmatprep.mubr.f32.mxu0 0.0
      %981 = vmatmul.mubr.f32.gmra.mxu0 %v463
      %v982 = vpop.f32.mrf.mxu0
      %v983 = vadd.f32 %v354, %v982
      %v984 = vpop.f32.mrf.mxu0
      %985 = vmatprep.mubr.f32.mxu0 0.0
      %986 = vmatmul.mubr.f32.gmra.mxu0 %v466
      %v987 = vpop.f32.mrf.mxu0
      %v988 = vadd.f32 %v354, %v987
      %v989 = vpop.f32.mrf.mxu0
      %990 = vmatprep.mubr.f32.mxu0 0.0
      %991 = vmatmul.mubr.f32.gmra.mxu0 %v469
      %v992 = vpop.f32.mrf.mxu0
      %v993 = vadd.f32 %v354, %v992
      %v994 = vpop.f32.mrf.mxu0
      %995 = vmatprep.mubr.f32.mxu0 0.0
      %996 = vmatmul.mubr.f32.gmra.mxu0 %v472
      %v997 = vpop.f32.mrf.mxu0
      %v998 = vadd.f32 %v354, %v997
      %v999 = vpop.f32.mrf.mxu0
      %1000 = vmatprep.mubr.f32.mxu0 0.0
      %1001 = vmatmul.mubr.f32.gmra.mxu0 %v475
      %v1002 = vpop.f32.mrf.mxu0
      %v1003 = vadd.f32 %v354, %v1002
      %v1004 = vpop.f32.mrf.mxu0
      %1005 = vmatprep.mubr.f32.mxu0 0.0
      %1006 = vmatmul.mubr.f32.gmra.mxu0 %v478
      %v1007 = vpop.f32.mrf.mxu0
      %v1008 = vadd.f32 %v354, %v1007
      %v1009 = vpop.f32.mrf.mxu0
      %1010 = vmatprep.mubr.f32.mxu0 0.0
      %1011 = vmatmul.mubr.f32.gmra.mxu0 %v481
      %v1012 = vpop.f32.mrf.mxu0
      %v1013 = vadd.f32 %v354, %v1012
      %v1014 = vpop.f32.mrf.mxu0
      %1015 = vmatprep.mubr.f32.mxu0 0.0
      %1016 = vmatmul.mubr.f32.gmra.mxu0 %v484
      %v1017 = vpop.f32.mrf.mxu0
      %v1018 = vadd.f32 %v354, %v1017
      %v1019 = vpop.f32.mrf.mxu0
      %1020 = vmatprep.mubr.f32.mxu0 0.0
      %1021 = vmatmul.mubr.f32.gmra.mxu0 %v487
      %v1022 = vpop.f32.mrf.mxu0
      %v1023 = vadd.f32 %v354, %v1022
      %v1024 = vpop.f32.mrf.mxu0
      %1025 = vmatprep.mubr.f32.mxu0 0.0
      %1026 = vmatmul.mubr.f32.gmra.mxu0 %v490
      %v1027 = vpop.f32.mrf.mxu0
      %v1028 = vadd.f32 %v354, %v1027
      %v1029 = vpop.f32.mrf.mxu0
      %1030 = vmatprep.mubr.f32.mxu0 0.0
      %1031 = vmatmul.mubr.f32.gmra.mxu0 %v493
      %v1032 = vpop.f32.mrf.mxu0
      %v1033 = vadd.f32 %v354, %v1032
      %v1034 = vpop.f32.mrf.mxu0
      %1035 = vmatprep.mubr.f32.mxu0 0.0
      %1036 = vmatmul.mubr.f32.gmra.mxu0 %v496
      %v1037 = vpop.f32.mrf.mxu0
      %v1038 = vadd.f32 %v354, %v1037
      %v1039 = vpop.f32.mrf.mxu0
      %1040 = vmatprep.mubr.f32.mxu0 0.0
      %1041 = vmatmul.mubr.f32.gmra.mxu0 %v499
      %v1042 = vpop.f32.mrf.mxu0
      %v1043 = vadd.f32 %v354, %v1042
      %v1044 = vpop.f32.mrf.mxu0
      %1045 = vmatprep.mubr.f32.mxu0 0.0
      %1046 = vmatmul.mubr.f32.gmra.mxu0 %v502
      %v1047 = vpop.f32.mrf.mxu0
      %v1048 = vadd.f32 %v354, %v1047
      %v1049 = vpop.f32.mrf.mxu0
      %1050 = vmatprep.mubr.f32.mxu0 0.0
      %1051 = vmatmul.mubr.f32.gmra.mxu0 %v505
      %v1052 = vpop.f32.mrf.mxu0
      %v1053 = vadd.f32 %v354, %v1052
      %v1054 = vpop.f32.mrf.mxu0
      %1055 = vmatprep.mubr.f32.mxu0 0.0
      %1056 = vmatmul.mubr.f32.gmra.mxu0 %v508
      %v1057 = vpop.f32.mrf.mxu0
      %v1058 = vadd.f32 %v354, %v1057
      %v1059 = vpop.f32.mrf.mxu0
      %1060 = vmatprep.mubr.f32.mxu0 0.0
      %1061 = vmatmul.mubr.f32.gmra.mxu0 %v511
      %v1062 = vpop.f32.mrf.mxu0
      %v1063 = vadd.f32 %v354, %v1062
      %v1064 = vpop.f32.mrf.mxu0
      %1065 = vmatprep.mubr.f32.mxu0 0.0
      %1066 = vmatmul.mubr.f32.gmra.mxu0 %v514
      %v1067 = vpop.f32.mrf.mxu0
      %v1068 = vadd.f32 %v354, %v1067
      %v1069 = vpop.f32.mrf.mxu0
      %1070 = vmatprep.mubr.f32.mxu0 0.0
      %1071 = vmatmul.mubr.f32.gmra.mxu0 %v517
      %v1072 = vpop.f32.mrf.mxu0
      %v1073 = vadd.f32 %v354, %v1072
      %v1074 = vpop.f32.mrf.mxu0
      %1075 = vmatprep.mubr.f32.mxu0 0.0
      %1076 = vmatmul.mubr.f32.gmra.mxu0 %v520
      %v1077 = vpop.f32.mrf.mxu0
      %v1078 = vadd.f32 %v354, %v1077
      %v1079 = vpop.f32.mrf.mxu0
      %1080 = vmatprep.mubr.f32.mxu0 0.0
      %1081 = vmatmul.mubr.f32.gmra.mxu0 %v523
      %v1082 = vpop.f32.mrf.mxu0
      %v1083 = vadd.f32 %v354, %v1082
      %v1084 = vpop.f32.mrf.mxu0
      %1085 = vmatprep.mubr.f32.mxu0 0.0
      %1086 = vmatmul.mubr.f32.gmra.mxu0 %v526
      %v1087 = vpop.f32.mrf.mxu0
      %v1088 = vadd.f32 %v354, %v1087
      %v1089 = vpop.f32.mrf.mxu0
      %1090 = vmatprep.mubr.f32.mxu0 0.0
      %1091 = vmatmul.mubr.f32.gmra.mxu0 %v529
      %v1092 = vpop.f32.mrf.mxu0
      %v1093 = vadd.f32 %v354, %v1092
      %v1094 = vpop.f32.mrf.mxu0
      %1095 = vmatprep.mubr.f32.mxu0 0.0
      %1096 = vmatmul.mubr.f32.gmra.mxu0 %v532
      %v1097 = vpop.f32.mrf.mxu0
      %v1098 = vadd.f32 %v354, %v1097
      %v1099 = vpop.f32.mrf.mxu0
      %1100 = vmatprep.mubr.f32.mxu0 0.0
      %1101 = vmatmul.mubr.f32.gmra.mxu0 %v535
      %v1102 = vpop.f32.mrf.mxu0
      %v1103 = vadd.f32 %v354, %v1102
      %v1104 = vpop.f32.mrf.mxu0
      %1105 = vmatprep.mubr.f32.mxu0 0.0
      %1106 = vmatmul.mubr.f32.gmra.mxu0 %v538
      %v1107 = vpop.f32.mrf.mxu0
      %v1108 = vadd.f32 %v354, %v1107
      %v1109 = vpop.f32.mrf.mxu0
      %1110 = vmatprep.mubr.f32.mxu0 0.0
      %1111 = vmatmul.mubr.f32.gmra.mxu0 %v541
      %v1112 = vpop.f32.mrf.mxu0
      %v1113 = vadd.f32 %v354, %v1112
      %v1114 = vpop.f32.mrf.mxu0
      %1115 = vmatprep.mubr.f32.mxu0 0.0
      %1116 = vmatmul.mubr.f32.gmra.mxu0 %v544
      %v1117 = vpop.f32.mrf.mxu0
      %v1118 = vadd.f32 %v354, %v1117
      %v1119 = vpop.f32.mrf.mxu0
      %1120 = vmatprep.mubr.f32.mxu0 0.0
      %1121 = vmatmul.mubr.f32.gmra.mxu0 %v547
      %v1122 = vpop.f32.mrf.mxu0
      %v1123 = vadd.f32 %v354, %v1122
      %v1124 = vpop.f32.mrf.mxu0
      %1125 = vmatprep.mubr.f32.mxu0 0.0
      %1126 = vmatmul.mubr.f32.gmra.mxu0 %v550
      %v1127 = vpop.f32.mrf.mxu0
      %v1128 = vadd.f32 %v354, %v1127
      %v1129 = vpop.f32.mrf.mxu0
      %1130 = vmatprep.mubr.f32.mxu0 0.0
      %1131 = vmatmul.mubr.f32.gmra.mxu0 %v553
      %v1132 = vpop.f32.mrf.mxu0
      %v1133 = vadd.f32 %v354, %v1132
      %v1134 = vpop.f32.mrf.mxu0
      %1135 = vmatprep.mubr.f32.mxu0 0.0
      %1136 = vmatmul.mubr.f32.gmra.mxu0 %v556
      %v1137 = vpop.f32.mrf.mxu0
      %v1138 = vadd.f32 %v354, %v1137
      %v1139 = vpop.f32.mrf.mxu0
      %1140 = vmatprep.mubr.f32.mxu0 0.0
      %1141 = vmatmul.mubr.f32.gmra.mxu0 %v559
      %v1142 = vpop.f32.mrf.mxu0
      %v1143 = vadd.f32 %v354, %v1142
      %v1144 = vpop.f32.mrf.mxu0
      %1145 = vmatprep.mubr.f32.mxu0 0.0
      %1146 = vmatmul.mubr.f32.gmra.mxu0 %v562
      %v1147 = vpop.f32.mrf.mxu0
      %v1148 = vadd.f32 %v354, %v1147
      %v1149 = vpop.f32.mrf.mxu0
      %1150 = vmatprep.mubr.f32.mxu0 0.0
      %1151 = vmatmul.mubr.f32.gmra.mxu0 %v565
      %v1152 = vpop.f32.mrf.mxu0
      %v1153 = vadd.f32 %v354, %v1152
      %v1154 = vpop.f32.mrf.mxu0
      %1155 = vmatprep.mubr.f32.mxu0 0.0
      %1156 = vmatmul.mubr.f32.gmra.mxu0 %v568
      %v1157 = vpop.f32.mrf.mxu0
      %v1158 = vadd.f32 %v354, %v1157
      %v1159 = vpop.f32.mrf.mxu0
      %1160 = vmatprep.mubr.f32.mxu0 0.0
      %1161 = vmatmul.mubr.f32.gmra.mxu0 %v571
      %v1162 = vpop.f32.mrf.mxu0
      %v1163 = vadd.f32 %v354, %v1162
      %v1164 = vpop.f32.mrf.mxu0
      %1165 = vmatprep.mubr.f32.mxu0 0.0
      %1166 = vmatmul.mubr.f32.gmra.mxu0 %v574
      %v1167 = vpop.f32.mrf.mxu0
      %v1168 = vadd.f32 %v354, %v1167
      %v1169 = vpop.f32.mrf.mxu0
      %1170 = vmatprep.mubr.f32.mxu0 0.0
      %1171 = vmatmul.mubr.f32.gmra.mxu0 %v577
      %v1172 = vpop.f32.mrf.mxu0
      %v1173 = vadd.f32 %v354, %v1172
      %v1174 = vpop.f32.mrf.mxu0
      %1175 = vmatprep.mubr.f32.mxu0 0.0
      %1176 = vmatmul.mubr.f32.gmra.mxu0 %v580
      %v1177 = vpop.f32.mrf.mxu0
      %v1178 = vadd.f32 %v354, %v1177
      %v1179 = vpop.f32.mrf.mxu0
      %1180 = vmatprep.mubr.f32.mxu0 0.0
      %1181 = vmatmul.mubr.f32.gmra.mxu0 %v583
      %v1182 = vpop.f32.mrf.mxu0
      %v1183 = vadd.f32 %v354, %v1182
      %v1184 = vpop.f32.mrf.mxu0
      %1185 = vmatprep.mubr.f32.mxu0 0.0
      %1186 = vmatmul.mubr.f32.gmra.mxu0 %v586
      %v1187 = vpop.f32.mrf.mxu0
      %v1188 = vadd.f32 %v354, %v1187
      %v1189 = vpop.f32.mrf.mxu0
      %1190 = vmatprep.mubr.f32.mxu0 0.0
      %1191 = vmatmul.mubr.f32.gmra.mxu0 %v589
      %v1192 = vpop.f32.mrf.mxu0
      %v1193 = vadd.f32 %v354, %v1192
      %v1194 = vpop.f32.mrf.mxu0
      %1195 = vmatprep.mubr.f32.mxu0 0.0
      %1196 = vmatmul.mubr.f32.gmra.mxu0 %v592
      %v1197 = vpop.f32.mrf.mxu0
      %v1198 = vadd.f32 %v354, %v1197
      %v1199 = vpop.f32.mrf.mxu0
      %1200 = vmatprep.mubr.f32.mxu0 0.0
      %1201 = vmatmul.mubr.f32.gmra.mxu0 %v595
      %v1202 = vpop.f32.mrf.mxu0
      %v1203 = vadd.f32 %v354, %v1202
      %v1204 = vpop.f32.mrf.mxu0
      %1205 = vmatprep.mubr.f32.mxu0 0.0
      %1206 = vmatmul.mubr.f32.gmra.mxu0 %v598
      %v1207 = vpop.f32.mrf.mxu0
      %v1208 = vadd.f32 %v354, %v1207
      %v1209 = vpop.f32.mrf.mxu0
      %1210 = vmatprep.mubr.f32.mxu0 0.0
      %1211 = vmatmul.mubr.f32.gmra.mxu0 %v601
      %v1212 = vpop.f32.mrf.mxu0
      %v1213 = vadd.f32 %v354, %v1212
      %v1214 = vpop.f32.mrf.mxu0
      %1215 = vmatprep.mubr.f32.mxu0 0.0
      %1216 = vmatmul.mubr.f32.gmra.mxu0 %v604
      %v1217 = vpop.f32.mrf.mxu0
      %v1218 = vadd.f32 %v354, %v1217
      %v1219 = vpop.f32.mrf.mxu0
      %1220 = vmatprep.mubr.f32.mxu0 0.0
      %1221 = vmatmul.mubr.f32.gmra.mxu0 %v607
      %v1222 = vpop.f32.mrf.mxu0
      %v1223 = vadd.f32 %v354, %v1222
      %v1224 = vpop.f32.mrf.mxu0
      %1225 = vmatprep.mubr.f32.mxu0 0.0
      %1226 = vmatmul.mubr.f32.gmra.mxu0 %v610
      %v1227 = vpop.f32.mrf.mxu0
      %v1228 = vadd.f32 %v354, %v1227
      %v1229 = vpop.f32.mrf.mxu0
      %1230 = vmatprep.mubr.f32.mxu0 0.0
      %1231 = vmatmul.mubr.f32.gmra.mxu0 %v613
      %v1232 = vpop.f32.mrf.mxu0
      %v1233 = vadd.f32 %v354, %v1232
      %v1234 = vpop.f32.mrf.mxu0
      %1235 = vmatprep.mubr.f32.mxu0 0.0
      %1236 = vmatmul.mubr.f32.gmra.mxu0 %v616
      %v1237 = vpop.f32.mrf.mxu0
      %v1238 = vadd.f32 %v354, %v1237
      %v1239 = vpop.f32.mrf.mxu0
      %1240 = vmatprep.mubr.f32.mxu0 0.0
      %1241 = vmatmul.mubr.f32.gmra.mxu0 %v619
      %v1242 = vpop.f32.mrf.mxu0
      %v1243 = vadd.f32 %v354, %v1242
      %v1244 = vpop.f32.mrf.mxu0
      %1245 = vmatprep.mubr.f32.mxu0 0.0
      %1246 = vmatmul.mubr.f32.gmra.mxu0 %v622
      %v1247 = vpop.f32.mrf.mxu0
      %v1248 = vadd.f32 %v354, %v1247
      %v1249 = vpop.f32.mrf.mxu0
      %1250 = vmatprep.mubr.f32.mxu0 0.0
      %1251 = vmatmul.mubr.f32.gmra.mxu0 %v625
      %v1252 = vpop.f32.mrf.mxu0
      %v1253 = vadd.f32 %v354, %v1252
      %v1254 = vpop.f32.mrf.mxu0
      %1255 = vmatprep.mubr.f32.mxu0 0.0
      %1256 = vmatmul.mubr.f32.gmra.mxu0 %v628
      %v1257 = vpop.f32.mrf.mxu0
      %v1258 = vadd.f32 %v354, %v1257
      %v1259 = vpop.f32.mrf.mxu0
      %1260 = vmatprep.mubr.f32.mxu0 0.0
      %1261 = vmatmul.mubr.f32.gmra.mxu0 %v631
      %v1262 = vpop.f32.mrf.mxu0
      %v1263 = vadd.f32 %v354, %v1262
      %v1264 = vpop.f32.mrf.mxu0
      %1265 = vmatprep.mubr.f32.mxu0 0.0
      %1266 = vmatmul.mubr.f32.gmra.mxu0 %v634
      %v1267 = vpop.f32.mrf.mxu0
      %v1268 = vadd.f32 %v354, %v1267
      %v1269 = vpop.f32.mrf.mxu0
      %1270 = vmatprep.mubr.f32.mxu0 0.0
      %1271 = vmatmul.mubr.f32.gmra.mxu0 %v637
      %v1272 = vpop.f32.mrf.mxu0
      %v1273 = vadd.f32 %v354, %v1272
      %v1274 = vpop.f32.mrf.mxu0
      %1275 = vmatprep.mubr.f32.mxu0 0.0
      %1276 = vmatmul.mubr.f32.gmra.mxu0 %v640
      %v1277 = vpop.f32.mrf.mxu0
      %v1278 = vadd.f32 %v354, %v1277
      %v1279 = vpop.f32.mrf.mxu0
      %1280 = vmatprep.mubr.f32.mxu0 0.0
      %1281 = vmatmul.mubr.f32.gmra.mxu0 %v643
      %v1282 = vpop.f32.mrf.mxu0
      %v1283 = vadd.f32 %v354, %v1282
      %v1284 = vpop.f32.mrf.mxu0
      %1285 = vmatprep.mubr.f32.mxu0 0.0
      %1286 = vmatmul.mubr.f32.gmra.mxu0 %v646
      %v1287 = vpop.f32.mrf.mxu0
      %v1288 = vadd.f32 %v354, %v1287
      %v1289 = vpop.f32.mrf.mxu0
      %1290 = vmatprep.mubr.f32.mxu0 0.0
      %1291 = vmatmul.mubr.f32.gmra.mxu0 %v649
      %v1292 = vpop.f32.mrf.mxu0
      %v1293 = vadd.f32 %v354, %v1292
      %v1294 = vpop.f32.mrf.mxu0
      %1295 = vmatprep.mubr.f32.mxu0 0.0
      %1296 = vmatmul.mubr.f32.gmra.mxu0 %v652
      %v1297 = vpop.f32.mrf.mxu0
      %v1298 = vadd.f32 %v354, %v1297
      %v1299 = vpop.f32.mrf.mxu0
      %1300 = vmatprep.mubr.f32.mxu0 0.0
      %1301 = vmatmul.mubr.f32.gmra.mxu0 %v655
      %v1302 = vpop.f32.mrf.mxu0
      %v1303 = vadd.f32 %v354, %v1302
      %v1304 = vpop.f32.mrf.mxu0
      %1305 = vmatprep.mubr.f32.mxu0 0.0
      %1306 = vmatmul.mubr.f32.gmra.mxu0 %v658
      %v1307 = vpop.f32.mrf.mxu0
      %v1308 = vadd.f32 %v354, %v1307
      %v1309 = vpop.f32.mrf.mxu0
      %1310 = vmatprep.mubr.f32.mxu0 0.0
      %1311 = vmatmul.mubr.f32.gmra.mxu0 %v661
      %v1312 = vpop.f32.mrf.mxu0
      %v1313 = vadd.f32 %v354, %v1312
      %v1314 = vpop.f32.mrf.mxu0
      %1315 = vmatprep.mubr.f32.mxu0 0.0
      %1316 = vmatmul.mubr.f32.gmra.mxu0 %v664
      %v1317 = vpop.f32.mrf.mxu0
      %v1318 = vadd.f32 %v354, %v1317
      %v1319 = vpop.f32.mrf.mxu0
      %1320 = vmatprep.mubr.f32.mxu0 0.0
      %1321 = vmatmul.mubr.f32.gmra.mxu0 %v667
      %v1322 = vpop.f32.mrf.mxu0
      %v1323 = vadd.f32 %v354, %v1322
      %v1324 = vpop.f32.mrf.mxu0
      %1325 = vmatprep.mubr.f32.mxu0 0.0
      %1326 = vmatmul.mubr.f32.gmra.mxu0 %v670
      %v1327 = vpop.f32.mrf.mxu0
      %v1328 = vadd.f32 %v354, %v1327
      %v1329 = vpop.f32.mrf.mxu0
      %1330 = vmatprep.mubr.f32.mxu0 0.0
      %1331 = vmatmul.mubr.f32.gmra.mxu0 %v673
      %v1332 = vpop.f32.mrf.mxu0
      %v1333 = vadd.f32 %v354, %v1332
      %v1334 = vpop.f32.mrf.mxu0
      %1335 = vmatprep.mubr.f32.mxu0 0.0
      %1336 = vmatmul.mubr.f32.gmra.mxu0 %v676
      %v1337 = vpop.f32.mrf.mxu0
      %v1338 = vadd.f32 %v354, %v1337
      %v1339 = vpop.f32.mrf.mxu0
      %1340 = vmatprep.mubr.f32.mxu0 0.0
      %1341 = vmatmul.mubr.f32.gmra.mxu0 %v679
      %v1342 = vpop.f32.mrf.mxu0
      %v1343 = vadd.f32 %v354, %v1342
      %v1344 = vpop.f32.mrf.mxu0
      %1345 = vmatprep.mubr.f32.mxu0 0.0
      %1346 = vmatmul.mubr.f32.gmra.mxu0 %v682
      %v1347 = vpop.f32.mrf.mxu0
      %v1348 = vadd.f32 %v354, %v1347
      %v1349 = vpop.f32.mrf.mxu0
      %1350 = vmatprep.mubr.f32.mxu0 0.0
      %1351 = vmatmul.mubr.f32.gmra.mxu0 %v685
      %v1352 = vpop.f32.mrf.mxu0
      %v1353 = vadd.f32 %v354, %v1352
      %v1354 = vpop.f32.mrf.mxu0
      %1355 = vmatprep.mubr.f32.mxu0 0.0
      %1356 = vmatmul.mubr.f32.gmra.mxu0 %v688
      %v1357 = vpop.f32.mrf.mxu0
      %v1358 = vadd.f32 %v354, %v1357
      %v1359 = vpop.f32.mrf.mxu0
      %1360 = vmatprep.mubr.f32.mxu0 0.0
      %1361 = vmatmul.mubr.f32.gmra.mxu0 %v691
      %v1362 = vpop.f32.mrf.mxu0
      %v1363 = vadd.f32 %v354, %v1362
      %v1364 = vpop.f32.mrf.mxu0
      %1365 = vmatprep.mubr.f32.mxu0 0.0
      %1366 = vmatmul.mubr.f32.gmra.mxu0 %v694
      %v1367 = vpop.f32.mrf.mxu0
      %v1368 = vadd.f32 %v354, %v1367
      %v1369 = vpop.f32.mrf.mxu0
      %1370 = vmatprep.mubr.f32.mxu0 0.0
      %1371 = vmatmul.mubr.f32.gmra.mxu0 %v697
      %v1372 = vpop.f32.mrf.mxu0
      %v1373 = vadd.f32 %v354, %v1372
      %v1374 = vpop.f32.mrf.mxu0
      %1375 = vmatprep.mubr.f32.mxu0 0.0
      %1376 = vmatmul.mubr.f32.gmra.mxu0 %v700
      %v1377 = vpop.f32.mrf.mxu0
      %v1378 = vadd.f32 %v354, %v1377
      %v1379 = vpop.f32.mrf.mxu0
      %1380 = vmatprep.mubr.f32.mxu0 0.0
      %1381 = vmatmul.mubr.f32.gmra.mxu0 %v703
      %v1382 = vpop.f32.mrf.mxu0
      %v1383 = vadd.f32 %v354, %v1382
      %v1384 = vpop.f32.mrf.mxu0
      %1385 = vmatprep.mubr.f32.mxu0 0.0
      %1386 = vmatmul.mubr.f32.gmra.mxu0 %v706
      %v1387 = vpop.f32.mrf.mxu0
      %v1388 = vadd.f32 %v354, %v1387
      %v1389 = vpop.f32.mrf.mxu0
      %1390 = vmatprep.mubr.f32.mxu0 0.0
      %1391 = vmatmul.mubr.f32.gmra.mxu0 %v709
      %v1392 = vpop.f32.mrf.mxu0
      %v1393 = vadd.f32 %v354, %v1392
      %v1394 = vpop.f32.mrf.mxu0
      %1395 = vmatprep.mubr.f32.mxu0 0.0
      %1396 = vmatmul.mubr.f32.gmra.mxu0 %v712
      %v1397 = vpop.f32.mrf.mxu0
      %v1398 = vadd.f32 %v354, %v1397
      %v1399 = vpop.f32.mrf.mxu0
      %1400 = vmatprep.mubr.f32.mxu0 0.0
      %1401 = vmatmul.mubr.f32.gmra.mxu0 %v715
      %v1402 = vpop.f32.mrf.mxu0
      %v1403 = vadd.f32 %v354, %v1402
      %v1404 = vpop.f32.mrf.mxu0
      %1405 = vmatprep.mubr.f32.mxu0 0.0
      %1406 = vmatmul.mubr.f32.gmra.mxu0 %v718
      %v1407 = vpop.f32.mrf.mxu0
      %v1408 = vadd.f32 %v354, %v1407
      %v1409 = vpop.f32.mrf.mxu0
      %1410 = vmatprep.mubr.f32.mxu0 0.0
      %1411 = vmatmul.mubr.f32.gmra.mxu0 %v721
      %v1412 = vpop.f32.mrf.mxu0
      %v1413 = vadd.f32 %v354, %v1412
      %v1414 = vpop.f32.mrf.mxu0
      %1415 = vmatprep.mubr.f32.mxu0 0.0
      %1416 = vmatmul.mubr.f32.gmra.mxu0 %v724
      %v1417 = vpop.f32.mrf.mxu0
      %v1418 = vadd.f32 %v354, %v1417
      %v1419 = vpop.f32.mrf.mxu0
      %1420 = vmatprep.mubr.f32.mxu0 0.0
      %1421 = vmatmul.mubr.f32.gmra.mxu0 %v727
      %v1422 = vpop.f32.mrf.mxu0
      %v1423 = vadd.f32 %v354, %v1422
      %v1424 = vpop.f32.mrf.mxu0
      %1425 = vmatprep.mubr.f32.mxu0 0.0
      %1426 = vmatmul.mubr.f32.gmra.mxu0 %v730
      %v1427 = vpop.f32.mrf.mxu0
      %v1428 = vadd.f32 %v354, %v1427
      %v1429 = vpop.f32.mrf.mxu0
      %1430 = vmatprep.mubr.f32.mxu0 0.0
      %1431 = vmatmul.mubr.f32.gmra.mxu0 %v733
      %v1432 = vpop.f32.mrf.mxu0
      %v1433 = vadd.f32 %v354, %v1432
      %v1434 = vpop.f32.mrf.mxu0
      %1435 = vmatprep.mubr.f32.mxu0 0.0
      %1436 = vmatmul.mubr.f32.gmra.mxu0 %v736
      %v1437 = vpop.f32.mrf.mxu0
      %v1438 = vadd.f32 %v354, %v1437
      %v1439 = vpop.f32.mrf.mxu0
      %1440 = vmatprep.mubr.f32.mxu0 0.0
      %1441 = vmatmul.mubr.f32.gmra.mxu0 %v739
      %v1442 = vpop.f32.mrf.mxu0
      %v1443 = vadd.f32 %v354, %v1442
      %v1444 = vpop.f32.mrf.mxu0
      %1445 = vdwg.mxu0
      %vm1446 = vcmask 130048
      %1447 = vst.msk [vmem:[%s206] sm:$0xff] %vm1446, %v808
      %1448 = vst.msk [vmem:[%s206 + $0x8] sm:$0xff] %vm1446, %v813
      %1449 = vst.msk [vmem:[%s206 + $0x10] sm:$0xff] %vm1446, %v818
      %1450 = vst.msk [vmem:[%s206 + $0x18] sm:$0xff] %vm1446, %v823
      %1451 = vst.msk [vmem:[%s206 + $0x20] sm:$0xff] %vm1446, %v828
      %1452 = vst.msk [vmem:[%s206 + $0x28] sm:$0xff] %vm1446, %v833
      %1453 = vst.msk [vmem:[%s206 + $0x30] sm:$0xff] %vm1446, %v838
      %1454 = vst.msk [vmem:[%s206 + $0x38] sm:$0xff] %vm1446, %v843
      %1455 = vst.msk [vmem:[%s206 + $0x40] sm:$0xff] %vm1446, %v848
      %1456 = vst.msk [vmem:[%s206 + $0x48] sm:$0xff] %vm1446, %v853
      %1457 = vst.msk [vmem:[%s206 + $0x50] sm:$0xff] %vm1446, %v858
      %1458 = vst.msk [vmem:[%s206 + $0x58] sm:$0xff] %vm1446, %v863
      %1459 = vst.msk [vmem:[%s206 + $0x60] sm:$0xff] %vm1446, %v868
      %1460 = vst.msk [vmem:[%s206 + $0x68] sm:$0xff] %vm1446, %v873
      %1461 = vst.msk [vmem:[%s206 + $0x70] sm:$0xff] %vm1446, %v878
      %1462 = vst.msk [vmem:[%s206 + $0x78] sm:$0xff] %vm1446, %v883
      %1463 = vst.msk [vmem:[%s206 + $0x80] sm:$0xff] %vm1446, %v888
      %1464 = vst.msk [vmem:[%s206 + $0x88] sm:$0xff] %vm1446, %v893
      %1465 = vst.msk [vmem:[%s206 + $0x90] sm:$0xff] %vm1446, %v898
      %1466 = vst.msk [vmem:[%s206 + $0x98] sm:$0xff] %vm1446, %v903
      %1467 = vst.msk [vmem:[%s206 + $0xa0] sm:$0xff] %vm1446, %v908
      %1468 = vst.msk [vmem:[%s206 + $0xa8] sm:$0xff] %vm1446, %v913
      %1469 = vst.msk [vmem:[%s206 + $0xb0] sm:$0xff] %vm1446, %v918
      %1470 = vst.msk [vmem:[%s206 + $0xb8] sm:$0xff] %vm1446, %v923
      %1471 = vst.msk [vmem:[%s206 + $0xc0] sm:$0xff] %vm1446, %v928
      %1472 = vst.msk [vmem:[%s206 + $0xc8] sm:$0xff] %vm1446, %v933
      %1473 = vst.msk [vmem:[%s206 + $0xd0] sm:$0xff] %vm1446, %v938
      %1474 = vst.msk [vmem:[%s206 + $0xd8] sm:$0xff] %vm1446, %v943
      %1475 = vst.msk [vmem:[%s206 + $0xe0] sm:$0xff] %vm1446, %v948
      %1476 = vst.msk [vmem:[%s206 + $0xe8] sm:$0xff] %vm1446, %v953
      %1477 = vst.msk [vmem:[%s206 + $0xf0] sm:$0xff] %vm1446, %v958
      %1478 = vst.msk [vmem:[%s206 + $0xf8] sm:$0xff] %vm1446, %v963
      %1479 = vst.msk [vmem:[%s206 + $0x100] sm:$0xff] %vm1446, %v968
      %1480 = vst.msk [vmem:[%s206 + $0x108] sm:$0xff] %vm1446, %v973
      %1481 = vst.msk [vmem:[%s206 + $0x110] sm:$0xff] %vm1446, %v978
      %1482 = vst.msk [vmem:[%s206 + $0x118] sm:$0xff] %vm1446, %v983
      %1483 = vst.msk [vmem:[%s206 + $0x120] sm:$0xff] %vm1446, %v988
      %1484 = vst.msk [vmem:[%s206 + $0x128] sm:$0xff] %vm1446, %v993
      %1485 = vst.msk [vmem:[%s206 + $0x130] sm:$0xff] %vm1446, %v998
      %1486 = vst.msk [vmem:[%s206 + $0x138] sm:$0xff] %vm1446, %v1003
      %1487 = vst.msk [vmem:[%s206 + $0x140] sm:$0xff] %vm1446, %v1008
      %1488 = vst.msk [vmem:[%s206 + $0x148] sm:$0xff] %vm1446, %v1013
      %1489 = vst.msk [vmem:[%s206 + $0x150] sm:$0xff] %vm1446, %v1018
      %1490 = vst.msk [vmem:[%s206 + $0x158] sm:$0xff] %vm1446, %v1023
      %1491 = vst.msk [vmem:[%s206 + $0x160] sm:$0xff] %vm1446, %v1028
      %1492 = vst.msk [vmem:[%s206 + $0x168] sm:$0xff] %vm1446, %v1033
      %1493 = vst.msk [vmem:[%s206 + $0x170] sm:$0xff] %vm1446, %v1038
      %1494 = vst.msk [vmem:[%s206 + $0x178] sm:$0xff] %vm1446, %v1043
      %1495 = vst.msk [vmem:[%s206 + $0x180] sm:$0xff] %vm1446, %v1048
      %1496 = vst.msk [vmem:[%s206 + $0x188] sm:$0xff] %vm1446, %v1053
      %1497 = vst.msk [vmem:[%s206 + $0x190] sm:$0xff] %vm1446, %v1058
      %1498 = vst.msk [vmem:[%s206 + $0x198] sm:$0xff] %vm1446, %v1063
      %1499 = vst.msk [vmem:[%s206 + $0x1a0] sm:$0xff] %vm1446, %v1068
      %1500 = vst.msk [vmem:[%s206 + $0x1a8] sm:$0xff] %vm1446, %v1073
      %1501 = vst.msk [vmem:[%s206 + $0x1b0] sm:$0xff] %vm1446, %v1078
      %1502 = vst.msk [vmem:[%s206 + $0x1b8] sm:$0xff] %vm1446, %v1083
      %1503 = vst.msk [vmem:[%s206 + $0x1c0] sm:$0xff] %vm1446, %v1088
      %1504 = vst.msk [vmem:[%s206 + $0x1c8] sm:$0xff] %vm1446, %v1093
      %1505 = vst.msk [vmem:[%s206 + $0x1d0] sm:$0xff] %vm1446, %v1098
      %1506 = vst.msk [vmem:[%s206 + $0x1d8] sm:$0xff] %vm1446, %v1103
      %1507 = vst.msk [vmem:[%s206 + $0x1e0] sm:$0xff] %vm1446, %v1108
      %1508 = vst.msk [vmem:[%s206 + $0x1e8] sm:$0xff] %vm1446, %v1113
      %1509 = vst.msk [vmem:[%s206 + $0x1f0] sm:$0xff] %vm1446, %v1118
      %1510 = vst.msk [vmem:[%s206 + $0x1f8] sm:$0xff] %vm1446, %v1123
      %1511 = vst.msk [vmem:[%s206 + $0x200] sm:$0xff] %vm1446, %v1128
      %1512 = vst.msk [vmem:[%s206 + $0x208] sm:$0xff] %vm1446, %v1133
      %1513 = vst.msk [vmem:[%s206 + $0x210] sm:$0xff] %vm1446, %v1138
      %1514 = vst.msk [vmem:[%s206 + $0x218] sm:$0xff] %vm1446, %v1143
      %1515 = vst.msk [vmem:[%s206 + $0x220] sm:$0xff] %vm1446, %v1148
      %1516 = vst.msk [vmem:[%s206 + $0x228] sm:$0xff] %vm1446, %v1153
      %1517 = vst.msk [vmem:[%s206 + $0x230] sm:$0xff] %vm1446, %v1158
      %1518 = vst.msk [vmem:[%s206 + $0x238] sm:$0xff] %vm1446, %v1163
      %1519 = vst.msk [vmem:[%s206 + $0x240] sm:$0xff] %vm1446, %v1168
      %1520 = vst.msk [vmem:[%s206 + $0x248] sm:$0xff] %vm1446, %v1173
      %1521 = vst.msk [vmem:[%s206 + $0x250] sm:$0xff] %vm1446, %v1178
      %1522 = vst.msk [vmem:[%s206 + $0x258] sm:$0xff] %vm1446, %v1183
      %1523 = vst.msk [vmem:[%s206 + $0x260] sm:$0xff] %vm1446, %v1188
      %1524 = vst.msk [vmem:[%s206 + $0x268] sm:$0xff] %vm1446, %v1193
      %1525 = vst.msk [vmem:[%s206 + $0x270] sm:$0xff] %vm1446, %v1198
      %1526 = vst.msk [vmem:[%s206 + $0x278] sm:$0xff] %vm1446, %v1203
      %1527 = vst.msk [vmem:[%s206 + $0x280] sm:$0xff] %vm1446, %v1208
      %1528 = vst.msk [vmem:[%s206 + $0x288] sm:$0xff] %vm1446, %v1213
      %1529 = vst.msk [vmem:[%s206 + $0x290] sm:$0xff] %vm1446, %v1218
      %1530 = vst.msk [vmem:[%s206 + $0x298] sm:$0xff] %vm1446, %v1223
      %1531 = vst.msk [vmem:[%s206 + $0x2a0] sm:$0xff] %vm1446, %v1228
      %1532 = vst.msk [vmem:[%s206 + $0x2a8] sm:$0xff] %vm1446, %v1233
      %1533 = vst.msk [vmem:[%s206 + $0x2b0] sm:$0xff] %vm1446, %v1238
      %1534 = vst.msk [vmem:[%s206 + $0x2b8] sm:$0xff] %vm1446, %v1243
      %1535 = vst.msk [vmem:[%s206 + $0x2c0] sm:$0xff] %vm1446, %v1248
      %1536 = vst.msk [vmem:[%s206 + $0x2c8] sm:$0xff] %vm1446, %v1253
      %1537 = vst.msk [vmem:[%s206 + $0x2d0] sm:$0xff] %vm1446, %v1258
      %1538 = vst.msk [vmem:[%s206 + $0x2d8] sm:$0xff] %vm1446, %v1263
      %1539 = vst.msk [vmem:[%s206 + $0x2e0] sm:$0xff] %vm1446, %v1268
      %1540 = vst.msk [vmem:[%s206 + $0x2e8] sm:$0xff] %vm1446, %v1273
      %1541 = vst.msk [vmem:[%s206 + $0x2f0] sm:$0xff] %vm1446, %v1278
      %1542 = vst.msk [vmem:[%s206 + $0x2f8] sm:$0xff] %vm1446, %v1283
      %1543 = vst.msk [vmem:[%s206 + $0x300] sm:$0xff] %vm1446, %v1288
      %1544 = vst.msk [vmem:[%s206 + $0x308] sm:$0xff] %vm1446, %v1293
      %1545 = vst.msk [vmem:[%s206 + $0x310] sm:$0xff] %vm1446, %v1298
      %1546 = vst.msk [vmem:[%s206 + $0x318] sm:$0xff] %vm1446, %v1303
      %1547 = vst.msk [vmem:[%s206 + $0x320] sm:$0xff] %vm1446, %v1308
      %1548 = vst.msk [vmem:[%s206 + $0x328] sm:$0xff] %vm1446, %v1313
      %1549 = vst.msk [vmem:[%s206 + $0x330] sm:$0xff] %vm1446, %v1318
      %1550 = vst.msk [vmem:[%s206 + $0x338] sm:$0xff] %vm1446, %v1323
      %1551 = vst.msk [vmem:[%s206 + $0x340] sm:$0xff] %vm1446, %v1328
      %1552 = vst.msk [vmem:[%s206 + $0x348] sm:$0xff] %vm1446, %v1333
      %1553 = vst.msk [vmem:[%s206 + $0x350] sm:$0xff] %vm1446, %v1338
      %1554 = vst.msk [vmem:[%s206 + $0x358] sm:$0xff] %vm1446, %v1343
      %1555 = vst.msk [vmem:[%s206 + $0x360] sm:$0xff] %vm1446, %v1348
      %1556 = vst.msk [vmem:[%s206 + $0x368] sm:$0xff] %vm1446, %v1353
      %1557 = vst.msk [vmem:[%s206 + $0x370] sm:$0xff] %vm1446, %v1358
      %1558 = vst.msk [vmem:[%s206 + $0x378] sm:$0xff] %vm1446, %v1363
      %1559 = vst.msk [vmem:[%s206 + $0x380] sm:$0xff] %vm1446, %v1368
      %1560 = vst.msk [vmem:[%s206 + $0x388] sm:$0xff] %vm1446, %v1373
      %1561 = vst.msk [vmem:[%s206 + $0x390] sm:$0xff] %vm1446, %v1378
      %1562 = vst.msk [vmem:[%s206 + $0x398] sm:$0xff] %vm1446, %v1383
      %1563 = vst.msk [vmem:[%s206 + $0x3a0] sm:$0xff] %vm1446, %v1388
      %1564 = vst.msk [vmem:[%s206 + $0x3a8] sm:$0xff] %vm1446, %v1393
      %1565 = vst.msk [vmem:[%s206 + $0x3b0] sm:$0xff] %vm1446, %v1398
      %1566 = vst.msk [vmem:[%s206 + $0x3b8] sm:$0xff] %vm1446, %v1403
      %1567 = vst.msk [vmem:[%s206 + $0x3c0] sm:$0xff] %vm1446, %v1408
      %1568 = vst.msk [vmem:[%s206 + $0x3c8] sm:$0xff] %vm1446, %v1413
      %1569 = vst.msk [vmem:[%s206 + $0x3d0] sm:$0xff] %vm1446, %v1418
      %1570 = vst.msk [vmem:[%s206 + $0x3d8] sm:$0xff] %vm1446, %v1423
      %1571 = vst.msk [vmem:[%s206 + $0x3e0] sm:$0xff] %vm1446, %v1428
      %1572 = vst.msk [vmem:[%s206 + $0x3e8] sm:$0xff] %vm1446, %v1433
      %1573 = vst.msk [vmem:[%s206 + $0x3f0] sm:$0xff] %vm1446, %v1438
      %1574 = vst.msk [vmem:[%s206 + $0x3f8] sm:$0xff] %vm1446, %v1443
      %v1575 = vlaneseq
      %v1576 = vshrl.u32 %v1575, 7
      %v1577 = vadd.s32 %v1576, 8
      %v1578 = vadd.s32 %v1576, 16
      %v1579 = vadd.s32 %v1576, 24
      %v1580 = vadd.s32 %v1576, 32
      %v1581 = vadd.s32 %v1576, 40
      %v1582 = vadd.s32 %v1576, 48
      %v1583 = vadd.s32 %v1576, 56
      %v1584 = vadd.s32 %v1576, 64
      %v1585 = vadd.s32 %v1576, 72
      %v1586 = vadd.s32 %v1576, 80
      %v1587 = vadd.s32 %v1576, 88
      %v1588 = vadd.s32 %v1576, 96
      %v1589 = vadd.s32 %v1576, 104
      %v1590 = vadd.s32 %v1576, 112
      %v1591 = vadd.s32 %v1576, 120
      %v1592 = vadd.s32 %v1576, 128
      %v1593 = vadd.s32 %v1576, 136
      %v1594 = vadd.s32 %v1576, 144
      %v1595 = vadd.s32 %v1576, 152
      %v1596 = vadd.s32 %v1576, 160
      %v1597 = vadd.s32 %v1576, 168
      %v1598 = vadd.s32 %v1576, 176
      %v1599 = vadd.s32 %v1576, 184
      %v1600 = vadd.s32 %v1576, 192
      %v1601 = vadd.s32 %v1576, 200
      %v1602 = vadd.s32 %v1576, 208
      %v1603 = vadd.s32 %v1576, 216
      %v1604 = vadd.s32 %v1576, 224
      %v1605 = vadd.s32 %v1576, 232
      %v1606 = vadd.s32 %v1576, 240
      %v1607 = vadd.s32 %v1576, 248
      %v1608 = vadd.s32 %v1576, 256
      %v1609 = vadd.s32 %v1576, 264
      %v1610 = vadd.s32 %v1576, 272
      %v1611 = vadd.s32 %v1576, 280
      %v1612 = vadd.s32 %v1576, 288
      %v1613 = vadd.s32 %v1576, 296
      %v1614 = vadd.s32 %v1576, 304
      %v1615 = vadd.s32 %v1576, 312
      %v1616 = vadd.s32 %v1576, 320
      %v1617 = vadd.s32 %v1576, 328
      %v1618 = vadd.s32 %v1576, 336
      %v1619 = vadd.s32 %v1576, 344
      %v1620 = vadd.s32 %v1576, 352
      %v1621 = vadd.s32 %v1576, 360
      %v1622 = vadd.s32 %v1576, 368
      %v1623 = vadd.s32 %v1576, 376
      %v1624 = vadd.s32 %v1576, 384
      %v1625 = vadd.s32 %v1576, 392
      %v1626 = vadd.s32 %v1576, 400
      %v1627 = vadd.s32 %v1576, 408
      %v1628 = vadd.s32 %v1576, 416
      %v1629 = vadd.s32 %v1576, 424
      %v1630 = vadd.s32 %v1576, 432
      %v1631 = vadd.s32 %v1576, 440
      %v1632 = vadd.s32 %v1576, 448
      %v1633 = vadd.s32 %v1576, 456
      %v1634 = vadd.s32 %v1576, 464
      %v1635 = vadd.s32 %v1576, 472
      %v1636 = vadd.s32 %v1576, 480
      %v1637 = vadd.s32 %v1576, 488
      %v1638 = vadd.s32 %v1576, 496
      %v1639 = vadd.s32 %v1576, 504
      %v1640 = vadd.s32 %v1576, 512
      %v1641 = vadd.s32 %v1576, 520
      %v1642 = vadd.s32 %v1576, 528
      %v1643 = vadd.s32 %v1576, 536
      %v1644 = vadd.s32 %v1576, 544
      %v1645 = vadd.s32 %v1576, 552
      %v1646 = vadd.s32 %v1576, 560
      %v1647 = vadd.s32 %v1576, 568
      %v1648 = vadd.s32 %v1576, 576
      %v1649 = vadd.s32 %v1576, 584
      %v1650 = vadd.s32 %v1576, 592
      %v1651 = vadd.s32 %v1576, 600
      %v1652 = vadd.s32 %v1576, 608
      %v1653 = vadd.s32 %v1576, 616
      %v1654 = vadd.s32 %v1576, 624
      %v1655 = vadd.s32 %v1576, 632
      %v1656 = vadd.s32 %v1576, 640
      %v1657 = vadd.s32 %v1576, 648
      %v1658 = vadd.s32 %v1576, 656
      %v1659 = vadd.s32 %v1576, 664
      %v1660 = vadd.s32 %v1576, 672
      %v1661 = vadd.s32 %v1576, 680
      %v1662 = vadd.s32 %v1576, 688
      %v1663 = vadd.s32 %v1576, 696
      %v1664 = vadd.s32 %v1576, 704
      %v1665 = vadd.s32 %v1576, 712
      %v1666 = vadd.s32 %v1576, 720
      %v1667 = vadd.s32 %v1576, 728
      %v1668 = vadd.s32 %v1576, 736
      %v1669 = vadd.s32 %v1576, 744
      %v1670 = vadd.s32 %v1576, 752
      %v1671 = vadd.s32 %v1576, 760
      %v1672 = vadd.s32 %v1576, 768
      %v1673 = vadd.s32 %v1576, 776
      %v1674 = vadd.s32 %v1576, 784
      %v1675 = vadd.s32 %v1576, 792
      %v1676 = vadd.s32 %v1576, 800
      %v1677 = vadd.s32 %v1576, 808
      %v1678 = vadd.s32 %v1576, 816
      %v1679 = vadd.s32 %v1576, 824
      %v1680 = vadd.s32 %v1576, 832
      %v1681 = vadd.s32 %v1576, 840
      %v1682 = vadd.s32 %v1576, 848
      %v1683 = vadd.s32 %v1576, 856
      %v1684 = vadd.s32 %v1576, 864
      %v1685 = vadd.s32 %v1576, 872
      %v1686 = vadd.s32 %v1576, 880
      %v1687 = vadd.s32 %v1576, 888
      %v1688 = vadd.s32 %v1576, 896
      %v1689 = vadd.s32 %v1576, 904
      %v1690 = vadd.s32 %v1576, 912
      %v1691 = vadd.s32 %v1576, 920
      %v1692 = vadd.s32 %v1576, 928
      %v1693 = vadd.s32 %v1576, 936
      %v1694 = vadd.s32 %v1576, 944
      %v1695 = vadd.s32 %v1576, 952
      %v1696 = vadd.s32 %v1576, 960
      %v1697 = vadd.s32 %v1576, 968
      %v1698 = vadd.s32 %v1576, 976
      %v1699 = vadd.s32 %v1576, 984
      %v1700 = vadd.s32 %v1576, 992
      %v1701 = vadd.s32 %v1576, 1000
      %v1702 = vadd.s32 %v1576, 1008
      %v1703 = vadd.s32 %v1576, 1016
      %s1704 = smul.u32 %s16, 1024
      %v1705 = vstv %s1704
      %v1706 = vadd.s32 %v1576, %v1705
      %v1707 = vadd.s32 %v1577, %v1705
      %v1708 = vadd.s32 %v1578, %v1705
      %v1709 = vadd.s32 %v1579, %v1705
      %v1710 = vadd.s32 %v1580, %v1705
      %v1711 = vadd.s32 %v1581, %v1705
      %v1712 = vadd.s32 %v1582, %v1705
      %v1713 = vadd.s32 %v1583, %v1705
      %v1714 = vadd.s32 %v1584, %v1705
      %v1715 = vadd.s32 %v1585, %v1705
      %v1716 = vadd.s32 %v1586, %v1705
      %v1717 = vadd.s32 %v1587, %v1705
      %v1718 = vadd.s32 %v1588, %v1705
      %v1719 = vadd.s32 %v1589, %v1705
      %v1720 = vadd.s32 %v1590, %v1705
      %v1721 = vadd.s32 %v1591, %v1705
      %v1722 = vadd.s32 %v1592, %v1705
      %v1723 = vadd.s32 %v1593, %v1705
      %v1724 = vadd.s32 %v1594, %v1705
      %v1725 = vadd.s32 %v1595, %v1705
      %v1726 = vadd.s32 %v1596, %v1705
      %v1727 = vadd.s32 %v1597, %v1705
      %v1728 = vadd.s32 %v1598, %v1705
      %v1729 = vadd.s32 %v1599, %v1705
      %v1730 = vadd.s32 %v1600, %v1705
      %v1731 = vadd.s32 %v1601, %v1705
      %v1732 = vadd.s32 %v1602, %v1705
      %v1733 = vadd.s32 %v1603, %v1705
      %v1734 = vadd.s32 %v1604, %v1705
      %v1735 = vadd.s32 %v1605, %v1705
      %v1736 = vadd.s32 %v1606, %v1705
      %v1737 = vadd.s32 %v1607, %v1705
      %v1738 = vadd.s32 %v1608, %v1705
      %v1739 = vadd.s32 %v1609, %v1705
      %v1740 = vadd.s32 %v1610, %v1705
      %v1741 = vadd.s32 %v1611, %v1705
      %v1742 = vadd.s32 %v1612, %v1705
      %v1743 = vadd.s32 %v1613, %v1705
      %v1744 = vadd.s32 %v1614, %v1705
      %v1745 = vadd.s32 %v1615, %v1705
      %v1746 = vadd.s32 %v1616, %v1705
      %v1747 = vadd.s32 %v1617, %v1705
      %v1748 = vadd.s32 %v1618, %v1705
      %v1749 = vadd.s32 %v1619, %v1705
      %v1750 = vadd.s32 %v1620, %v1705
      %v1751 = vadd.s32 %v1621, %v1705
      %v1752 = vadd.s32 %v1622, %v1705
      %v1753 = vadd.s32 %v1623, %v1705
      %v1754 = vadd.s32 %v1624, %v1705
      %v1755 = vadd.s32 %v1625, %v1705
      %v1756 = vadd.s32 %v1626, %v1705
      %v1757 = vadd.s32 %v1627, %v1705
      %v1758 = vadd.s32 %v1628, %v1705
      %v1759 = vadd.s32 %v1629, %v1705
      %v1760 = vadd.s32 %v1630, %v1705
      %v1761 = vadd.s32 %v1631, %v1705
      %v1762 = vadd.s32 %v1632, %v1705
      %v1763 = vadd.s32 %v1633, %v1705
      %v1764 = vadd.s32 %v1634, %v1705
      %v1765 = vadd.s32 %v1635, %v1705
      %v1766 = vadd.s32 %v1636, %v1705
      %v1767 = vadd.s32 %v1637, %v1705
      %v1768 = vadd.s32 %v1638, %v1705
      %v1769 = vadd.s32 %v1639, %v1705
      %v1770 = vadd.s32 %v1640, %v1705
      %v1771 = vadd.s32 %v1641, %v1705
      %v1772 = vadd.s32 %v1642, %v1705
      %v1773 = vadd.s32 %v1643, %v1705
      %v1774 = vadd.s32 %v1644, %v1705
      %v1775 = vadd.s32 %v1645, %v1705
      %v1776 = vadd.s32 %v1646, %v1705
      %v1777 = vadd.s32 %v1647, %v1705
      %v1778 = vadd.s32 %v1648, %v1705
      %v1779 = vadd.s32 %v1649, %v1705
      %v1780 = vadd.s32 %v1650, %v1705
      %v1781 = vadd.s32 %v1651, %v1705
      %v1782 = vadd.s32 %v1652, %v1705
      %v1783 = vadd.s32 %v1653, %v1705
      %v1784 = vadd.s32 %v1654, %v1705
      %v1785 = vadd.s32 %v1655, %v1705
      %v1786 = vadd.s32 %v1656, %v1705
      %v1787 = vadd.s32 %v1657, %v1705
      %v1788 = vadd.s32 %v1658, %v1705
      %v1789 = vadd.s32 %v1659, %v1705
      %v1790 = vadd.s32 %v1660, %v1705
      %v1791 = vadd.s32 %v1661, %v1705
      %v1792 = vadd.s32 %v1662, %v1705
      %v1793 = vadd.s32 %v1663, %v1705
      %v1794 = vadd.s32 %v1664, %v1705
      %v1795 = vadd.s32 %v1665, %v1705
      %v1796 = vadd.s32 %v1666, %v1705
      %v1797 = vadd.s32 %v1667, %v1705
      %v1798 = vadd.s32 %v1668, %v1705
      %v1799 = vadd.s32 %v1669, %v1705
      %v1800 = vadd.s32 %v1670, %v1705
      %v1801 = vadd.s32 %v1671, %v1705
      %v1802 = vadd.s32 %v1672, %v1705
      %v1803 = vadd.s32 %v1673, %v1705
      %v1804 = vadd.s32 %v1674, %v1705
      %v1805 = vadd.s32 %v1675, %v1705
      %v1806 = vadd.s32 %v1676, %v1705
      %v1807 = vadd.s32 %v1677, %v1705
      %v1808 = vadd.s32 %v1678, %v1705
      %v1809 = vadd.s32 %v1679, %v1705
      %v1810 = vadd.s32 %v1680, %v1705
      %v1811 = vadd.s32 %v1681, %v1705
      %v1812 = vadd.s32 %v1682, %v1705
      %v1813 = vadd.s32 %v1683, %v1705
      %v1814 = vadd.s32 %v1684, %v1705
      %v1815 = vadd.s32 %v1685, %v1705
      %v1816 = vadd.s32 %v1686, %v1705
      %v1817 = vadd.s32 %v1687, %v1705
      %v1818 = vadd.s32 %v1688, %v1705
      %v1819 = vadd.s32 %v1689, %v1705
      %v1820 = vadd.s32 %v1690, %v1705
      %v1821 = vadd.s32 %v1691, %v1705
      %v1822 = vadd.s32 %v1692, %v1705
      %v1823 = vadd.s32 %v1693, %v1705
      %v1824 = vadd.s32 %v1694, %v1705
      %v1825 = vadd.s32 %v1695, %v1705
      %v1826 = vadd.s32 %v1696, %v1705
      %v1827 = vadd.s32 %v1697, %v1705
      %v1828 = vadd.s32 %v1698, %v1705
      %v1829 = vadd.s32 %v1699, %v1705
      %v1830 = vadd.s32 %v1700, %v1705
      %v1831 = vadd.s32 %v1701, %v1705
      %v1832 = vadd.s32 %v1702, %v1705
      %v1833 = vadd.s32 %v1703, %v1705
      %vm1834 = vcmp.lt.s32.totalorder %v1706, 2790
      %vm1835 = vcmp.lt.s32.totalorder %v1707, 2790
      %vm1836 = vcmp.lt.s32.totalorder %v1708, 2790
      %vm1837 = vcmp.lt.s32.totalorder %v1709, 2790
      %vm1838 = vcmp.lt.s32.totalorder %v1710, 2790
      %vm1839 = vcmp.lt.s32.totalorder %v1711, 2790
      %vm1840 = vcmp.lt.s32.totalorder %v1712, 2790
      %vm1841 = vcmp.lt.s32.totalorder %v1713, 2790
      %vm1842 = vcmp.lt.s32.totalorder %v1714, 2790
      %vm1843 = vcmp.lt.s32.totalorder %v1715, 2790
      %vm1844 = vcmp.lt.s32.totalorder %v1716, 2790
      %vm1845 = vcmp.lt.s32.totalorder %v1717, 2790
      %vm1846 = vcmp.lt.s32.totalorder %v1718, 2790
      %vm1847 = vcmp.lt.s32.totalorder %v1719, 2790
      %vm1848 = vcmp.lt.s32.totalorder %v1720, 2790
      %vm1849 = vcmp.lt.s32.totalorder %v1721, 2790
      %vm1850 = vcmp.lt.s32.totalorder %v1722, 2790
      %vm1851 = vcmp.lt.s32.totalorder %v1723, 2790
      %vm1852 = vcmp.lt.s32.totalorder %v1724, 2790
      %vm1853 = vcmp.lt.s32.totalorder %v1725, 2790
      %vm1854 = vcmp.lt.s32.totalorder %v1726, 2790
      %vm1855 = vcmp.lt.s32.totalorder %v1727, 2790
      %vm1856 = vcmp.lt.s32.totalorder %v1728, 2790
      %vm1857 = vcmp.lt.s32.totalorder %v1729, 2790
      %vm1858 = vcmp.lt.s32.totalorder %v1730, 2790
      %vm1859 = vcmp.lt.s32.totalorder %v1731, 2790
      %vm1860 = vcmp.lt.s32.totalorder %v1732, 2790
      %vm1861 = vcmp.lt.s32.totalorder %v1733, 2790
      %vm1862 = vcmp.lt.s32.totalorder %v1734, 2790
      %vm1863 = vcmp.lt.s32.totalorder %v1735, 2790
      %vm1864 = vcmp.lt.s32.totalorder %v1736, 2790
      %vm1865 = vcmp.lt.s32.totalorder %v1737, 2790
      %vm1866 = vcmp.lt.s32.totalorder %v1738, 2790
      %vm1867 = vcmp.lt.s32.totalorder %v1739, 2790
      %vm1868 = vcmp.lt.s32.totalorder %v1740, 2790
      %vm1869 = vcmp.lt.s32.totalorder %v1741, 2790
      %vm1870 = vcmp.lt.s32.totalorder %v1742, 2790
      %vm1871 = vcmp.lt.s32.totalorder %v1743, 2790
      %vm1872 = vcmp.lt.s32.totalorder %v1744, 2790
      %vm1873 = vcmp.lt.s32.totalorder %v1745, 2790
      %vm1874 = vcmp.lt.s32.totalorder %v1746, 2790
      %vm1875 = vcmp.lt.s32.totalorder %v1747, 2790
      %vm1876 = vcmp.lt.s32.totalorder %v1748, 2790
      %vm1877 = vcmp.lt.s32.totalorder %v1749, 2790
      %vm1878 = vcmp.lt.s32.totalorder %v1750, 2790
      %vm1879 = vcmp.lt.s32.totalorder %v1751, 2790
      %vm1880 = vcmp.lt.s32.totalorder %v1752, 2790
      %vm1881 = vcmp.lt.s32.totalorder %v1753, 2790
      %vm1882 = vcmp.lt.s32.totalorder %v1754, 2790
      %vm1883 = vcmp.lt.s32.totalorder %v1755, 2790
      %vm1884 = vcmp.lt.s32.totalorder %v1756, 2790
      %vm1885 = vcmp.lt.s32.totalorder %v1757, 2790
      %vm1886 = vcmp.lt.s32.totalorder %v1758, 2790
      %vm1887 = vcmp.lt.s32.totalorder %v1759, 2790
      %vm1888 = vcmp.lt.s32.totalorder %v1760, 2790
      %vm1889 = vcmp.lt.s32.totalorder %v1761, 2790
      %vm1890 = vcmp.lt.s32.totalorder %v1762, 2790
      %vm1891 = vcmp.lt.s32.totalorder %v1763, 2790
      %vm1892 = vcmp.lt.s32.totalorder %v1764, 2790
      %vm1893 = vcmp.lt.s32.totalorder %v1765, 2790
      %vm1894 = vcmp.lt.s32.totalorder %v1766, 2790
      %vm1895 = vcmp.lt.s32.totalorder %v1767, 2790
      %vm1896 = vcmp.lt.s32.totalorder %v1768, 2790
      %vm1897 = vcmp.lt.s32.totalorder %v1769, 2790
      %vm1898 = vcmp.lt.s32.totalorder %v1770, 2790
      %vm1899 = vcmp.lt.s32.totalorder %v1771, 2790
      %vm1900 = vcmp.lt.s32.totalorder %v1772, 2790
      %vm1901 = vcmp.lt.s32.totalorder %v1773, 2790
      %vm1902 = vcmp.lt.s32.totalorder %v1774, 2790
      %vm1903 = vcmp.lt.s32.totalorder %v1775, 2790
      %vm1904 = vcmp.lt.s32.totalorder %v1776, 2790
      %vm1905 = vcmp.lt.s32.totalorder %v1777, 2790
      %vm1906 = vcmp.lt.s32.totalorder %v1778, 2790
      %vm1907 = vcmp.lt.s32.totalorder %v1779, 2790
      %vm1908 = vcmp.lt.s32.totalorder %v1780, 2790
      %vm1909 = vcmp.lt.s32.totalorder %v1781, 2790
      %vm1910 = vcmp.lt.s32.totalorder %v1782, 2790
      %vm1911 = vcmp.lt.s32.totalorder %v1783, 2790
      %vm1912 = vcmp.lt.s32.totalorder %v1784, 2790
      %vm1913 = vcmp.lt.s32.totalorder %v1785, 2790
      %vm1914 = vcmp.lt.s32.totalorder %v1786, 2790
      %vm1915 = vcmp.lt.s32.totalorder %v1787, 2790
      %vm1916 = vcmp.lt.s32.totalorder %v1788, 2790
      %vm1917 = vcmp.lt.s32.totalorder %v1789, 2790
      %vm1918 = vcmp.lt.s32.totalorder %v1790, 2790
      %vm1919 = vcmp.lt.s32.totalorder %v1791, 2790
      %vm1920 = vcmp.lt.s32.totalorder %v1792, 2790
      %vm1921 = vcmp.lt.s32.totalorder %v1793, 2790
      %vm1922 = vcmp.lt.s32.totalorder %v1794, 2790
      %vm1923 = vcmp.lt.s32.totalorder %v1795, 2790
      %vm1924 = vcmp.lt.s32.totalorder %v1796, 2790
      %vm1925 = vcmp.lt.s32.totalorder %v1797, 2790
      %vm1926 = vcmp.lt.s32.totalorder %v1798, 2790
      %vm1927 = vcmp.lt.s32.totalorder %v1799, 2790
      %vm1928 = vcmp.lt.s32.totalorder %v1800, 2790
      %vm1929 = vcmp.lt.s32.totalorder %v1801, 2790
      %vm1930 = vcmp.lt.s32.totalorder %v1802, 2790
      %vm1931 = vcmp.lt.s32.totalorder %v1803, 2790
      %vm1932 = vcmp.lt.s32.totalorder %v1804, 2790
      %vm1933 = vcmp.lt.s32.totalorder %v1805, 2790
      %vm1934 = vcmp.lt.s32.totalorder %v1806, 2790
      %vm1935 = vcmp.lt.s32.totalorder %v1807, 2790
      %vm1936 = vcmp.lt.s32.totalorder %v1808, 2790
      %vm1937 = vcmp.lt.s32.totalorder %v1809, 2790
      %vm1938 = vcmp.lt.s32.totalorder %v1810, 2790
      %vm1939 = vcmp.lt.s32.totalorder %v1811, 2790
      %vm1940 = vcmp.lt.s32.totalorder %v1812, 2790
      %vm1941 = vcmp.lt.s32.totalorder %v1813, 2790
      %vm1942 = vcmp.lt.s32.totalorder %v1814, 2790
      %vm1943 = vcmp.lt.s32.totalorder %v1815, 2790
      %vm1944 = vcmp.lt.s32.totalorder %v1816, 2790
      %vm1945 = vcmp.lt.s32.totalorder %v1817, 2790
      %vm1946 = vcmp.lt.s32.totalorder %v1818, 2790
      %vm1947 = vcmp.lt.s32.totalorder %v1819, 2790
      %vm1948 = vcmp.lt.s32.totalorder %v1820, 2790
      %vm1949 = vcmp.lt.s32.totalorder %v1821, 2790
      %vm1950 = vcmp.lt.s32.totalorder %v1822, 2790
      %vm1951 = vcmp.lt.s32.totalorder %v1823, 2790
      %vm1952 = vcmp.lt.s32.totalorder %v1824, 2790
      %vm1953 = vcmp.lt.s32.totalorder %v1825, 2790
      %vm1954 = vcmp.lt.s32.totalorder %v1826, 2790
      %vm1955 = vcmp.lt.s32.totalorder %v1827, 2790
      %vm1956 = vcmp.lt.s32.totalorder %v1828, 2790
      %vm1957 = vcmp.lt.s32.totalorder %v1829, 2790
      %vm1958 = vcmp.lt.s32.totalorder %v1830, 2790
      %vm1959 = vcmp.lt.s32.totalorder %v1831, 2790
      %vm1960 = vcmp.lt.s32.totalorder %v1832, 2790
      %vm1961 = vcmp.lt.s32.totalorder %v1833, 2790
      %v1962 = vsel %vm1834, 1, 0
      %v1963 = vsel %vm1835, 1, 0
      %v1964 = vsel %vm1836, 1, 0
      %v1965 = vsel %vm1837, 1, 0
      %v1966 = vsel %vm1838, 1, 0
      %v1967 = vsel %vm1839, 1, 0
      %v1968 = vsel %vm1840, 1, 0
      %v1969 = vsel %vm1841, 1, 0
      %v1970 = vsel %vm1842, 1, 0
      %v1971 = vsel %vm1843, 1, 0
      %v1972 = vsel %vm1844, 1, 0
      %v1973 = vsel %vm1845, 1, 0
      %v1974 = vsel %vm1846, 1, 0
      %v1975 = vsel %vm1847, 1, 0
      %v1976 = vsel %vm1848, 1, 0
      %v1977 = vsel %vm1849, 1, 0
      %v1978 = vsel %vm1850, 1, 0
      %v1979 = vsel %vm1851, 1, 0
      %v1980 = vsel %vm1852, 1, 0
      %v1981 = vsel %vm1853, 1, 0
      %v1982 = vsel %vm1854, 1, 0
      %v1983 = vsel %vm1855, 1, 0
      %v1984 = vsel %vm1856, 1, 0
      %v1985 = vsel %vm1857, 1, 0
      %v1986 = vsel %vm1858, 1, 0
      %v1987 = vsel %vm1859, 1, 0
      %v1988 = vsel %vm1860, 1, 0
      %v1989 = vsel %vm1861, 1, 0
      %v1990 = vsel %vm1862, 1, 0
      %v1991 = vsel %vm1863, 1, 0
      %v1992 = vsel %vm1864, 1, 0
      %v1993 = vsel %vm1865, 1, 0
      %v1994 = vsel %vm1866, 1, 0
      %v1995 = vsel %vm1867, 1, 0
      %v1996 = vsel %vm1868, 1, 0
      %v1997 = vsel %vm1869, 1, 0
      %v1998 = vsel %vm1870, 1, 0
      %v1999 = vsel %vm1871, 1, 0
      %v2000 = vsel %vm1872, 1, 0
      %v2001 = vsel %vm1873, 1, 0
      %v2002 = vsel %vm1874, 1, 0
      %v2003 = vsel %vm1875, 1, 0
      %v2004 = vsel %vm1876, 1, 0
      %v2005 = vsel %vm1877, 1, 0
      %v2006 = vsel %vm1878, 1, 0
      %v2007 = vsel %vm1879, 1, 0
      %v2008 = vsel %vm1880, 1, 0
      %v2009 = vsel %vm1881, 1, 0
      %v2010 = vsel %vm1882, 1, 0
      %v2011 = vsel %vm1883, 1, 0
      %v2012 = vsel %vm1884, 1, 0
      %v2013 = vsel %vm1885, 1, 0
      %v2014 = vsel %vm1886, 1, 0
      %v2015 = vsel %vm1887, 1, 0
      %v2016 = vsel %vm1888, 1, 0
      %v2017 = vsel %vm1889, 1, 0
      %v2018 = vsel %vm1890, 1, 0
      %v2019 = vsel %vm1891, 1, 0
      %v2020 = vsel %vm1892, 1, 0
      %v2021 = vsel %vm1893, 1, 0
      %v2022 = vsel %vm1894, 1, 0
      %v2023 = vsel %vm1895, 1, 0
      %v2024 = vsel %vm1896, 1, 0
      %v2025 = vsel %vm1897, 1, 0
      %v2026 = vsel %vm1898, 1, 0
      %v2027 = vsel %vm1899, 1, 0
      %v2028 = vsel %vm1900, 1, 0
      %v2029 = vsel %vm1901, 1, 0
      %v2030 = vsel %vm1902, 1, 0
      %v2031 = vsel %vm1903, 1, 0
      %v2032 = vsel %vm1904, 1, 0
      %v2033 = vsel %vm1905, 1, 0
      %v2034 = vsel %vm1906, 1, 0
      %v2035 = vsel %vm1907, 1, 0
      %v2036 = vsel %vm1908, 1, 0
      %v2037 = vsel %vm1909, 1, 0
      %v2038 = vsel %vm1910, 1, 0
      %v2039 = vsel %vm1911, 1, 0
      %v2040 = vsel %vm1912, 1, 0
      %v2041 = vsel %vm1913, 1, 0
      %v2042 = vsel %vm1914, 1, 0
      %v2043 = vsel %vm1915, 1, 0
      %v2044 = vsel %vm1916, 1, 0
      %v2045 = vsel %vm1917, 1, 0
      %v2046 = vsel %vm1918, 1, 0
      %v2047 = vsel %vm1919, 1, 0
      %v2048 = vsel %vm1920, 1, 0
      %v2049 = vsel %vm1921, 1, 0
      %v2050 = vsel %vm1922, 1, 0
      %v2051 = vsel %vm1923, 1, 0
      %v2052 = vsel %vm1924, 1, 0
      %v2053 = vsel %vm1925, 1, 0
      %v2054 = vsel %vm1926, 1, 0
      %v2055 = vsel %vm1927, 1, 0
      %v2056 = vsel %vm1928, 1, 0
      %v2057 = vsel %vm1929, 1, 0
      %v2058 = vsel %vm1930, 1, 0
      %v2059 = vsel %vm1931, 1, 0
      %v2060 = vsel %vm1932, 1, 0
      %v2061 = vsel %vm1933, 1, 0
      %v2062 = vsel %vm1934, 1, 0
      %v2063 = vsel %vm1935, 1, 0
      %v2064 = vsel %vm1936, 1, 0
      %v2065 = vsel %vm1937, 1, 0
      %v2066 = vsel %vm1938, 1, 0
      %v2067 = vsel %vm1939, 1, 0
      %v2068 = vsel %vm1940, 1, 0
      %v2069 = vsel %vm1941, 1, 0
      %v2070 = vsel %vm1942, 1, 0
      %v2071 = vsel %vm1943, 1, 0
      %v2072 = vsel %vm1944, 1, 0
      %v2073 = vsel %vm1945, 1, 0
      %v2074 = vsel %vm1946, 1, 0
      %v2075 = vsel %vm1947, 1, 0
      %v2076 = vsel %vm1948, 1, 0
      %v2077 = vsel %vm1949, 1, 0
      %v2078 = vsel %vm1950, 1, 0
      %v2079 = vsel %vm1951, 1, 0
      %v2080 = vsel %vm1952, 1, 0
      %v2081 = vsel %vm1953, 1, 0
      %v2082 = vsel %vm1954, 1, 0
      %v2083 = vsel %vm1955, 1, 0
      %v2084 = vsel %vm1956, 1, 0
      %v2085 = vsel %vm1957, 1, 0
      %v2086 = vsel %vm1958, 1, 0
      %v2087 = vsel %vm1959, 1, 0
      %v2088 = vsel %vm1960, 1, 0
      %v2089 = vsel %vm1961, 1, 0
      %vm2090 = vcmp.eq.s32.totalorder %v1962, 1
      %vm2091 = vcmp.eq.s32.totalorder %v1963, 1
      %vm2092 = vcmp.eq.s32.totalorder %v1964, 1
      %vm2093 = vcmp.eq.s32.totalorder %v1965, 1
      %vm2094 = vcmp.eq.s32.totalorder %v1966, 1
      %vm2095 = vcmp.eq.s32.totalorder %v1967, 1
      %vm2096 = vcmp.eq.s32.totalorder %v1968, 1
      %vm2097 = vcmp.eq.s32.totalorder %v1969, 1
      %vm2098 = vcmp.eq.s32.totalorder %v1970, 1
      %vm2099 = vcmp.eq.s32.totalorder %v1971, 1
      %vm2100 = vcmp.eq.s32.totalorder %v1972, 1
      %vm2101 = vcmp.eq.s32.totalorder %v1973, 1
      %vm2102 = vcmp.eq.s32.totalorder %v1974, 1
      %vm2103 = vcmp.eq.s32.totalorder %v1975, 1
      %vm2104 = vcmp.eq.s32.totalorder %v1976, 1
      %vm2105 = vcmp.eq.s32.totalorder %v1977, 1
      %vm2106 = vcmp.eq.s32.totalorder %v1978, 1
      %vm2107 = vcmp.eq.s32.totalorder %v1979, 1
      %vm2108 = vcmp.eq.s32.totalorder %v1980, 1
      %vm2109 = vcmp.eq.s32.totalorder %v1981, 1
      %vm2110 = vcmp.eq.s32.totalorder %v1982, 1
      %vm2111 = vcmp.eq.s32.totalorder %v1983, 1
      %vm2112 = vcmp.eq.s32.totalorder %v1984, 1
      %vm2113 = vcmp.eq.s32.totalorder %v1985, 1
      %vm2114 = vcmp.eq.s32.totalorder %v1986, 1
      %vm2115 = vcmp.eq.s32.totalorder %v1987, 1
      %vm2116 = vcmp.eq.s32.totalorder %v1988, 1
      %vm2117 = vcmp.eq.s32.totalorder %v1989, 1
      %vm2118 = vcmp.eq.s32.totalorder %v1990, 1
      %vm2119 = vcmp.eq.s32.totalorder %v1991, 1
      %vm2120 = vcmp.eq.s32.totalorder %v1992, 1
      %vm2121 = vcmp.eq.s32.totalorder %v1993, 1
      %vm2122 = vcmp.eq.s32.totalorder %v1994, 1
      %vm2123 = vcmp.eq.s32.totalorder %v1995, 1
      %vm2124 = vcmp.eq.s32.totalorder %v1996, 1
      %vm2125 = vcmp.eq.s32.totalorder %v1997, 1
      %vm2126 = vcmp.eq.s32.totalorder %v1998, 1
      %vm2127 = vcmp.eq.s32.totalorder %v1999, 1
      %vm2128 = vcmp.eq.s32.totalorder %v2000, 1
      %vm2129 = vcmp.eq.s32.totalorder %v2001, 1
      %vm2130 = vcmp.eq.s32.totalorder %v2002, 1
      %vm2131 = vcmp.eq.s32.totalorder %v2003, 1
      %vm2132 = vcmp.eq.s32.totalorder %v2004, 1
      %vm2133 = vcmp.eq.s32.totalorder %v2005, 1
      %vm2134 = vcmp.eq.s32.totalorder %v2006, 1
      %vm2135 = vcmp.eq.s32.totalorder %v2007, 1
      %vm2136 = vcmp.eq.s32.totalorder %v2008, 1
      %vm2137 = vcmp.eq.s32.totalorder %v2009, 1
      %vm2138 = vcmp.eq.s32.totalorder %v2010, 1
      %vm2139 = vcmp.eq.s32.totalorder %v2011, 1
      %vm2140 = vcmp.eq.s32.totalorder %v2012, 1
      %vm2141 = vcmp.eq.s32.totalorder %v2013, 1
      %vm2142 = vcmp.eq.s32.totalorder %v2014, 1
      %vm2143 = vcmp.eq.s32.totalorder %v2015, 1
      %vm2144 = vcmp.eq.s32.totalorder %v2016, 1
      %vm2145 = vcmp.eq.s32.totalorder %v2017, 1
      %vm2146 = vcmp.eq.s32.totalorder %v2018, 1
      %vm2147 = vcmp.eq.s32.totalorder %v2019, 1
      %vm2148 = vcmp.eq.s32.totalorder %v2020, 1
      %vm2149 = vcmp.eq.s32.totalorder %v2021, 1
      %vm2150 = vcmp.eq.s32.totalorder %v2022, 1
      %vm2151 = vcmp.eq.s32.totalorder %v2023, 1
      %vm2152 = vcmp.eq.s32.totalorder %v2024, 1
      %vm2153 = vcmp.eq.s32.totalorder %v2025, 1
      %vm2154 = vcmp.eq.s32.totalorder %v2026, 1
      %vm2155 = vcmp.eq.s32.totalorder %v2027, 1
      %vm2156 = vcmp.eq.s32.totalorder %v2028, 1
      %vm2157 = vcmp.eq.s32.totalorder %v2029, 1
      %vm2158 = vcmp.eq.s32.totalorder %v2030, 1
      %vm2159 = vcmp.eq.s32.totalorder %v2031, 1
      %vm2160 = vcmp.eq.s32.totalorder %v2032, 1
      %vm2161 = vcmp.eq.s32.totalorder %v2033, 1
      %vm2162 = vcmp.eq.s32.totalorder %v2034, 1
      %vm2163 = vcmp.eq.s32.totalorder %v2035, 1
      %vm2164 = vcmp.eq.s32.totalorder %v2036, 1
      %vm2165 = vcmp.eq.s32.totalorder %v2037, 1
      %vm2166 = vcmp.eq.s32.totalorder %v2038, 1
      %vm2167 = vcmp.eq.s32.totalorder %v2039, 1
      %vm2168 = vcmp.eq.s32.totalorder %v2040, 1
      %vm2169 = vcmp.eq.s32.totalorder %v2041, 1
      %vm2170 = vcmp.eq.s32.totalorder %v2042, 1
      %vm2171 = vcmp.eq.s32.totalorder %v2043, 1
      %vm2172 = vcmp.eq.s32.totalorder %v2044, 1
      %vm2173 = vcmp.eq.s32.totalorder %v2045, 1
      %vm2174 = vcmp.eq.s32.totalorder %v2046, 1
      %vm2175 = vcmp.eq.s32.totalorder %v2047, 1
      %vm2176 = vcmp.eq.s32.totalorder %v2048, 1
      %vm2177 = vcmp.eq.s32.totalorder %v2049, 1
      %vm2178 = vcmp.eq.s32.totalorder %v2050, 1
      %vm2179 = vcmp.eq.s32.totalorder %v2051, 1
      %vm2180 = vcmp.eq.s32.totalorder %v2052, 1
      %vm2181 = vcmp.eq.s32.totalorder %v2053, 1
      %vm2182 = vcmp.eq.s32.totalorder %v2054, 1
      %vm2183 = vcmp.eq.s32.totalorder %v2055, 1
      %vm2184 = vcmp.eq.s32.totalorder %v2056, 1
      %vm2185 = vcmp.eq.s32.totalorder %v2057, 1
      %vm2186 = vcmp.eq.s32.totalorder %v2058, 1
      %vm2187 = vcmp.eq.s32.totalorder %v2059, 1
      %vm2188 = vcmp.eq.s32.totalorder %v2060, 1
      %vm2189 = vcmp.eq.s32.totalorder %v2061, 1
      %vm2190 = vcmp.eq.s32.totalorder %v2062, 1
      %vm2191 = vcmp.eq.s32.totalorder %v2063, 1
      %vm2192 = vcmp.eq.s32.totalorder %v2064, 1
      %vm2193 = vcmp.eq.s32.totalorder %v2065, 1
      %vm2194 = vcmp.eq.s32.totalorder %v2066, 1
      %vm2195 = vcmp.eq.s32.totalorder %v2067, 1
      %vm2196 = vcmp.eq.s32.totalorder %v2068, 1
      %vm2197 = vcmp.eq.s32.totalorder %v2069, 1
      %vm2198 = vcmp.eq.s32.totalorder %v2070, 1
      %vm2199 = vcmp.eq.s32.totalorder %v2071, 1
      %vm2200 = vcmp.eq.s32.totalorder %v2072, 1
      %vm2201 = vcmp.eq.s32.totalorder %v2073, 1
      %vm2202 = vcmp.eq.s32.totalorder %v2074, 1
      %vm2203 = vcmp.eq.s32.totalorder %v2075, 1
      %vm2204 = vcmp.eq.s32.totalorder %v2076, 1
      %vm2205 = vcmp.eq.s32.totalorder %v2077, 1
      %vm2206 = vcmp.eq.s32.totalorder %v2078, 1
      %vm2207 = vcmp.eq.s32.totalorder %v2079, 1
      %vm2208 = vcmp.eq.s32.totalorder %v2080, 1
      %vm2209 = vcmp.eq.s32.totalorder %v2081, 1
      %vm2210 = vcmp.eq.s32.totalorder %v2082, 1
      %vm2211 = vcmp.eq.s32.totalorder %v2083, 1
      %vm2212 = vcmp.eq.s32.totalorder %v2084, 1
      %vm2213 = vcmp.eq.s32.totalorder %v2085, 1
      %vm2214 = vcmp.eq.s32.totalorder %v2086, 1
      %vm2215 = vcmp.eq.s32.totalorder %v2087, 1
      %vm2216 = vcmp.eq.s32.totalorder %v2088, 1
      %vm2217 = vcmp.eq.s32.totalorder %v2089, 1
      %v2218 = vsel %vm2090, %v808, 0.0
      %v2219 = vsel %vm2091, %v813, 0.0
      %v2220 = vsel %vm2092, %v818, 0.0
      %v2221 = vsel %vm2093, %v823, 0.0
      %v2222 = vsel %vm2094, %v828, 0.0
      %v2223 = vsel %vm2095, %v833, 0.0
      %v2224 = vsel %vm2096, %v838, 0.0
      %v2225 = vsel %vm2097, %v843, 0.0
      %v2226 = vsel %vm2098, %v848, 0.0
      %v2227 = vsel %vm2099, %v853, 0.0
      %v2228 = vsel %vm2100, %v858, 0.0
      %v2229 = vsel %vm2101, %v863, 0.0
      %v2230 = vsel %vm2102, %v868, 0.0
      %v2231 = vsel %vm2103, %v873, 0.0
      %v2232 = vsel %vm2104, %v878, 0.0
      %v2233 = vsel %vm2105, %v883, 0.0
      %v2234 = vsel %vm2106, %v888, 0.0
      %v2235 = vsel %vm2107, %v893, 0.0
      %v2236 = vsel %vm2108, %v898, 0.0
      %v2237 = vsel %vm2109, %v903, 0.0
      %v2238 = vsel %vm2110, %v908, 0.0
      %v2239 = vsel %vm2111, %v913, 0.0
      %v2240 = vsel %vm2112, %v918, 0.0
      %v2241 = vsel %vm2113, %v923, 0.0
      %v2242 = vsel %vm2114, %v928, 0.0
      %v2243 = vsel %vm2115, %v933, 0.0
      %v2244 = vsel %vm2116, %v938, 0.0
      %v2245 = vsel %vm2117, %v943, 0.0
      %v2246 = vsel %vm2118, %v948, 0.0
      %v2247 = vsel %vm2119, %v953, 0.0
      %v2248 = vsel %vm2120, %v958, 0.0
      %v2249 = vsel %vm2121, %v963, 0.0
      %v2250 = vsel %vm2122, %v968, 0.0
      %v2251 = vsel %vm2123, %v973, 0.0
      %v2252 = vsel %vm2124, %v978, 0.0
      %v2253 = vsel %vm2125, %v983, 0.0
      %v2254 = vsel %vm2126, %v988, 0.0
      %v2255 = vsel %vm2127, %v993, 0.0
      %v2256 = vsel %vm2128, %v998, 0.0
      %v2257 = vsel %vm2129, %v1003, 0.0
      %v2258 = vsel %vm2130, %v1008, 0.0
      %v2259 = vsel %vm2131, %v1013, 0.0
      %v2260 = vsel %vm2132, %v1018, 0.0
      %v2261 = vsel %vm2133, %v1023, 0.0
      %v2262 = vsel %vm2134, %v1028, 0.0
      %v2263 = vsel %vm2135, %v1033, 0.0
      %v2264 = vsel %vm2136, %v1038, 0.0
      %v2265 = vsel %vm2137, %v1043, 0.0
      %v2266 = vsel %vm2138, %v1048, 0.0
      %v2267 = vsel %vm2139, %v1053, 0.0
      %v2268 = vsel %vm2140, %v1058, 0.0
      %v2269 = vsel %vm2141, %v1063, 0.0
      %v2270 = vsel %vm2142, %v1068, 0.0
      %v2271 = vsel %vm2143, %v1073, 0.0
      %v2272 = vsel %vm2144, %v1078, 0.0
      %v2273 = vsel %vm2145, %v1083, 0.0
      %v2274 = vsel %vm2146, %v1088, 0.0
      %v2275 = vsel %vm2147, %v1093, 0.0
      %v2276 = vsel %vm2148, %v1098, 0.0
      %v2277 = vsel %vm2149, %v1103, 0.0
      %v2278 = vsel %vm2150, %v1108, 0.0
      %v2279 = vsel %vm2151, %v1113, 0.0
      %v2280 = vsel %vm2152, %v1118, 0.0
      %v2281 = vsel %vm2153, %v1123, 0.0
      %v2282 = vsel %vm2154, %v1128, 0.0
      %v2283 = vsel %vm2155, %v1133, 0.0
      %v2284 = vsel %vm2156, %v1138, 0.0
      %v2285 = vsel %vm2157, %v1143, 0.0
      %v2286 = vsel %vm2158, %v1148, 0.0
      %v2287 = vsel %vm2159, %v1153, 0.0
      %v2288 = vsel %vm2160, %v1158, 0.0
      %v2289 = vsel %vm2161, %v1163, 0.0
      %v2290 = vsel %vm2162, %v1168, 0.0
      %v2291 = vsel %vm2163, %v1173, 0.0
      %v2292 = vsel %vm2164, %v1178, 0.0
      %v2293 = vsel %vm2165, %v1183, 0.0
      %v2294 = vsel %vm2166, %v1188, 0.0
      %v2295 = vsel %vm2167, %v1193, 0.0
      %v2296 = vsel %vm2168, %v1198, 0.0
      %v2297 = vsel %vm2169, %v1203, 0.0
      %v2298 = vsel %vm2170, %v1208, 0.0
      %v2299 = vsel %vm2171, %v1213, 0.0
      %v2300 = vsel %vm2172, %v1218, 0.0
      %v2301 = vsel %vm2173, %v1223, 0.0
      %v2302 = vsel %vm2174, %v1228, 0.0
      %v2303 = vsel %vm2175, %v1233, 0.0
      %v2304 = vsel %vm2176, %v1238, 0.0
      %v2305 = vsel %vm2177, %v1243, 0.0
      %v2306 = vsel %vm2178, %v1248, 0.0
      %v2307 = vsel %vm2179, %v1253, 0.0
      %v2308 = vsel %vm2180, %v1258, 0.0
      %v2309 = vsel %vm2181, %v1263, 0.0
      %v2310 = vsel %vm2182, %v1268, 0.0
      %v2311 = vsel %vm2183, %v1273, 0.0
      %v2312 = vsel %vm2184, %v1278, 0.0
      %v2313 = vsel %vm2185, %v1283, 0.0
      %v2314 = vsel %vm2186, %v1288, 0.0
      %v2315 = vsel %vm2187, %v1293, 0.0
      %v2316 = vsel %vm2188, %v1298, 0.0
      %v2317 = vsel %vm2189, %v1303, 0.0
      %v2318 = vsel %vm2190, %v1308, 0.0
      %v2319 = vsel %vm2191, %v1313, 0.0
      %v2320 = vsel %vm2192, %v1318, 0.0
      %v2321 = vsel %vm2193, %v1323, 0.0
      %v2322 = vsel %vm2194, %v1328, 0.0
      %v2323 = vsel %vm2195, %v1333, 0.0
      %v2324 = vsel %vm2196, %v1338, 0.0
      %v2325 = vsel %vm2197, %v1343, 0.0
      %v2326 = vsel %vm2198, %v1348, 0.0
      %v2327 = vsel %vm2199, %v1353, 0.0
      %v2328 = vsel %vm2200, %v1358, 0.0
      %v2329 = vsel %vm2201, %v1363, 0.0
      %v2330 = vsel %vm2202, %v1368, 0.0
      %v2331 = vsel %vm2203, %v1373, 0.0
      %v2332 = vsel %vm2204, %v1378, 0.0
      %v2333 = vsel %vm2205, %v1383, 0.0
      %v2334 = vsel %vm2206, %v1388, 0.0
      %v2335 = vsel %vm2207, %v1393, 0.0
      %v2336 = vsel %vm2208, %v1398, 0.0
      %v2337 = vsel %vm2209, %v1403, 0.0
      %v2338 = vsel %vm2210, %v1408, 0.0
      %v2339 = vsel %vm2211, %v1413, 0.0
      %v2340 = vsel %vm2212, %v1418, 0.0
      %v2341 = vsel %vm2213, %v1423, 0.0
      %v2342 = vsel %vm2214, %v1428, 0.0
      %v2343 = vsel %vm2215, %v1433, 0.0
      %v2344 = vsel %vm2216, %v1438, 0.0
      %v2345 = vsel %vm2217, %v1443, 0.0
      %v2346 = vsel %vm1446, %v2218, 0.0
      %v2347 = vsel %vm1446, %v2219, 0.0
      %v2348 = vadd.f32 %v2346, %v2347
      %v2349 = vsel %vm1446, %v2220, 0.0
      %v2350 = vadd.f32 %v2348, %v2349
      %v2351 = vsel %vm1446, %v2221, 0.0
      %v2352 = vadd.f32 %v2350, %v2351
      %v2353 = vsel %vm1446, %v2222, 0.0
      %v2354 = vadd.f32 %v2352, %v2353
      %v2355 = vsel %vm1446, %v2223, 0.0
      %v2356 = vadd.f32 %v2354, %v2355
      %v2357 = vsel %vm1446, %v2224, 0.0
      %v2358 = vadd.f32 %v2356, %v2357
      %v2359 = vsel %vm1446, %v2225, 0.0
      %v2360 = vadd.f32 %v2358, %v2359
      %v2361 = vsel %vm1446, %v2226, 0.0
      %v2362 = vadd.f32 %v2360, %v2361
      %v2363 = vsel %vm1446, %v2227, 0.0
      %v2364 = vadd.f32 %v2362, %v2363
      %v2365 = vsel %vm1446, %v2228, 0.0
      %v2366 = vadd.f32 %v2364, %v2365
      %v2367 = vsel %vm1446, %v2229, 0.0
      %v2368 = vadd.f32 %v2366, %v2367
      %v2369 = vsel %vm1446, %v2230, 0.0
      %v2370 = vadd.f32 %v2368, %v2369
      %v2371 = vsel %vm1446, %v2231, 0.0
      %v2372 = vadd.f32 %v2370, %v2371
      %v2373 = vsel %vm1446, %v2232, 0.0
      %v2374 = vadd.f32 %v2372, %v2373
      %v2375 = vsel %vm1446, %v2233, 0.0
      %v2376 = vadd.f32 %v2374, %v2375
      %v2377 = vsel %vm1446, %v2234, 0.0
      %v2378 = vadd.f32 %v2376, %v2377
      %v2379 = vsel %vm1446, %v2235, 0.0
      %v2380 = vadd.f32 %v2378, %v2379
      %v2381 = vsel %vm1446, %v2236, 0.0
      %v2382 = vadd.f32 %v2380, %v2381
      %v2383 = vsel %vm1446, %v2237, 0.0
      %v2384 = vadd.f32 %v2382, %v2383
      %v2385 = vsel %vm1446, %v2238, 0.0
      %v2386 = vadd.f32 %v2384, %v2385
      %v2387 = vsel %vm1446, %v2239, 0.0
      %v2388 = vadd.f32 %v2386, %v2387
      %v2389 = vsel %vm1446, %v2240, 0.0
      %v2390 = vadd.f32 %v2388, %v2389
      %v2391 = vsel %vm1446, %v2241, 0.0
      %v2392 = vadd.f32 %v2390, %v2391
      %v2393 = vsel %vm1446, %v2242, 0.0
      %v2394 = vadd.f32 %v2392, %v2393
      %v2395 = vsel %vm1446, %v2243, 0.0
      %v2396 = vadd.f32 %v2394, %v2395
      %v2397 = vsel %vm1446, %v2244, 0.0
      %v2398 = vadd.f32 %v2396, %v2397
      %v2399 = vsel %vm1446, %v2245, 0.0
      %v2400 = vadd.f32 %v2398, %v2399
      %v2401 = vsel %vm1446, %v2246, 0.0
      %v2402 = vadd.f32 %v2400, %v2401
      %v2403 = vsel %vm1446, %v2247, 0.0
      %v2404 = vadd.f32 %v2402, %v2403
      %v2405 = vsel %vm1446, %v2248, 0.0
      %v2406 = vadd.f32 %v2404, %v2405
      %v2407 = vsel %vm1446, %v2249, 0.0
      %v2408 = vadd.f32 %v2406, %v2407
      %v2409 = vsel %vm1446, %v2250, 0.0
      %v2410 = vadd.f32 %v2408, %v2409
      %v2411 = vsel %vm1446, %v2251, 0.0
      %v2412 = vadd.f32 %v2410, %v2411
      %v2413 = vsel %vm1446, %v2252, 0.0
      %v2414 = vadd.f32 %v2412, %v2413
      %v2415 = vsel %vm1446, %v2253, 0.0
      %v2416 = vadd.f32 %v2414, %v2415
      %v2417 = vsel %vm1446, %v2254, 0.0
      %v2418 = vadd.f32 %v2416, %v2417
      %v2419 = vsel %vm1446, %v2255, 0.0
      %v2420 = vadd.f32 %v2418, %v2419
      %v2421 = vsel %vm1446, %v2256, 0.0
      %v2422 = vadd.f32 %v2420, %v2421
      %v2423 = vsel %vm1446, %v2257, 0.0
      %v2424 = vadd.f32 %v2422, %v2423
      %v2425 = vsel %vm1446, %v2258, 0.0
      %v2426 = vadd.f32 %v2424, %v2425
      %v2427 = vsel %vm1446, %v2259, 0.0
      %v2428 = vadd.f32 %v2426, %v2427
      %v2429 = vsel %vm1446, %v2260, 0.0
      %v2430 = vadd.f32 %v2428, %v2429
      %v2431 = vsel %vm1446, %v2261, 0.0
      %v2432 = vadd.f32 %v2430, %v2431
      %v2433 = vsel %vm1446, %v2262, 0.0
      %v2434 = vadd.f32 %v2432, %v2433
      %v2435 = vsel %vm1446, %v2263, 0.0
      %v2436 = vadd.f32 %v2434, %v2435
      %v2437 = vsel %vm1446, %v2264, 0.0
      %v2438 = vadd.f32 %v2436, %v2437
      %v2439 = vsel %vm1446, %v2265, 0.0
      %v2440 = vadd.f32 %v2438, %v2439
      %v2441 = vsel %vm1446, %v2266, 0.0
      %v2442 = vadd.f32 %v2440, %v2441
      %v2443 = vsel %vm1446, %v2267, 0.0
      %v2444 = vadd.f32 %v2442, %v2443
      %v2445 = vsel %vm1446, %v2268, 0.0
      %v2446 = vadd.f32 %v2444, %v2445
      %v2447 = vsel %vm1446, %v2269, 0.0
      %v2448 = vadd.f32 %v2446, %v2447
      %v2449 = vsel %vm1446, %v2270, 0.0
      %v2450 = vadd.f32 %v2448, %v2449
      %v2451 = vsel %vm1446, %v2271, 0.0
      %v2452 = vadd.f32 %v2450, %v2451
      %v2453 = vsel %vm1446, %v2272, 0.0
      %v2454 = vadd.f32 %v2452, %v2453
      %v2455 = vsel %vm1446, %v2273, 0.0
      %v2456 = vadd.f32 %v2454, %v2455
      %v2457 = vsel %vm1446, %v2274, 0.0
      %v2458 = vadd.f32 %v2456, %v2457
      %v2459 = vsel %vm1446, %v2275, 0.0
      %v2460 = vadd.f32 %v2458, %v2459
      %v2461 = vsel %vm1446, %v2276, 0.0
      %v2462 = vadd.f32 %v2460, %v2461
      %v2463 = vsel %vm1446, %v2277, 0.0
      %v2464 = vadd.f32 %v2462, %v2463
      %v2465 = vsel %vm1446, %v2278, 0.0
      %v2466 = vadd.f32 %v2464, %v2465
      %v2467 = vsel %vm1446, %v2279, 0.0
      %v2468 = vadd.f32 %v2466, %v2467
      %v2469 = vsel %vm1446, %v2280, 0.0
      %v2470 = vadd.f32 %v2468, %v2469
      %v2471 = vsel %vm1446, %v2281, 0.0
      %v2472 = vadd.f32 %v2470, %v2471
      %v2473 = vsel %vm1446, %v2282, 0.0
      %v2474 = vadd.f32 %v2472, %v2473
      %v2475 = vsel %vm1446, %v2283, 0.0
      %v2476 = vadd.f32 %v2474, %v2475
      %v2477 = vsel %vm1446, %v2284, 0.0
      %v2478 = vadd.f32 %v2476, %v2477
      %v2479 = vsel %vm1446, %v2285, 0.0
      %v2480 = vadd.f32 %v2478, %v2479
      %v2481 = vsel %vm1446, %v2286, 0.0
      %v2482 = vadd.f32 %v2480, %v2481
      %v2483 = vsel %vm1446, %v2287, 0.0
      %v2484 = vadd.f32 %v2482, %v2483
      %v2485 = vsel %vm1446, %v2288, 0.0
      %v2486 = vadd.f32 %v2484, %v2485
      %v2487 = vsel %vm1446, %v2289, 0.0
      %v2488 = vadd.f32 %v2486, %v2487
      %v2489 = vsel %vm1446, %v2290, 0.0
      %v2490 = vadd.f32 %v2488, %v2489
      %v2491 = vsel %vm1446, %v2291, 0.0
      %v2492 = vadd.f32 %v2490, %v2491
      %v2493 = vsel %vm1446, %v2292, 0.0
      %v2494 = vadd.f32 %v2492, %v2493
      %v2495 = vsel %vm1446, %v2293, 0.0
      %v2496 = vadd.f32 %v2494, %v2495
      %v2497 = vsel %vm1446, %v2294, 0.0
      %v2498 = vadd.f32 %v2496, %v2497
      %v2499 = vsel %vm1446, %v2295, 0.0
      %v2500 = vadd.f32 %v2498, %v2499
      %v2501 = vsel %vm1446, %v2296, 0.0
      %v2502 = vadd.f32 %v2500, %v2501
      %v2503 = vsel %vm1446, %v2297, 0.0
      %v2504 = vadd.f32 %v2502, %v2503
      %v2505 = vsel %vm1446, %v2298, 0.0
      %v2506 = vadd.f32 %v2504, %v2505
      %v2507 = vsel %vm1446, %v2299, 0.0
      %v2508 = vadd.f32 %v2506, %v2507
      %v2509 = vsel %vm1446, %v2300, 0.0
      %v2510 = vadd.f32 %v2508, %v2509
      %v2511 = vsel %vm1446, %v2301, 0.0
      %v2512 = vadd.f32 %v2510, %v2511
      %v2513 = vsel %vm1446, %v2302, 0.0
      %v2514 = vadd.f32 %v2512, %v2513
      %v2515 = vsel %vm1446, %v2303, 0.0
      %v2516 = vadd.f32 %v2514, %v2515
      %v2517 = vsel %vm1446, %v2304, 0.0
      %v2518 = vadd.f32 %v2516, %v2517
      %v2519 = vsel %vm1446, %v2305, 0.0
      %v2520 = vadd.f32 %v2518, %v2519
      %v2521 = vsel %vm1446, %v2306, 0.0
      %v2522 = vadd.f32 %v2520, %v2521
      %v2523 = vsel %vm1446, %v2307, 0.0
      %v2524 = vadd.f32 %v2522, %v2523
      %v2525 = vsel %vm1446, %v2308, 0.0
      %v2526 = vadd.f32 %v2524, %v2525
      %v2527 = vsel %vm1446, %v2309, 0.0
      %v2528 = vadd.f32 %v2526, %v2527
      %v2529 = vsel %vm1446, %v2310, 0.0
      %v2530 = vadd.f32 %v2528, %v2529
      %v2531 = vsel %vm1446, %v2311, 0.0
      %v2532 = vadd.f32 %v2530, %v2531
      %v2533 = vsel %vm1446, %v2312, 0.0
      %v2534 = vadd.f32 %v2532, %v2533
      %v2535 = vsel %vm1446, %v2313, 0.0
      %v2536 = vadd.f32 %v2534, %v2535
      %v2537 = vsel %vm1446, %v2314, 0.0
      %v2538 = vadd.f32 %v2536, %v2537
      %v2539 = vsel %vm1446, %v2315, 0.0
      %v2540 = vadd.f32 %v2538, %v2539
      %v2541 = vsel %vm1446, %v2316, 0.0
      %v2542 = vadd.f32 %v2540, %v2541
      %v2543 = vsel %vm1446, %v2317, 0.0
      %v2544 = vadd.f32 %v2542, %v2543
      %v2545 = vsel %vm1446, %v2318, 0.0
      %v2546 = vadd.f32 %v2544, %v2545
      %v2547 = vsel %vm1446, %v2319, 0.0
      %v2548 = vadd.f32 %v2546, %v2547
      %v2549 = vsel %vm1446, %v2320, 0.0
      %v2550 = vadd.f32 %v2548, %v2549
      %v2551 = vsel %vm1446, %v2321, 0.0
      %v2552 = vadd.f32 %v2550, %v2551
      %v2553 = vsel %vm1446, %v2322, 0.0
      %v2554 = vadd.f32 %v2552, %v2553
      %v2555 = vsel %vm1446, %v2323, 0.0
      %v2556 = vadd.f32 %v2554, %v2555
      %v2557 = vsel %vm1446, %v2324, 0.0
      %v2558 = vadd.f32 %v2556, %v2557
      %v2559 = vsel %vm1446, %v2325, 0.0
      %v2560 = vadd.f32 %v2558, %v2559
      %v2561 = vsel %vm1446, %v2326, 0.0
      %v2562 = vadd.f32 %v2560, %v2561
      %v2563 = vsel %vm1446, %v2327, 0.0
      %v2564 = vadd.f32 %v2562, %v2563
      %v2565 = vsel %vm1446, %v2328, 0.0
      %v2566 = vadd.f32 %v2564, %v2565
      %v2567 = vsel %vm1446, %v2329, 0.0
      %v2568 = vadd.f32 %v2566, %v2567
      %v2569 = vsel %vm1446, %v2330, 0.0
      %v2570 = vadd.f32 %v2568, %v2569
      %v2571 = vsel %vm1446, %v2331, 0.0
      %v2572 = vadd.f32 %v2570, %v2571
      %v2573 = vsel %vm1446, %v2332, 0.0
      %v2574 = vadd.f32 %v2572, %v2573
      %v2575 = vsel %vm1446, %v2333, 0.0
      %v2576 = vadd.f32 %v2574, %v2575
      %v2577 = vsel %vm1446, %v2334, 0.0
      %v2578 = vadd.f32 %v2576, %v2577
      %v2579 = vsel %vm1446, %v2335, 0.0
      %v2580 = vadd.f32 %v2578, %v2579
      %v2581 = vsel %vm1446, %v2336, 0.0
      %v2582 = vadd.f32 %v2580, %v2581
      %v2583 = vsel %vm1446, %v2337, 0.0
      %v2584 = vadd.f32 %v2582, %v2583
      %v2585 = vsel %vm1446, %v2338, 0.0
      %v2586 = vadd.f32 %v2584, %v2585
      %v2587 = vsel %vm1446, %v2339, 0.0
      %v2588 = vadd.f32 %v2586, %v2587
      %v2589 = vsel %vm1446, %v2340, 0.0
      %v2590 = vadd.f32 %v2588, %v2589
      %v2591 = vsel %vm1446, %v2341, 0.0
      %v2592 = vadd.f32 %v2590, %v2591
      %v2593 = vsel %vm1446, %v2342, 0.0
      %v2594 = vadd.f32 %v2592, %v2593
      %v2595 = vsel %vm1446, %v2343, 0.0
      %v2596 = vadd.f32 %v2594, %v2595
      %v2597 = vsel %vm1446, %v2344, 0.0
      %v2598 = vadd.f32 %v2596, %v2597
      %v2599 = vsel %vm1446, %v2345, 0.0
      %v2600 = vadd.f32 %v2598, %v2599
      %v2601 = vrot.slane %v2600, 4
      %v2602 = vadd.f32 %v2600, %v2601
      %v2603 = vrot.slane %v2602, 2
      %v2604 = vadd.f32 %v2602, %v2603
      %v2605 = vrot.slane %v2604, 1
      %v2606 = vadd.f32 %v2604, %v2605
      %v2607 = vmul.f32 %v2218, %v2218
      %v2608 = vmul.f32 %v2219, %v2219
      %v2609 = vmul.f32 %v2220, %v2220
      %v2610 = vmul.f32 %v2221, %v2221
      %v2611 = vmul.f32 %v2222, %v2222
      %v2612 = vmul.f32 %v2223, %v2223
      %v2613 = vmul.f32 %v2224, %v2224
      %v2614 = vmul.f32 %v2225, %v2225
      %v2615 = vmul.f32 %v2226, %v2226
      %v2616 = vmul.f32 %v2227, %v2227
      %v2617 = vmul.f32 %v2228, %v2228
      %v2618 = vmul.f32 %v2229, %v2229
      %v2619 = vmul.f32 %v2230, %v2230
      %v2620 = vmul.f32 %v2231, %v2231
      %v2621 = vmul.f32 %v2232, %v2232
      %v2622 = vmul.f32 %v2233, %v2233
      %v2623 = vmul.f32 %v2234, %v2234
      %v2624 = vmul.f32 %v2235, %v2235
      %v2625 = vmul.f32 %v2236, %v2236
      %v2626 = vmul.f32 %v2237, %v2237
      %v2627 = vmul.f32 %v2238, %v2238
      %v2628 = vmul.f32 %v2239, %v2239
      %v2629 = vmul.f32 %v2240, %v2240
      %v2630 = vmul.f32 %v2241, %v2241
      %v2631 = vmul.f32 %v2242, %v2242
      %v2632 = vmul.f32 %v2243, %v2243
      %v2633 = vmul.f32 %v2244, %v2244
      %v2634 = vmul.f32 %v2245, %v2245
      %v2635 = vmul.f32 %v2246, %v2246
      %v2636 = vmul.f32 %v2247, %v2247
      %v2637 = vmul.f32 %v2248, %v2248
      %v2638 = vmul.f32 %v2249, %v2249
      %v2639 = vmul.f32 %v2250, %v2250
      %v2640 = vmul.f32 %v2251, %v2251
      %v2641 = vmul.f32 %v2252, %v2252
      %v2642 = vmul.f32 %v2253, %v2253
      %v2643 = vmul.f32 %v2254, %v2254
      %v2644 = vmul.f32 %v2255, %v2255
      %v2645 = vmul.f32 %v2256, %v2256
      %v2646 = vmul.f32 %v2257, %v2257
      %v2647 = vmul.f32 %v2258, %v2258
      %v2648 = vmul.f32 %v2259, %v2259
      %v2649 = vmul.f32 %v2260, %v2260
      %v2650 = vmul.f32 %v2261, %v2261
      %v2651 = vmul.f32 %v2262, %v2262
      %v2652 = vmul.f32 %v2263, %v2263
      %v2653 = vmul.f32 %v2264, %v2264
      %v2654 = vmul.f32 %v2265, %v2265
      %v2655 = vmul.f32 %v2266, %v2266
      %v2656 = vmul.f32 %v2267, %v2267
      %v2657 = vmul.f32 %v2268, %v2268
      %v2658 = vmul.f32 %v2269, %v2269
      %v2659 = vmul.f32 %v2270, %v2270
      %v2660 = vmul.f32 %v2271, %v2271
      %v2661 = vmul.f32 %v2272, %v2272
      %v2662 = vmul.f32 %v2273, %v2273
      %v2663 = vmul.f32 %v2274, %v2274
      %v2664 = vmul.f32 %v2275, %v2275
      %v2665 = vmul.f32 %v2276, %v2276
      %v2666 = vmul.f32 %v2277, %v2277
      %v2667 = vmul.f32 %v2278, %v2278
      %v2668 = vmul.f32 %v2279, %v2279
      %v2669 = vmul.f32 %v2280, %v2280
      %v2670 = vmul.f32 %v2281, %v2281
      %v2671 = vmul.f32 %v2282, %v2282
      %v2672 = vmul.f32 %v2283, %v2283
      %v2673 = vmul.f32 %v2284, %v2284
      %v2674 = vmul.f32 %v2285, %v2285
      %v2675 = vmul.f32 %v2286, %v2286
      %v2676 = vmul.f32 %v2287, %v2287
      %v2677 = vmul.f32 %v2288, %v2288
      %v2678 = vmul.f32 %v2289, %v2289
      %v2679 = vmul.f32 %v2290, %v2290
      %v2680 = vmul.f32 %v2291, %v2291
      %v2681 = vmul.f32 %v2292, %v2292
      %v2682 = vmul.f32 %v2293, %v2293
      %v2683 = vmul.f32 %v2294, %v2294
      %v2684 = vmul.f32 %v2295, %v2295
      %v2685 = vmul.f32 %v2296, %v2296
      %v2686 = vmul.f32 %v2297, %v2297
      %v2687 = vmul.f32 %v2298, %v2298
      %v2688 = vmul.f32 %v2299, %v2299
      %v2689 = vmul.f32 %v2300, %v2300
      %v2690 = vmul.f32 %v2301, %v2301
      %v2691 = vmul.f32 %v2302, %v2302
      %v2692 = vmul.f32 %v2303, %v2303
      %v2693 = vmul.f32 %v2304, %v2304
      %v2694 = vmul.f32 %v2305, %v2305
      %v2695 = vmul.f32 %v2306, %v2306
      %v2696 = vmul.f32 %v2307, %v2307
      %v2697 = vmul.f32 %v2308, %v2308
      %v2698 = vmul.f32 %v2309, %v2309
      %v2699 = vmul.f32 %v2310, %v2310
      %v2700 = vmul.f32 %v2311, %v2311
      %v2701 = vmul.f32 %v2312, %v2312
      %v2702 = vmul.f32 %v2313, %v2313
      %v2703 = vmul.f32 %v2314, %v2314
      %v2704 = vmul.f32 %v2315, %v2315
      %v2705 = vmul.f32 %v2316, %v2316
      %v2706 = vmul.f32 %v2317, %v2317
      %v2707 = vmul.f32 %v2318, %v2318
      %v2708 = vmul.f32 %v2319, %v2319
      %v2709 = vmul.f32 %v2320, %v2320
      %v2710 = vmul.f32 %v2321, %v2321
      %v2711 = vmul.f32 %v2322, %v2322
      %v2712 = vmul.f32 %v2323, %v2323
      %v2713 = vmul.f32 %v2324, %v2324
      %v2714 = vmul.f32 %v2325, %v2325
      %v2715 = vmul.f32 %v2326, %v2326
      %v2716 = vmul.f32 %v2327, %v2327
      %v2717 = vmul.f32 %v2328, %v2328
      %v2718 = vmul.f32 %v2329, %v2329
      %v2719 = vmul.f32 %v2330, %v2330
      %v2720 = vmul.f32 %v2331, %v2331
      %v2721 = vmul.f32 %v2332, %v2332
      %v2722 = vmul.f32 %v2333, %v2333
      %v2723 = vmul.f32 %v2334, %v2334
      %v2724 = vmul.f32 %v2335, %v2335
      %v2725 = vmul.f32 %v2336, %v2336
      %v2726 = vmul.f32 %v2337, %v2337
      %v2727 = vmul.f32 %v2338, %v2338
      %v2728 = vmul.f32 %v2339, %v2339
      %v2729 = vmul.f32 %v2340, %v2340
      %v2730 = vmul.f32 %v2341, %v2341
      %v2731 = vmul.f32 %v2342, %v2342
      %v2732 = vmul.f32 %v2343, %v2343
      %v2733 = vmul.f32 %v2344, %v2344
      %v2734 = vmul.f32 %v2345, %v2345
      %v2735 = vsel %vm1446, %v2607, 0.0
      %v2736 = vsel %vm1446, %v2608, 0.0
      %v2737 = vadd.f32 %v2735, %v2736
      %v2738 = vsel %vm1446, %v2609, 0.0
      %v2739 = vadd.f32 %v2737, %v2738
      %v2740 = vsel %vm1446, %v2610, 0.0
      %v2741 = vadd.f32 %v2739, %v2740
      %v2742 = vsel %vm1446, %v2611, 0.0
      %v2743 = vadd.f32 %v2741, %v2742
      %v2744 = vsel %vm1446, %v2612, 0.0
      %v2745 = vadd.f32 %v2743, %v2744
      %v2746 = vsel %vm1446, %v2613, 0.0
      %v2747 = vadd.f32 %v2745, %v2746
      %v2748 = vsel %vm1446, %v2614, 0.0
      %v2749 = vadd.f32 %v2747, %v2748
      %v2750 = vsel %vm1446, %v2615, 0.0
      %v2751 = vadd.f32 %v2749, %v2750
      %v2752 = vsel %vm1446, %v2616, 0.0
      %v2753 = vadd.f32 %v2751, %v2752
      %v2754 = vsel %vm1446, %v2617, 0.0
      %v2755 = vadd.f32 %v2753, %v2754
      %v2756 = vsel %vm1446, %v2618, 0.0
      %v2757 = vadd.f32 %v2755, %v2756
      %v2758 = vsel %vm1446, %v2619, 0.0
      %v2759 = vadd.f32 %v2757, %v2758
      %v2760 = vsel %vm1446, %v2620, 0.0
      %v2761 = vadd.f32 %v2759, %v2760
      %v2762 = vsel %vm1446, %v2621, 0.0
      %v2763 = vadd.f32 %v2761, %v2762
      %v2764 = vsel %vm1446, %v2622, 0.0
      %v2765 = vadd.f32 %v2763, %v2764
      %v2766 = vsel %vm1446, %v2623, 0.0
      %v2767 = vadd.f32 %v2765, %v2766
      %v2768 = vsel %vm1446, %v2624, 0.0
      %v2769 = vadd.f32 %v2767, %v2768
      %v2770 = vsel %vm1446, %v2625, 0.0
      %v2771 = vadd.f32 %v2769, %v2770
      %v2772 = vsel %vm1446, %v2626, 0.0
      %v2773 = vadd.f32 %v2771, %v2772
      %v2774 = vsel %vm1446, %v2627, 0.0
      %v2775 = vadd.f32 %v2773, %v2774
      %v2776 = vsel %vm1446, %v2628, 0.0
      %v2777 = vadd.f32 %v2775, %v2776
      %v2778 = vsel %vm1446, %v2629, 0.0
      %v2779 = vadd.f32 %v2777, %v2778
      %v2780 = vsel %vm1446, %v2630, 0.0
      %v2781 = vadd.f32 %v2779, %v2780
      %v2782 = vsel %vm1446, %v2631, 0.0
      %v2783 = vadd.f32 %v2781, %v2782
      %v2784 = vsel %vm1446, %v2632, 0.0
      %v2785 = vadd.f32 %v2783, %v2784
      %v2786 = vsel %vm1446, %v2633, 0.0
      %v2787 = vadd.f32 %v2785, %v2786
      %v2788 = vsel %vm1446, %v2634, 0.0
      %v2789 = vadd.f32 %v2787, %v2788
      %v2790 = vsel %vm1446, %v2635, 0.0
      %v2791 = vadd.f32 %v2789, %v2790
      %v2792 = vsel %vm1446, %v2636, 0.0
      %v2793 = vadd.f32 %v2791, %v2792
      %v2794 = vsel %vm1446, %v2637, 0.0
      %v2795 = vadd.f32 %v2793, %v2794
      %v2796 = vsel %vm1446, %v2638, 0.0
      %v2797 = vadd.f32 %v2795, %v2796
      %v2798 = vsel %vm1446, %v2639, 0.0
      %v2799 = vadd.f32 %v2797, %v2798
      %v2800 = vsel %vm1446, %v2640, 0.0
      %v2801 = vadd.f32 %v2799, %v2800
      %v2802 = vsel %vm1446, %v2641, 0.0
      %v2803 = vadd.f32 %v2801, %v2802
      %v2804 = vsel %vm1446, %v2642, 0.0
      %v2805 = vadd.f32 %v2803, %v2804
      %v2806 = vsel %vm1446, %v2643, 0.0
      %v2807 = vadd.f32 %v2805, %v2806
      %v2808 = vsel %vm1446, %v2644, 0.0
      %v2809 = vadd.f32 %v2807, %v2808
      %v2810 = vsel %vm1446, %v2645, 0.0
      %v2811 = vadd.f32 %v2809, %v2810
      %v2812 = vsel %vm1446, %v2646, 0.0
      %v2813 = vadd.f32 %v2811, %v2812
      %v2814 = vsel %vm1446, %v2647, 0.0
      %v2815 = vadd.f32 %v2813, %v2814
      %v2816 = vsel %vm1446, %v2648, 0.0
      %v2817 = vadd.f32 %v2815, %v2816
      %v2818 = vsel %vm1446, %v2649, 0.0
      %v2819 = vadd.f32 %v2817, %v2818
      %v2820 = vsel %vm1446, %v2650, 0.0
      %v2821 = vadd.f32 %v2819, %v2820
      %v2822 = vsel %vm1446, %v2651, 0.0
      %v2823 = vadd.f32 %v2821, %v2822
      %v2824 = vsel %vm1446, %v2652, 0.0
      %v2825 = vadd.f32 %v2823, %v2824
      %v2826 = vsel %vm1446, %v2653, 0.0
      %v2827 = vadd.f32 %v2825, %v2826
      %v2828 = vsel %vm1446, %v2654, 0.0
      %v2829 = vadd.f32 %v2827, %v2828
      %v2830 = vsel %vm1446, %v2655, 0.0
      %v2831 = vadd.f32 %v2829, %v2830
      %v2832 = vsel %vm1446, %v2656, 0.0
      %v2833 = vadd.f32 %v2831, %v2832
      %v2834 = vsel %vm1446, %v2657, 0.0
      %v2835 = vadd.f32 %v2833, %v2834
      %v2836 = vsel %vm1446, %v2658, 0.0
      %v2837 = vadd.f32 %v2835, %v2836
      %v2838 = vsel %vm1446, %v2659, 0.0
      %v2839 = vadd.f32 %v2837, %v2838
      %v2840 = vsel %vm1446, %v2660, 0.0
      %v2841 = vadd.f32 %v2839, %v2840
      %v2842 = vsel %vm1446, %v2661, 0.0
      %v2843 = vadd.f32 %v2841, %v2842
      %v2844 = vsel %vm1446, %v2662, 0.0
      %v2845 = vadd.f32 %v2843, %v2844
      %v2846 = vsel %vm1446, %v2663, 0.0
      %v2847 = vadd.f32 %v2845, %v2846
      %v2848 = vsel %vm1446, %v2664, 0.0
      %v2849 = vadd.f32 %v2847, %v2848
      %v2850 = vsel %vm1446, %v2665, 0.0
      %v2851 = vadd.f32 %v2849, %v2850
      %v2852 = vsel %vm1446, %v2666, 0.0
      %v2853 = vadd.f32 %v2851, %v2852
      %v2854 = vsel %vm1446, %v2667, 0.0
      %v2855 = vadd.f32 %v2853, %v2854
      %v2856 = vsel %vm1446, %v2668, 0.0
      %v2857 = vadd.f32 %v2855, %v2856
      %v2858 = vsel %vm1446, %v2669, 0.0
      %v2859 = vadd.f32 %v2857, %v2858
      %v2860 = vsel %vm1446, %v2670, 0.0
      %v2861 = vadd.f32 %v2859, %v2860
      %v2862 = vsel %vm1446, %v2671, 0.0
      %v2863 = vadd.f32 %v2861, %v2862
      %v2864 = vsel %vm1446, %v2672, 0.0
      %v2865 = vadd.f32 %v2863, %v2864
      %v2866 = vsel %vm1446, %v2673, 0.0
      %v2867 = vadd.f32 %v2865, %v2866
      %v2868 = vsel %vm1446, %v2674, 0.0
      %v2869 = vadd.f32 %v2867, %v2868
      %v2870 = vsel %vm1446, %v2675, 0.0
      %v2871 = vadd.f32 %v2869, %v2870
      %v2872 = vsel %vm1446, %v2676, 0.0
      %v2873 = vadd.f32 %v2871, %v2872
      %v2874 = vsel %vm1446, %v2677, 0.0
      %v2875 = vadd.f32 %v2873, %v2874
      %v2876 = vsel %vm1446, %v2678, 0.0
      %v2877 = vadd.f32 %v2875, %v2876
      %v2878 = vsel %vm1446, %v2679, 0.0
      %v2879 = vadd.f32 %v2877, %v2878
      %v2880 = vsel %vm1446, %v2680, 0.0
      %v2881 = vadd.f32 %v2879, %v2880
      %v2882 = vsel %vm1446, %v2681, 0.0
      %v2883 = vadd.f32 %v2881, %v2882
      %v2884 = vsel %vm1446, %v2682, 0.0
      %v2885 = vadd.f32 %v2883, %v2884
      %v2886 = vsel %vm1446, %v2683, 0.0
      %v2887 = vadd.f32 %v2885, %v2886
      %v2888 = vsel %vm1446, %v2684, 0.0
      %v2889 = vadd.f32 %v2887, %v2888
      %v2890 = vsel %vm1446, %v2685, 0.0
      %v2891 = vadd.f32 %v2889, %v2890
      %v2892 = vsel %vm1446, %v2686, 0.0
      %v2893 = vadd.f32 %v2891, %v2892
      %v2894 = vsel %vm1446, %v2687, 0.0
      %v2895 = vadd.f32 %v2893, %v2894
      %v2896 = vsel %vm1446, %v2688, 0.0
      %v2897 = vadd.f32 %v2895, %v2896
      %v2898 = vsel %vm1446, %v2689, 0.0
      %v2899 = vadd.f32 %v2897, %v2898
      %v2900 = vsel %vm1446, %v2690, 0.0
      %v2901 = vadd.f32 %v2899, %v2900
      %v2902 = vsel %vm1446, %v2691, 0.0
      %v2903 = vadd.f32 %v2901, %v2902
      %v2904 = vsel %vm1446, %v2692, 0.0
      %v2905 = vadd.f32 %v2903, %v2904
      %v2906 = vsel %vm1446, %v2693, 0.0
      %v2907 = vadd.f32 %v2905, %v2906
      %v2908 = vsel %vm1446, %v2694, 0.0
      %v2909 = vadd.f32 %v2907, %v2908
      %v2910 = vsel %vm1446, %v2695, 0.0
      %v2911 = vadd.f32 %v2909, %v2910
      %v2912 = vsel %vm1446, %v2696, 0.0
      %v2913 = vadd.f32 %v2911, %v2912
      %v2914 = vsel %vm1446, %v2697, 0.0
      %v2915 = vadd.f32 %v2913, %v2914
      %v2916 = vsel %vm1446, %v2698, 0.0
      %v2917 = vadd.f32 %v2915, %v2916
      %v2918 = vsel %vm1446, %v2699, 0.0
      %v2919 = vadd.f32 %v2917, %v2918
      %v2920 = vsel %vm1446, %v2700, 0.0
      %v2921 = vadd.f32 %v2919, %v2920
      %v2922 = vsel %vm1446, %v2701, 0.0
      %v2923 = vadd.f32 %v2921, %v2922
      %v2924 = vsel %vm1446, %v2702, 0.0
      %v2925 = vadd.f32 %v2923, %v2924
      %v2926 = vsel %vm1446, %v2703, 0.0
      %v2927 = vadd.f32 %v2925, %v2926
      %v2928 = vsel %vm1446, %v2704, 0.0
      %v2929 = vadd.f32 %v2927, %v2928
      %v2930 = vsel %vm1446, %v2705, 0.0
      %v2931 = vadd.f32 %v2929, %v2930
      %v2932 = vsel %vm1446, %v2706, 0.0
      %v2933 = vadd.f32 %v2931, %v2932
      %v2934 = vsel %vm1446, %v2707, 0.0
      %v2935 = vadd.f32 %v2933, %v2934
      %v2936 = vsel %vm1446, %v2708, 0.0
      %v2937 = vadd.f32 %v2935, %v2936
      %v2938 = vsel %vm1446, %v2709, 0.0
      %v2939 = vadd.f32 %v2937, %v2938
      %v2940 = vsel %vm1446, %v2710, 0.0
      %v2941 = vadd.f32 %v2939, %v2940
      %v2942 = vsel %vm1446, %v2711, 0.0
      %v2943 = vadd.f32 %v2941, %v2942
      %v2944 = vsel %vm1446, %v2712, 0.0
      %v2945 = vadd.f32 %v2943, %v2944
      %v2946 = vsel %vm1446, %v2713, 0.0
      %v2947 = vadd.f32 %v2945, %v2946
      %v2948 = vsel %vm1446, %v2714, 0.0
      %v2949 = vadd.f32 %v2947, %v2948
      %v2950 = vsel %vm1446, %v2715, 0.0
      %v2951 = vadd.f32 %v2949, %v2950
      %v2952 = vsel %vm1446, %v2716, 0.0
      %v2953 = vadd.f32 %v2951, %v2952
      %v2954 = vsel %vm1446, %v2717, 0.0
      %v2955 = vadd.f32 %v2953, %v2954
      %v2956 = vsel %vm1446, %v2718, 0.0
      %v2957 = vadd.f32 %v2955, %v2956
      %v2958 = vsel %vm1446, %v2719, 0.0
      %v2959 = vadd.f32 %v2957, %v2958
      %v2960 = vsel %vm1446, %v2720, 0.0
      %v2961 = vadd.f32 %v2959, %v2960
      %v2962 = vsel %vm1446, %v2721, 0.0
      %v2963 = vadd.f32 %v2961, %v2962
      %v2964 = vsel %vm1446, %v2722, 0.0
      %v2965 = vadd.f32 %v2963, %v2964
      %v2966 = vsel %vm1446, %v2723, 0.0
      %v2967 = vadd.f32 %v2965, %v2966
      %v2968 = vsel %vm1446, %v2724, 0.0
      %v2969 = vadd.f32 %v2967, %v2968
      %v2970 = vsel %vm1446, %v2725, 0.0
      %v2971 = vadd.f32 %v2969, %v2970
      %v2972 = vsel %vm1446, %v2726, 0.0
      %v2973 = vadd.f32 %v2971, %v2972
      %v2974 = vsel %vm1446, %v2727, 0.0
      %v2975 = vadd.f32 %v2973, %v2974
      %v2976 = vsel %vm1446, %v2728, 0.0
      %v2977 = vadd.f32 %v2975, %v2976
      %v2978 = vsel %vm1446, %v2729, 0.0
      %v2979 = vadd.f32 %v2977, %v2978
      %v2980 = vsel %vm1446, %v2730, 0.0
      %v2981 = vadd.f32 %v2979, %v2980
      %v2982 = vsel %vm1446, %v2731, 0.0
      %v2983 = vadd.f32 %v2981, %v2982
      %v2984 = vsel %vm1446, %v2732, 0.0
      %v2985 = vadd.f32 %v2983, %v2984
      %v2986 = vsel %vm1446, %v2733, 0.0
      %v2987 = vadd.f32 %v2985, %v2986
      %v2988 = vsel %vm1446, %v2734, 0.0
      %v2989 = vadd.f32 %v2987, %v2988
      %v2990 = vrot.slane %v2989, 4
      %v2991 = vadd.f32 %v2989, %v2990
      %v2992 = vrot.slane %v2991, 2
      %v2993 = vadd.f32 %v2991, %v2992
      %v2994 = vrot.slane %v2993, 1
      %v2995 = vadd.f32 %v2993, %v2994
      %vm2996 = vcmp.eq.s32.totalorder %v1576, 0
      %vm2997 = vcmp.eq.s32.totalorder %v1576, 1
      %v2998 = vsel %vm2997, %v2995, 0.0
      %v2999 = vsel %vm2996, %v2606, %v2998
      %3000 = vst.msk [vmem:[%s211] sm:$0xff] %vm1446, %v2999
      %s3001 = smul.u32 128, %s16
      %p3002 = scmp.lt.s32.totalorder %s3001, 383
      %s3003 = scalar_select %p3002, %s3001, 383
      %s3004 = smul.addr %s3003, 8
      %s3005 = scalar_lea.vmem %s3, %s3004
      %p3006 = scmp.lt.s32.totalorder %s16, 2
      %s3007 = scalar_select %p3006, %s16, 2
      %s3008 = smul.addr %s3007, 8
      %s3009 = scalar_lea.vmem %s4, %s3008
      // Predicated region
      $region33: #{encoder_forward.6} parent=31 // pred_check
        %p3010 = pneg %p102
      $region34: #{encoder_forward.6} parent=31 // pred_check_branch
        %3012 = sbr.rel (%p3010) target = $region36
      $region35: #{encoder_forward.6} parent=31 // pred_region
        %s3013 = smul.u32 128, %s16
      $region36: #{encoder_forward.6} parent=31 // pred_fallthru
        _
      // Predicated region
      $region37: #{encoder_forward.6} parent=31 // pred_check
        %p3014 = pneg %p128
      $region38: #{encoder_forward.6} parent=31 // pred_check_branch
        %3016 = sbr.rel (%p3014) target = $region40
      $region39: #{encoder_forward.6} parent=31 // pred_region
        _
      $region40: #{encoder_forward.6} parent=31 // pred_fallthru
        _
    $region32: #{encoder_forward.6} parent=5 // pred_fallthru
      _
    %p3017 = scmp.le.s32.totalorder 2, %s11
    // Predicated region
    $region41: #{encoder_forward.6} parent=5 // pred_check
      %p3018 = pneg %p3017
    $region42: #{encoder_forward.6} parent=5 // pred_check_branch
      %3020 = sbr.rel (%p3018) target = $region44
    $region43: #{encoder_forward.6} parent=5 // pred_region
      %s3021 = ssub.s32 %s11, 2
      // Predicated region
      $region45: #{encoder_forward.6} parent=43 // pred_check
        %p3022 = pneg %p108
      $region46: #{encoder_forward.6} parent=43 // pred_check_branch
        %3024 = sbr.rel (%p3022) target = $region48
      $region47: #{encoder_forward.6} parent=43 // pred_region
        %s3025 = smul.u32 128, %s17
        %p3026 = scmp.lt.s32.totalorder %s3025, 383
        %s3027 = scalar_select %p3026, %s3025, 383
        %s3028 = smul.addr %s3027, 8
        %s3029 = scalar_lea.vmem %s3, %s3028
      $region48: #{encoder_forward.6} parent=43 // pred_fallthru
        _
      // Predicated region
      $region49: #{encoder_forward.6} parent=43 // pred_check
        %p3030 = pneg %p134
      $region50: #{encoder_forward.6} parent=43 // pred_check_branch
        %3032 = sbr.rel (%p3030) target = $region52
      $region51: #{encoder_forward.6} parent=43 // pred_region
        %p3033 = scmp.lt.s32.totalorder %s17, 2
        %s3034 = scalar_select %p3033, %s17, 2
        %s3035 = smul.addr %s3034, 8
        %s3036 = scalar_lea.vmem %s4, %s3035
      $region52: #{encoder_forward.6} parent=43 // pred_fallthru
        _
    $region44: #{encoder_forward.6} parent=5 // pred_fallthru
      _
  $region6: #{encoder_forward.6} parent=0 // loop_footer
    %s15 = sadd.s32 1, %s11
  $region7: #{encoder_forward.6} parent=0 // loop_footer_branch
    %10 = sbr.rel target = $region3
  $region8: #{encoder_forward.6} parent=0 // loop_exit
    _

// kernel: encoder_forward.8
$region0: #{encoder_forward.8}
  #allocation0 [shape = 'u32[]', space=smem, size = 0x4, offset = 0x4, fixed_abs, tag = 'smem constant byte address 0x4 - core index']
  #allocation1 [shape = 'u32[144,128]{1,0:T(1,128)}', space=vmem, size = 0x12000, scoped, tag = 'internal scratch']
  %s0 = inlined_call_operand.vmem [shape: f32[656,144], index: 0, kind: input, shape index: {}]
  %s1 = inlined_call_operand.vmem [shape: f32[144,32], index: 1, kind: input, shape index: {}]
  %s2 = inlined_call_operand.vmem [shape: f32[1,32], index: 2, kind: input, shape index: {}]
  %s3 = inlined_call_operand.vmem [shape: f32[656,32], index: 3, kind: output, shape index: {}]
  %s4 = sld [smem:[#allocation0]]
  $region45: #{encoder_forward.8} parent=0
    _
  %s6 = ssub.s32 1, %s4
  %s7 = scalar_select 0, %s6, %s4
  loop: start=0, step=1, limit=4
  $region2: #{encoder_forward.8} parent=0 // loop_pre_header
    _
  $region3: #{encoder_forward.8} parent=0 // loop_header
    %s9 = sphi 0, %s13
    %p10 = scmp.ge.s32.totalorder %s9, 4
    %s19 = sphi 0, %s21
    %s22 = sphi 0, %s19
    %s23 = sphi 0, %s22
    %s39 = sphi 0, %s23
    %s43 = sphi 0, %s43
    %s45 = sphi 0, %s43
    %s46 = sphi 0, %s45
    %s60 = sphi 0, %s46
    %s64 = sphi 0, %s64
    %s66 = sphi 0, %s64
    %s67 = sphi 0, %s66
    %s81 = sphi 0, %s67
    %s87 = sphi 0, %s89
    %s90 = sphi 0, %s87
    %s91 = sphi 0, %s90
    %s107 = sphi 0, %s91
  $region4: #{encoder_forward.8} parent=0 // loop_header_branch
    %12 = sbr.rel (%p10) target = $region8
  $region5: #{encoder_forward.8} parent=0 // loop_body
    %s14 = ssub.s32 %s9, 1
    %s15 = ssub.s32 %s9, 2
    %s16 = sadd.s32 %s9, 1
    %s17 = ssub.s32 %s9, %s16
    %p18 = scmp.eq.s32.totalorder %s17, 0
    %s20 = sadd.s32 %s19, 1
    %s21 = scalar_select %p18, %s19, %s20
    %p24 = pneg %p18
    %p25 = scmp.eq.s32.totalorder %s9, 1
    %p26 = por %p24, %p25
    %p27 = scmp.ne.s32.totalorder %s19, %s22
    %p28 = scmp.eq.s32.totalorder %s9, 0
    %p29 = por %p27, %p28
    %p30 = scmp.ne.s32.totalorder %s19, %s22
    %p31 = scmp.eq.s32.totalorder %s14, 1
    %p32 = por %p30, %p31
    %p33 = scmp.ne.s32.totalorder %s22, %s23
    %p34 = scmp.eq.s32.totalorder %s14, 0
    %p35 = por %p33, %p34
    %p36 = scmp.ne.s32.totalorder %s22, %s23
    %p37 = scmp.eq.s32.totalorder %s15, 1
    %p38 = por %p36, %p37
    %p40 = scmp.ne.s32.totalorder %s23, %s39
    %p41 = scmp.eq.s32.totalorder %s15, 0
    %p42 = por %p40, %p41
    %s44 = sadd.s32 %s43, 1
    %p47 = scmp.eq.s32.totalorder %s9, 1
    %p48 = scmp.ne.s32.totalorder %s43, %s45
    %p49 = scmp.eq.s32.totalorder %s9, 0
    %p50 = por %p48, %p49
    %p51 = scmp.ne.s32.totalorder %s43, %s45
    %p52 = scmp.eq.s32.totalorder %s14, 1
    %p53 = por %p51, %p52
    %p54 = scmp.ne.s32.totalorder %s45, %s46
    %p55 = scmp.eq.s32.totalorder %s14, 0
    %p56 = por %p54, %p55
    %p57 = scmp.ne.s32.totalorder %s45, %s46
    %p58 = scmp.eq.s32.totalorder %s15, 1
    %p59 = por %p57, %p58
    %p61 = scmp.ne.s32.totalorder %s46, %s60
    %p62 = scmp.eq.s32.totalorder %s15, 0
    %p63 = por %p61, %p62
    %s65 = sadd.s32 %s64, 1
    %p68 = scmp.eq.s32.totalorder %s9, 1
    %p69 = scmp.ne.s32.totalorder %s64, %s66
    %p70 = scmp.eq.s32.totalorder %s9, 0
    %p71 = por %p69, %p70
    %p72 = scmp.ne.s32.totalorder %s64, %s66
    %p73 = scmp.eq.s32.totalorder %s14, 1
    %p74 = por %p72, %p73
    %p75 = scmp.ne.s32.totalorder %s66, %s67
    %p76 = scmp.eq.s32.totalorder %s14, 0
    %p77 = por %p75, %p76
    %p78 = scmp.ne.s32.totalorder %s66, %s67
    %p79 = scmp.eq.s32.totalorder %s15, 1
    %p80 = por %p78, %p79
    %p82 = scmp.ne.s32.totalorder %s67, %s81
    %p83 = scmp.eq.s32.totalorder %s15, 0
    %p84 = por %p82, %p83
    %s85 = ssub.s32 %s9, %s16
    %p86 = scmp.eq.s32.totalorder %s85, 0
    %s88 = sadd.s32 %s87, 1
    %s89 = scalar_select %p86, %s87, %s88
    %p92 = pneg %p86
    %p93 = scmp.eq.s32.totalorder %s9, 1
    %p94 = por %p92, %p93
    %p95 = scmp.ne.s32.totalorder %s87, %s90
    %p96 = scmp.eq.s32.totalorder %s9, 0
    %p97 = por %p95, %p96
    %p98 = scmp.ne.s32.totalorder %s87, %s90
    %p99 = scmp.eq.s32.totalorder %s14, 1
    %p100 = por %p98, %p99
    %p101 = scmp.ne.s32.totalorder %s90, %s91
    %p102 = scmp.eq.s32.totalorder %s14, 0
    %p103 = por %p101, %p102
    %p104 = scmp.ne.s32.totalorder %s90, %s91
    %p105 = scmp.eq.s32.totalorder %s15, 1
    %p106 = por %p104, %p105
    %p108 = scmp.ne.s32.totalorder %s91, %s107
    %p109 = scmp.eq.s32.totalorder %s15, 0
    %p110 = por %p108, %p109
    %p111 = scmp.le.s32.totalorder 1, %s9
    %p112 = scmp.lt.s32.totalorder %s9, 3
    %p113 = pnand %p111, %p112
    %p114 = pneg %p113
    // Predicated region
    $region9: #{encoder_forward.8} parent=5 // pred_check
      _
    $region10: #{encoder_forward.8} parent=5 // pred_check_branch
      %116 = sbr.rel (%p113) target = $region12
    $region11: #{encoder_forward.8} parent=5 // pred_region
      %s117 = ssub.s32 %s9, 1
      // Predicated region
      $region13: #{encoder_forward.8} parent=11 // pred_check
        %p118 = pneg %p56
      $region14: #{encoder_forward.8} parent=11 // pred_check_branch
        %120 = sbr.rel (%p118) target = $region16
      $region15: #{encoder_forward.8} parent=11 // pred_region
        _
      $region16: #{encoder_forward.8} parent=11 // pred_fallthru
        _
      // Predicated region
      $region17: #{encoder_forward.8} parent=11 // pred_check
        %p121 = pneg %p77
      $region18: #{encoder_forward.8} parent=11 // pred_check_branch
        %123 = sbr.rel (%p121) target = $region20
      $region19: #{encoder_forward.8} parent=11 // pred_region
        _
      $region20: #{encoder_forward.8} parent=11 // pred_fallthru
        _
    $region12: #{encoder_forward.8} parent=5 // pred_fallthru
      _
    %p124 = scmp.lt.s32.totalorder %s9, 2
    // Predicated region
    $region21: #{encoder_forward.8} parent=5 // pred_check
      %p125 = pneg %p124
    $region22: #{encoder_forward.8} parent=5 // pred_check_branch
      %127 = sbr.rel (%p125) target = $region24
    $region23: #{encoder_forward.8} parent=5 // pred_region
      // Predicated region
      $region25: #{encoder_forward.8} parent=23 // pred_check
        %p128 = pneg %p29
      $region26: #{encoder_forward.8} parent=23 // pred_check_branch
        %130 = sbr.rel (%p128) target = $region28
      $region27: #{encoder_forward.8} parent=23 // pred_region
        %s131 = smul.u32 41, %s9
        %p132 = scmp.lt.s32.totalorder %s131, 81
        %s133 = scalar_select %p132, %s131, 81
        %s134 = smul.addr %s133, 2
        %s135 = smul.addr %s134, 8
        %s136 = scalar_lea.vmem %s0, %s135
        %s137 = smul.u32 41, %s9
      $region28: #{encoder_forward.8} parent=23 // pred_fallthru
        _
    $region24: #{encoder_forward.8} parent=5 // pred_fallthru
      _
    %p138 = scmp.le.s32.totalorder 1, %s9
    %p139 = scmp.lt.s32.totalorder %s9, 3
    %p140 = pnand %p138, %p139
    %p141 = pneg %p140
    // Predicated region
    $region29: #{encoder_forward.8} parent=5 // pred_check
      _
    $region30: #{encoder_forward.8} parent=5 // pred_check_branch
      %143 = sbr.rel (%p140) target = $region32
    $region31: #{encoder_forward.8} parent=5 // pred_region
      %s144 = ssub.s32 %s9, 1
      %s145 = smul.u32 41, %s14
      %p146 = scmp.lt.s32.totalorder %s145, 81
      %s147 = scalar_select %p146, %s145, 81
      %s148 = smul.addr %s147, 2
      %s149 = smul.addr %s148, 8
      %s150 = scalar_lea.vmem %s0, %s149
      %p151 = pneg %p35
      %p152 = pneg %p32
      %p153 = pneg %p56
      %p154 = pneg %p53
      %p155 = pneg %p77
      %p156 = pneg %p74
      %p157 = pneg %p103
      %p158 = pneg %p100
      %s159 = smul.u32 41, %s14
      %p160 = scmp.lt.s32.totalorder %s159, 81
      %s161 = scalar_select %p160, %s159, 81
      %s162 = smul.addr %s161, 8
      %s163 = scalar_lea.vmem %s3, %s162
      %s164 = smul.u32 41, %s14
      %p165 = scmp.lt.s32.totalorder %s164, 81
      %s166 = scalar_select %p165, %s164, 81
      %s167 = smul.addr %s166, 2
      %s168 = smul.addr %s167, 8
      %s169 = scalar_lea.vmem %s0, %s168
      %s170 = smul.u32 41, %s14
      %s171 = smul.u32 41, %s14
      %p172 = scmp.lt.s32.totalorder %s171, 81
      %s173 = scalar_select %p172, %s171, 81
      %s174 = smul.addr %s173, 8
      %s175 = scalar_lea.vmem %s3, %s174
      %s176 = smul.u32 41, %s14
      %v177 = vld [vmem:[%s169] sm:$0xff]
      %v178 = vld [vmem:[%s169 + $0x8] sm:$0xff]
      %v179 = vld [vmem:[%s169 + $0x10] sm:$0xff]
      %v180 = vld [vmem:[%s169 + $0x18] sm:$0xff]
      %v181 = vld [vmem:[%s169 + $0x20] sm:$0xff]
      %v182 = vld [vmem:[%s169 + $0x28] sm:$0xff]
      %v183 = vld [vmem:[%s169 + $0x30] sm:$0xff]
      %v184 = vld [vmem:[%s169 + $0x38] sm:$0xff]
      %v185 = vld [vmem:[%s169 + $0x40] sm:$0xff]
      %v186 = vld [vmem:[%s169 + $0x48] sm:$0xff]
      %v187 = vld [vmem:[%s169 + $0x50] sm:$0xff]
      %v188 = vld [vmem:[%s169 + $0x58] sm:$0xff]
      %v189 = vld [vmem:[%s169 + $0x60] sm:$0xff]
      %v190 = vld [vmem:[%s169 + $0x68] sm:$0xff]
      %v191 = vld [vmem:[%s169 + $0x70] sm:$0xff]
      %v192 = vld [vmem:[%s169 + $0x78] sm:$0xff]
      %v193 = vld [vmem:[%s169 + $0x80] sm:$0xff]
      %v194 = vld [vmem:[%s169 + $0x88] sm:$0xff]
      %v195 = vld [vmem:[%s169 + $0x90] sm:$0xff]
      %v196 = vld [vmem:[%s169 + $0x98] sm:$0xff]
      %v197 = vld [vmem:[%s169 + $0xa0] sm:$0xff]
      %v198 = vld [vmem:[%s169 + $0xa8] sm:$0xff]
      %v199 = vld [vmem:[%s169 + $0xb0] sm:$0xff]
      %v200 = vld [vmem:[%s169 + $0xb8] sm:$0xff]
      %v201 = vld [vmem:[%s169 + $0xc0] sm:$0xff]
      %v202 = vld [vmem:[%s169 + $0xc8] sm:$0xff]
      %v203 = vld [vmem:[%s169 + $0xd0] sm:$0xff]
      %v204 = vld [vmem:[%s169 + $0xd8] sm:$0xff]
      %v205 = vld [vmem:[%s169 + $0xe0] sm:$0xff]
      %v206 = vld [vmem:[%s169 + $0xe8] sm:$0xff]
      %v207 = vld [vmem:[%s169 + $0xf0] sm:$0xff]
      %v208 = vld [vmem:[%s169 + $0xf8] sm:$0xff]
      %v209 = vld [vmem:[%s169 + $0x100] sm:$0xff]
      %v210 = vld [vmem:[%s169 + $0x108] sm:$0xff]
      %v211 = vld [vmem:[%s169 + $0x110] sm:$0xff]
      %v212 = vld [vmem:[%s169 + $0x118] sm:$0xff]
      %v213 = vld [vmem:[%s169 + $0x120] sm:$0xff]
      %v214 = vld [vmem:[%s169 + $0x128] sm:$0xff]
      %v215 = vld [vmem:[%s169 + $0x130] sm:$0xff]
      %v216 = vld [vmem:[%s169 + $0x138] sm:$0xff]
      %v217 = vld [vmem:[%s169 + $0x140] sm:$0xff]
      %v218 = vld [vmem:[%s169 + $0x148] sm:$0xff]
      %v219 = vld [vmem:[%s169 + $0x150] sm:$0xff]
      %v220 = vld [vmem:[%s169 + $0x158] sm:$0xff]
      %v221 = vld [vmem:[%s169 + $0x160] sm:$0xff]
      %v222 = vld [vmem:[%s169 + $0x168] sm:$0xff]
      %v223 = vld [vmem:[%s169 + $0x170] sm:$0xff]
      %v224 = vld [vmem:[%s169 + $0x178] sm:$0xff]
      %v225 = vld [vmem:[%s169 + $0x180] sm:$0xff]
      %v226 = vld [vmem:[%s169 + $0x188] sm:$0xff]
      %v227 = vld [vmem:[%s169 + $0x190] sm:$0xff]
      %v228 = vld [vmem:[%s169 + $0x198] sm:$0xff]
      %v229 = vld [vmem:[%s169 + $0x1a0] sm:$0xff]
      %v230 = vld [vmem:[%s169 + $0x1a8] sm:$0xff]
      %v231 = vld [vmem:[%s169 + $0x1b0] sm:$0xff]
      %v232 = vld [vmem:[%s169 + $0x1b8] sm:$0xff]
      %v233 = vld [vmem:[%s169 + $0x1c0] sm:$0xff]
      %v234 = vld [vmem:[%s169 + $0x1c8] sm:$0xff]
      %v235 = vld [vmem:[%s169 + $0x1d0] sm:$0xff]
      %v236 = vld [vmem:[%s169 + $0x1d8] sm:$0xff]
      %v237 = vld [vmem:[%s169 + $0x1e0] sm:$0xff]
      %v238 = vld [vmem:[%s169 + $0x1e8] sm:$0xff]
      %v239 = vld [vmem:[%s169 + $0x1f0] sm:$0xff]
      %v240 = vld [vmem:[%s169 + $0x1f8] sm:$0xff]
      %v241 = vld [vmem:[%s169 + $0x200] sm:$0xff]
      %v242 = vld [vmem:[%s169 + $0x208] sm:$0xff]
      %v243 = vld [vmem:[%s169 + $0x210] sm:$0xff]
      %v244 = vld [vmem:[%s169 + $0x218] sm:$0xff]
      %v245 = vld [vmem:[%s169 + $0x220] sm:$0xff]
      %v246 = vld [vmem:[%s169 + $0x228] sm:$0xff]
      %v247 = vld [vmem:[%s169 + $0x230] sm:$0xff]
      %v248 = vld [vmem:[%s169 + $0x238] sm:$0xff]
      %v249 = vld [vmem:[%s169 + $0x240] sm:$0xff]
      %v250 = vld [vmem:[%s169 + $0x248] sm:$0xff]
      %v251 = vld [vmem:[%s169 + $0x250] sm:$0xff]
      %v252 = vld [vmem:[%s169 + $0x258] sm:$0xff]
      %v253 = vld [vmem:[%s169 + $0x260] sm:$0xff]
      %v254 = vld [vmem:[%s169 + $0x268] sm:$0xff]
      %v255 = vld [vmem:[%s169 + $0x270] sm:$0xff]
      %v256 = vld [vmem:[%s169 + $0x278] sm:$0xff]
      %v257 = vld [vmem:[%s169 + $0x280] sm:$0xff]
      %v258 = vld [vmem:[%s169 + $0x288] sm:$0xff]
      %v259 = vld [vmem:[%s1] sm:$0xff]
      %v260 = vld [vmem:[%s1 + $0x8] sm:$0xff]
      %v261 = vld [vmem:[%s1 + $0x10] sm:$0xff]
      %v262 = vld [vmem:[%s1 + $0x18] sm:$0xff]
      %v263 = vld [vmem:[%s1 + $0x20] sm:$0xff]
      %v264 = vld [vmem:[%s1 + $0x28] sm:$0xff]
      %v265 = vld [vmem:[%s1 + $0x30] sm:$0xff]
      %v266 = vld [vmem:[%s1 + $0x38] sm:$0xff]
      %v267 = vld [vmem:[%s1 + $0x40] sm:$0xff]
      %v268 = vld [vmem:[%s1 + $0x48] sm:$0xff]
      %v269 = vld [vmem:[%s1 + $0x50] sm:$0xff]
      %v270 = vld [vmem:[%s1 + $0x58] sm:$0xff]
      %v271 = vld [vmem:[%s1 + $0x60] sm:$0xff]
      %v272 = vld [vmem:[%s1 + $0x68] sm:$0xff]
      %v273 = vld [vmem:[%s1 + $0x70] sm:$0xff]
      %v274 = vld [vmem:[%s1 + $0x78] sm:$0xff]
      %v275 = vld [vmem:[%s1 + $0x80] sm:$0xff]
      %v276 = vld [vmem:[%s1 + $0x88] sm:$0xff]
      %v277 = vld [vmem:[%s2] sm:$0x1]
      %v279 = vlaneseq
      %v280 = vshrl.u32 %v279, 7
      %v281 = vsub.s32 0, %v280
      %v282 = vrot.slane %v277, %v281
      %vm284 = vcmask 130048
      %v286 = vsel %vm284, %v178, 0
      %v289 = vsel %vm284, %v180, 0
      %v292 = vsel %vm284, %v182, 0
      %v295 = vsel %vm284, %v184, 0
      %v298 = vsel %vm284, %v186, 0
      %v301 = vsel %vm284, %v188, 0
      %v304 = vsel %vm284, %v190, 0
      %v307 = vsel %vm284, %v192, 0
      %v310 = vsel %vm284, %v194, 0
      %v313 = vsel %vm284, %v196, 0
      %v316 = vsel %vm284, %v198, 0
      %v319 = vsel %vm284, %v200, 0
      %v322 = vsel %vm284, %v202, 0
      %v325 = vsel %vm284, %v204, 0
      %v328 = vsel %vm284, %v206, 0
      %v331 = vsel %vm284, %v208, 0
      %v334 = vsel %vm284, %v210, 0
      %v337 = vsel %vm284, %v212, 0
      %v340 = vsel %vm284, %v214, 0
      %v343 = vsel %vm284, %v216, 0
      %v346 = vsel %vm284, %v218, 0
      %v349 = vsel %vm284, %v220, 0
      %v352 = vsel %vm284, %v222, 0
      %v355 = vsel %vm284, %v224, 0
      %v358 = vsel %vm284, %v226, 0
      %v361 = vsel %vm284, %v228, 0
      %v364 = vsel %vm284, %v230, 0
      %v367 = vsel %vm284, %v232, 0
      %v370 = vsel %vm284, %v234, 0
      %v373 = vsel %vm284, %v236, 0
      %v376 = vsel %vm284, %v238, 0
      %v379 = vsel %vm284, %v240, 0
      %v382 = vsel %vm284, %v242, 0
      %v385 = vsel %vm284, %v244, 0
      %v388 = vsel %vm284, %v246, 0
      %v391 = vsel %vm284, %v248, 0
      %v394 = vsel %vm284, %v250, 0
      %v397 = vsel %vm284, %v252, 0
      %v400 = vsel %vm284, %v254, 0
      %v403 = vsel %vm284, %v256, 0
      %v406 = vsel %vm284, %v258, 0
      %408 = vmatprep.subr.mxu0 0.0
      %409 = vmatpush1.msra.mxu0 %v274
      %410 = vmatprep.subr.mxu0 0.0
      %411 = vmatpush1.msra.mxu0 %v273
      %412 = vmatprep.subr.mxu0 0.0
      %413 = vmatpush1.msra.mxu0 %v272
      %414 = vmatprep.subr.mxu0 0.0
      %415 = vmatpush1.msra.mxu0 %v271
      %416 = vmatprep.subr.mxu0 0.0
      %417 = vmatpush1.msra.mxu0 %v270
      %418 = vmatprep.subr.mxu0 0.0
      %419 = vmatpush1.msra.mxu0 %v269
      %420 = vmatprep.subr.mxu0 0.0
      %421 = vmatpush1.msra.mxu0 %v268
      %422 = vmatprep.subr.mxu0 0.0
      %423 = vmatpush1.msra.mxu0 %v267
      %424 = vmatprep.subr.mxu0 0.0
      %425 = vmatpush1.msra.mxu0 %v266
      %426 = vmatprep.subr.mxu0 0.0
      %427 = vmatpush1.msra.mxu0 %v265
      %428 = vmatprep.subr.mxu0 0.0
      %429 = vmatpush1.msra.mxu0 %v264
      %430 = vmatprep.subr.mxu0 0.0
      %431 = vmatpush1.msra.mxu0 %v263
      %432 = vmatprep.subr.mxu0 0.0
      %433 = vmatpush1.msra.mxu0 %v262
      %434 = vmatprep.subr.mxu0 0.0
      %435 = vmatpush1.msra.mxu0 %v261
      %436 = vmatprep.subr.mxu0 0.0
      %437 = vmatpush1.msra.mxu0 %v260
      %438 = vmatprep.subr.mxu0 0.0
      %439 = vmatpush1.msra.mxu0 %v259
      %440 = vmatprep.subr.mxu0 0.0
      %441 = vmatpush2.msra.mxu0 0.0
      %442 = vmatprep.subr.mxu0 0.0
      %443 = vmatpush2.msra.mxu0 0.0
      %444 = vmatprep.subr.mxu0 0.0
      %445 = vmatpush2.msra.mxu0 0.0
      %446 = vmatprep.subr.mxu0 0.0
      %447 = vmatpush2.msra.mxu0 0.0
      %448 = vmatprep.subr.mxu0 0.0
      %449 = vmatpush2.msra.mxu0 0.0
      %450 = vmatprep.subr.mxu0 0.0
      %451 = vmatpush2.msra.mxu0 0.0
      %452 = vmatprep.subr.mxu0 0.0
      %453 = vmatpush2.msra.mxu0 0.0
      %454 = vmatprep.subr.mxu0 0.0
      %455 = vmatpush2.msra.mxu0 0.0
      %456 = vmatprep.subr.mxu0 0.0
      %457 = vmatpush2.msra.mxu0 0.0
      %458 = vmatprep.subr.mxu0 0.0
      %459 = vmatpush2.msra.mxu0 0.0
      %460 = vmatprep.subr.mxu0 0.0
      %461 = vmatpush2.msra.mxu0 0.0
      %462 = vmatprep.subr.mxu0 0.0
      %463 = vmatpush2.msra.mxu0 0.0
      %464 = vmatprep.subr.mxu0 0.0
      %465 = vmatpush2.msra.mxu0 0.0
      %466 = vmatprep.subr.mxu0 0.0
      %467 = vmatpush2.msra.mxu0 0.0
      %468 = vmatprep.subr.mxu0 0.0
      %469 = vmatpush2.msra.mxu0 %v276
      %470 = vmatprep.subr.mxu0 0.0
      %471 = vmatpush2.msra.mxu0 %v275
      %472 = vmatprep.mubr.f32.mxu0 %v286
      %473 = vmatmul.mubr.f32.gmra.mxu0 %v177
      %v474 = vpop.f32.mrf.mxu0
      %v475 = vadd.f32 %v282, %v474
      %v476 = vpop.f32.mrf.mxu0
      %477 = vmatprep.mubr.f32.mxu0 %v289
      %478 = vmatmul.mubr.f32.gmra.mxu0 %v179
      %v479 = vpop.f32.mrf.mxu0
      %v480 = vadd.f32 %v282, %v479
      %v481 = vpop.f32.mrf.mxu0
      %482 = vmatprep.mubr.f32.mxu0 %v292
      %483 = vmatmul.mubr.f32.gmra.mxu0 %v181
      %v484 = vpop.f32.mrf.mxu0
      %v485 = vadd.f32 %v282, %v484
      %v486 = vpop.f32.mrf.mxu0
      %487 = vmatprep.mubr.f32.mxu0 %v295
      %488 = vmatmul.mubr.f32.gmra.mxu0 %v183
      %v489 = vpop.f32.mrf.mxu0
      %v490 = vadd.f32 %v282, %v489
      %v491 = vpop.f32.mrf.mxu0
      %492 = vmatprep.mubr.f32.mxu0 %v298
      %493 = vmatmul.mubr.f32.gmra.mxu0 %v185
      %v494 = vpop.f32.mrf.mxu0
      %v495 = vadd.f32 %v282, %v494
      %v496 = vpop.f32.mrf.mxu0
      %497 = vmatprep.mubr.f32.mxu0 %v301
      %498 = vmatmul.mubr.f32.gmra.mxu0 %v187
      %v499 = vpop.f32.mrf.mxu0
      %v500 = vadd.f32 %v282, %v499
      %v501 = vpop.f32.mrf.mxu0
      %502 = vmatprep.mubr.f32.mxu0 %v304
      %503 = vmatmul.mubr.f32.gmra.mxu0 %v189
      %v504 = vpop.f32.mrf.mxu0
      %v505 = vadd.f32 %v282, %v504
      %v506 = vpop.f32.mrf.mxu0
      %507 = vmatprep.mubr.f32.mxu0 %v307
      %508 = vmatmul.mubr.f32.gmra.mxu0 %v191
      %v509 = vpop.f32.mrf.mxu0
      %v510 = vadd.f32 %v282, %v509
      %v511 = vpop.f32.mrf.mxu0
      %512 = vmatprep.mubr.f32.mxu0 %v310
      %513 = vmatmul.mubr.f32.gmra.mxu0 %v193
      %v514 = vpop.f32.mrf.mxu0
      %v515 = vadd.f32 %v282, %v514
      %v516 = vpop.f32.mrf.mxu0
      %517 = vmatprep.mubr.f32.mxu0 %v313
      %518 = vmatmul.mubr.f32.gmra.mxu0 %v195
      %v519 = vpop.f32.mrf.mxu0
      %v520 = vadd.f32 %v282, %v519
      %v521 = vpop.f32.mrf.mxu0
      %522 = vmatprep.mubr.f32.mxu0 %v316
      %523 = vmatmul.mubr.f32.gmra.mxu0 %v197
      %v524 = vpop.f32.mrf.mxu0
      %v525 = vadd.f32 %v282, %v524
      %v526 = vpop.f32.mrf.mxu0
      %527 = vmatprep.mubr.f32.mxu0 %v319
      %528 = vmatmul.mubr.f32.gmra.mxu0 %v199
      %v529 = vpop.f32.mrf.mxu0
      %v530 = vadd.f32 %v282, %v529
      %v531 = vpop.f32.mrf.mxu0
      %532 = vmatprep.mubr.f32.mxu0 %v322
      %533 = vmatmul.mubr.f32.gmra.mxu0 %v201
      %v534 = vpop.f32.mrf.mxu0
      %v535 = vadd.f32 %v282, %v534
      %v536 = vpop.f32.mrf.mxu0
      %537 = vmatprep.mubr.f32.mxu0 %v325
      %538 = vmatmul.mubr.f32.gmra.mxu0 %v203
      %v539 = vpop.f32.mrf.mxu0
      %v540 = vadd.f32 %v282, %v539
      %v541 = vpop.f32.mrf.mxu0
      %542 = vmatprep.mubr.f32.mxu0 %v328
      %543 = vmatmul.mubr.f32.gmra.mxu0 %v205
      %v544 = vpop.f32.mrf.mxu0
      %v545 = vadd.f32 %v282, %v544
      %v546 = vpop.f32.mrf.mxu0
      %547 = vmatprep.mubr.f32.mxu0 %v331
      %548 = vmatmul.mubr.f32.gmra.mxu0 %v207
      %v549 = vpop.f32.mrf.mxu0
      %v550 = vadd.f32 %v282, %v549
      %v551 = vpop.f32.mrf.mxu0
      %552 = vmatprep.mubr.f32.mxu0 %v334
      %553 = vmatmul.mubr.f32.gmra.mxu0 %v209
      %v554 = vpop.f32.mrf.mxu0
      %v555 = vadd.f32 %v282, %v554
      %v556 = vpop.f32.mrf.mxu0
      %557 = vmatprep.mubr.f32.mxu0 %v337
      %558 = vmatmul.mubr.f32.gmra.mxu0 %v211
      %v559 = vpop.f32.mrf.mxu0
      %v560 = vadd.f32 %v282, %v559
      %v561 = vpop.f32.mrf.mxu0
      %562 = vmatprep.mubr.f32.mxu0 %v340
      %563 = vmatmul.mubr.f32.gmra.mxu0 %v213
      %v564 = vpop.f32.mrf.mxu0
      %v565 = vadd.f32 %v282, %v564
      %v566 = vpop.f32.mrf.mxu0
      %567 = vmatprep.mubr.f32.mxu0 %v343
      %568 = vmatmul.mubr.f32.gmra.mxu0 %v215
      %v569 = vpop.f32.mrf.mxu0
      %v570 = vadd.f32 %v282, %v569
      %v571 = vpop.f32.mrf.mxu0
      %572 = vmatprep.mubr.f32.mxu0 %v346
      %573 = vmatmul.mubr.f32.gmra.mxu0 %v217
      %v574 = vpop.f32.mrf.mxu0
      %v575 = vadd.f32 %v282, %v574
      %v576 = vpop.f32.mrf.mxu0
      %577 = vmatprep.mubr.f32.mxu0 %v349
      %578 = vmatmul.mubr.f32.gmra.mxu0 %v219
      %v579 = vpop.f32.mrf.mxu0
      %v580 = vadd.f32 %v282, %v579
      %v581 = vpop.f32.mrf.mxu0
      %582 = vmatprep.mubr.f32.mxu0 %v352
      %583 = vmatmul.mubr.f32.gmra.mxu0 %v221
      %v584 = vpop.f32.mrf.mxu0
      %v585 = vadd.f32 %v282, %v584
      %v586 = vpop.f32.mrf.mxu0
      %587 = vmatprep.mubr.f32.mxu0 %v355
      %588 = vmatmul.mubr.f32.gmra.mxu0 %v223
      %v589 = vpop.f32.mrf.mxu0
      %v590 = vadd.f32 %v282, %v589
      %v591 = vpop.f32.mrf.mxu0
      %592 = vmatprep.mubr.f32.mxu0 %v358
      %593 = vmatmul.mubr.f32.gmra.mxu0 %v225
      %v594 = vpop.f32.mrf.mxu0
      %v595 = vadd.f32 %v282, %v594
      %v596 = vpop.f32.mrf.mxu0
      %597 = vmatprep.mubr.f32.mxu0 %v361
      %598 = vmatmul.mubr.f32.gmra.mxu0 %v227
      %v599 = vpop.f32.mrf.mxu0
      %v600 = vadd.f32 %v282, %v599
      %v601 = vpop.f32.mrf.mxu0
      %602 = vmatprep.mubr.f32.mxu0 %v364
      %603 = vmatmul.mubr.f32.gmra.mxu0 %v229
      %v604 = vpop.f32.mrf.mxu0
      %v605 = vadd.f32 %v282, %v604
      %v606 = vpop.f32.mrf.mxu0
      %607 = vmatprep.mubr.f32.mxu0 %v367
      %608 = vmatmul.mubr.f32.gmra.mxu0 %v231
      %v609 = vpop.f32.mrf.mxu0
      %v610 = vadd.f32 %v282, %v609
      %v611 = vpop.f32.mrf.mxu0
      %612 = vmatprep.mubr.f32.mxu0 %v370
      %613 = vmatmul.mubr.f32.gmra.mxu0 %v233
      %v614 = vpop.f32.mrf.mxu0
      %v615 = vadd.f32 %v282, %v614
      %v616 = vpop.f32.mrf.mxu0
      %617 = vmatprep.mubr.f32.mxu0 %v373
      %618 = vmatmul.mubr.f32.gmra.mxu0 %v235
      %v619 = vpop.f32.mrf.mxu0
      %v620 = vadd.f32 %v282, %v619
      %v621 = vpop.f32.mrf.mxu0
      %622 = vmatprep.mubr.f32.mxu0 %v376
      %623 = vmatmul.mubr.f32.gmra.mxu0 %v237
      %v624 = vpop.f32.mrf.mxu0
      %v625 = vadd.f32 %v282, %v624
      %v626 = vpop.f32.mrf.mxu0
      %627 = vmatprep.mubr.f32.mxu0 %v379
      %628 = vmatmul.mubr.f32.gmra.mxu0 %v239
      %v629 = vpop.f32.mrf.mxu0
      %v630 = vadd.f32 %v282, %v629
      %v631 = vpop.f32.mrf.mxu0
      %632 = vmatprep.mubr.f32.mxu0 %v382
      %633 = vmatmul.mubr.f32.gmra.mxu0 %v241
      %v634 = vpop.f32.mrf.mxu0
      %v635 = vadd.f32 %v282, %v634
      %v636 = vpop.f32.mrf.mxu0
      %637 = vmatprep.mubr.f32.mxu0 %v385
      %638 = vmatmul.mubr.f32.gmra.mxu0 %v243
      %v639 = vpop.f32.mrf.mxu0
      %v640 = vadd.f32 %v282, %v639
      %v641 = vpop.f32.mrf.mxu0
      %642 = vmatprep.mubr.f32.mxu0 %v388
      %643 = vmatmul.mubr.f32.gmra.mxu0 %v245
      %v644 = vpop.f32.mrf.mxu0
      %v645 = vadd.f32 %v282, %v644
      %v646 = vpop.f32.mrf.mxu0
      %647 = vmatprep.mubr.f32.mxu0 %v391
      %648 = vmatmul.mubr.f32.gmra.mxu0 %v247
      %v649 = vpop.f32.mrf.mxu0
      %v650 = vadd.f32 %v282, %v649
      %v651 = vpop.f32.mrf.mxu0
      %652 = vmatprep.mubr.f32.mxu0 %v394
      %653 = vmatmul.mubr.f32.gmra.mxu0 %v249
      %v654 = vpop.f32.mrf.mxu0
      %v655 = vadd.f32 %v282, %v654
      %v656 = vpop.f32.mrf.mxu0
      %657 = vmatprep.mubr.f32.mxu0 %v397
      %658 = vmatmul.mubr.f32.gmra.mxu0 %v251
      %v659 = vpop.f32.mrf.mxu0
      %v660 = vadd.f32 %v282, %v659
      %v661 = vpop.f32.mrf.mxu0
      %662 = vmatprep.mubr.f32.mxu0 %v400
      %663 = vmatmul.mubr.f32.gmra.mxu0 %v253
      %v664 = vpop.f32.mrf.mxu0
      %v665 = vadd.f32 %v282, %v664
      %v666 = vpop.f32.mrf.mxu0
      %667 = vmatprep.mubr.f32.mxu0 %v403
      %668 = vmatmul.mubr.f32.gmra.mxu0 %v255
      %v669 = vpop.f32.mrf.mxu0
      %v670 = vadd.f32 %v282, %v669
      %v671 = vpop.f32.mrf.mxu0
      %672 = vmatprep.mubr.f32.mxu0 %v406
      %673 = vmatmul.mubr.f32.gmra.mxu0 %v257
      %v674 = vpop.f32.mrf.mxu0
      %v675 = vadd.f32 %v282, %v674
      %v676 = vpop.f32.mrf.mxu0
      %677 = vdwg.mxu0
      %v678 = vmax.f32 %v475, 0.0
      %v679 = vmax.f32 %v480, 0.0
      %v680 = vmax.f32 %v485, 0.0
      %v681 = vmax.f32 %v490, 0.0
      %v682 = vmax.f32 %v495, 0.0
      %v683 = vmax.f32 %v500, 0.0
      %v684 = vmax.f32 %v505, 0.0
      %v685 = vmax.f32 %v510, 0.0
      %v686 = vmax.f32 %v515, 0.0
      %v687 = vmax.f32 %v520, 0.0
      %v688 = vmax.f32 %v525, 0.0
      %v689 = vmax.f32 %v530, 0.0
      %v690 = vmax.f32 %v535, 0.0
      %v691 = vmax.f32 %v540, 0.0
      %v692 = vmax.f32 %v545, 0.0
      %v693 = vmax.f32 %v550, 0.0
      %v694 = vmax.f32 %v555, 0.0
      %v695 = vmax.f32 %v560, 0.0
      %v696 = vmax.f32 %v565, 0.0
      %v697 = vmax.f32 %v570, 0.0
      %v698 = vmax.f32 %v575, 0.0
      %v699 = vmax.f32 %v580, 0.0
      %v700 = vmax.f32 %v585, 0.0
      %v701 = vmax.f32 %v590, 0.0
      %v702 = vmax.f32 %v595, 0.0
      %v703 = vmax.f32 %v600, 0.0
      %v704 = vmax.f32 %v605, 0.0
      %v705 = vmax.f32 %v610, 0.0
      %v706 = vmax.f32 %v615, 0.0
      %v707 = vmax.f32 %v620, 0.0
      %v708 = vmax.f32 %v625, 0.0
      %v709 = vmax.f32 %v630, 0.0
      %v710 = vmax.f32 %v635, 0.0
      %v711 = vmax.f32 %v640, 0.0
      %v712 = vmax.f32 %v645, 0.0
      %v713 = vmax.f32 %v650, 0.0
      %v714 = vmax.f32 %v655, 0.0
      %v715 = vmax.f32 %v660, 0.0
      %v716 = vmax.f32 %v665, 0.0
      %v717 = vmax.f32 %v670, 0.0
      %v718 = vmax.f32 %v675, 0.0
      %vm719 = vcmask 261120
      %720 = vst.msk [vmem:[%s175] sm:$0xff] %vm719, %v678
      %721 = vst.msk [vmem:[%s175 + $0x8] sm:$0xff] %vm719, %v679
      %722 = vst.msk [vmem:[%s175 + $0x10] sm:$0xff] %vm719, %v680
      %723 = vst.msk [vmem:[%s175 + $0x18] sm:$0xff] %vm719, %v681
      %724 = vst.msk [vmem:[%s175 + $0x20] sm:$0xff] %vm719, %v682
      %725 = vst.msk [vmem:[%s175 + $0x28] sm:$0xff] %vm719, %v683
      %726 = vst.msk [vmem:[%s175 + $0x30] sm:$0xff] %vm719, %v684
      %727 = vst.msk [vmem:[%s175 + $0x38] sm:$0xff] %vm719, %v685
      %728 = vst.msk [vmem:[%s175 + $0x40] sm:$0xff] %vm719, %v686
      %729 = vst.msk [vmem:[%s175 + $0x48] sm:$0xff] %vm719, %v687
      %730 = vst.msk [vmem:[%s175 + $0x50] sm:$0xff] %vm719, %v688
      %731 = vst.msk [vmem:[%s175 + $0x58] sm:$0xff] %vm719, %v689
      %732 = vst.msk [vmem:[%s175 + $0x60] sm:$0xff] %vm719, %v690
      %733 = vst.msk [vmem:[%s175 + $0x68] sm:$0xff] %vm719, %v691
      %734 = vst.msk [vmem:[%s175 + $0x70] sm:$0xff] %vm719, %v692
      %735 = vst.msk [vmem:[%s175 + $0x78] sm:$0xff] %vm719, %v693
      %736 = vst.msk [vmem:[%s175 + $0x80] sm:$0xff] %vm719, %v694
      %737 = vst.msk [vmem:[%s175 + $0x88] sm:$0xff] %vm719, %v695
      %738 = vst.msk [vmem:[%s175 + $0x90] sm:$0xff] %vm719, %v696
      %739 = vst.msk [vmem:[%s175 + $0x98] sm:$0xff] %vm719, %v697
      %740 = vst.msk [vmem:[%s175 + $0xa0] sm:$0xff] %vm719, %v698
      %741 = vst.msk [vmem:[%s175 + $0xa8] sm:$0xff] %vm719, %v699
      %742 = vst.msk [vmem:[%s175 + $0xb0] sm:$0xff] %vm719, %v700
      %743 = vst.msk [vmem:[%s175 + $0xb8] sm:$0xff] %vm719, %v701
      %744 = vst.msk [vmem:[%s175 + $0xc0] sm:$0xff] %vm719, %v702
      %745 = vst.msk [vmem:[%s175 + $0xc8] sm:$0xff] %vm719, %v703
      %746 = vst.msk [vmem:[%s175 + $0xd0] sm:$0xff] %vm719, %v704
      %747 = vst.msk [vmem:[%s175 + $0xd8] sm:$0xff] %vm719, %v705
      %748 = vst.msk [vmem:[%s175 + $0xe0] sm:$0xff] %vm719, %v706
      %749 = vst.msk [vmem:[%s175 + $0xe8] sm:$0xff] %vm719, %v707
      %750 = vst.msk [vmem:[%s175 + $0xf0] sm:$0xff] %vm719, %v708
      %751 = vst.msk [vmem:[%s175 + $0xf8] sm:$0xff] %vm719, %v709
      %752 = vst.msk [vmem:[%s175 + $0x100] sm:$0xff] %vm719, %v710
      %753 = vst.msk [vmem:[%s175 + $0x108] sm:$0xff] %vm719, %v711
      %754 = vst.msk [vmem:[%s175 + $0x110] sm:$0xff] %vm719, %v712
      %755 = vst.msk [vmem:[%s175 + $0x118] sm:$0xff] %vm719, %v713
      %756 = vst.msk [vmem:[%s175 + $0x120] sm:$0xff] %vm719, %v714
      %757 = vst.msk [vmem:[%s175 + $0x128] sm:$0xff] %vm719, %v715
      %758 = vst.msk [vmem:[%s175 + $0x130] sm:$0xff] %vm719, %v716
      %759 = vst.msk [vmem:[%s175 + $0x138] sm:$0xff] %vm719, %v717
      %760 = vst.msk [vmem:[%s175 + $0x140] sm:$0xff] %vm719, %v718
      %s761 = smul.u32 41, %s14
      %p762 = scmp.lt.s32.totalorder %s761, 81
      %s763 = scalar_select %p762, %s761, 81
      %s764 = smul.addr %s763, 8
      %s765 = scalar_lea.vmem %s3, %s764
      // Predicated region
      $region33: #{encoder_forward.8} parent=31 // pred_check
        %p766 = pneg %p100
      $region34: #{encoder_forward.8} parent=31 // pred_check_branch
        %768 = sbr.rel (%p766) target = $region36
      $region35: #{encoder_forward.8} parent=31 // pred_region
        %s769 = smul.u32 41, %s14
      $region36: #{encoder_forward.8} parent=31 // pred_fallthru
        _
    $region32: #{encoder_forward.8} parent=5 // pred_fallthru
      _
    %p770 = scmp.le.s32.totalorder 2, %s9
    // Predicated region
    $region37: #{encoder_forward.8} parent=5 // pred_check
      %p771 = pneg %p770
    $region38: #{encoder_forward.8} parent=5 // pred_check_branch
      %773 = sbr.rel (%p771) target = $region40
    $region39: #{encoder_forward.8} parent=5 // pred_region
      %s774 = ssub.s32 %s9, 2
      // Predicated region
      $region41: #{encoder_forward.8} parent=39 // pred_check
        %p775 = pneg %p106
      $region42: #{encoder_forward.8} parent=39 // pred_check_branch
        %777 = sbr.rel (%p775) target = $region44
      $region43: #{encoder_forward.8} parent=39 // pred_region
        %s778 = smul.u32 41, %s15
        %p779 = scmp.lt.s32.totalorder %s778, 81
        %s780 = scalar_select %p779, %s778, 81
        %s781 = smul.addr %s780, 8
        %s782 = scalar_lea.vmem %s3, %s781
      $region44: #{encoder_forward.8} parent=39 // pred_fallthru
        _
    $region40: #{encoder_forward.8} parent=5 // pred_fallthru
      _
  $region6: #{encoder_forward.8} parent=0 // loop_footer
    %s13 = sadd.s32 1, %s9
  $region7: #{encoder_forward.8} parent=0 // loop_footer_branch
    %8 = sbr.rel target = $region3
  $region8: #{encoder_forward.8} parent=0 // loop_exit
    _

// kernel: encoder_forward.9
$region0: #{encoder_forward.9}
  #allocation0 [shape = 'u32[]', space=smem, size = 0x4, offset = 0x4, fixed_abs, tag = 'smem constant byte address 0x4 - core index']
  #allocation1 [shape = 'u32[144,128]{1,0:T(1,128)}', space=vmem, size = 0x12000, scoped, tag = 'internal scratch']
  %s0 = inlined_call_operand.vmem [shape: f32[8,10304], index: 0, kind: input, shape index: {}]
  %s1 = inlined_call_operand.vmem [shape: f32[10304,32], index: 1, kind: input, shape index: {}]
  %s2 = inlined_call_operand.vmem [shape: f32[1,32], index: 2, kind: input, shape index: {}]
  %s3 = inlined_call_operand.vmem [shape: f32[32,128], index: 3, kind: input, shape index: {}]
  %s4 = inlined_call_operand.vmem [shape: f32[1,128], index: 4, kind: input, shape index: {}]
  %s5 = inlined_call_operand.vmem [shape: f32[8,128], index: 5, kind: output, shape index: {}]
  %s6 = sld [smem:[#allocation0]]
  $region30: #{encoder_forward.9} parent=0
    _
  %s8 = ssub.s32 1, %s6
  %s9 = scalar_select 0, %s8, %s6
  // Predicated region
  $region2: #{encoder_forward.9} parent=0 // pred_check
    _
  $region3: #{encoder_forward.9} parent=0 // pred_check_branch
    %11 = sbr.rel (0) target = $region5
  $region4: #{encoder_forward.9} parent=0 // pred_region
    _
  $region5: #{encoder_forward.9} parent=0 // pred_fallthru
    _
  // Predicated region
  $region6: #{encoder_forward.9} parent=0 // pred_check
    _
  $region7: #{encoder_forward.9} parent=0 // pred_check_branch
    %13 = sbr.rel (0) target = $region9
  $region8: #{encoder_forward.9} parent=0 // pred_region
    _
  $region9: #{encoder_forward.9} parent=0 // pred_fallthru
    _
  // Predicated region
  $region10: #{encoder_forward.9} parent=0 // pred_check
    _
  $region11: #{encoder_forward.9} parent=0 // pred_check_branch
    %15 = sbr.rel (0) target = $region13
  $region12: #{encoder_forward.9} parent=0 // pred_region
    _
  $region13: #{encoder_forward.9} parent=0 // pred_fallthru
    _
  // Predicated region
  $region14: #{encoder_forward.9} parent=0 // pred_check
    _
  $region15: #{encoder_forward.9} parent=0 // pred_check_branch
    %17 = sbr.rel (0) target = $region17
  $region16: #{encoder_forward.9} parent=0 // pred_region
    _
  $region17: #{encoder_forward.9} parent=0 // pred_fallthru
    _
  // Predicated region
  $region18: #{encoder_forward.9} parent=0 // pred_check
    _
  $region19: #{encoder_forward.9} parent=0 // pred_check_branch
    %19 = sbr.rel (0) target = $region21
  $region20: #{encoder_forward.9} parent=0 // pred_region
    _
  $region21: #{encoder_forward.9} parent=0 // pred_fallthru
    _
  %v20 = vld [vmem:[%s0] sm:$0xff]
  %v21 = vld [vmem:[%s0 + $0x8] sm:$0xff]
  %v22 = vld [vmem:[%s0 + $0x10] sm:$0xff]
  %v23 = vld [vmem:[%s0 + $0x18] sm:$0xff]
  %v24 = vld [vmem:[%s0 + $0x20] sm:$0xff]
  %v25 = vld [vmem:[%s0 + $0x28] sm:$0xff]
  %v26 = vld [vmem:[%s0 + $0x30] sm:$0xff]
  %v27 = vld [vmem:[%s0 + $0x38] sm:$0xff]
  %v28 = vld [vmem:[%s0 + $0x40] sm:$0xff]
  %v29 = vld [vmem:[%s0 + $0x48] sm:$0xff]
  %v30 = vld [vmem:[%s0 + $0x50] sm:$0xff]
  %v31 = vld [vmem:[%s0 + $0x58] sm:$0xff]
  %v32 = vld [vmem:[%s0 + $0x60] sm:$0xff]
  %v33 = vld [vmem:[%s0 + $0x68] sm:$0xff]
  %v34 = vld [vmem:[%s0 + $0x70] sm:$0xff]
  %v35 = vld [vmem:[%s0 + $0x78] sm:$0xff]
  %v36 = vld [vmem:[%s0 + $0x80] sm:$0xff]
  %v37 = vld [vmem:[%s0 + $0x88] sm:$0xff]
  %v38 = vld [vmem:[%s0 + $0x90] sm:$0xff]
  %v39 = vld [vmem:[%s0 + $0x98] sm:$0xff]
  %v40 = vld [vmem:[%s0 + $0xa0] sm:$0xff]
  %v41 = vld [vmem:[%s0 + $0xa8] sm:$0xff]
  %v42 = vld [vmem:[%s0 + $0xb0] sm:$0xff]
  %v43 = vld [vmem:[%s0 + $0xb8] sm:$0xff]
  %v44 = vld [vmem:[%s0 + $0xc0] sm:$0xff]
  %v45 = vld [vmem:[%s0 + $0xc8] sm:$0xff]
  %v46 = vld [vmem:[%s0 + $0xd0] sm:$0xff]
  %v47 = vld [vmem:[%s0 + $0xd8] sm:$0xff]
  %v48 = vld [vmem:[%s0 + $0xe0] sm:$0xff]
  %v49 = vld [vmem:[%s0 + $0xe8] sm:$0xff]
  %v50 = vld [vmem:[%s0 + $0xf0] sm:$0xff]
  %v51 = vld [vmem:[%s0 + $0xf8] sm:$0xff]
  %v52 = vld [vmem:[%s0 + $0x100] sm:$0xff]
  %v53 = vld [vmem:[%s0 + $0x108] sm:$0xff]
  %v54 = vld [vmem:[%s0 + $0x110] sm:$0xff]
  %v55 = vld [vmem:[%s0 + $0x118] sm:$0xff]
  %v56 = vld [vmem:[%s0 + $0x120] sm:$0xff]
  %v57 = vld [vmem:[%s0 + $0x128] sm:$0xff]
  %v58 = vld [vmem:[%s0 + $0x130] sm:$0xff]
  %v59 = vld [vmem:[%s0 + $0x138] sm:$0xff]
  %v60 = vld [vmem:[%s0 + $0x140] sm:$0xff]
  %v61 = vld [vmem:[%s0 + $0x148] sm:$0xff]
  %v62 = vld [vmem:[%s0 + $0x150] sm:$0xff]
  %v63 = vld [vmem:[%s0 + $0x158] sm:$0xff]
  %v64 = vld [vmem:[%s0 + $0x160] sm:$0xff]
  %v65 = vld [vmem:[%s0 + $0x168] sm:$0xff]
  %v66 = vld [vmem:[%s0 + $0x170] sm:$0xff]
  %v67 = vld [vmem:[%s0 + $0x178] sm:$0xff]
  %v68 = vld [vmem:[%s0 + $0x180] sm:$0xff]
  %v69 = vld [vmem:[%s0 + $0x188] sm:$0xff]
  %v70 = vld [vmem:[%s0 + $0x190] sm:$0xff]
  %v71 = vld [vmem:[%s0 + $0x198] sm:$0xff]
  %v72 = vld [vmem:[%s0 + $0x1a0] sm:$0xff]
  %v73 = vld [vmem:[%s0 + $0x1a8] sm:$0xff]
  %v74 = vld [vmem:[%s0 + $0x1b0] sm:$0xff]
  %v75 = vld [vmem:[%s0 + $0x1b8] sm:$0xff]
  %v76 = vld [vmem:[%s0 + $0x1c0] sm:$0xff]
  %v77 = vld [vmem:[%s0 + $0x1c8] sm:$0xff]
  %v78 = vld [vmem:[%s0 + $0x1d0] sm:$0xff]
  %v79 = vld [vmem:[%s0 + $0x1d8] sm:$0xff]
  %v80 = vld [vmem:[%s0 + $0x1e0] sm:$0xff]
  %v81 = vld [vmem:[%s0 + $0x1e8] sm:$0xff]
  %v82 = vld [vmem:[%s0 + $0x1f0] sm:$0xff]
  %v83 = vld [vmem:[%s0 + $0x1f8] sm:$0xff]
  %v84 = vld [vmem:[%s0 + $0x200] sm:$0xff]
  %v85 = vld [vmem:[%s0 + $0x208] sm:$0xff]
  %v86 = vld [vmem:[%s0 + $0x210] sm:$0xff]
  %v87 = vld [vmem:[%s0 + $0x218] sm:$0xff]
  %v88 = vld [vmem:[%s0 + $0x220] sm:$0xff]
  %v89 = vld [vmem:[%s0 + $0x228] sm:$0xff]
  %v90 = vld [vmem:[%s0 + $0x230] sm:$0xff]
  %v91 = vld [vmem:[%s0 + $0x238] sm:$0xff]
  %v92 = vld [vmem:[%s0 + $0x240] sm:$0xff]
  %v93 = vld [vmem:[%s0 + $0x248] sm:$0xff]
  %v94 = vld [vmem:[%s0 + $0x250] sm:$0xff]
  %v95 = vld [vmem:[%s0 + $0x258] sm:$0xff]
  %v96 = vld [vmem:[%s0 + $0x260] sm:$0xff]
  %v97 = vld [vmem:[%s0 + $0x268] sm:$0xff]
  %v98 = vld [vmem:[%s0 + $0x270] sm:$0xff]
  %v99 = vld [vmem:[%s0 + $0x278] sm:$0xff]
  %v100 = vld [vmem:[%s0 + $0x280] sm:$0xff]
  %v101 = vld [vmem:[%s1] sm:$0xff]
  %v102 = vld [vmem:[%s1 + $0x8] sm:$0xff]
  %v103 = vld [vmem:[%s1 + $0x10] sm:$0xff]
  %v104 = vld [vmem:[%s1 + $0x18] sm:$0xff]
  %v105 = vld [vmem:[%s1 + $0x20] sm:$0xff]
  %v106 = vld [vmem:[%s1 + $0x28] sm:$0xff]
  %v107 = vld [vmem:[%s1 + $0x30] sm:$0xff]
  %v108 = vld [vmem:[%s1 + $0x38] sm:$0xff]
  %v109 = vld [vmem:[%s1 + $0x40] sm:$0xff]
  %v110 = vld [vmem:[%s1 + $0x48] sm:$0xff]
  %v111 = vld [vmem:[%s1 + $0x50] sm:$0xff]
  %v112 = vld [vmem:[%s1 + $0x58] sm:$0xff]
  %v113 = vld [vmem:[%s1 + $0x60] sm:$0xff]
  %v114 = vld [vmem:[%s1 + $0x68] sm:$0xff]
  %v115 = vld [vmem:[%s1 + $0x70] sm:$0xff]
  %v116 = vld [vmem:[%s1 + $0x78] sm:$0xff]
  %v117 = vld [vmem:[%s1 + $0x80] sm:$0xff]
  %v118 = vld [vmem:[%s1 + $0x88] sm:$0xff]
  %v119 = vld [vmem:[%s1 + $0x90] sm:$0xff]
  %v120 = vld [vmem:[%s1 + $0x98] sm:$0xff]
  %v121 = vld [vmem:[%s1 + $0xa0] sm:$0xff]
  %v122 = vld [vmem:[%s1 + $0xa8] sm:$0xff]
  %v123 = vld [vmem:[%s1 + $0xb0] sm:$0xff]
  %v124 = vld [vmem:[%s1 + $0xb8] sm:$0xff]
  %v125 = vld [vmem:[%s1 + $0xc0] sm:$0xff]
  %v126 = vld [vmem:[%s1 + $0xc8] sm:$0xff]
  %v127 = vld [vmem:[%s1 + $0xd0] sm:$0xff]
  %v128 = vld [vmem:[%s1 + $0xd8] sm:$0xff]
  %v129 = vld [vmem:[%s1 + $0xe0] sm:$0xff]
  %v130 = vld [vmem:[%s1 + $0xe8] sm:$0xff]
  %v131 = vld [vmem:[%s1 + $0xf0] sm:$0xff]
  %v132 = vld [vmem:[%s1 + $0xf8] sm:$0xff]
  %v133 = vld [vmem:[%s1 + $0x100] sm:$0xff]
  %v134 = vld [vmem:[%s1 + $0x108] sm:$0xff]
  %v135 = vld [vmem:[%s1 + $0x110] sm:$0xff]
  %v136 = vld [vmem:[%s1 + $0x118] sm:$0xff]
  %v137 = vld [vmem:[%s1 + $0x120] sm:$0xff]
  %v138 = vld [vmem:[%s1 + $0x128] sm:$0xff]
  %v139 = vld [vmem:[%s1 + $0x130] sm:$0xff]
  %v140 = vld [vmem:[%s1 + $0x138] sm:$0xff]
  %v141 = vld [vmem:[%s1 + $0x140] sm:$0xff]
  %v142 = vld [vmem:[%s1 + $0x148] sm:$0xff]
  %v143 = vld [vmem:[%s1 + $0x150] sm:$0xff]
  %v144 = vld [vmem:[%s1 + $0x158] sm:$0xff]
  %v145 = vld [vmem:[%s1 + $0x160] sm:$0xff]
  %v146 = vld [vmem:[%s1 + $0x168] sm:$0xff]
  %v147 = vld [vmem:[%s1 + $0x170] sm:$0xff]
  %v148 = vld [vmem:[%s1 + $0x178] sm:$0xff]
  %v149 = vld [vmem:[%s1 + $0x180] sm:$0xff]
  %v150 = vld [vmem:[%s1 + $0x188] sm:$0xff]
  %v151 = vld [vmem:[%s1 + $0x190] sm:$0xff]
  %v152 = vld [vmem:[%s1 + $0x198] sm:$0xff]
  %v153 = vld [vmem:[%s1 + $0x1a0] sm:$0xff]
  %v154 = vld [vmem:[%s1 + $0x1a8] sm:$0xff]
  %v155 = vld [vmem:[%s1 + $0x1b0] sm:$0xff]
  %v156 = vld [vmem:[%s1 + $0x1b8] sm:$0xff]
  %v157 = vld [vmem:[%s1 + $0x1c0] sm:$0xff]
  %v158 = vld [vmem:[%s1 + $0x1c8] sm:$0xff]
  %v159 = vld [vmem:[%s1 + $0x1d0] sm:$0xff]
  %v160 = vld [vmem:[%s1 + $0x1d8] sm:$0xff]
  %v161 = vld [vmem:[%s1 + $0x1e0] sm:$0xff]
  %v162 = vld [vmem:[%s1 + $0x1e8] sm:$0xff]
  %v163 = vld [vmem:[%s1 + $0x1f0] sm:$0xff]
  %v164 = vld [vmem:[%s1 + $0x1f8] sm:$0xff]
  %v165 = vld [vmem:[%s1 + $0x200] sm:$0xff]
  %v166 = vld [vmem:[%s1 + $0x208] sm:$0xff]
  %v167 = vld [vmem:[%s1 + $0x210] sm:$0xff]
  %v168 = vld [vmem:[%s1 + $0x218] sm:$0xff]
  %v169 = vld [vmem:[%s1 + $0x220] sm:$0xff]
  %v170 = vld [vmem:[%s1 + $0x228] sm:$0xff]
  %v171 = vld [vmem:[%s1 + $0x230] sm:$0xff]
  %v172 = vld [vmem:[%s1 + $0x238] sm:$0xff]
  %v173 = vld [vmem:[%s1 + $0x240] sm:$0xff]
  %v174 = vld [vmem:[%s1 + $0x248] sm:$0xff]
  %v175 = vld [vmem:[%s1 + $0x250] sm:$0xff]
  %v176 = vld [vmem:[%s1 + $0x258] sm:$0xff]
  %v177 = vld [vmem:[%s1 + $0x260] sm:$0xff]
  %v178 = vld [vmem:[%s1 + $0x268] sm:$0xff]
  %v179 = vld [vmem:[%s1 + $0x270] sm:$0xff]
  %v180 = vld [vmem:[%s1 + $0x278] sm:$0xff]
  %v181 = vld [vmem:[%s1 + $0x280] sm:$0xff]
  %v182 = vld [vmem:[%s1 + $0x288] sm:$0xff]
  %v183 = vld [vmem:[%s1 + $0x290] sm:$0xff]
  %v184 = vld [vmem:[%s1 + $0x298] sm:$0xff]
  %v185 = vld [vmem:[%s1 + $0x2a0] sm:$0xff]
  %v186 = vld [vmem:[%s1 + $0x2a8] sm:$0xff]
  %v187 = vld [vmem:[%s1 + $0x2b0] sm:$0xff]
  %v188 = vld [vmem:[%s1 + $0x2b8] sm:$0xff]
  %v189 = vld [vmem:[%s1 + $0x2c0] sm:$0xff]
  %v190 = vld [vmem:[%s1 + $0x2c8] sm:$0xff]
  %v191 = vld [vmem:[%s1 + $0x2d0] sm:$0xff]
  %v192 = vld [vmem:[%s1 + $0x2d8] sm:$0xff]
  %v193 = vld [vmem:[%s1 + $0x2e0] sm:$0xff]
  %v194 = vld [vmem:[%s1 + $0x2e8] sm:$0xff]
  %v195 = vld [vmem:[%s1 + $0x2f0] sm:$0xff]
  %v196 = vld [vmem:[%s1 + $0x2f8] sm:$0xff]
  %v197 = vld [vmem:[%s1 + $0x300] sm:$0xff]
  %v198 = vld [vmem:[%s1 + $0x308] sm:$0xff]
  %v199 = vld [vmem:[%s1 + $0x310] sm:$0xff]
  %v200 = vld [vmem:[%s1 + $0x318] sm:$0xff]
  %v201 = vld [vmem:[%s1 + $0x320] sm:$0xff]
  %v202 = vld [vmem:[%s1 + $0x328] sm:$0xff]
  %v203 = vld [vmem:[%s1 + $0x330] sm:$0xff]
  %v204 = vld [vmem:[%s1 + $0x338] sm:$0xff]
  %v205 = vld [vmem:[%s1 + $0x340] sm:$0xff]
  %v206 = vld [vmem:[%s1 + $0x348] sm:$0xff]
  %v207 = vld [vmem:[%s1 + $0x350] sm:$0xff]
  %v208 = vld [vmem:[%s1 + $0x358] sm:$0xff]
  %v209 = vld [vmem:[%s1 + $0x360] sm:$0xff]
  %v210 = vld [vmem:[%s1 + $0x368] sm:$0xff]
  %v211 = vld [vmem:[%s1 + $0x370] sm:$0xff]
  %v212 = vld [vmem:[%s1 + $0x378] sm:$0xff]
  %v213 = vld [vmem:[%s1 + $0x380] sm:$0xff]
  %v214 = vld [vmem:[%s1 + $0x388] sm:$0xff]
  %v215 = vld [vmem:[%s1 + $0x390] sm:$0xff]
  %v216 = vld [vmem:[%s1 + $0x398] sm:$0xff]
  %v217 = vld [vmem:[%s1 + $0x3a0] sm:$0xff]
  %v218 = vld [vmem:[%s1 + $0x3a8] sm:$0xff]
  %v219 = vld [vmem:[%s1 + $0x3b0] sm:$0xff]
  %v220 = vld [vmem:[%s1 + $0x3b8] sm:$0xff]
  %v221 = vld [vmem:[%s1 + $0x3c0] sm:$0xff]
  %v222 = vld [vmem:[%s1 + $0x3c8] sm:$0xff]
  %v223 = vld [vmem:[%s1 + $0x3d0] sm:$0xff]
  %v224 = vld [vmem:[%s1 + $0x3d8] sm:$0xff]
  %v225 = vld [vmem:[%s1 + $0x3e0] sm:$0xff]
  %v226 = vld [vmem:[%s1 + $0x3e8] sm:$0xff]
  %v227 = vld [vmem:[%s1 + $0x3f0] sm:$0xff]
  %v228 = vld [vmem:[%s1 + $0x3f8] sm:$0xff]
  %v229 = vld [vmem:[%s1 + $0x400] sm:$0xff]
  %v230 = vld [vmem:[%s1 + $0x408] sm:$0xff]
  %v231 = vld [vmem:[%s1 + $0x410] sm:$0xff]
  %v232 = vld [vmem:[%s1 + $0x418] sm:$0xff]
  %v233 = vld [vmem:[%s1 + $0x420] sm:$0xff]
  %v234 = vld [vmem:[%s1 + $0x428] sm:$0xff]
  %v235 = vld [vmem:[%s1 + $0x430] sm:$0xff]
  %v236 = vld [vmem:[%s1 + $0x438] sm:$0xff]
  %v237 = vld [vmem:[%s1 + $0x440] sm:$0xff]
  %v238 = vld [vmem:[%s1 + $0x448] sm:$0xff]
  %v239 = vld [vmem:[%s1 + $0x450] sm:$0xff]
  %v240 = vld [vmem:[%s1 + $0x458] sm:$0xff]
  %v241 = vld [vmem:[%s1 + $0x460] sm:$0xff]
  %v242 = vld [vmem:[%s1 + $0x468] sm:$0xff]
  %v243 = vld [vmem:[%s1 + $0x470] sm:$0xff]
  %v244 = vld [vmem:[%s1 + $0x478] sm:$0xff]
  %v245 = vld [vmem:[%s1 + $0x480] sm:$0xff]
  %v246 = vld [vmem:[%s1 + $0x488] sm:$0xff]
  %v247 = vld [vmem:[%s1 + $0x490] sm:$0xff]
  %v248 = vld [vmem:[%s1 + $0x498] sm:$0xff]
  %v249 = vld [vmem:[%s1 + $0x4a0] sm:$0xff]
  %v250 = vld [vmem:[%s1 + $0x4a8] sm:$0xff]
  %v251 = vld [vmem:[%s1 + $0x4b0] sm:$0xff]
  %v252 = vld [vmem:[%s1 + $0x4b8] sm:$0xff]
  %v253 = vld [vmem:[%s1 + $0x4c0] sm:$0xff]
  %v254 = vld [vmem:[%s1 + $0x4c8] sm:$0xff]
  %v255 = vld [vmem:[%s1 + $0x4d0] sm:$0xff]
  %v256 = vld [vmem:[%s1 + $0x4d8] sm:$0xff]
  %v257 = vld [vmem:[%s1 + $0x4e0] sm:$0xff]
  %v258 = vld [vmem:[%s1 + $0x4e8] sm:$0xff]
  %v259 = vld [vmem:[%s1 + $0x4f0] sm:$0xff]
  %v260 = vld [vmem:[%s1 + $0x4f8] sm:$0xff]
  %v261 = vld [vmem:[%s1 + $0x500] sm:$0xff]
  %v262 = vld [vmem:[%s1 + $0x508] sm:$0xff]
  %v263 = vld [vmem:[%s1 + $0x510] sm:$0xff]
  %v264 = vld [vmem:[%s1 + $0x518] sm:$0xff]
  %v265 = vld [vmem:[%s1 + $0x520] sm:$0xff]
  %v266 = vld [vmem:[%s1 + $0x528] sm:$0xff]
  %v267 = vld [vmem:[%s1 + $0x530] sm:$0xff]
  %v268 = vld [vmem:[%s1 + $0x538] sm:$0xff]
  %v269 = vld [vmem:[%s1 + $0x540] sm:$0xff]
  %v270 = vld [vmem:[%s1 + $0x548] sm:$0xff]
  %v271 = vld [vmem:[%s1 + $0x550] sm:$0xff]
  %v272 = vld [vmem:[%s1 + $0x558] sm:$0xff]
  %v273 = vld [vmem:[%s1 + $0x560] sm:$0xff]
  %v274 = vld [vmem:[%s1 + $0x568] sm:$0xff]
  %v275 = vld [vmem:[%s1 + $0x570] sm:$0xff]
  %v276 = vld [vmem:[%s1 + $0x578] sm:$0xff]
  %v277 = vld [vmem:[%s1 + $0x580] sm:$0xff]
  %v278 = vld [vmem:[%s1 + $0x588] sm:$0xff]
  %v279 = vld [vmem:[%s1 + $0x590] sm:$0xff]
  %v280 = vld [vmem:[%s1 + $0x598] sm:$0xff]
  %v281 = vld [vmem:[%s1 + $0x5a0] sm:$0xff]
  %v282 = vld [vmem:[%s1 + $0x5a8] sm:$0xff]
  %v283 = vld [vmem:[%s1 + $0x5b0] sm:$0xff]
  %v284 = vld [vmem:[%s1 + $0x5b8] sm:$0xff]
  %v285 = vld [vmem:[%s1 + $0x5c0] sm:$0xff]
  %v286 = vld [vmem:[%s1 + $0x5c8] sm:$0xff]
  %v287 = vld [vmem:[%s1 + $0x5d0] sm:$0xff]
  %v288 = vld [vmem:[%s1 + $0x5d8] sm:$0xff]
  %v289 = vld [vmem:[%s1 + $0x5e0] sm:$0xff]
  %v290 = vld [vmem:[%s1 + $0x5e8] sm:$0xff]
  %v291 = vld [vmem:[%s1 + $0x5f0] sm:$0xff]
  %v292 = vld [vmem:[%s1 + $0x5f8] sm:$0xff]
  %v293 = vld [vmem:[%s1 + $0x600] sm:$0xff]
  %v294 = vld [vmem:[%s1 + $0x608] sm:$0xff]
  %v295 = vld [vmem:[%s1 + $0x610] sm:$0xff]
  %v296 = vld [vmem:[%s1 + $0x618] sm:$0xff]
  %v297 = vld [vmem:[%s1 + $0x620] sm:$0xff]
  %v298 = vld [vmem:[%s1 + $0x628] sm:$0xff]
  %v299 = vld [vmem:[%s1 + $0x630] sm:$0xff]
  %v300 = vld [vmem:[%s1 + $0x638] sm:$0xff]
  %v301 = vld [vmem:[%s1 + $0x640] sm:$0xff]
  %v302 = vld [vmem:[%s1 + $0x648] sm:$0xff]
  %v303 = vld [vmem:[%s1 + $0x650] sm:$0xff]
  %v304 = vld [vmem:[%s1 + $0x658] sm:$0xff]
  %v305 = vld [vmem:[%s1 + $0x660] sm:$0xff]
  %v306 = vld [vmem:[%s1 + $0x668] sm:$0xff]
  %v307 = vld [vmem:[%s1 + $0x670] sm:$0xff]
  %v308 = vld [vmem:[%s1 + $0x678] sm:$0xff]
  %v309 = vld [vmem:[%s1 + $0x680] sm:$0xff]
  %v310 = vld [vmem:[%s1 + $0x688] sm:$0xff]
  %v311 = vld [vmem:[%s1 + $0x690] sm:$0xff]
  %v312 = vld [vmem:[%s1 + $0x698] sm:$0xff]
  %v313 = vld [vmem:[%s1 + $0x6a0] sm:$0xff]
  %v314 = vld [vmem:[%s1 + $0x6a8] sm:$0xff]
  %v315 = vld [vmem:[%s1 + $0x6b0] sm:$0xff]
  %v316 = vld [vmem:[%s1 + $0x6b8] sm:$0xff]
  %v317 = vld [vmem:[%s1 + $0x6c0] sm:$0xff]
  %v318 = vld [vmem:[%s1 + $0x6c8] sm:$0xff]
  %v319 = vld [vmem:[%s1 + $0x6d0] sm:$0xff]
  %v320 = vld [vmem:[%s1 + $0x6d8] sm:$0xff]
  %v321 = vld [vmem:[%s1 + $0x6e0] sm:$0xff]
  %v322 = vld [vmem:[%s1 + $0x6e8] sm:$0xff]
  %v323 = vld [vmem:[%s1 + $0x6f0] sm:$0xff]
  %v324 = vld [vmem:[%s1 + $0x6f8] sm:$0xff]
  %v325 = vld [vmem:[%s1 + $0x700] sm:$0xff]
  %v326 = vld [vmem:[%s1 + $0x708] sm:$0xff]
  %v327 = vld [vmem:[%s1 + $0x710] sm:$0xff]
  %v328 = vld [vmem:[%s1 + $0x718] sm:$0xff]
  %v329 = vld [vmem:[%s1 + $0x720] sm:$0xff]
  %v330 = vld [vmem:[%s1 + $0x728] sm:$0xff]
  %v331 = vld [vmem:[%s1 + $0x730] sm:$0xff]
  %v332 = vld [vmem:[%s1 + $0x738] sm:$0xff]
  %v333 = vld [vmem:[%s1 + $0x740] sm:$0xff]
  %v334 = vld [vmem:[%s1 + $0x748] sm:$0xff]
  %v335 = vld [vmem:[%s1 + $0x750] sm:$0xff]
  %v336 = vld [vmem:[%s1 + $0x758] sm:$0xff]
  %v337 = vld [vmem:[%s1 + $0x760] sm:$0xff]
  %v338 = vld [vmem:[%s1 + $0x768] sm:$0xff]
  %v339 = vld [vmem:[%s1 + $0x770] sm:$0xff]
  %v340 = vld [vmem:[%s1 + $0x778] sm:$0xff]
  %v341 = vld [vmem:[%s1 + $0x780] sm:$0xff]
  %v342 = vld [vmem:[%s1 + $0x788] sm:$0xff]
  %v343 = vld [vmem:[%s1 + $0x790] sm:$0xff]
  %v344 = vld [vmem:[%s1 + $0x798] sm:$0xff]
  %v345 = vld [vmem:[%s1 + $0x7a0] sm:$0xff]
  %v346 = vld [vmem:[%s1 + $0x7a8] sm:$0xff]
  %v347 = vld [vmem:[%s1 + $0x7b0] sm:$0xff]
  %v348 = vld [vmem:[%s1 + $0x7b8] sm:$0xff]
  %v349 = vld [vmem:[%s1 + $0x7c0] sm:$0xff]
  %v350 = vld [vmem:[%s1 + $0x7c8] sm:$0xff]
  %v351 = vld [vmem:[%s1 + $0x7d0] sm:$0xff]
  %v352 = vld [vmem:[%s1 + $0x7d8] sm:$0xff]
  %v353 = vld [vmem:[%s1 + $0x7e0] sm:$0xff]
  %v354 = vld [vmem:[%s1 + $0x7e8] sm:$0xff]
  %v355 = vld [vmem:[%s1 + $0x7f0] sm:$0xff]
  %v356 = vld [vmem:[%s1 + $0x7f8] sm:$0xff]
  %v357 = vld [vmem:[%s1 + $0x800] sm:$0xff]
  %v358 = vld [vmem:[%s1 + $0x808] sm:$0xff]
  %v359 = vld [vmem:[%s1 + $0x810] sm:$0xff]
  %v360 = vld [vmem:[%s1 + $0x818] sm:$0xff]
  %v361 = vld [vmem:[%s1 + $0x820] sm:$0xff]
  %v362 = vld [vmem:[%s1 + $0x828] sm:$0xff]
  %v363 = vld [vmem:[%s1 + $0x830] sm:$0xff]
  %v364 = vld [vmem:[%s1 + $0x838] sm:$0xff]
  %v365 = vld [vmem:[%s1 + $0x840] sm:$0xff]
  %v366 = vld [vmem:[%s1 + $0x848] sm:$0xff]
  %v367 = vld [vmem:[%s1 + $0x850] sm:$0xff]
  %v368 = vld [vmem:[%s1 + $0x858] sm:$0xff]
  %v369 = vld [vmem:[%s1 + $0x860] sm:$0xff]
  %v370 = vld [vmem:[%s1 + $0x868] sm:$0xff]
  %v371 = vld [vmem:[%s1 + $0x870] sm:$0xff]
  %v372 = vld [vmem:[%s1 + $0x878] sm:$0xff]
  %v373 = vld [vmem:[%s1 + $0x880] sm:$0xff]
  %v374 = vld [vmem:[%s1 + $0x888] sm:$0xff]
  %v375 = vld [vmem:[%s1 + $0x890] sm:$0xff]
  %v376 = vld [vmem:[%s1 + $0x898] sm:$0xff]
  %v377 = vld [vmem:[%s1 + $0x8a0] sm:$0xff]
  %v378 = vld [vmem:[%s1 + $0x8a8] sm:$0xff]
  %v379 = vld [vmem:[%s1 + $0x8b0] sm:$0xff]
  %v380 = vld [vmem:[%s1 + $0x8b8] sm:$0xff]
  %v381 = vld [vmem:[%s1 + $0x8c0] sm:$0xff]
  %v382 = vld [vmem:[%s1 + $0x8c8] sm:$0xff]
  %v383 = vld [vmem:[%s1 + $0x8d0] sm:$0xff]
  %v384 = vld [vmem:[%s1 + $0x8d8] sm:$0xff]
  %v385 = vld [vmem:[%s1 + $0x8e0] sm:$0xff]
  %v386 = vld [vmem:[%s1 + $0x8e8] sm:$0xff]
  %v387 = vld [vmem:[%s1 + $0x8f0] sm:$0xff]
  %v388 = vld [vmem:[%s1 + $0x8f8] sm:$0xff]
  %v389 = vld [vmem:[%s1 + $0x900] sm:$0xff]
  %v390 = vld [vmem:[%s1 + $0x908] sm:$0xff]
  %v391 = vld [vmem:[%s1 + $0x910] sm:$0xff]
  %v392 = vld [vmem:[%s1 + $0x918] sm:$0xff]
  %v393 = vld [vmem:[%s1 + $0x920] sm:$0xff]
  %v394 = vld [vmem:[%s1 + $0x928] sm:$0xff]
  %v395 = vld [vmem:[%s1 + $0x930] sm:$0xff]
  %v396 = vld [vmem:[%s1 + $0x938] sm:$0xff]
  %v397 = vld [vmem:[%s1 + $0x940] sm:$0xff]
  %v398 = vld [vmem:[%s1 + $0x948] sm:$0xff]
  %v399 = vld [vmem:[%s1 + $0x950] sm:$0xff]
  %v400 = vld [vmem:[%s1 + $0x958] sm:$0xff]
  %v401 = vld [vmem:[%s1 + $0x960] sm:$0xff]
  %v402 = vld [vmem:[%s1 + $0x968] sm:$0xff]
  %v403 = vld [vmem:[%s1 + $0x970] sm:$0xff]
  %v404 = vld [vmem:[%s1 + $0x978] sm:$0xff]
  %v405 = vld [vmem:[%s1 + $0x980] sm:$0xff]
  %v406 = vld [vmem:[%s1 + $0x988] sm:$0xff]
  %v407 = vld [vmem:[%s1 + $0x990] sm:$0xff]
  %v408 = vld [vmem:[%s1 + $0x998] sm:$0xff]
  %v409 = vld [vmem:[%s1 + $0x9a0] sm:$0xff]
  %v410 = vld [vmem:[%s1 + $0x9a8] sm:$0xff]
  %v411 = vld [vmem:[%s1 + $0x9b0] sm:$0xff]
  %v412 = vld [vmem:[%s1 + $0x9b8] sm:$0xff]
  %v413 = vld [vmem:[%s1 + $0x9c0] sm:$0xff]
  %v414 = vld [vmem:[%s1 + $0x9c8] sm:$0xff]
  %v415 = vld [vmem:[%s1 + $0x9d0] sm:$0xff]
  %v416 = vld [vmem:[%s1 + $0x9d8] sm:$0xff]
  %v417 = vld [vmem:[%s1 + $0x9e0] sm:$0xff]
  %v418 = vld [vmem:[%s1 + $0x9e8] sm:$0xff]
  %v419 = vld [vmem:[%s1 + $0x9f0] sm:$0xff]
  %v420 = vld [vmem:[%s1 + $0x9f8] sm:$0xff]
  %v421 = vld [vmem:[%s1 + $0xa00] sm:$0xff]
  %v422 = vld [vmem:[%s1 + $0xa08] sm:$0xff]
  %v423 = vld [vmem:[%s1 + $0xa10] sm:$0xff]
  %v424 = vld [vmem:[%s1 + $0xa18] sm:$0xff]
  %v425 = vld [vmem:[%s1 + $0xa20] sm:$0xff]
  %v426 = vld [vmem:[%s1 + $0xa28] sm:$0xff]
  %v427 = vld [vmem:[%s1 + $0xa30] sm:$0xff]
  %v428 = vld [vmem:[%s1 + $0xa38] sm:$0xff]
  %v429 = vld [vmem:[%s1 + $0xa40] sm:$0xff]
  %v430 = vld [vmem:[%s1 + $0xa48] sm:$0xff]
  %v431 = vld [vmem:[%s1 + $0xa50] sm:$0xff]
  %v432 = vld [vmem:[%s1 + $0xa58] sm:$0xff]
  %v433 = vld [vmem:[%s1 + $0xa60] sm:$0xff]
  %v434 = vld [vmem:[%s1 + $0xa68] sm:$0xff]
  %v435 = vld [vmem:[%s1 + $0xa70] sm:$0xff]
  %v436 = vld [vmem:[%s1 + $0xa78] sm:$0xff]
  %v437 = vld [vmem:[%s1 + $0xa80] sm:$0xff]
  %v438 = vld [vmem:[%s1 + $0xa88] sm:$0xff]
  %v439 = vld [vmem:[%s1 + $0xa90] sm:$0xff]
  %v440 = vld [vmem:[%s1 + $0xa98] sm:$0xff]
  %v441 = vld [vmem:[%s1 + $0xaa0] sm:$0xff]
  %v442 = vld [vmem:[%s1 + $0xaa8] sm:$0xff]
  %v443 = vld [vmem:[%s1 + $0xab0] sm:$0xff]
  %v444 = vld [vmem:[%s1 + $0xab8] sm:$0xff]
  %v445 = vld [vmem:[%s1 + $0xac0] sm:$0xff]
  %v446 = vld [vmem:[%s1 + $0xac8] sm:$0xff]
  %v447 = vld [vmem:[%s1 + $0xad0] sm:$0xff]
  %v448 = vld [vmem:[%s1 + $0xad8] sm:$0xff]
  %v449 = vld [vmem:[%s1 + $0xae0] sm:$0xff]
  %v450 = vld [vmem:[%s1 + $0xae8] sm:$0xff]
  %v451 = vld [vmem:[%s1 + $0xaf0] sm:$0xff]
  %v452 = vld [vmem:[%s1 + $0xaf8] sm:$0xff]
  %v453 = vld [vmem:[%s1 + $0xb00] sm:$0xff]
  %v454 = vld [vmem:[%s1 + $0xb08] sm:$0xff]
  %v455 = vld [vmem:[%s1 + $0xb10] sm:$0xff]
  %v456 = vld [vmem:[%s1 + $0xb18] sm:$0xff]
  %v457 = vld [vmem:[%s1 + $0xb20] sm:$0xff]
  %v458 = vld [vmem:[%s1 + $0xb28] sm:$0xff]
  %v459 = vld [vmem:[%s1 + $0xb30] sm:$0xff]
  %v460 = vld [vmem:[%s1 + $0xb38] sm:$0xff]
  %v461 = vld [vmem:[%s1 + $0xb40] sm:$0xff]
  %v462 = vld [vmem:[%s1 + $0xb48] sm:$0xff]
  %v463 = vld [vmem:[%s1 + $0xb50] sm:$0xff]
  %v464 = vld [vmem:[%s1 + $0xb58] sm:$0xff]
  %v465 = vld [vmem:[%s1 + $0xb60] sm:$0xff]
  %v466 = vld [vmem:[%s1 + $0xb68] sm:$0xff]
  %v467 = vld [vmem:[%s1 + $0xb70] sm:$0xff]
  %v468 = vld [vmem:[%s1 + $0xb78] sm:$0xff]
  %v469 = vld [vmem:[%s1 + $0xb80] sm:$0xff]
  %v470 = vld [vmem:[%s1 + $0xb88] sm:$0xff]
  %v471 = vld [vmem:[%s1 + $0xb90] sm:$0xff]
  %v472 = vld [vmem:[%s1 + $0xb98] sm:$0xff]
  %v473 = vld [vmem:[%s1 + $0xba0] sm:$0xff]
  %v474 = vld [vmem:[%s1 + $0xba8] sm:$0xff]
  %v475 = vld [vmem:[%s1 + $0xbb0] sm:$0xff]
  %v476 = vld [vmem:[%s1 + $0xbb8] sm:$0xff]
  %v477 = vld [vmem:[%s1 + $0xbc0] sm:$0xff]
  %v478 = vld [vmem:[%s1 + $0xbc8] sm:$0xff]
  %v479 = vld [vmem:[%s1 + $0xbd0] sm:$0xff]
  %v480 = vld [vmem:[%s1 + $0xbd8] sm:$0xff]
  %v481 = vld [vmem:[%s1 + $0xbe0] sm:$0xff]
  %v482 = vld [vmem:[%s1 + $0xbe8] sm:$0xff]
  %v483 = vld [vmem:[%s1 + $0xbf0] sm:$0xff]
  %v484 = vld [vmem:[%s1 + $0xbf8] sm:$0xff]
  %v485 = vld [vmem:[%s1 + $0xc00] sm:$0xff]
  %v486 = vld [vmem:[%s1 + $0xc08] sm:$0xff]
  %v487 = vld [vmem:[%s1 + $0xc10] sm:$0xff]
  %v488 = vld [vmem:[%s1 + $0xc18] sm:$0xff]
  %v489 = vld [vmem:[%s1 + $0xc20] sm:$0xff]
  %v490 = vld [vmem:[%s1 + $0xc28] sm:$0xff]
  %v491 = vld [vmem:[%s1 + $0xc30] sm:$0xff]
  %v492 = vld [vmem:[%s1 + $0xc38] sm:$0xff]
  %v493 = vld [vmem:[%s1 + $0xc40] sm:$0xff]
  %v494 = vld [vmem:[%s1 + $0xc48] sm:$0xff]
  %v495 = vld [vmem:[%s1 + $0xc50] sm:$0xff]
  %v496 = vld [vmem:[%s1 + $0xc58] sm:$0xff]
  %v497 = vld [vmem:[%s1 + $0xc60] sm:$0xff]
  %v498 = vld [vmem:[%s1 + $0xc68] sm:$0xff]
  %v499 = vld [vmem:[%s1 + $0xc70] sm:$0xff]
  %v500 = vld [vmem:[%s1 + $0xc78] sm:$0xff]
  %v501 = vld [vmem:[%s1 + $0xc80] sm:$0xff]
  %v502 = vld [vmem:[%s1 + $0xc88] sm:$0xff]
  %v503 = vld [vmem:[%s1 + $0xc90] sm:$0xff]
  %v504 = vld [vmem:[%s1 + $0xc98] sm:$0xff]
  %v505 = vld [vmem:[%s1 + $0xca0] sm:$0xff]
  %v506 = vld [vmem:[%s1 + $0xca8] sm:$0xff]
  %v507 = vld [vmem:[%s1 + $0xcb0] sm:$0xff]
  %v508 = vld [vmem:[%s1 + $0xcb8] sm:$0xff]
  %v509 = vld [vmem:[%s1 + $0xcc0] sm:$0xff]
  %v510 = vld [vmem:[%s1 + $0xcc8] sm:$0xff]
  %v511 = vld [vmem:[%s1 + $0xcd0] sm:$0xff]
  %v512 = vld [vmem:[%s1 + $0xcd8] sm:$0xff]
  %v513 = vld [vmem:[%s1 + $0xce0] sm:$0xff]
  %v514 = vld [vmem:[%s1 + $0xce8] sm:$0xff]
  %v515 = vld [vmem:[%s1 + $0xcf0] sm:$0xff]
  %v516 = vld [vmem:[%s1 + $0xcf8] sm:$0xff]
  %v517 = vld [vmem:[%s1 + $0xd00] sm:$0xff]
  %v518 = vld [vmem:[%s1 + $0xd08] sm:$0xff]
  %v519 = vld [vmem:[%s1 + $0xd10] sm:$0xff]
  %v520 = vld [vmem:[%s1 + $0xd18] sm:$0xff]
  %v521 = vld [vmem:[%s1 + $0xd20] sm:$0xff]
  %v522 = vld [vmem:[%s1 + $0xd28] sm:$0xff]
  %v523 = vld [vmem:[%s1 + $0xd30] sm:$0xff]
  %v524 = vld [vmem:[%s1 + $0xd38] sm:$0xff]
  %v525 = vld [vmem:[%s1 + $0xd40] sm:$0xff]
  %v526 = vld [vmem:[%s1 + $0xd48] sm:$0xff]
  %v527 = vld [vmem:[%s1 + $0xd50] sm:$0xff]
  %v528 = vld [vmem:[%s1 + $0xd58] sm:$0xff]
  %v529 = vld [vmem:[%s1 + $0xd60] sm:$0xff]
  %v530 = vld [vmem:[%s1 + $0xd68] sm:$0xff]
  %v531 = vld [vmem:[%s1 + $0xd70] sm:$0xff]
  %v532 = vld [vmem:[%s1 + $0xd78] sm:$0xff]
  %v533 = vld [vmem:[%s1 + $0xd80] sm:$0xff]
  %v534 = vld [vmem:[%s1 + $0xd88] sm:$0xff]
  %v535 = vld [vmem:[%s1 + $0xd90] sm:$0xff]
  %v536 = vld [vmem:[%s1 + $0xd98] sm:$0xff]
  %v537 = vld [vmem:[%s1 + $0xda0] sm:$0xff]
  %v538 = vld [vmem:[%s1 + $0xda8] sm:$0xff]
  %v539 = vld [vmem:[%s1 + $0xdb0] sm:$0xff]
  %v540 = vld [vmem:[%s1 + $0xdb8] sm:$0xff]
  %v541 = vld [vmem:[%s1 + $0xdc0] sm:$0xff]
  %v542 = vld [vmem:[%s1 + $0xdc8] sm:$0xff]
  %v543 = vld [vmem:[%s1 + $0xdd0] sm:$0xff]
  %v544 = vld [vmem:[%s1 + $0xdd8] sm:$0xff]
  %v545 = vld [vmem:[%s1 + $0xde0] sm:$0xff]
  %v546 = vld [vmem:[%s1 + $0xde8] sm:$0xff]
  %v547 = vld [vmem:[%s1 + $0xdf0] sm:$0xff]
  %v548 = vld [vmem:[%s1 + $0xdf8] sm:$0xff]
  %v549 = vld [vmem:[%s1 + $0xe00] sm:$0xff]
  %v550 = vld [vmem:[%s1 + $0xe08] sm:$0xff]
  %v551 = vld [vmem:[%s1 + $0xe10] sm:$0xff]
  %v552 = vld [vmem:[%s1 + $0xe18] sm:$0xff]
  %v553 = vld [vmem:[%s1 + $0xe20] sm:$0xff]
  %v554 = vld [vmem:[%s1 + $0xe28] sm:$0xff]
  %v555 = vld [vmem:[%s1 + $0xe30] sm:$0xff]
  %v556 = vld [vmem:[%s1 + $0xe38] sm:$0xff]
  %v557 = vld [vmem:[%s1 + $0xe40] sm:$0xff]
  %v558 = vld [vmem:[%s1 + $0xe48] sm:$0xff]
  %v559 = vld [vmem:[%s1 + $0xe50] sm:$0xff]
  %v560 = vld [vmem:[%s1 + $0xe58] sm:$0xff]
  %v561 = vld [vmem:[%s1 + $0xe60] sm:$0xff]
  %v562 = vld [vmem:[%s1 + $0xe68] sm:$0xff]
  %v563 = vld [vmem:[%s1 + $0xe70] sm:$0xff]
  %v564 = vld [vmem:[%s1 + $0xe78] sm:$0xff]
  %v565 = vld [vmem:[%s1 + $0xe80] sm:$0xff]
  %v566 = vld [vmem:[%s1 + $0xe88] sm:$0xff]
  %v567 = vld [vmem:[%s1 + $0xe90] sm:$0xff]
  %v568 = vld [vmem:[%s1 + $0xe98] sm:$0xff]
  %v569 = vld [vmem:[%s1 + $0xea0] sm:$0xff]
  %v570 = vld [vmem:[%s1 + $0xea8] sm:$0xff]
  %v571 = vld [vmem:[%s1 + $0xeb0] sm:$0xff]
  %v572 = vld [vmem:[%s1 + $0xeb8] sm:$0xff]
  %v573 = vld [vmem:[%s1 + $0xec0] sm:$0xff]
  %v574 = vld [vmem:[%s1 + $0xec8] sm:$0xff]
  %v575 = vld [vmem:[%s1 + $0xed0] sm:$0xff]
  %v576 = vld [vmem:[%s1 + $0xed8] sm:$0xff]
  %v577 = vld [vmem:[%s1 + $0xee0] sm:$0xff]
  %v578 = vld [vmem:[%s1 + $0xee8] sm:$0xff]
  %v579 = vld [vmem:[%s1 + $0xef0] sm:$0xff]
  %v580 = vld [vmem:[%s1 + $0xef8] sm:$0xff]
  %v581 = vld [vmem:[%s1 + $0xf00] sm:$0xff]
  %v582 = vld [vmem:[%s1 + $0xf08] sm:$0xff]
  %v583 = vld [vmem:[%s1 + $0xf10] sm:$0xff]
  %v584 = vld [vmem:[%s1 + $0xf18] sm:$0xff]
  %v585 = vld [vmem:[%s1 + $0xf20] sm:$0xff]
  %v586 = vld [vmem:[%s1 + $0xf28] sm:$0xff]
  %v587 = vld [vmem:[%s1 + $0xf30] sm:$0xff]
  %v588 = vld [vmem:[%s1 + $0xf38] sm:$0xff]
  %v589 = vld [vmem:[%s1 + $0xf40] sm:$0xff]
  %v590 = vld [vmem:[%s1 + $0xf48] sm:$0xff]
  %v591 = vld [vmem:[%s1 + $0xf50] sm:$0xff]
  %v592 = vld [vmem:[%s1 + $0xf58] sm:$0xff]
  %v593 = vld [vmem:[%s1 + $0xf60] sm:$0xff]
  %v594 = vld [vmem:[%s1 + $0xf68] sm:$0xff]
  %v595 = vld [vmem:[%s1 + $0xf70] sm:$0xff]
  %v596 = vld [vmem:[%s1 + $0xf78] sm:$0xff]
  %v597 = vld [vmem:[%s1 + $0xf80] sm:$0xff]
  %v598 = vld [vmem:[%s1 + $0xf88] sm:$0xff]
  %v599 = vld [vmem:[%s1 + $0xf90] sm:$0xff]
  %v600 = vld [vmem:[%s1 + $0xf98] sm:$0xff]
  %v601 = vld [vmem:[%s1 + $0xfa0] sm:$0xff]
  %v602 = vld [vmem:[%s1 + $0xfa8] sm:$0xff]
  %v603 = vld [vmem:[%s1 + $0xfb0] sm:$0xff]
  %v604 = vld [vmem:[%s1 + $0xfb8] sm:$0xff]
  %v605 = vld [vmem:[%s1 + $0xfc0] sm:$0xff]
  %v606 = vld [vmem:[%s1 + $0xfc8] sm:$0xff]
  %v607 = vld [vmem:[%s1 + $0xfd0] sm:$0xff]
  %v608 = vld [vmem:[%s1 + $0xfd8] sm:$0xff]
  %v609 = vld [vmem:[%s1 + $0xfe0] sm:$0xff]
  %v610 = vld [vmem:[%s1 + $0xfe8] sm:$0xff]
  %v611 = vld [vmem:[%s1 + $0xff0] sm:$0xff]
  %v612 = vld [vmem:[%s1 + $0xff8] sm:$0xff]
  %v613 = vld [vmem:[%s1 + $0x1000] sm:$0xff]
  %v614 = vld [vmem:[%s1 + $0x1008] sm:$0xff]
  %v615 = vld [vmem:[%s1 + $0x1010] sm:$0xff]
  %v616 = vld [vmem:[%s1 + $0x1018] sm:$0xff]
  %v617 = vld [vmem:[%s1 + $0x1020] sm:$0xff]
  %v618 = vld [vmem:[%s1 + $0x1028] sm:$0xff]
  %v619 = vld [vmem:[%s1 + $0x1030] sm:$0xff]
  %v620 = vld [vmem:[%s1 + $0x1038] sm:$0xff]
  %v621 = vld [vmem:[%s1 + $0x1040] sm:$0xff]
  %v622 = vld [vmem:[%s1 + $0x1048] sm:$0xff]
  %v623 = vld [vmem:[%s1 + $0x1050] sm:$0xff]
  %v624 = vld [vmem:[%s1 + $0x1058] sm:$0xff]
  %v625 = vld [vmem:[%s1 + $0x1060] sm:$0xff]
  %v626 = vld [vmem:[%s1 + $0x1068] sm:$0xff]
  %v627 = vld [vmem:[%s1 + $0x1070] sm:$0xff]
  %v628 = vld [vmem:[%s1 + $0x1078] sm:$0xff]
  %v629 = vld [vmem:[%s1 + $0x1080] sm:$0xff]
  %v630 = vld [vmem:[%s1 + $0x1088] sm:$0xff]
  %v631 = vld [vmem:[%s1 + $0x1090] sm:$0xff]
  %v632 = vld [vmem:[%s1 + $0x1098] sm:$0xff]
  %v633 = vld [vmem:[%s1 + $0x10a0] sm:$0xff]
  %v634 = vld [vmem:[%s1 + $0x10a8] sm:$0xff]
  %v635 = vld [vmem:[%s1 + $0x10b0] sm:$0xff]
  %v636 = vld [vmem:[%s1 + $0x10b8] sm:$0xff]
  %v637 = vld [vmem:[%s1 + $0x10c0] sm:$0xff]
  %v638 = vld [vmem:[%s1 + $0x10c8] sm:$0xff]
  %v639 = vld [vmem:[%s1 + $0x10d0] sm:$0xff]
  %v640 = vld [vmem:[%s1 + $0x10d8] sm:$0xff]
  %v641 = vld [vmem:[%s1 + $0x10e0] sm:$0xff]
  %v642 = vld [vmem:[%s1 + $0x10e8] sm:$0xff]
  %v643 = vld [vmem:[%s1 + $0x10f0] sm:$0xff]
  %v644 = vld [vmem:[%s1 + $0x10f8] sm:$0xff]
  %v645 = vld [vmem:[%s1 + $0x1100] sm:$0xff]
  %v646 = vld [vmem:[%s1 + $0x1108] sm:$0xff]
  %v647 = vld [vmem:[%s1 + $0x1110] sm:$0xff]
  %v648 = vld [vmem:[%s1 + $0x1118] sm:$0xff]
  %v649 = vld [vmem:[%s1 + $0x1120] sm:$0xff]
  %v650 = vld [vmem:[%s1 + $0x1128] sm:$0xff]
  %v651 = vld [vmem:[%s1 + $0x1130] sm:$0xff]
  %v652 = vld [vmem:[%s1 + $0x1138] sm:$0xff]
  %v653 = vld [vmem:[%s1 + $0x1140] sm:$0xff]
  %v654 = vld [vmem:[%s1 + $0x1148] sm:$0xff]
  %v655 = vld [vmem:[%s1 + $0x1150] sm:$0xff]
  %v656 = vld [vmem:[%s1 + $0x1158] sm:$0xff]
  %v657 = vld [vmem:[%s1 + $0x1160] sm:$0xff]
  %v658 = vld [vmem:[%s1 + $0x1168] sm:$0xff]
  %v659 = vld [vmem:[%s1 + $0x1170] sm:$0xff]
  %v660 = vld [vmem:[%s1 + $0x1178] sm:$0xff]
  %v661 = vld [vmem:[%s1 + $0x1180] sm:$0xff]
  %v662 = vld [vmem:[%s1 + $0x1188] sm:$0xff]
  %v663 = vld [vmem:[%s1 + $0x1190] sm:$0xff]
  %v664 = vld [vmem:[%s1 + $0x1198] sm:$0xff]
  %v665 = vld [vmem:[%s1 + $0x11a0] sm:$0xff]
  %v666 = vld [vmem:[%s1 + $0x11a8] sm:$0xff]
  %v667 = vld [vmem:[%s1 + $0x11b0] sm:$0xff]
  %v668 = vld [vmem:[%s1 + $0x11b8] sm:$0xff]
  %v669 = vld [vmem:[%s1 + $0x11c0] sm:$0xff]
  %v670 = vld [vmem:[%s1 + $0x11c8] sm:$0xff]
  %v671 = vld [vmem:[%s1 + $0x11d0] sm:$0xff]
  %v672 = vld [vmem:[%s1 + $0x11d8] sm:$0xff]
  %v673 = vld [vmem:[%s1 + $0x11e0] sm:$0xff]
  %v674 = vld [vmem:[%s1 + $0x11e8] sm:$0xff]
  %v675 = vld [vmem:[%s1 + $0x11f0] sm:$0xff]
  %v676 = vld [vmem:[%s1 + $0x11f8] sm:$0xff]
  %v677 = vld [vmem:[%s1 + $0x1200] sm:$0xff]
  %v678 = vld [vmem:[%s1 + $0x1208] sm:$0xff]
  %v679 = vld [vmem:[%s1 + $0x1210] sm:$0xff]
  %v680 = vld [vmem:[%s1 + $0x1218] sm:$0xff]
  %v681 = vld [vmem:[%s1 + $0x1220] sm:$0xff]
  %v682 = vld [vmem:[%s1 + $0x1228] sm:$0xff]
  %v683 = vld [vmem:[%s1 + $0x1230] sm:$0xff]
  %v684 = vld [vmem:[%s1 + $0x1238] sm:$0xff]
  %v685 = vld [vmem:[%s1 + $0x1240] sm:$0xff]
  %v686 = vld [vmem:[%s1 + $0x1248] sm:$0xff]
  %v687 = vld [vmem:[%s1 + $0x1250] sm:$0xff]
  %v688 = vld [vmem:[%s1 + $0x1258] sm:$0xff]
  %v689 = vld [vmem:[%s1 + $0x1260] sm:$0xff]
  %v690 = vld [vmem:[%s1 + $0x1268] sm:$0xff]
  %v691 = vld [vmem:[%s1 + $0x1270] sm:$0xff]
  %v692 = vld [vmem:[%s1 + $0x1278] sm:$0xff]
  %v693 = vld [vmem:[%s1 + $0x1280] sm:$0xff]
  %v694 = vld [vmem:[%s1 + $0x1288] sm:$0xff]
  %v695 = vld [vmem:[%s1 + $0x1290] sm:$0xff]
  %v696 = vld [vmem:[%s1 + $0x1298] sm:$0xff]
  %v697 = vld [vmem:[%s1 + $0x12a0] sm:$0xff]
  %v698 = vld [vmem:[%s1 + $0x12a8] sm:$0xff]
  %v699 = vld [vmem:[%s1 + $0x12b0] sm:$0xff]
  %v700 = vld [vmem:[%s1 + $0x12b8] sm:$0xff]
  %v701 = vld [vmem:[%s1 + $0x12c0] sm:$0xff]
  %v702 = vld [vmem:[%s1 + $0x12c8] sm:$0xff]
  %v703 = vld [vmem:[%s1 + $0x12d0] sm:$0xff]
  %v704 = vld [vmem:[%s1 + $0x12d8] sm:$0xff]
  %v705 = vld [vmem:[%s1 + $0x12e0] sm:$0xff]
  %v706 = vld [vmem:[%s1 + $0x12e8] sm:$0xff]
  %v707 = vld [vmem:[%s1 + $0x12f0] sm:$0xff]
  %v708 = vld [vmem:[%s1 + $0x12f8] sm:$0xff]
  %v709 = vld [vmem:[%s1 + $0x1300] sm:$0xff]
  %v710 = vld [vmem:[%s1 + $0x1308] sm:$0xff]
  %v711 = vld [vmem:[%s1 + $0x1310] sm:$0xff]
  %v712 = vld [vmem:[%s1 + $0x1318] sm:$0xff]
  %v713 = vld [vmem:[%s1 + $0x1320] sm:$0xff]
  %v714 = vld [vmem:[%s1 + $0x1328] sm:$0xff]
  %v715 = vld [vmem:[%s1 + $0x1330] sm:$0xff]
  %v716 = vld [vmem:[%s1 + $0x1338] sm:$0xff]
  %v717 = vld [vmem:[%s1 + $0x1340] sm:$0xff]
  %v718 = vld [vmem:[%s1 + $0x1348] sm:$0xff]
  %v719 = vld [vmem:[%s1 + $0x1350] sm:$0xff]
  %v720 = vld [vmem:[%s1 + $0x1358] sm:$0xff]
  %v721 = vld [vmem:[%s1 + $0x1360] sm:$0xff]
  %v722 = vld [vmem:[%s1 + $0x1368] sm:$0xff]
  %v723 = vld [vmem:[%s1 + $0x1370] sm:$0xff]
  %v724 = vld [vmem:[%s1 + $0x1378] sm:$0xff]
  %v725 = vld [vmem:[%s1 + $0x1380] sm:$0xff]
  %v726 = vld [vmem:[%s1 + $0x1388] sm:$0xff]
  %v727 = vld [vmem:[%s1 + $0x1390] sm:$0xff]
  %v728 = vld [vmem:[%s1 + $0x1398] sm:$0xff]
  %v729 = vld [vmem:[%s1 + $0x13a0] sm:$0xff]
  %v730 = vld [vmem:[%s1 + $0x13a8] sm:$0xff]
  %v731 = vld [vmem:[%s1 + $0x13b0] sm:$0xff]
  %v732 = vld [vmem:[%s1 + $0x13b8] sm:$0xff]
  %v733 = vld [vmem:[%s1 + $0x13c0] sm:$0xff]
  %v734 = vld [vmem:[%s1 + $0x13c8] sm:$0xff]
  %v735 = vld [vmem:[%s1 + $0x13d0] sm:$0xff]
  %v736 = vld [vmem:[%s1 + $0x13d8] sm:$0xff]
  %v737 = vld [vmem:[%s1 + $0x13e0] sm:$0xff]
  %v738 = vld [vmem:[%s1 + $0x13e8] sm:$0xff]
  %v739 = vld [vmem:[%s1 + $0x13f0] sm:$0xff]
  %v740 = vld [vmem:[%s1 + $0x13f8] sm:$0xff]
  %v741 = vld [vmem:[%s1 + $0x1400] sm:$0xff]
  %v742 = vld [vmem:[%s1 + $0x1408] sm:$0xff]
  %v743 = vld [vmem:[%s1 + $0x1410] sm:$0xff]
  %v744 = vld [vmem:[%s1 + $0x1418] sm:$0xff]
  %v745 = vld [vmem:[%s1 + $0x1420] sm:$0xff]
  %v746 = vld [vmem:[%s1 + $0x1428] sm:$0xff]
  %v747 = vld [vmem:[%s1 + $0x1430] sm:$0xff]
  %v748 = vld [vmem:[%s1 + $0x1438] sm:$0xff]
  %v749 = vld [vmem:[%s1 + $0x1440] sm:$0xff]
  %v750 = vld [vmem:[%s1 + $0x1448] sm:$0xff]
  %v751 = vld [vmem:[%s1 + $0x1450] sm:$0xff]
  %v752 = vld [vmem:[%s1 + $0x1458] sm:$0xff]
  %v753 = vld [vmem:[%s1 + $0x1460] sm:$0xff]
  %v754 = vld [vmem:[%s1 + $0x1468] sm:$0xff]
  %v755 = vld [vmem:[%s1 + $0x1470] sm:$0xff]
  %v756 = vld [vmem:[%s1 + $0x1478] sm:$0xff]
  %v757 = vld [vmem:[%s1 + $0x1480] sm:$0xff]
  %v758 = vld [vmem:[%s1 + $0x1488] sm:$0xff]
  %v759 = vld [vmem:[%s1 + $0x1490] sm:$0xff]
  %v760 = vld [vmem:[%s1 + $0x1498] sm:$0xff]
  %v761 = vld [vmem:[%s1 + $0x14a0] sm:$0xff]
  %v762 = vld [vmem:[%s1 + $0x14a8] sm:$0xff]
  %v763 = vld [vmem:[%s1 + $0x14b0] sm:$0xff]
  %v764 = vld [vmem:[%s1 + $0x14b8] sm:$0xff]
  %v765 = vld [vmem:[%s1 + $0x14c0] sm:$0xff]
  %v766 = vld [vmem:[%s1 + $0x14c8] sm:$0xff]
  %v767 = vld [vmem:[%s1 + $0x14d0] sm:$0xff]
  %v768 = vld [vmem:[%s1 + $0x14d8] sm:$0xff]
  %v769 = vld [vmem:[%s1 + $0x14e0] sm:$0xff]
  %v770 = vld [vmem:[%s1 + $0x14e8] sm:$0xff]
  %v771 = vld [vmem:[%s1 + $0x14f0] sm:$0xff]
  %v772 = vld [vmem:[%s1 + $0x14f8] sm:$0xff]
  %v773 = vld [vmem:[%s1 + $0x1500] sm:$0xff]
  %v774 = vld [vmem:[%s1 + $0x1508] sm:$0xff]
  %v775 = vld [vmem:[%s1 + $0x1510] sm:$0xff]
  %v776 = vld [vmem:[%s1 + $0x1518] sm:$0xff]
  %v777 = vld [vmem:[%s1 + $0x1520] sm:$0xff]
  %v778 = vld [vmem:[%s1 + $0x1528] sm:$0xff]
  %v779 = vld [vmem:[%s1 + $0x1530] sm:$0xff]
  %v780 = vld [vmem:[%s1 + $0x1538] sm:$0xff]
  %v781 = vld [vmem:[%s1 + $0x1540] sm:$0xff]
  %v782 = vld [vmem:[%s1 + $0x1548] sm:$0xff]
  %v783 = vld [vmem:[%s1 + $0x1550] sm:$0xff]
  %v784 = vld [vmem:[%s1 + $0x1558] sm:$0xff]
  %v785 = vld [vmem:[%s1 + $0x1560] sm:$0xff]
  %v786 = vld [vmem:[%s1 + $0x1568] sm:$0xff]
  %v787 = vld [vmem:[%s1 + $0x1570] sm:$0xff]
  %v788 = vld [vmem:[%s1 + $0x1578] sm:$0xff]
  %v789 = vld [vmem:[%s1 + $0x1580] sm:$0xff]
  %v790 = vld [vmem:[%s1 + $0x1588] sm:$0xff]
  %v791 = vld [vmem:[%s1 + $0x1590] sm:$0xff]
  %v792 = vld [vmem:[%s1 + $0x1598] sm:$0xff]
  %v793 = vld [vmem:[%s1 + $0x15a0] sm:$0xff]
  %v794 = vld [vmem:[%s1 + $0x15a8] sm:$0xff]
  %v795 = vld [vmem:[%s1 + $0x15b0] sm:$0xff]
  %v796 = vld [vmem:[%s1 + $0x15b8] sm:$0xff]
  %v797 = vld [vmem:[%s1 + $0x15c0] sm:$0xff]
  %v798 = vld [vmem:[%s1 + $0x15c8] sm:$0xff]
  %v799 = vld [vmem:[%s1 + $0x15d0] sm:$0xff]
  %v800 = vld [vmem:[%s1 + $0x15d8] sm:$0xff]
  %v801 = vld [vmem:[%s1 + $0x15e0] sm:$0xff]
  %v802 = vld [vmem:[%s1 + $0x15e8] sm:$0xff]
  %v803 = vld [vmem:[%s1 + $0x15f0] sm:$0xff]
  %v804 = vld [vmem:[%s1 + $0x15f8] sm:$0xff]
  %v805 = vld [vmem:[%s1 + $0x1600] sm:$0xff]
  %v806 = vld [vmem:[%s1 + $0x1608] sm:$0xff]
  %v807 = vld [vmem:[%s1 + $0x1610] sm:$0xff]
  %v808 = vld [vmem:[%s1 + $0x1618] sm:$0xff]
  %v809 = vld [vmem:[%s1 + $0x1620] sm:$0xff]
  %v810 = vld [vmem:[%s1 + $0x1628] sm:$0xff]
  %v811 = vld [vmem:[%s1 + $0x1630] sm:$0xff]
  %v812 = vld [vmem:[%s1 + $0x1638] sm:$0xff]
  %v813 = vld [vmem:[%s1 + $0x1640] sm:$0xff]
  %v814 = vld [vmem:[%s1 + $0x1648] sm:$0xff]
  %v815 = vld [vmem:[%s1 + $0x1650] sm:$0xff]
  %v816 = vld [vmem:[%s1 + $0x1658] sm:$0xff]
  %v817 = vld [vmem:[%s1 + $0x1660] sm:$0xff]
  %v818 = vld [vmem:[%s1 + $0x1668] sm:$0xff]
  %v819 = vld [vmem:[%s1 + $0x1670] sm:$0xff]
  %v820 = vld [vmem:[%s1 + $0x1678] sm:$0xff]
  %v821 = vld [vmem:[%s1 + $0x1680] sm:$0xff]
  %v822 = vld [vmem:[%s1 + $0x1688] sm:$0xff]
  %v823 = vld [vmem:[%s1 + $0x1690] sm:$0xff]
  %v824 = vld [vmem:[%s1 + $0x1698] sm:$0xff]
  %v825 = vld [vmem:[%s1 + $0x16a0] sm:$0xff]
  %v826 = vld [vmem:[%s1 + $0x16a8] sm:$0xff]
  %v827 = vld [vmem:[%s1 + $0x16b0] sm:$0xff]
  %v828 = vld [vmem:[%s1 + $0x16b8] sm:$0xff]
  %v829 = vld [vmem:[%s1 + $0x16c0] sm:$0xff]
  %v830 = vld [vmem:[%s1 + $0x16c8] sm:$0xff]
  %v831 = vld [vmem:[%s1 + $0x16d0] sm:$0xff]
  %v832 = vld [vmem:[%s1 + $0x16d8] sm:$0xff]
  %v833 = vld [vmem:[%s1 + $0x16e0] sm:$0xff]
  %v834 = vld [vmem:[%s1 + $0x16e8] sm:$0xff]
  %v835 = vld [vmem:[%s1 + $0x16f0] sm:$0xff]
  %v836 = vld [vmem:[%s1 + $0x16f8] sm:$0xff]
  %v837 = vld [vmem:[%s1 + $0x1700] sm:$0xff]
  %v838 = vld [vmem:[%s1 + $0x1708] sm:$0xff]
  %v839 = vld [vmem:[%s1 + $0x1710] sm:$0xff]
  %v840 = vld [vmem:[%s1 + $0x1718] sm:$0xff]
  %v841 = vld [vmem:[%s1 + $0x1720] sm:$0xff]
  %v842 = vld [vmem:[%s1 + $0x1728] sm:$0xff]
  %v843 = vld [vmem:[%s1 + $0x1730] sm:$0xff]
  %v844 = vld [vmem:[%s1 + $0x1738] sm:$0xff]
  %v845 = vld [vmem:[%s1 + $0x1740] sm:$0xff]
  %v846 = vld [vmem:[%s1 + $0x1748] sm:$0xff]
  %v847 = vld [vmem:[%s1 + $0x1750] sm:$0xff]
  %v848 = vld [vmem:[%s1 + $0x1758] sm:$0xff]
  %v849 = vld [vmem:[%s1 + $0x1760] sm:$0xff]
  %v850 = vld [vmem:[%s1 + $0x1768] sm:$0xff]
  %v851 = vld [vmem:[%s1 + $0x1770] sm:$0xff]
  %v852 = vld [vmem:[%s1 + $0x1778] sm:$0xff]
  %v853 = vld [vmem:[%s1 + $0x1780] sm:$0xff]
  %v854 = vld [vmem:[%s1 + $0x1788] sm:$0xff]
  %v855 = vld [vmem:[%s1 + $0x1790] sm:$0xff]
  %v856 = vld [vmem:[%s1 + $0x1798] sm:$0xff]
  %v857 = vld [vmem:[%s1 + $0x17a0] sm:$0xff]
  %v858 = vld [vmem:[%s1 + $0x17a8] sm:$0xff]
  %v859 = vld [vmem:[%s1 + $0x17b0] sm:$0xff]
  %v860 = vld [vmem:[%s1 + $0x17b8] sm:$0xff]
  %v861 = vld [vmem:[%s1 + $0x17c0] sm:$0xff]
  %v862 = vld [vmem:[%s1 + $0x17c8] sm:$0xff]
  %v863 = vld [vmem:[%s1 + $0x17d0] sm:$0xff]
  %v864 = vld [vmem:[%s1 + $0x17d8] sm:$0xff]
  %v865 = vld [vmem:[%s1 + $0x17e0] sm:$0xff]
  %v866 = vld [vmem:[%s1 + $0x17e8] sm:$0xff]
  %v867 = vld [vmem:[%s1 + $0x17f0] sm:$0xff]
  %v868 = vld [vmem:[%s1 + $0x17f8] sm:$0xff]
  %v869 = vld [vmem:[%s1 + $0x1800] sm:$0xff]
  %v870 = vld [vmem:[%s1 + $0x1808] sm:$0xff]
  %v871 = vld [vmem:[%s1 + $0x1810] sm:$0xff]
  %v872 = vld [vmem:[%s1 + $0x1818] sm:$0xff]
  %v873 = vld [vmem:[%s1 + $0x1820] sm:$0xff]
  %v874 = vld [vmem:[%s1 + $0x1828] sm:$0xff]
  %v875 = vld [vmem:[%s1 + $0x1830] sm:$0xff]
  %v876 = vld [vmem:[%s1 + $0x1838] sm:$0xff]
  %v877 = vld [vmem:[%s1 + $0x1840] sm:$0xff]
  %v878 = vld [vmem:[%s1 + $0x1848] sm:$0xff]
  %v879 = vld [vmem:[%s1 + $0x1850] sm:$0xff]
  %v880 = vld [vmem:[%s1 + $0x1858] sm:$0xff]
  %v881 = vld [vmem:[%s1 + $0x1860] sm:$0xff]
  %v882 = vld [vmem:[%s1 + $0x1868] sm:$0xff]
  %v883 = vld [vmem:[%s1 + $0x1870] sm:$0xff]
  %v884 = vld [vmem:[%s1 + $0x1878] sm:$0xff]
  %v885 = vld [vmem:[%s1 + $0x1880] sm:$0xff]
  %v886 = vld [vmem:[%s1 + $0x1888] sm:$0xff]
  %v887 = vld [vmem:[%s1 + $0x1890] sm:$0xff]
  %v888 = vld [vmem:[%s1 + $0x1898] sm:$0xff]
  %v889 = vld [vmem:[%s1 + $0x18a0] sm:$0xff]
  %v890 = vld [vmem:[%s1 + $0x18a8] sm:$0xff]
  %v891 = vld [vmem:[%s1 + $0x18b0] sm:$0xff]
  %v892 = vld [vmem:[%s1 + $0x18b8] sm:$0xff]
  %v893 = vld [vmem:[%s1 + $0x18c0] sm:$0xff]
  %v894 = vld [vmem:[%s1 + $0x18c8] sm:$0xff]
  %v895 = vld [vmem:[%s1 + $0x18d0] sm:$0xff]
  %v896 = vld [vmem:[%s1 + $0x18d8] sm:$0xff]
  %v897 = vld [vmem:[%s1 + $0x18e0] sm:$0xff]
  %v898 = vld [vmem:[%s1 + $0x18e8] sm:$0xff]
  %v899 = vld [vmem:[%s1 + $0x18f0] sm:$0xff]
  %v900 = vld [vmem:[%s1 + $0x18f8] sm:$0xff]
  %v901 = vld [vmem:[%s1 + $0x1900] sm:$0xff]
  %v902 = vld [vmem:[%s1 + $0x1908] sm:$0xff]
  %v903 = vld [vmem:[%s1 + $0x1910] sm:$0xff]
  %v904 = vld [vmem:[%s1 + $0x1918] sm:$0xff]
  %v905 = vld [vmem:[%s1 + $0x1920] sm:$0xff]
  %v906 = vld [vmem:[%s1 + $0x1928] sm:$0xff]
  %v907 = vld [vmem:[%s1 + $0x1930] sm:$0xff]
  %v908 = vld [vmem:[%s1 + $0x1938] sm:$0xff]
  %v909 = vld [vmem:[%s1 + $0x1940] sm:$0xff]
  %v910 = vld [vmem:[%s1 + $0x1948] sm:$0xff]
  %v911 = vld [vmem:[%s1 + $0x1950] sm:$0xff]
  %v912 = vld [vmem:[%s1 + $0x1958] sm:$0xff]
  %v913 = vld [vmem:[%s1 + $0x1960] sm:$0xff]
  %v914 = vld [vmem:[%s1 + $0x1968] sm:$0xff]
  %v915 = vld [vmem:[%s1 + $0x1970] sm:$0xff]
  %v916 = vld [vmem:[%s1 + $0x1978] sm:$0xff]
  %v917 = vld [vmem:[%s1 + $0x1980] sm:$0xff]
  %v918 = vld [vmem:[%s1 + $0x1988] sm:$0xff]
  %v919 = vld [vmem:[%s1 + $0x1990] sm:$0xff]
  %v920 = vld [vmem:[%s1 + $0x1998] sm:$0xff]
  %v921 = vld [vmem:[%s1 + $0x19a0] sm:$0xff]
  %v922 = vld [vmem:[%s1 + $0x19a8] sm:$0xff]
  %v923 = vld [vmem:[%s1 + $0x19b0] sm:$0xff]
  %v924 = vld [vmem:[%s1 + $0x19b8] sm:$0xff]
  %v925 = vld [vmem:[%s1 + $0x19c0] sm:$0xff]
  %v926 = vld [vmem:[%s1 + $0x19c8] sm:$0xff]
  %v927 = vld [vmem:[%s1 + $0x19d0] sm:$0xff]
  %v928 = vld [vmem:[%s1 + $0x19d8] sm:$0xff]
  %v929 = vld [vmem:[%s1 + $0x19e0] sm:$0xff]
  %v930 = vld [vmem:[%s1 + $0x19e8] sm:$0xff]
  %v931 = vld [vmem:[%s1 + $0x19f0] sm:$0xff]
  %v932 = vld [vmem:[%s1 + $0x19f8] sm:$0xff]
  %v933 = vld [vmem:[%s1 + $0x1a00] sm:$0xff]
  %v934 = vld [vmem:[%s1 + $0x1a08] sm:$0xff]
  %v935 = vld [vmem:[%s1 + $0x1a10] sm:$0xff]
  %v936 = vld [vmem:[%s1 + $0x1a18] sm:$0xff]
  %v937 = vld [vmem:[%s1 + $0x1a20] sm:$0xff]
  %v938 = vld [vmem:[%s1 + $0x1a28] sm:$0xff]
  %v939 = vld [vmem:[%s1 + $0x1a30] sm:$0xff]
  %v940 = vld [vmem:[%s1 + $0x1a38] sm:$0xff]
  %v941 = vld [vmem:[%s1 + $0x1a40] sm:$0xff]
  %v942 = vld [vmem:[%s1 + $0x1a48] sm:$0xff]
  %v943 = vld [vmem:[%s1 + $0x1a50] sm:$0xff]
  %v944 = vld [vmem:[%s1 + $0x1a58] sm:$0xff]
  %v945 = vld [vmem:[%s1 + $0x1a60] sm:$0xff]
  %v946 = vld [vmem:[%s1 + $0x1a68] sm:$0xff]
  %v947 = vld [vmem:[%s1 + $0x1a70] sm:$0xff]
  %v948 = vld [vmem:[%s1 + $0x1a78] sm:$0xff]
  %v949 = vld [vmem:[%s1 + $0x1a80] sm:$0xff]
  %v950 = vld [vmem:[%s1 + $0x1a88] sm:$0xff]
  %v951 = vld [vmem:[%s1 + $0x1a90] sm:$0xff]
  %v952 = vld [vmem:[%s1 + $0x1a98] sm:$0xff]
  %v953 = vld [vmem:[%s1 + $0x1aa0] sm:$0xff]
  %v954 = vld [vmem:[%s1 + $0x1aa8] sm:$0xff]
  %v955 = vld [vmem:[%s1 + $0x1ab0] sm:$0xff]
  %v956 = vld [vmem:[%s1 + $0x1ab8] sm:$0xff]
  %v957 = vld [vmem:[%s1 + $0x1ac0] sm:$0xff]
  %v958 = vld [vmem:[%s1 + $0x1ac8] sm:$0xff]
  %v959 = vld [vmem:[%s1 + $0x1ad0] sm:$0xff]
  %v960 = vld [vmem:[%s1 + $0x1ad8] sm:$0xff]
  %v961 = vld [vmem:[%s1 + $0x1ae0] sm:$0xff]
  %v962 = vld [vmem:[%s1 + $0x1ae8] sm:$0xff]
  %v963 = vld [vmem:[%s1 + $0x1af0] sm:$0xff]
  %v964 = vld [vmem:[%s1 + $0x1af8] sm:$0xff]
  %v965 = vld [vmem:[%s1 + $0x1b00] sm:$0xff]
  %v966 = vld [vmem:[%s1 + $0x1b08] sm:$0xff]
  %v967 = vld [vmem:[%s1 + $0x1b10] sm:$0xff]
  %v968 = vld [vmem:[%s1 + $0x1b18] sm:$0xff]
  %v969 = vld [vmem:[%s1 + $0x1b20] sm:$0xff]
  %v970 = vld [vmem:[%s1 + $0x1b28] sm:$0xff]
  %v971 = vld [vmem:[%s1 + $0x1b30] sm:$0xff]
  %v972 = vld [vmem:[%s1 + $0x1b38] sm:$0xff]
  %v973 = vld [vmem:[%s1 + $0x1b40] sm:$0xff]
  %v974 = vld [vmem:[%s1 + $0x1b48] sm:$0xff]
  %v975 = vld [vmem:[%s1 + $0x1b50] sm:$0xff]
  %v976 = vld [vmem:[%s1 + $0x1b58] sm:$0xff]
  %v977 = vld [vmem:[%s1 + $0x1b60] sm:$0xff]
  %v978 = vld [vmem:[%s1 + $0x1b68] sm:$0xff]
  %v979 = vld [vmem:[%s1 + $0x1b70] sm:$0xff]
  %v980 = vld [vmem:[%s1 + $0x1b78] sm:$0xff]
  %v981 = vld [vmem:[%s1 + $0x1b80] sm:$0xff]
  %v982 = vld [vmem:[%s1 + $0x1b88] sm:$0xff]
  %v983 = vld [vmem:[%s1 + $0x1b90] sm:$0xff]
  %v984 = vld [vmem:[%s1 + $0x1b98] sm:$0xff]
  %v985 = vld [vmem:[%s1 + $0x1ba0] sm:$0xff]
  %v986 = vld [vmem:[%s1 + $0x1ba8] sm:$0xff]
  %v987 = vld [vmem:[%s1 + $0x1bb0] sm:$0xff]
  %v988 = vld [vmem:[%s1 + $0x1bb8] sm:$0xff]
  %v989 = vld [vmem:[%s1 + $0x1bc0] sm:$0xff]
  %v990 = vld [vmem:[%s1 + $0x1bc8] sm:$0xff]
  %v991 = vld [vmem:[%s1 + $0x1bd0] sm:$0xff]
  %v992 = vld [vmem:[%s1 + $0x1bd8] sm:$0xff]
  %v993 = vld [vmem:[%s1 + $0x1be0] sm:$0xff]
  %v994 = vld [vmem:[%s1 + $0x1be8] sm:$0xff]
  %v995 = vld [vmem:[%s1 + $0x1bf0] sm:$0xff]
  %v996 = vld [vmem:[%s1 + $0x1bf8] sm:$0xff]
  %v997 = vld [vmem:[%s1 + $0x1c00] sm:$0xff]
  %v998 = vld [vmem:[%s1 + $0x1c08] sm:$0xff]
  %v999 = vld [vmem:[%s1 + $0x1c10] sm:$0xff]
  %v1000 = vld [vmem:[%s1 + $0x1c18] sm:$0xff]
  %v1001 = vld [vmem:[%s1 + $0x1c20] sm:$0xff]
  %v1002 = vld [vmem:[%s1 + $0x1c28] sm:$0xff]
  %v1003 = vld [vmem:[%s1 + $0x1c30] sm:$0xff]
  %v1004 = vld [vmem:[%s1 + $0x1c38] sm:$0xff]
  %v1005 = vld [vmem:[%s1 + $0x1c40] sm:$0xff]
  %v1006 = vld [vmem:[%s1 + $0x1c48] sm:$0xff]
  %v1007 = vld [vmem:[%s1 + $0x1c50] sm:$0xff]
  %v1008 = vld [vmem:[%s1 + $0x1c58] sm:$0xff]
  %v1009 = vld [vmem:[%s1 + $0x1c60] sm:$0xff]
  %v1010 = vld [vmem:[%s1 + $0x1c68] sm:$0xff]
  %v1011 = vld [vmem:[%s1 + $0x1c70] sm:$0xff]
  %v1012 = vld [vmem:[%s1 + $0x1c78] sm:$0xff]
  %v1013 = vld [vmem:[%s1 + $0x1c80] sm:$0xff]
  %v1014 = vld [vmem:[%s1 + $0x1c88] sm:$0xff]
  %v1015 = vld [vmem:[%s1 + $0x1c90] sm:$0xff]
  %v1016 = vld [vmem:[%s1 + $0x1c98] sm:$0xff]
  %v1017 = vld [vmem:[%s1 + $0x1ca0] sm:$0xff]
  %v1018 = vld [vmem:[%s1 + $0x1ca8] sm:$0xff]
  %v1019 = vld [vmem:[%s1 + $0x1cb0] sm:$0xff]
  %v1020 = vld [vmem:[%s1 + $0x1cb8] sm:$0xff]
  %v1021 = vld [vmem:[%s1 + $0x1cc0] sm:$0xff]
  %v1022 = vld [vmem:[%s1 + $0x1cc8] sm:$0xff]
  %v1023 = vld [vmem:[%s1 + $0x1cd0] sm:$0xff]
  %v1024 = vld [vmem:[%s1 + $0x1cd8] sm:$0xff]
  %v1025 = vld [vmem:[%s1 + $0x1ce0] sm:$0xff]
  %v1026 = vld [vmem:[%s1 + $0x1ce8] sm:$0xff]
  %v1027 = vld [vmem:[%s1 + $0x1cf0] sm:$0xff]
  %v1028 = vld [vmem:[%s1 + $0x1cf8] sm:$0xff]
  %v1029 = vld [vmem:[%s1 + $0x1d00] sm:$0xff]
  %v1030 = vld [vmem:[%s1 + $0x1d08] sm:$0xff]
  %v1031 = vld [vmem:[%s1 + $0x1d10] sm:$0xff]
  %v1032 = vld [vmem:[%s1 + $0x1d18] sm:$0xff]
  %v1033 = vld [vmem:[%s1 + $0x1d20] sm:$0xff]
  %v1034 = vld [vmem:[%s1 + $0x1d28] sm:$0xff]
  %v1035 = vld [vmem:[%s1 + $0x1d30] sm:$0xff]
  %v1036 = vld [vmem:[%s1 + $0x1d38] sm:$0xff]
  %v1037 = vld [vmem:[%s1 + $0x1d40] sm:$0xff]
  %v1038 = vld [vmem:[%s1 + $0x1d48] sm:$0xff]
  %v1039 = vld [vmem:[%s1 + $0x1d50] sm:$0xff]
  %v1040 = vld [vmem:[%s1 + $0x1d58] sm:$0xff]
  %v1041 = vld [vmem:[%s1 + $0x1d60] sm:$0xff]
  %v1042 = vld [vmem:[%s1 + $0x1d68] sm:$0xff]
  %v1043 = vld [vmem:[%s1 + $0x1d70] sm:$0xff]
  %v1044 = vld [vmem:[%s1 + $0x1d78] sm:$0xff]
  %v1045 = vld [vmem:[%s1 + $0x1d80] sm:$0xff]
  %v1046 = vld [vmem:[%s1 + $0x1d88] sm:$0xff]
  %v1047 = vld [vmem:[%s1 + $0x1d90] sm:$0xff]
  %v1048 = vld [vmem:[%s1 + $0x1d98] sm:$0xff]
  %v1049 = vld [vmem:[%s1 + $0x1da0] sm:$0xff]
  %v1050 = vld [vmem:[%s1 + $0x1da8] sm:$0xff]
  %v1051 = vld [vmem:[%s1 + $0x1db0] sm:$0xff]
  %v1052 = vld [vmem:[%s1 + $0x1db8] sm:$0xff]
  %v1053 = vld [vmem:[%s1 + $0x1dc0] sm:$0xff]
  %v1054 = vld [vmem:[%s1 + $0x1dc8] sm:$0xff]
  %v1055 = vld [vmem:[%s1 + $0x1dd0] sm:$0xff]
  %v1056 = vld [vmem:[%s1 + $0x1dd8] sm:$0xff]
  %v1057 = vld [vmem:[%s1 + $0x1de0] sm:$0xff]
  %v1058 = vld [vmem:[%s1 + $0x1de8] sm:$0xff]
  %v1059 = vld [vmem:[%s1 + $0x1df0] sm:$0xff]
  %v1060 = vld [vmem:[%s1 + $0x1df8] sm:$0xff]
  %v1061 = vld [vmem:[%s1 + $0x1e00] sm:$0xff]
  %v1062 = vld [vmem:[%s1 + $0x1e08] sm:$0xff]
  %v1063 = vld [vmem:[%s1 + $0x1e10] sm:$0xff]
  %v1064 = vld [vmem:[%s1 + $0x1e18] sm:$0xff]
  %v1065 = vld [vmem:[%s1 + $0x1e20] sm:$0xff]
  %v1066 = vld [vmem:[%s1 + $0x1e28] sm:$0xff]
  %v1067 = vld [vmem:[%s1 + $0x1e30] sm:$0xff]
  %v1068 = vld [vmem:[%s1 + $0x1e38] sm:$0xff]
  %v1069 = vld [vmem:[%s1 + $0x1e40] sm:$0xff]
  %v1070 = vld [vmem:[%s1 + $0x1e48] sm:$0xff]
  %v1071 = vld [vmem:[%s1 + $0x1e50] sm:$0xff]
  %v1072 = vld [vmem:[%s1 + $0x1e58] sm:$0xff]
  %v1073 = vld [vmem:[%s1 + $0x1e60] sm:$0xff]
  %v1074 = vld [vmem:[%s1 + $0x1e68] sm:$0xff]
  %v1075 = vld [vmem:[%s1 + $0x1e70] sm:$0xff]
  %v1076 = vld [vmem:[%s1 + $0x1e78] sm:$0xff]
  %v1077 = vld [vmem:[%s1 + $0x1e80] sm:$0xff]
  %v1078 = vld [vmem:[%s1 + $0x1e88] sm:$0xff]
  %v1079 = vld [vmem:[%s1 + $0x1e90] sm:$0xff]
  %v1080 = vld [vmem:[%s1 + $0x1e98] sm:$0xff]
  %v1081 = vld [vmem:[%s1 + $0x1ea0] sm:$0xff]
  %v1082 = vld [vmem:[%s1 + $0x1ea8] sm:$0xff]
  %v1083 = vld [vmem:[%s1 + $0x1eb0] sm:$0xff]
  %v1084 = vld [vmem:[%s1 + $0x1eb8] sm:$0xff]
  %v1085 = vld [vmem:[%s1 + $0x1ec0] sm:$0xff]
  %v1086 = vld [vmem:[%s1 + $0x1ec8] sm:$0xff]
  %v1087 = vld [vmem:[%s1 + $0x1ed0] sm:$0xff]
  %v1088 = vld [vmem:[%s1 + $0x1ed8] sm:$0xff]
  %v1089 = vld [vmem:[%s1 + $0x1ee0] sm:$0xff]
  %v1090 = vld [vmem:[%s1 + $0x1ee8] sm:$0xff]
  %v1091 = vld [vmem:[%s1 + $0x1ef0] sm:$0xff]
  %v1092 = vld [vmem:[%s1 + $0x1ef8] sm:$0xff]
  %v1093 = vld [vmem:[%s1 + $0x1f00] sm:$0xff]
  %v1094 = vld [vmem:[%s1 + $0x1f08] sm:$0xff]
  %v1095 = vld [vmem:[%s1 + $0x1f10] sm:$0xff]
  %v1096 = vld [vmem:[%s1 + $0x1f18] sm:$0xff]
  %v1097 = vld [vmem:[%s1 + $0x1f20] sm:$0xff]
  %v1098 = vld [vmem:[%s1 + $0x1f28] sm:$0xff]
  %v1099 = vld [vmem:[%s1 + $0x1f30] sm:$0xff]
  %v1100 = vld [vmem:[%s1 + $0x1f38] sm:$0xff]
  %v1101 = vld [vmem:[%s1 + $0x1f40] sm:$0xff]
  %v1102 = vld [vmem:[%s1 + $0x1f48] sm:$0xff]
  %v1103 = vld [vmem:[%s1 + $0x1f50] sm:$0xff]
  %v1104 = vld [vmem:[%s1 + $0x1f58] sm:$0xff]
  %v1105 = vld [vmem:[%s1 + $0x1f60] sm:$0xff]
  %v1106 = vld [vmem:[%s1 + $0x1f68] sm:$0xff]
  %v1107 = vld [vmem:[%s1 + $0x1f70] sm:$0xff]
  %v1108 = vld [vmem:[%s1 + $0x1f78] sm:$0xff]
  %v1109 = vld [vmem:[%s1 + $0x1f80] sm:$0xff]
  %v1110 = vld [vmem:[%s1 + $0x1f88] sm:$0xff]
  %v1111 = vld [vmem:[%s1 + $0x1f90] sm:$0xff]
  %v1112 = vld [vmem:[%s1 + $0x1f98] sm:$0xff]
  %v1113 = vld [vmem:[%s1 + $0x1fa0] sm:$0xff]
  %v1114 = vld [vmem:[%s1 + $0x1fa8] sm:$0xff]
  %v1115 = vld [vmem:[%s1 + $0x1fb0] sm:$0xff]
  %v1116 = vld [vmem:[%s1 + $0x1fb8] sm:$0xff]
  %v1117 = vld [vmem:[%s1 + $0x1fc0] sm:$0xff]
  %v1118 = vld [vmem:[%s1 + $0x1fc8] sm:$0xff]
  %v1119 = vld [vmem:[%s1 + $0x1fd0] sm:$0xff]
  %v1120 = vld [vmem:[%s1 + $0x1fd8] sm:$0xff]
  %v1121 = vld [vmem:[%s1 + $0x1fe0] sm:$0xff]
  %v1122 = vld [vmem:[%s1 + $0x1fe8] sm:$0xff]
  %v1123 = vld [vmem:[%s1 + $0x1ff0] sm:$0xff]
  %v1124 = vld [vmem:[%s1 + $0x1ff8] sm:$0xff]
  %v1125 = vld [vmem:[%s1 + $0x2000] sm:$0xff]
  %v1126 = vld [vmem:[%s1 + $0x2008] sm:$0xff]
  %v1127 = vld [vmem:[%s1 + $0x2010] sm:$0xff]
  %v1128 = vld [vmem:[%s1 + $0x2018] sm:$0xff]
  %v1129 = vld [vmem:[%s1 + $0x2020] sm:$0xff]
  %v1130 = vld [vmem:[%s1 + $0x2028] sm:$0xff]
  %v1131 = vld [vmem:[%s1 + $0x2030] sm:$0xff]
  %v1132 = vld [vmem:[%s1 + $0x2038] sm:$0xff]
  %v1133 = vld [vmem:[%s1 + $0x2040] sm:$0xff]
  %v1134 = vld [vmem:[%s1 + $0x2048] sm:$0xff]
  %v1135 = vld [vmem:[%s1 + $0x2050] sm:$0xff]
  %v1136 = vld [vmem:[%s1 + $0x2058] sm:$0xff]
  %v1137 = vld [vmem:[%s1 + $0x2060] sm:$0xff]
  %v1138 = vld [vmem:[%s1 + $0x2068] sm:$0xff]
  %v1139 = vld [vmem:[%s1 + $0x2070] sm:$0xff]
  %v1140 = vld [vmem:[%s1 + $0x2078] sm:$0xff]
  %v1141 = vld [vmem:[%s1 + $0x2080] sm:$0xff]
  %v1142 = vld [vmem:[%s1 + $0x2088] sm:$0xff]
  %v1143 = vld [vmem:[%s1 + $0x2090] sm:$0xff]
  %v1144 = vld [vmem:[%s1 + $0x2098] sm:$0xff]
  %v1145 = vld [vmem:[%s1 + $0x20a0] sm:$0xff]
  %v1146 = vld [vmem:[%s1 + $0x20a8] sm:$0xff]
  %v1147 = vld [vmem:[%s1 + $0x20b0] sm:$0xff]
  %v1148 = vld [vmem:[%s1 + $0x20b8] sm:$0xff]
  %v1149 = vld [vmem:[%s1 + $0x20c0] sm:$0xff]
  %v1150 = vld [vmem:[%s1 + $0x20c8] sm:$0xff]
  %v1151 = vld [vmem:[%s1 + $0x20d0] sm:$0xff]
  %v1152 = vld [vmem:[%s1 + $0x20d8] sm:$0xff]
  %v1153 = vld [vmem:[%s1 + $0x20e0] sm:$0xff]
  %v1154 = vld [vmem:[%s1 + $0x20e8] sm:$0xff]
  %v1155 = vld [vmem:[%s1 + $0x20f0] sm:$0xff]
  %v1156 = vld [vmem:[%s1 + $0x20f8] sm:$0xff]
  %v1157 = vld [vmem:[%s1 + $0x2100] sm:$0xff]
  %v1158 = vld [vmem:[%s1 + $0x2108] sm:$0xff]
  %v1159 = vld [vmem:[%s1 + $0x2110] sm:$0xff]
  %v1160 = vld [vmem:[%s1 + $0x2118] sm:$0xff]
  %v1161 = vld [vmem:[%s1 + $0x2120] sm:$0xff]
  %v1162 = vld [vmem:[%s1 + $0x2128] sm:$0xff]
  %v1163 = vld [vmem:[%s1 + $0x2130] sm:$0xff]
  %v1164 = vld [vmem:[%s1 + $0x2138] sm:$0xff]
  %v1165 = vld [vmem:[%s1 + $0x2140] sm:$0xff]
  %v1166 = vld [vmem:[%s1 + $0x2148] sm:$0xff]
  %v1167 = vld [vmem:[%s1 + $0x2150] sm:$0xff]
  %v1168 = vld [vmem:[%s1 + $0x2158] sm:$0xff]
  %v1169 = vld [vmem:[%s1 + $0x2160] sm:$0xff]
  %v1170 = vld [vmem:[%s1 + $0x2168] sm:$0xff]
  %v1171 = vld [vmem:[%s1 + $0x2170] sm:$0xff]
  %v1172 = vld [vmem:[%s1 + $0x2178] sm:$0xff]
  %v1173 = vld [vmem:[%s1 + $0x2180] sm:$0xff]
  %v1174 = vld [vmem:[%s1 + $0x2188] sm:$0xff]
  %v1175 = vld [vmem:[%s1 + $0x2190] sm:$0xff]
  %v1176 = vld [vmem:[%s1 + $0x2198] sm:$0xff]
  %v1177 = vld [vmem:[%s1 + $0x21a0] sm:$0xff]
  %v1178 = vld [vmem:[%s1 + $0x21a8] sm:$0xff]
  %v1179 = vld [vmem:[%s1 + $0x21b0] sm:$0xff]
  %v1180 = vld [vmem:[%s1 + $0x21b8] sm:$0xff]
  %v1181 = vld [vmem:[%s1 + $0x21c0] sm:$0xff]
  %v1182 = vld [vmem:[%s1 + $0x21c8] sm:$0xff]
  %v1183 = vld [vmem:[%s1 + $0x21d0] sm:$0xff]
  %v1184 = vld [vmem:[%s1 + $0x21d8] sm:$0xff]
  %v1185 = vld [vmem:[%s1 + $0x21e0] sm:$0xff]
  %v1186 = vld [vmem:[%s1 + $0x21e8] sm:$0xff]
  %v1187 = vld [vmem:[%s1 + $0x21f0] sm:$0xff]
  %v1188 = vld [vmem:[%s1 + $0x21f8] sm:$0xff]
  %v1189 = vld [vmem:[%s1 + $0x2200] sm:$0xff]
  %v1190 = vld [vmem:[%s1 + $0x2208] sm:$0xff]
  %v1191 = vld [vmem:[%s1 + $0x2210] sm:$0xff]
  %v1192 = vld [vmem:[%s1 + $0x2218] sm:$0xff]
  %v1193 = vld [vmem:[%s1 + $0x2220] sm:$0xff]
  %v1194 = vld [vmem:[%s1 + $0x2228] sm:$0xff]
  %v1195 = vld [vmem:[%s1 + $0x2230] sm:$0xff]
  %v1196 = vld [vmem:[%s1 + $0x2238] sm:$0xff]
  %v1197 = vld [vmem:[%s1 + $0x2240] sm:$0xff]
  %v1198 = vld [vmem:[%s1 + $0x2248] sm:$0xff]
  %v1199 = vld [vmem:[%s1 + $0x2250] sm:$0xff]
  %v1200 = vld [vmem:[%s1 + $0x2258] sm:$0xff]
  %v1201 = vld [vmem:[%s1 + $0x2260] sm:$0xff]
  %v1202 = vld [vmem:[%s1 + $0x2268] sm:$0xff]
  %v1203 = vld [vmem:[%s1 + $0x2270] sm:$0xff]
  %v1204 = vld [vmem:[%s1 + $0x2278] sm:$0xff]
  %v1205 = vld [vmem:[%s1 + $0x2280] sm:$0xff]
  %v1206 = vld [vmem:[%s1 + $0x2288] sm:$0xff]
  %v1207 = vld [vmem:[%s1 + $0x2290] sm:$0xff]
  %v1208 = vld [vmem:[%s1 + $0x2298] sm:$0xff]
  %v1209 = vld [vmem:[%s1 + $0x22a0] sm:$0xff]
  %v1210 = vld [vmem:[%s1 + $0x22a8] sm:$0xff]
  %v1211 = vld [vmem:[%s1 + $0x22b0] sm:$0xff]
  %v1212 = vld [vmem:[%s1 + $0x22b8] sm:$0xff]
  %v1213 = vld [vmem:[%s1 + $0x22c0] sm:$0xff]
  %v1214 = vld [vmem:[%s1 + $0x22c8] sm:$0xff]
  %v1215 = vld [vmem:[%s1 + $0x22d0] sm:$0xff]
  %v1216 = vld [vmem:[%s1 + $0x22d8] sm:$0xff]
  %v1217 = vld [vmem:[%s1 + $0x22e0] sm:$0xff]
  %v1218 = vld [vmem:[%s1 + $0x22e8] sm:$0xff]
  %v1219 = vld [vmem:[%s1 + $0x22f0] sm:$0xff]
  %v1220 = vld [vmem:[%s1 + $0x22f8] sm:$0xff]
  %v1221 = vld [vmem:[%s1 + $0x2300] sm:$0xff]
  %v1222 = vld [vmem:[%s1 + $0x2308] sm:$0xff]
  %v1223 = vld [vmem:[%s1 + $0x2310] sm:$0xff]
  %v1224 = vld [vmem:[%s1 + $0x2318] sm:$0xff]
  %v1225 = vld [vmem:[%s1 + $0x2320] sm:$0xff]
  %v1226 = vld [vmem:[%s1 + $0x2328] sm:$0xff]
  %v1227 = vld [vmem:[%s1 + $0x2330] sm:$0xff]
  %v1228 = vld [vmem:[%s1 + $0x2338] sm:$0xff]
  %v1229 = vld [vmem:[%s1 + $0x2340] sm:$0xff]
  %v1230 = vld [vmem:[%s1 + $0x2348] sm:$0xff]
  %v1231 = vld [vmem:[%s1 + $0x2350] sm:$0xff]
  %v1232 = vld [vmem:[%s1 + $0x2358] sm:$0xff]
  %v1233 = vld [vmem:[%s1 + $0x2360] sm:$0xff]
  %v1234 = vld [vmem:[%s1 + $0x2368] sm:$0xff]
  %v1235 = vld [vmem:[%s1 + $0x2370] sm:$0xff]
  %v1236 = vld [vmem:[%s1 + $0x2378] sm:$0xff]
  %v1237 = vld [vmem:[%s1 + $0x2380] sm:$0xff]
  %v1238 = vld [vmem:[%s1 + $0x2388] sm:$0xff]
  %v1239 = vld [vmem:[%s1 + $0x2390] sm:$0xff]
  %v1240 = vld [vmem:[%s1 + $0x2398] sm:$0xff]
  %v1241 = vld [vmem:[%s1 + $0x23a0] sm:$0xff]
  %v1242 = vld [vmem:[%s1 + $0x23a8] sm:$0xff]
  %v1243 = vld [vmem:[%s1 + $0x23b0] sm:$0xff]
  %v1244 = vld [vmem:[%s1 + $0x23b8] sm:$0xff]
  %v1245 = vld [vmem:[%s1 + $0x23c0] sm:$0xff]
  %v1246 = vld [vmem:[%s1 + $0x23c8] sm:$0xff]
  %v1247 = vld [vmem:[%s1 + $0x23d0] sm:$0xff]
  %v1248 = vld [vmem:[%s1 + $0x23d8] sm:$0xff]
  %v1249 = vld [vmem:[%s1 + $0x23e0] sm:$0xff]
  %v1250 = vld [vmem:[%s1 + $0x23e8] sm:$0xff]
  %v1251 = vld [vmem:[%s1 + $0x23f0] sm:$0xff]
  %v1252 = vld [vmem:[%s1 + $0x23f8] sm:$0xff]
  %v1253 = vld [vmem:[%s1 + $0x2400] sm:$0xff]
  %v1254 = vld [vmem:[%s1 + $0x2408] sm:$0xff]
  %v1255 = vld [vmem:[%s1 + $0x2410] sm:$0xff]
  %v1256 = vld [vmem:[%s1 + $0x2418] sm:$0xff]
  %v1257 = vld [vmem:[%s1 + $0x2420] sm:$0xff]
  %v1258 = vld [vmem:[%s1 + $0x2428] sm:$0xff]
  %v1259 = vld [vmem:[%s1 + $0x2430] sm:$0xff]
  %v1260 = vld [vmem:[%s1 + $0x2438] sm:$0xff]
  %v1261 = vld [vmem:[%s1 + $0x2440] sm:$0xff]
  %v1262 = vld [vmem:[%s1 + $0x2448] sm:$0xff]
  %v1263 = vld [vmem:[%s1 + $0x2450] sm:$0xff]
  %v1264 = vld [vmem:[%s1 + $0x2458] sm:$0xff]
  %v1265 = vld [vmem:[%s1 + $0x2460] sm:$0xff]
  %v1266 = vld [vmem:[%s1 + $0x2468] sm:$0xff]
  %v1267 = vld [vmem:[%s1 + $0x2470] sm:$0xff]
  %v1268 = vld [vmem:[%s1 + $0x2478] sm:$0xff]
  %v1269 = vld [vmem:[%s1 + $0x2480] sm:$0xff]
  %v1270 = vld [vmem:[%s1 + $0x2488] sm:$0xff]
  %v1271 = vld [vmem:[%s1 + $0x2490] sm:$0xff]
  %v1272 = vld [vmem:[%s1 + $0x2498] sm:$0xff]
  %v1273 = vld [vmem:[%s1 + $0x24a0] sm:$0xff]
  %v1274 = vld [vmem:[%s1 + $0x24a8] sm:$0xff]
  %v1275 = vld [vmem:[%s1 + $0x24b0] sm:$0xff]
  %v1276 = vld [vmem:[%s1 + $0x24b8] sm:$0xff]
  %v1277 = vld [vmem:[%s1 + $0x24c0] sm:$0xff]
  %v1278 = vld [vmem:[%s1 + $0x24c8] sm:$0xff]
  %v1279 = vld [vmem:[%s1 + $0x24d0] sm:$0xff]
  %v1280 = vld [vmem:[%s1 + $0x24d8] sm:$0xff]
  %v1281 = vld [vmem:[%s1 + $0x24e0] sm:$0xff]
  %v1282 = vld [vmem:[%s1 + $0x24e8] sm:$0xff]
  %v1283 = vld [vmem:[%s1 + $0x24f0] sm:$0xff]
  %v1284 = vld [vmem:[%s1 + $0x24f8] sm:$0xff]
  %v1285 = vld [vmem:[%s1 + $0x2500] sm:$0xff]
  %v1286 = vld [vmem:[%s1 + $0x2508] sm:$0xff]
  %v1287 = vld [vmem:[%s1 + $0x2510] sm:$0xff]
  %v1288 = vld [vmem:[%s1 + $0x2518] sm:$0xff]
  %v1289 = vld [vmem:[%s1 + $0x2520] sm:$0xff]
  %v1290 = vld [vmem:[%s1 + $0x2528] sm:$0xff]
  %v1291 = vld [vmem:[%s1 + $0x2530] sm:$0xff]
  %v1292 = vld [vmem:[%s1 + $0x2538] sm:$0xff]
  %v1293 = vld [vmem:[%s1 + $0x2540] sm:$0xff]
  %v1294 = vld [vmem:[%s1 + $0x2548] sm:$0xff]
  %v1295 = vld [vmem:[%s1 + $0x2550] sm:$0xff]
  %v1296 = vld [vmem:[%s1 + $0x2558] sm:$0xff]
  %v1297 = vld [vmem:[%s1 + $0x2560] sm:$0xff]
  %v1298 = vld [vmem:[%s1 + $0x2568] sm:$0xff]
  %v1299 = vld [vmem:[%s1 + $0x2570] sm:$0xff]
  %v1300 = vld [vmem:[%s1 + $0x2578] sm:$0xff]
  %v1301 = vld [vmem:[%s1 + $0x2580] sm:$0xff]
  %v1302 = vld [vmem:[%s1 + $0x2588] sm:$0xff]
  %v1303 = vld [vmem:[%s1 + $0x2590] sm:$0xff]
  %v1304 = vld [vmem:[%s1 + $0x2598] sm:$0xff]
  %v1305 = vld [vmem:[%s1 + $0x25a0] sm:$0xff]
  %v1306 = vld [vmem:[%s1 + $0x25a8] sm:$0xff]
  %v1307 = vld [vmem:[%s1 + $0x25b0] sm:$0xff]
  %v1308 = vld [vmem:[%s1 + $0x25b8] sm:$0xff]
  %v1309 = vld [vmem:[%s1 + $0x25c0] sm:$0xff]
  %v1310 = vld [vmem:[%s1 + $0x25c8] sm:$0xff]
  %v1311 = vld [vmem:[%s1 + $0x25d0] sm:$0xff]
  %v1312 = vld [vmem:[%s1 + $0x25d8] sm:$0xff]
  %v1313 = vld [vmem:[%s1 + $0x25e0] sm:$0xff]
  %v1314 = vld [vmem:[%s1 + $0x25e8] sm:$0xff]
  %v1315 = vld [vmem:[%s1 + $0x25f0] sm:$0xff]
  %v1316 = vld [vmem:[%s1 + $0x25f8] sm:$0xff]
  %v1317 = vld [vmem:[%s1 + $0x2600] sm:$0xff]
  %v1318 = vld [vmem:[%s1 + $0x2608] sm:$0xff]
  %v1319 = vld [vmem:[%s1 + $0x2610] sm:$0xff]
  %v1320 = vld [vmem:[%s1 + $0x2618] sm:$0xff]
  %v1321 = vld [vmem:[%s1 + $0x2620] sm:$0xff]
  %v1322 = vld [vmem:[%s1 + $0x2628] sm:$0xff]
  %v1323 = vld [vmem:[%s1 + $0x2630] sm:$0xff]
  %v1324 = vld [vmem:[%s1 + $0x2638] sm:$0xff]
  %v1325 = vld [vmem:[%s1 + $0x2640] sm:$0xff]
  %v1326 = vld [vmem:[%s1 + $0x2648] sm:$0xff]
  %v1327 = vld [vmem:[%s1 + $0x2650] sm:$0xff]
  %v1328 = vld [vmem:[%s1 + $0x2658] sm:$0xff]
  %v1329 = vld [vmem:[%s1 + $0x2660] sm:$0xff]
  %v1330 = vld [vmem:[%s1 + $0x2668] sm:$0xff]
  %v1331 = vld [vmem:[%s1 + $0x2670] sm:$0xff]
  %v1332 = vld [vmem:[%s1 + $0x2678] sm:$0xff]
  %v1333 = vld [vmem:[%s1 + $0x2680] sm:$0xff]
  %v1334 = vld [vmem:[%s1 + $0x2688] sm:$0xff]
  %v1335 = vld [vmem:[%s1 + $0x2690] sm:$0xff]
  %v1336 = vld [vmem:[%s1 + $0x2698] sm:$0xff]
  %v1337 = vld [vmem:[%s1 + $0x26a0] sm:$0xff]
  %v1338 = vld [vmem:[%s1 + $0x26a8] sm:$0xff]
  %v1339 = vld [vmem:[%s1 + $0x26b0] sm:$0xff]
  %v1340 = vld [vmem:[%s1 + $0x26b8] sm:$0xff]
  %v1341 = vld [vmem:[%s1 + $0x26c0] sm:$0xff]
  %v1342 = vld [vmem:[%s1 + $0x26c8] sm:$0xff]
  %v1343 = vld [vmem:[%s1 + $0x26d0] sm:$0xff]
  %v1344 = vld [vmem:[%s1 + $0x26d8] sm:$0xff]
  %v1345 = vld [vmem:[%s1 + $0x26e0] sm:$0xff]
  %v1346 = vld [vmem:[%s1 + $0x26e8] sm:$0xff]
  %v1347 = vld [vmem:[%s1 + $0x26f0] sm:$0xff]
  %v1348 = vld [vmem:[%s1 + $0x26f8] sm:$0xff]
  %v1349 = vld [vmem:[%s1 + $0x2700] sm:$0xff]
  %v1350 = vld [vmem:[%s1 + $0x2708] sm:$0xff]
  %v1351 = vld [vmem:[%s1 + $0x2710] sm:$0xff]
  %v1352 = vld [vmem:[%s1 + $0x2718] sm:$0xff]
  %v1353 = vld [vmem:[%s1 + $0x2720] sm:$0xff]
  %v1354 = vld [vmem:[%s1 + $0x2728] sm:$0xff]
  %v1355 = vld [vmem:[%s1 + $0x2730] sm:$0xff]
  %v1356 = vld [vmem:[%s1 + $0x2738] sm:$0xff]
  %v1357 = vld [vmem:[%s1 + $0x2740] sm:$0xff]
  %v1358 = vld [vmem:[%s1 + $0x2748] sm:$0xff]
  %v1359 = vld [vmem:[%s1 + $0x2750] sm:$0xff]
  %v1360 = vld [vmem:[%s1 + $0x2758] sm:$0xff]
  %v1361 = vld [vmem:[%s1 + $0x2760] sm:$0xff]
  %v1362 = vld [vmem:[%s1 + $0x2768] sm:$0xff]
  %v1363 = vld [vmem:[%s1 + $0x2770] sm:$0xff]
  %v1364 = vld [vmem:[%s1 + $0x2778] sm:$0xff]
  %v1365 = vld [vmem:[%s1 + $0x2780] sm:$0xff]
  %v1366 = vld [vmem:[%s1 + $0x2788] sm:$0xff]
  %v1367 = vld [vmem:[%s1 + $0x2790] sm:$0xff]
  %v1368 = vld [vmem:[%s1 + $0x2798] sm:$0xff]
  %v1369 = vld [vmem:[%s1 + $0x27a0] sm:$0xff]
  %v1370 = vld [vmem:[%s1 + $0x27a8] sm:$0xff]
  %v1371 = vld [vmem:[%s1 + $0x27b0] sm:$0xff]
  %v1372 = vld [vmem:[%s1 + $0x27b8] sm:$0xff]
  %v1373 = vld [vmem:[%s1 + $0x27c0] sm:$0xff]
  %v1374 = vld [vmem:[%s1 + $0x27c8] sm:$0xff]
  %v1375 = vld [vmem:[%s1 + $0x27d0] sm:$0xff]
  %v1376 = vld [vmem:[%s1 + $0x27d8] sm:$0xff]
  %v1377 = vld [vmem:[%s1 + $0x27e0] sm:$0xff]
  %v1378 = vld [vmem:[%s1 + $0x27e8] sm:$0xff]
  %v1379 = vld [vmem:[%s1 + $0x27f0] sm:$0xff]
  %v1380 = vld [vmem:[%s1 + $0x27f8] sm:$0xff]
  %v1381 = vld [vmem:[%s1 + $0x2800] sm:$0xff]
  %v1382 = vld [vmem:[%s1 + $0x2808] sm:$0xff]
  %v1383 = vld [vmem:[%s1 + $0x2810] sm:$0xff]
  %v1384 = vld [vmem:[%s1 + $0x2818] sm:$0xff]
  %v1385 = vld [vmem:[%s1 + $0x2820] sm:$0xff]
  %v1386 = vld [vmem:[%s1 + $0x2828] sm:$0xff]
  %v1387 = vld [vmem:[%s1 + $0x2830] sm:$0xff]
  %v1388 = vld [vmem:[%s1 + $0x2838] sm:$0xff]
  %v1389 = vld [vmem:[%s2] sm:$0x1]
  %v1391 = vlaneseq
  %v1392 = vshrl.u32 %v1391, 7
  %v1393 = vsub.s32 0, %v1392
  %v1394 = vrot.slane %v1389, %v1393
  %vm1396 = vcmask 523264
  %v1398 = vsel %vm1396, %v100, 0
  %1400 = vmatprep.subr.mxu0 0.0
  %1401 = vmatpush1.msra.mxu0 %v116
  %1402 = vmatprep.subr.mxu0 0.0
  %1403 = vmatpush1.msra.mxu0 %v115
  %1404 = vmatprep.subr.mxu0 0.0
  %1405 = vmatpush1.msra.mxu0 %v114
  %1406 = vmatprep.subr.mxu0 0.0
  %1407 = vmatpush1.msra.mxu0 %v113
  %1408 = vmatprep.subr.mxu0 0.0
  %1409 = vmatpush1.msra.mxu0 %v112
  %1410 = vmatprep.subr.mxu0 0.0
  %1411 = vmatpush1.msra.mxu0 %v111
  %1412 = vmatprep.subr.mxu0 0.0
  %1413 = vmatpush1.msra.mxu0 %v110
  %1414 = vmatprep.subr.mxu0 0.0
  %1415 = vmatpush1.msra.mxu0 %v109
  %1416 = vmatprep.subr.mxu0 0.0
  %1417 = vmatpush1.msra.mxu0 %v108
  %1418 = vmatprep.subr.mxu0 0.0
  %1419 = vmatpush1.msra.mxu0 %v107
  %1420 = vmatprep.subr.mxu0 0.0
  %1421 = vmatpush1.msra.mxu0 %v106
  %1422 = vmatprep.subr.mxu0 0.0
  %1423 = vmatpush1.msra.mxu0 %v105
  %1424 = vmatprep.subr.mxu0 0.0
  %1425 = vmatpush1.msra.mxu0 %v104
  %1426 = vmatprep.subr.mxu0 0.0
  %1427 = vmatpush1.msra.mxu0 %v103
  %1428 = vmatprep.subr.mxu0 0.0
  %1429 = vmatpush1.msra.mxu0 %v102
  %1430 = vmatprep.subr.mxu0 0.0
  %1431 = vmatpush1.msra.mxu0 %v101
  %1432 = vmatprep.subr.mxu0 0.0
  %1433 = vmatpush2.msra.mxu0 %v132
  %1434 = vmatprep.subr.mxu0 0.0
  %1435 = vmatpush2.msra.mxu0 %v131
  %1436 = vmatprep.subr.mxu0 0.0
  %1437 = vmatpush2.msra.mxu0 %v130
  %1438 = vmatprep.subr.mxu0 0.0
  %1439 = vmatpush2.msra.mxu0 %v129
  %1440 = vmatprep.subr.mxu0 0.0
  %1441 = vmatpush2.msra.mxu0 %v128
  %1442 = vmatprep.subr.mxu0 0.0
  %1443 = vmatpush2.msra.mxu0 %v127
  %1444 = vmatprep.subr.mxu0 0.0
  %1445 = vmatpush2.msra.mxu0 %v126
  %1446 = vmatprep.subr.mxu0 0.0
  %1447 = vmatpush2.msra.mxu0 %v125
  %1448 = vmatprep.subr.mxu0 0.0
  %1449 = vmatpush2.msra.mxu0 %v124
  %1450 = vmatprep.subr.mxu0 0.0
  %1451 = vmatpush2.msra.mxu0 %v123
  %1452 = vmatprep.subr.mxu0 0.0
  %1453 = vmatpush2.msra.mxu0 %v122
  %1454 = vmatprep.subr.mxu0 0.0
  %1455 = vmatpush2.msra.mxu0 %v121
  %1456 = vmatprep.subr.mxu0 0.0
  %1457 = vmatpush2.msra.mxu0 %v120
  %1458 = vmatprep.subr.mxu0 0.0
  %1459 = vmatpush2.msra.mxu0 %v119
  %1460 = vmatprep.subr.mxu0 0.0
  %1461 = vmatpush2.msra.mxu0 %v118
  %1462 = vmatprep.subr.mxu0 0.0
  %1463 = vmatpush2.msra.mxu0 %v117
  %1464 = vmatprep.mubr.f32.mxu0 %v21
  %1465 = vmatmul.mubr.f32.gmra.mxu0 %v20
  %v1466 = vpop.f32.mrf.mxu0
  %v1467 = vadd.f32 %v1394, %v1466
  %v1468 = vpop.f32.mrf.mxu0
  %1469 = vdwg.mxu0
  %1470 = vmatprep.subr.mxu0 0.0
  %1471 = vmatpush1.msra.mxu0 %v148
  %1472 = vmatprep.subr.mxu0 0.0
  %1473 = vmatpush1.msra.mxu0 %v147
  %1474 = vmatprep.subr.mxu0 0.0
  %1475 = vmatpush1.msra.mxu0 %v146
  %1476 = vmatprep.subr.mxu0 0.0
  %1477 = vmatpush1.msra.mxu0 %v145
  %1478 = vmatprep.subr.mxu0 0.0
  %1479 = vmatpush1.msra.mxu0 %v144
  %1480 = vmatprep.subr.mxu0 0.0
  %1481 = vmatpush1.msra.mxu0 %v143
  %1482 = vmatprep.subr.mxu0 0.0
  %1483 = vmatpush1.msra.mxu0 %v142
  %1484 = vmatprep.subr.mxu0 0.0
  %1485 = vmatpush1.msra.mxu0 %v141
  %1486 = vmatprep.subr.mxu0 0.0
  %1487 = vmatpush1.msra.mxu0 %v140
  %1488 = vmatprep.subr.mxu0 0.0
  %1489 = vmatpush1.msra.mxu0 %v139
  %1490 = vmatprep.subr.mxu0 0.0
  %1491 = vmatpush1.msra.mxu0 %v138
  %1492 = vmatprep.subr.mxu0 0.0
  %1493 = vmatpush1.msra.mxu0 %v137
  %1494 = vmatprep.subr.mxu0 0.0
  %1495 = vmatpush1.msra.mxu0 %v136
  %1496 = vmatprep.subr.mxu0 0.0
  %1497 = vmatpush1.msra.mxu0 %v135
  %1498 = vmatprep.subr.mxu0 0.0
  %1499 = vmatpush1.msra.mxu0 %v134
  %1500 = vmatprep.subr.mxu0 0.0
  %1501 = vmatpush1.msra.mxu0 %v133
  %1502 = vmatprep.subr.mxu0 0.0
  %1503 = vmatpush2.msra.mxu0 %v164
  %1504 = vmatprep.subr.mxu0 0.0
  %1505 = vmatpush2.msra.mxu0 %v163
  %1506 = vmatprep.subr.mxu0 0.0
  %1507 = vmatpush2.msra.mxu0 %v162
  %1508 = vmatprep.subr.mxu0 0.0
  %1509 = vmatpush2.msra.mxu0 %v161
  %1510 = vmatprep.subr.mxu0 0.0
  %1511 = vmatpush2.msra.mxu0 %v160
  %1512 = vmatprep.subr.mxu0 0.0
  %1513 = vmatpush2.msra.mxu0 %v159
  %1514 = vmatprep.subr.mxu0 0.0
  %1515 = vmatpush2.msra.mxu0 %v158
  %1516 = vmatprep.subr.mxu0 0.0
  %1517 = vmatpush2.msra.mxu0 %v157
  %1518 = vmatprep.subr.mxu0 0.0
  %1519 = vmatpush2.msra.mxu0 %v156
  %1520 = vmatprep.subr.mxu0 0.0
  %1521 = vmatpush2.msra.mxu0 %v155
  %1522 = vmatprep.subr.mxu0 0.0
  %1523 = vmatpush2.msra.mxu0 %v154
  %1524 = vmatprep.subr.mxu0 0.0
  %1525 = vmatpush2.msra.mxu0 %v153
  %1526 = vmatprep.subr.mxu0 0.0
  %1527 = vmatpush2.msra.mxu0 %v152
  %1528 = vmatprep.subr.mxu0 0.0
  %1529 = vmatpush2.msra.mxu0 %v151
  %1530 = vmatprep.subr.mxu0 0.0
  %1531 = vmatpush2.msra.mxu0 %v150
  %1532 = vmatprep.subr.mxu0 0.0
  %1533 = vmatpush2.msra.mxu0 %v149
  %1534 = vmatprep.mubr.f32.mxu0 %v23
  %1535 = vmatmul.mubr.f32.gmra.mxu0 %v22
  %v1536 = vpop.f32.mrf.mxu0
  %v1537 = vadd.f32 %v1467, %v1536
  %v1538 = vpop.f32.mrf.mxu0
  %1539 = vdwg.mxu0
  %1540 = vmatprep.subr.mxu0 0.0
  %1541 = vmatpush1.msra.mxu0 %v180
  %1542 = vmatprep.subr.mxu0 0.0
  %1543 = vmatpush1.msra.mxu0 %v179
  %1544 = vmatprep.subr.mxu0 0.0
  %1545 = vmatpush1.msra.mxu0 %v178
  %1546 = vmatprep.subr.mxu0 0.0
  %1547 = vmatpush1.msra.mxu0 %v177
  %1548 = vmatprep.subr.mxu0 0.0
  %1549 = vmatpush1.msra.mxu0 %v176
  %1550 = vmatprep.subr.mxu0 0.0
  %1551 = vmatpush1.msra.mxu0 %v175
  %1552 = vmatprep.subr.mxu0 0.0
  %1553 = vmatpush1.msra.mxu0 %v174
  %1554 = vmatprep.subr.mxu0 0.0
  %1555 = vmatpush1.msra.mxu0 %v173
  %1556 = vmatprep.subr.mxu0 0.0
  %1557 = vmatpush1.msra.mxu0 %v172
  %1558 = vmatprep.subr.mxu0 0.0
  %1559 = vmatpush1.msra.mxu0 %v171
  %1560 = vmatprep.subr.mxu0 0.0
  %1561 = vmatpush1.msra.mxu0 %v170
  %1562 = vmatprep.subr.mxu0 0.0
  %1563 = vmatpush1.msra.mxu0 %v169
  %1564 = vmatprep.subr.mxu0 0.0
  %1565 = vmatpush1.msra.mxu0 %v168
  %1566 = vmatprep.subr.mxu0 0.0
  %1567 = vmatpush1.msra.mxu0 %v167
  %1568 = vmatprep.subr.mxu0 0.0
  %1569 = vmatpush1.msra.mxu0 %v166
  %1570 = vmatprep.subr.mxu0 0.0
  %1571 = vmatpush1.msra.mxu0 %v165
  %1572 = vmatprep.subr.mxu0 0.0
  %1573 = vmatpush2.msra.mxu0 %v196
  %1574 = vmatprep.subr.mxu0 0.0
  %1575 = vmatpush2.msra.mxu0 %v195
  %1576 = vmatprep.subr.mxu0 0.0
  %1577 = vmatpush2.msra.mxu0 %v194
  %1578 = vmatprep.subr.mxu0 0.0
  %1579 = vmatpush2.msra.mxu0 %v193
  %1580 = vmatprep.subr.mxu0 0.0
  %1581 = vmatpush2.msra.mxu0 %v192
  %1582 = vmatprep.subr.mxu0 0.0
  %1583 = vmatpush2.msra.mxu0 %v191
  %1584 = vmatprep.subr.mxu0 0.0
  %1585 = vmatpush2.msra.mxu0 %v190
  %1586 = vmatprep.subr.mxu0 0.0
  %1587 = vmatpush2.msra.mxu0 %v189
  %1588 = vmatprep.subr.mxu0 0.0
  %1589 = vmatpush2.msra.mxu0 %v188
  %1590 = vmatprep.subr.mxu0 0.0
  %1591 = vmatpush2.msra.mxu0 %v187
  %1592 = vmatprep.subr.mxu0 0.0
  %1593 = vmatpush2.msra.mxu0 %v186
  %1594 = vmatprep.subr.mxu0 0.0
  %1595 = vmatpush2.msra.mxu0 %v185
  %1596 = vmatprep.subr.mxu0 0.0
  %1597 = vmatpush2.msra.mxu0 %v184
  %1598 = vmatprep.subr.mxu0 0.0
  %1599 = vmatpush2.msra.mxu0 %v183
  %1600 = vmatprep.subr.mxu0 0.0
  %1601 = vmatpush2.msra.mxu0 %v182
  %1602 = vmatprep.subr.mxu0 0.0
  %1603 = vmatpush2.msra.mxu0 %v181
  %1604 = vmatprep.mubr.f32.mxu0 %v25
  %1605 = vmatmul.mubr.f32.gmra.mxu0 %v24
  %v1606 = vpop.f32.mrf.mxu0
  %v1607 = vadd.f32 %v1537, %v1606
  %v1608 = vpop.f32.mrf.mxu0
  %1609 = vdwg.mxu0
  %1610 = vmatprep.subr.mxu0 0.0
  %1611 = vmatpush1.msra.mxu0 %v212
  %1612 = vmatprep.subr.mxu0 0.0
  %1613 = vmatpush1.msra.mxu0 %v211
  %1614 = vmatprep.subr.mxu0 0.0
  %1615 = vmatpush1.msra.mxu0 %v210
  %1616 = vmatprep.subr.mxu0 0.0
  %1617 = vmatpush1.msra.mxu0 %v209
  %1618 = vmatprep.subr.mxu0 0.0
  %1619 = vmatpush1.msra.mxu0 %v208
  %1620 = vmatprep.subr.mxu0 0.0
  %1621 = vmatpush1.msra.mxu0 %v207
  %1622 = vmatprep.subr.mxu0 0.0
  %1623 = vmatpush1.msra.mxu0 %v206
  %1624 = vmatprep.subr.mxu0 0.0
  %1625 = vmatpush1.msra.mxu0 %v205
  %1626 = vmatprep.subr.mxu0 0.0
  %1627 = vmatpush1.msra.mxu0 %v204
  %1628 = vmatprep.subr.mxu0 0.0
  %1629 = vmatpush1.msra.mxu0 %v203
  %1630 = vmatprep.subr.mxu0 0.0
  %1631 = vmatpush1.msra.mxu0 %v202
  %1632 = vmatprep.subr.mxu0 0.0
  %1633 = vmatpush1.msra.mxu0 %v201
  %1634 = vmatprep.subr.mxu0 0.0
  %1635 = vmatpush1.msra.mxu0 %v200
  %1636 = vmatprep.subr.mxu0 0.0
  %1637 = vmatpush1.msra.mxu0 %v199
  %1638 = vmatprep.subr.mxu0 0.0
  %1639 = vmatpush1.msra.mxu0 %v198
  %1640 = vmatprep.subr.mxu0 0.0
  %1641 = vmatpush1.msra.mxu0 %v197
  %1642 = vmatprep.subr.mxu0 0.0
  %1643 = vmatpush2.msra.mxu0 %v228
  %1644 = vmatprep.subr.mxu0 0.0
  %1645 = vmatpush2.msra.mxu0 %v227
  %1646 = vmatprep.subr.mxu0 0.0
  %1647 = vmatpush2.msra.mxu0 %v226
  %1648 = vmatprep.subr.mxu0 0.0
  %1649 = vmatpush2.msra.mxu0 %v225
  %1650 = vmatprep.subr.mxu0 0.0
  %1651 = vmatpush2.msra.mxu0 %v224
  %1652 = vmatprep.subr.mxu0 0.0
  %1653 = vmatpush2.msra.mxu0 %v223
  %1654 = vmatprep.subr.mxu0 0.0
  %1655 = vmatpush2.msra.mxu0 %v222
  %1656 = vmatprep.subr.mxu0 0.0
  %1657 = vmatpush2.msra.mxu0 %v221
  %1658 = vmatprep.subr.mxu0 0.0
  %1659 = vmatpush2.msra.mxu0 %v220
  %1660 = vmatprep.subr.mxu0 0.0
  %1661 = vmatpush2.msra.mxu0 %v219
  %1662 = vmatprep.subr.mxu0 0.0
  %1663 = vmatpush2.msra.mxu0 %v218
  %1664 = vmatprep.subr.mxu0 0.0
  %1665 = vmatpush2.msra.mxu0 %v217
  %1666 = vmatprep.subr.mxu0 0.0
  %1667 = vmatpush2.msra.mxu0 %v216
  %1668 = vmatprep.subr.mxu0 0.0
  %1669 = vmatpush2.msra.mxu0 %v215
  %1670 = vmatprep.subr.mxu0 0.0
  %1671 = vmatpush2.msra.mxu0 %v214
  %1672 = vmatprep.subr.mxu0 0.0
  %1673 = vmatpush2.msra.mxu0 %v213
  %1674 = vmatprep.mubr.f32.mxu0 %v27
  %1675 = vmatmul.mubr.f32.gmra.mxu0 %v26
  %v1676 = vpop.f32.mrf.mxu0
  %v1677 = vadd.f32 %v1607, %v1676
  %v1678 = vpop.f32.mrf.mxu0
  %1679 = vdwg.mxu0
  %1680 = vmatprep.subr.mxu0 0.0
  %1681 = vmatpush1.msra.mxu0 %v244
  %1682 = vmatprep.subr.mxu0 0.0
  %1683 = vmatpush1.msra.mxu0 %v243
  %1684 = vmatprep.subr.mxu0 0.0
  %1685 = vmatpush1.msra.mxu0 %v242
  %1686 = vmatprep.subr.mxu0 0.0
  %1687 = vmatpush1.msra.mxu0 %v241
  %1688 = vmatprep.subr.mxu0 0.0
  %1689 = vmatpush1.msra.mxu0 %v240
  %1690 = vmatprep.subr.mxu0 0.0
  %1691 = vmatpush1.msra.mxu0 %v239
  %1692 = vmatprep.subr.mxu0 0.0
  %1693 = vmatpush1.msra.mxu0 %v238
  %1694 = vmatprep.subr.mxu0 0.0
  %1695 = vmatpush1.msra.mxu0 %v237
  %1696 = vmatprep.subr.mxu0 0.0
  %1697 = vmatpush1.msra.mxu0 %v236
  %1698 = vmatprep.subr.mxu0 0.0
  %1699 = vmatpush1.msra.mxu0 %v235
  %1700 = vmatprep.subr.mxu0 0.0
  %1701 = vmatpush1.msra.mxu0 %v234
  %1702 = vmatprep.subr.mxu0 0.0
  %1703 = vmatpush1.msra.mxu0 %v233
  %1704 = vmatprep.subr.mxu0 0.0
  %1705 = vmatpush1.msra.mxu0 %v232
  %1706 = vmatprep.subr.mxu0 0.0
  %1707 = vmatpush1.msra.mxu0 %v231
  %1708 = vmatprep.subr.mxu0 0.0
  %1709 = vmatpush1.msra.mxu0 %v230
  %1710 = vmatprep.subr.mxu0 0.0
  %1711 = vmatpush1.msra.mxu0 %v229
  %1712 = vmatprep.subr.mxu0 0.0
  %1713 = vmatpush2.msra.mxu0 %v260
  %1714 = vmatprep.subr.mxu0 0.0
  %1715 = vmatpush2.msra.mxu0 %v259
  %1716 = vmatprep.subr.mxu0 0.0
  %1717 = vmatpush2.msra.mxu0 %v258
  %1718 = vmatprep.subr.mxu0 0.0
  %1719 = vmatpush2.msra.mxu0 %v257
  %1720 = vmatprep.subr.mxu0 0.0
  %1721 = vmatpush2.msra.mxu0 %v256
  %1722 = vmatprep.subr.mxu0 0.0
  %1723 = vmatpush2.msra.mxu0 %v255
  %1724 = vmatprep.subr.mxu0 0.0
  %1725 = vmatpush2.msra.mxu0 %v254
  %1726 = vmatprep.subr.mxu0 0.0
  %1727 = vmatpush2.msra.mxu0 %v253
  %1728 = vmatprep.subr.mxu0 0.0
  %1729 = vmatpush2.msra.mxu0 %v252
  %1730 = vmatprep.subr.mxu0 0.0
  %1731 = vmatpush2.msra.mxu0 %v251
  %1732 = vmatprep.subr.mxu0 0.0
  %1733 = vmatpush2.msra.mxu0 %v250
  %1734 = vmatprep.subr.mxu0 0.0
  %1735 = vmatpush2.msra.mxu0 %v249
  %1736 = vmatprep.subr.mxu0 0.0
  %1737 = vmatpush2.msra.mxu0 %v248
  %1738 = vmatprep.subr.mxu0 0.0
  %1739 = vmatpush2.msra.mxu0 %v247
  %1740 = vmatprep.subr.mxu0 0.0
  %1741 = vmatpush2.msra.mxu0 %v246
  %1742 = vmatprep.subr.mxu0 0.0
  %1743 = vmatpush2.msra.mxu0 %v245
  %1744 = vmatprep.mubr.f32.mxu0 %v29
  %1745 = vmatmul.mubr.f32.gmra.mxu0 %v28
  %v1746 = vpop.f32.mrf.mxu0
  %v1747 = vadd.f32 %v1677, %v1746
  %v1748 = vpop.f32.mrf.mxu0
  %1749 = vdwg.mxu0
  %1750 = vmatprep.subr.mxu0 0.0
  %1751 = vmatpush1.msra.mxu0 %v276
  %1752 = vmatprep.subr.mxu0 0.0
  %1753 = vmatpush1.msra.mxu0 %v275
  %1754 = vmatprep.subr.mxu0 0.0
  %1755 = vmatpush1.msra.mxu0 %v274
  %1756 = vmatprep.subr.mxu0 0.0
  %1757 = vmatpush1.msra.mxu0 %v273
  %1758 = vmatprep.subr.mxu0 0.0
  %1759 = vmatpush1.msra.mxu0 %v272
  %1760 = vmatprep.subr.mxu0 0.0
  %1761 = vmatpush1.msra.mxu0 %v271
  %1762 = vmatprep.subr.mxu0 0.0
  %1763 = vmatpush1.msra.mxu0 %v270
  %1764 = vmatprep.subr.mxu0 0.0
  %1765 = vmatpush1.msra.mxu0 %v269
  %1766 = vmatprep.subr.mxu0 0.0
  %1767 = vmatpush1.msra.mxu0 %v268
  %1768 = vmatprep.subr.mxu0 0.0
  %1769 = vmatpush1.msra.mxu0 %v267
  %1770 = vmatprep.subr.mxu0 0.0
  %1771 = vmatpush1.msra.mxu0 %v266
  %1772 = vmatprep.subr.mxu0 0.0
  %1773 = vmatpush1.msra.mxu0 %v265
  %1774 = vmatprep.subr.mxu0 0.0
  %1775 = vmatpush1.msra.mxu0 %v264
  %1776 = vmatprep.subr.mxu0 0.0
  %1777 = vmatpush1.msra.mxu0 %v263
  %1778 = vmatprep.subr.mxu0 0.0
  %1779 = vmatpush1.msra.mxu0 %v262
  %1780 = vmatprep.subr.mxu0 0.0
  %1781 = vmatpush1.msra.mxu0 %v261
  %1782 = vmatprep.subr.mxu0 0.0
  %1783 = vmatpush2.msra.mxu0 %v292
  %1784 = vmatprep.subr.mxu0 0.0
  %1785 = vmatpush2.msra.mxu0 %v291
  %1786 = vmatprep.subr.mxu0 0.0
  %1787 = vmatpush2.msra.mxu0 %v290
  %1788 = vmatprep.subr.mxu0 0.0
  %1789 = vmatpush2.msra.mxu0 %v289
  %1790 = vmatprep.subr.mxu0 0.0
  %1791 = vmatpush2.msra.mxu0 %v288
  %1792 = vmatprep.subr.mxu0 0.0
  %1793 = vmatpush2.msra.mxu0 %v287
  %1794 = vmatprep.subr.mxu0 0.0
  %1795 = vmatpush2.msra.mxu0 %v286
  %1796 = vmatprep.subr.mxu0 0.0
  %1797 = vmatpush2.msra.mxu0 %v285
  %1798 = vmatprep.subr.mxu0 0.0
  %1799 = vmatpush2.msra.mxu0 %v284
  %1800 = vmatprep.subr.mxu0 0.0
  %1801 = vmatpush2.msra.mxu0 %v283
  %1802 = vmatprep.subr.mxu0 0.0
  %1803 = vmatpush2.msra.mxu0 %v282
  %1804 = vmatprep.subr.mxu0 0.0
  %1805 = vmatpush2.msra.mxu0 %v281
  %1806 = vmatprep.subr.mxu0 0.0
  %1807 = vmatpush2.msra.mxu0 %v280
  %1808 = vmatprep.subr.mxu0 0.0
  %1809 = vmatpush2.msra.mxu0 %v279
  %1810 = vmatprep.subr.mxu0 0.0
  %1811 = vmatpush2.msra.mxu0 %v278
  %1812 = vmatprep.subr.mxu0 0.0
  %1813 = vmatpush2.msra.mxu0 %v277
  %1814 = vmatprep.mubr.f32.mxu0 %v31
  %1815 = vmatmul.mubr.f32.gmra.mxu0 %v30
  %v1816 = vpop.f32.mrf.mxu0
  %v1817 = vadd.f32 %v1747, %v1816
  %v1818 = vpop.f32.mrf.mxu0
  %1819 = vdwg.mxu0
  %1820 = vmatprep.subr.mxu0 0.0
  %1821 = vmatpush1.msra.mxu0 %v308
  %1822 = vmatprep.subr.mxu0 0.0
  %1823 = vmatpush1.msra.mxu0 %v307
  %1824 = vmatprep.subr.mxu0 0.0
  %1825 = vmatpush1.msra.mxu0 %v306
  %1826 = vmatprep.subr.mxu0 0.0
  %1827 = vmatpush1.msra.mxu0 %v305
  %1828 = vmatprep.subr.mxu0 0.0
  %1829 = vmatpush1.msra.mxu0 %v304
  %1830 = vmatprep.subr.mxu0 0.0
  %1831 = vmatpush1.msra.mxu0 %v303
  %1832 = vmatprep.subr.mxu0 0.0
  %1833 = vmatpush1.msra.mxu0 %v302
  %1834 = vmatprep.subr.mxu0 0.0
  %1835 = vmatpush1.msra.mxu0 %v301
  %1836 = vmatprep.subr.mxu0 0.0
  %1837 = vmatpush1.msra.mxu0 %v300
  %1838 = vmatprep.subr.mxu0 0.0
  %1839 = vmatpush1.msra.mxu0 %v299
  %1840 = vmatprep.subr.mxu0 0.0
  %1841 = vmatpush1.msra.mxu0 %v298
  %1842 = vmatprep.subr.mxu0 0.0
  %1843 = vmatpush1.msra.mxu0 %v297
  %1844 = vmatprep.subr.mxu0 0.0
  %1845 = vmatpush1.msra.mxu0 %v296
  %1846 = vmatprep.subr.mxu0 0.0
  %1847 = vmatpush1.msra.mxu0 %v295
  %1848 = vmatprep.subr.mxu0 0.0
  %1849 = vmatpush1.msra.mxu0 %v294
  %1850 = vmatprep.subr.mxu0 0.0
  %1851 = vmatpush1.msra.mxu0 %v293
  %1852 = vmatprep.subr.mxu0 0.0
  %1853 = vmatpush2.msra.mxu0 %v324
  %1854 = vmatprep.subr.mxu0 0.0
  %1855 = vmatpush2.msra.mxu0 %v323
  %1856 = vmatprep.subr.mxu0 0.0
  %1857 = vmatpush2.msra.mxu0 %v322
  %1858 = vmatprep.subr.mxu0 0.0
  %1859 = vmatpush2.msra.mxu0 %v321
  %1860 = vmatprep.subr.mxu0 0.0
  %1861 = vmatpush2.msra.mxu0 %v320
  %1862 = vmatprep.subr.mxu0 0.0
  %1863 = vmatpush2.msra.mxu0 %v319
  %1864 = vmatprep.subr.mxu0 0.0
  %1865 = vmatpush2.msra.mxu0 %v318
  %1866 = vmatprep.subr.mxu0 0.0
  %1867 = vmatpush2.msra.mxu0 %v317
  %1868 = vmatprep.subr.mxu0 0.0
  %1869 = vmatpush2.msra.mxu0 %v316
  %1870 = vmatprep.subr.mxu0 0.0
  %1871 = vmatpush2.msra.mxu0 %v315
  %1872 = vmatprep.subr.mxu0 0.0
  %1873 = vmatpush2.msra.mxu0 %v314
  %1874 = vmatprep.subr.mxu0 0.0
  %1875 = vmatpush2.msra.mxu0 %v313
  %1876 = vmatprep.subr.mxu0 0.0
  %1877 = vmatpush2.msra.mxu0 %v312
  %1878 = vmatprep.subr.mxu0 0.0
  %1879 = vmatpush2.msra.mxu0 %v311
  %1880 = vmatprep.subr.mxu0 0.0
  %1881 = vmatpush2.msra.mxu0 %v310
  %1882 = vmatprep.subr.mxu0 0.0
  %1883 = vmatpush2.msra.mxu0 %v309
  %1884 = vmatprep.mubr.f32.mxu0 %v33
  %1885 = vmatmul.mubr.f32.gmra.mxu0 %v32
  %v1886 = vpop.f32.mrf.mxu0
  %v1887 = vadd.f32 %v1817, %v1886
  %v1888 = vpop.f32.mrf.mxu0
  %1889 = vdwg.mxu0
  %1890 = vmatprep.subr.mxu0 0.0
  %1891 = vmatpush1.msra.mxu0 %v340
  %1892 = vmatprep.subr.mxu0 0.0
  %1893 = vmatpush1.msra.mxu0 %v339
  %1894 = vmatprep.subr.mxu0 0.0
  %1895 = vmatpush1.msra.mxu0 %v338
  %1896 = vmatprep.subr.mxu0 0.0
  %1897 = vmatpush1.msra.mxu0 %v337
  %1898 = vmatprep.subr.mxu0 0.0
  %1899 = vmatpush1.msra.mxu0 %v336
  %1900 = vmatprep.subr.mxu0 0.0
  %1901 = vmatpush1.msra.mxu0 %v335
  %1902 = vmatprep.subr.mxu0 0.0
  %1903 = vmatpush1.msra.mxu0 %v334
  %1904 = vmatprep.subr.mxu0 0.0
  %1905 = vmatpush1.msra.mxu0 %v333
  %1906 = vmatprep.subr.mxu0 0.0
  %1907 = vmatpush1.msra.mxu0 %v332
  %1908 = vmatprep.subr.mxu0 0.0
  %1909 = vmatpush1.msra.mxu0 %v331
  %1910 = vmatprep.subr.mxu0 0.0
  %1911 = vmatpush1.msra.mxu0 %v330
  %1912 = vmatprep.subr.mxu0 0.0
  %1913 = vmatpush1.msra.mxu0 %v329
  %1914 = vmatprep.subr.mxu0 0.0
  %1915 = vmatpush1.msra.mxu0 %v328
  %1916 = vmatprep.subr.mxu0 0.0
  %1917 = vmatpush1.msra.mxu0 %v327
  %1918 = vmatprep.subr.mxu0 0.0
  %1919 = vmatpush1.msra.mxu0 %v326
  %1920 = vmatprep.subr.mxu0 0.0
  %1921 = vmatpush1.msra.mxu0 %v325
  %1922 = vmatprep.subr.mxu0 0.0
  %1923 = vmatpush2.msra.mxu0 %v356
  %1924 = vmatprep.subr.mxu0 0.0
  %1925 = vmatpush2.msra.mxu0 %v355
  %1926 = vmatprep.subr.mxu0 0.0
  %1927 = vmatpush2.msra.mxu0 %v354
  %1928 = vmatprep.subr.mxu0 0.0
  %1929 = vmatpush2.msra.mxu0 %v353
  %1930 = vmatprep.subr.mxu0 0.0
  %1931 = vmatpush2.msra.mxu0 %v352
  %1932 = vmatprep.subr.mxu0 0.0
  %1933 = vmatpush2.msra.mxu0 %v351
  %1934 = vmatprep.subr.mxu0 0.0
  %1935 = vmatpush2.msra.mxu0 %v350
  %1936 = vmatprep.subr.mxu0 0.0
  %1937 = vmatpush2.msra.mxu0 %v349
  %1938 = vmatprep.subr.mxu0 0.0
  %1939 = vmatpush2.msra.mxu0 %v348
  %1940 = vmatprep.subr.mxu0 0.0
  %1941 = vmatpush2.msra.mxu0 %v347
  %1942 = vmatprep.subr.mxu0 0.0
  %1943 = vmatpush2.msra.mxu0 %v346
  %1944 = vmatprep.subr.mxu0 0.0
  %1945 = vmatpush2.msra.mxu0 %v345
  %1946 = vmatprep.subr.mxu0 0.0
  %1947 = vmatpush2.msra.mxu0 %v344
  %1948 = vmatprep.subr.mxu0 0.0
  %1949 = vmatpush2.msra.mxu0 %v343
  %1950 = vmatprep.subr.mxu0 0.0
  %1951 = vmatpush2.msra.mxu0 %v342
  %1952 = vmatprep.subr.mxu0 0.0
  %1953 = vmatpush2.msra.mxu0 %v341
  %1954 = vmatprep.mubr.f32.mxu0 %v35
  %1955 = vmatmul.mubr.f32.gmra.mxu0 %v34
  %v1956 = vpop.f32.mrf.mxu0
  %v1957 = vadd.f32 %v1887, %v1956
  %v1958 = vpop.f32.mrf.mxu0
  %1959 = vdwg.mxu0
  %1960 = vmatprep.subr.mxu0 0.0
  %1961 = vmatpush1.msra.mxu0 %v372
  %1962 = vmatprep.subr.mxu0 0.0
  %1963 = vmatpush1.msra.mxu0 %v371
  %1964 = vmatprep.subr.mxu0 0.0
  %1965 = vmatpush1.msra.mxu0 %v370
  %1966 = vmatprep.subr.mxu0 0.0
  %1967 = vmatpush1.msra.mxu0 %v369
  %1968 = vmatprep.subr.mxu0 0.0
  %1969 = vmatpush1.msra.mxu0 %v368
  %1970 = vmatprep.subr.mxu0 0.0
  %1971 = vmatpush1.msra.mxu0 %v367
  %1972 = vmatprep.subr.mxu0 0.0
  %1973 = vmatpush1.msra.mxu0 %v366
  %1974 = vmatprep.subr.mxu0 0.0
  %1975 = vmatpush1.msra.mxu0 %v365
  %1976 = vmatprep.subr.mxu0 0.0
  %1977 = vmatpush1.msra.mxu0 %v364
  %1978 = vmatprep.subr.mxu0 0.0
  %1979 = vmatpush1.msra.mxu0 %v363
  %1980 = vmatprep.subr.mxu0 0.0
  %1981 = vmatpush1.msra.mxu0 %v362
  %1982 = vmatprep.subr.mxu0 0.0
  %1983 = vmatpush1.msra.mxu0 %v361
  %1984 = vmatprep.subr.mxu0 0.0
  %1985 = vmatpush1.msra.mxu0 %v360
  %1986 = vmatprep.subr.mxu0 0.0
  %1987 = vmatpush1.msra.mxu0 %v359
  %1988 = vmatprep.subr.mxu0 0.0
  %1989 = vmatpush1.msra.mxu0 %v358
  %1990 = vmatprep.subr.mxu0 0.0
  %1991 = vmatpush1.msra.mxu0 %v357
  %1992 = vmatprep.subr.mxu0 0.0
  %1993 = vmatpush2.msra.mxu0 %v388
  %1994 = vmatprep.subr.mxu0 0.0
  %1995 = vmatpush2.msra.mxu0 %v387
  %1996 = vmatprep.subr.mxu0 0.0
  %1997 = vmatpush2.msra.mxu0 %v386
  %1998 = vmatprep.subr.mxu0 0.0
  %1999 = vmatpush2.msra.mxu0 %v385
  %2000 = vmatprep.subr.mxu0 0.0
  %2001 = vmatpush2.msra.mxu0 %v384
  %2002 = vmatprep.subr.mxu0 0.0
  %2003 = vmatpush2.msra.mxu0 %v383
  %2004 = vmatprep.subr.mxu0 0.0
  %2005 = vmatpush2.msra.mxu0 %v382
  %2006 = vmatprep.subr.mxu0 0.0
  %2007 = vmatpush2.msra.mxu0 %v381
  %2008 = vmatprep.subr.mxu0 0.0
  %2009 = vmatpush2.msra.mxu0 %v380
  %2010 = vmatprep.subr.mxu0 0.0
  %2011 = vmatpush2.msra.mxu0 %v379
  %2012 = vmatprep.subr.mxu0 0.0
  %2013 = vmatpush2.msra.mxu0 %v378
  %2014 = vmatprep.subr.mxu0 0.0
  %2015 = vmatpush2.msra.mxu0 %v377
  %2016 = vmatprep.subr.mxu0 0.0
  %2017 = vmatpush2.msra.mxu0 %v376
  %2018 = vmatprep.subr.mxu0 0.0
  %2019 = vmatpush2.msra.mxu0 %v375
  %2020 = vmatprep.subr.mxu0 0.0
  %2021 = vmatpush2.msra.mxu0 %v374
  %2022 = vmatprep.subr.mxu0 0.0
  %2023 = vmatpush2.msra.mxu0 %v373
  %2024 = vmatprep.mubr.f32.mxu0 %v37
  %2025 = vmatmul.mubr.f32.gmra.mxu0 %v36
  %v2026 = vpop.f32.mrf.mxu0
  %v2027 = vadd.f32 %v1957, %v2026
  %v2028 = vpop.f32.mrf.mxu0
  %2029 = vdwg.mxu0
  %2030 = vmatprep.subr.mxu0 0.0
  %2031 = vmatpush1.msra.mxu0 %v404
  %2032 = vmatprep.subr.mxu0 0.0
  %2033 = vmatpush1.msra.mxu0 %v403
  %2034 = vmatprep.subr.mxu0 0.0
  %2035 = vmatpush1.msra.mxu0 %v402
  %2036 = vmatprep.subr.mxu0 0.0
  %2037 = vmatpush1.msra.mxu0 %v401
  %2038 = vmatprep.subr.mxu0 0.0
  %2039 = vmatpush1.msra.mxu0 %v400
  %2040 = vmatprep.subr.mxu0 0.0
  %2041 = vmatpush1.msra.mxu0 %v399
  %2042 = vmatprep.subr.mxu0 0.0
  %2043 = vmatpush1.msra.mxu0 %v398
  %2044 = vmatprep.subr.mxu0 0.0
  %2045 = vmatpush1.msra.mxu0 %v397
  %2046 = vmatprep.subr.mxu0 0.0
  %2047 = vmatpush1.msra.mxu0 %v396
  %2048 = vmatprep.subr.mxu0 0.0
  %2049 = vmatpush1.msra.mxu0 %v395
  %2050 = vmatprep.subr.mxu0 0.0
  %2051 = vmatpush1.msra.mxu0 %v394
  %2052 = vmatprep.subr.mxu0 0.0
  %2053 = vmatpush1.msra.mxu0 %v393
  %2054 = vmatprep.subr.mxu0 0.0
  %2055 = vmatpush1.msra.mxu0 %v392
  %2056 = vmatprep.subr.mxu0 0.0
  %2057 = vmatpush1.msra.mxu0 %v391
  %2058 = vmatprep.subr.mxu0 0.0
  %2059 = vmatpush1.msra.mxu0 %v390
  %2060 = vmatprep.subr.mxu0 0.0
  %2061 = vmatpush1.msra.mxu0 %v389
  %2062 = vmatprep.subr.mxu0 0.0
  %2063 = vmatpush2.msra.mxu0 %v420
  %2064 = vmatprep.subr.mxu0 0.0
  %2065 = vmatpush2.msra.mxu0 %v419
  %2066 = vmatprep.subr.mxu0 0.0
  %2067 = vmatpush2.msra.mxu0 %v418
  %2068 = vmatprep.subr.mxu0 0.0
  %2069 = vmatpush2.msra.mxu0 %v417
  %2070 = vmatprep.subr.mxu0 0.0
  %2071 = vmatpush2.msra.mxu0 %v416
  %2072 = vmatprep.subr.mxu0 0.0
  %2073 = vmatpush2.msra.mxu0 %v415
  %2074 = vmatprep.subr.mxu0 0.0
  %2075 = vmatpush2.msra.mxu0 %v414
  %2076 = vmatprep.subr.mxu0 0.0
  %2077 = vmatpush2.msra.mxu0 %v413
  %2078 = vmatprep.subr.mxu0 0.0
  %2079 = vmatpush2.msra.mxu0 %v412
  %2080 = vmatprep.subr.mxu0 0.0
  %2081 = vmatpush2.msra.mxu0 %v411
  %2082 = vmatprep.subr.mxu0 0.0
  %2083 = vmatpush2.msra.mxu0 %v410
  %2084 = vmatprep.subr.mxu0 0.0
  %2085 = vmatpush2.msra.mxu0 %v409
  %2086 = vmatprep.subr.mxu0 0.0
  %2087 = vmatpush2.msra.mxu0 %v408
  %2088 = vmatprep.subr.mxu0 0.0
  %2089 = vmatpush2.msra.mxu0 %v407
  %2090 = vmatprep.subr.mxu0 0.0
  %2091 = vmatpush2.msra.mxu0 %v406
  %2092 = vmatprep.subr.mxu0 0.0
  %2093 = vmatpush2.msra.mxu0 %v405
  %2094 = vmatprep.mubr.f32.mxu0 %v39
  %2095 = vmatmul.mubr.f32.gmra.mxu0 %v38
  %v2096 = vpop.f32.mrf.mxu0
  %v2097 = vadd.f32 %v2027, %v2096
  %v2098 = vpop.f32.mrf.mxu0
  %2099 = vdwg.mxu0
  %2100 = vmatprep.subr.mxu0 0.0
  %2101 = vmatpush1.msra.mxu0 %v436
  %2102 = vmatprep.subr.mxu0 0.0
  %2103 = vmatpush1.msra.mxu0 %v435
  %2104 = vmatprep.subr.mxu0 0.0
  %2105 = vmatpush1.msra.mxu0 %v434
  %2106 = vmatprep.subr.mxu0 0.0
  %2107 = vmatpush1.msra.mxu0 %v433
  %2108 = vmatprep.subr.mxu0 0.0
  %2109 = vmatpush1.msra.mxu0 %v432
  %2110 = vmatprep.subr.mxu0 0.0
  %2111 = vmatpush1.msra.mxu0 %v431
  %2112 = vmatprep.subr.mxu0 0.0
  %2113 = vmatpush1.msra.mxu0 %v430
  %2114 = vmatprep.subr.mxu0 0.0
  %2115 = vmatpush1.msra.mxu0 %v429
  %2116 = vmatprep.subr.mxu0 0.0
  %2117 = vmatpush1.msra.mxu0 %v428
  %2118 = vmatprep.subr.mxu0 0.0
  %2119 = vmatpush1.msra.mxu0 %v427
  %2120 = vmatprep.subr.mxu0 0.0
  %2121 = vmatpush1.msra.mxu0 %v426
  %2122 = vmatprep.subr.mxu0 0.0
  %2123 = vmatpush1.msra.mxu0 %v425
  %2124 = vmatprep.subr.mxu0 0.0
  %2125 = vmatpush1.msra.mxu0 %v424
  %2126 = vmatprep.subr.mxu0 0.0
  %2127 = vmatpush1.msra.mxu0 %v423
  %2128 = vmatprep.subr.mxu0 0.0
  %2129 = vmatpush1.msra.mxu0 %v422
  %2130 = vmatprep.subr.mxu0 0.0
  %2131 = vmatpush1.msra.mxu0 %v421
  %2132 = vmatprep.subr.mxu0 0.0
  %2133 = vmatpush2.msra.mxu0 %v452
  %2134 = vmatprep.subr.mxu0 0.0
  %2135 = vmatpush2.msra.mxu0 %v451
  %2136 = vmatprep.subr.mxu0 0.0
  %2137 = vmatpush2.msra.mxu0 %v450
  %2138 = vmatprep.subr.mxu0 0.0
  %2139 = vmatpush2.msra.mxu0 %v449
  %2140 = vmatprep.subr.mxu0 0.0
  %2141 = vmatpush2.msra.mxu0 %v448
  %2142 = vmatprep.subr.mxu0 0.0
  %2143 = vmatpush2.msra.mxu0 %v447
  %2144 = vmatprep.subr.mxu0 0.0
  %2145 = vmatpush2.msra.mxu0 %v446
  %2146 = vmatprep.subr.mxu0 0.0
  %2147 = vmatpush2.msra.mxu0 %v445
  %2148 = vmatprep.subr.mxu0 0.0
  %2149 = vmatpush2.msra.mxu0 %v444
  %2150 = vmatprep.subr.mxu0 0.0
  %2151 = vmatpush2.msra.mxu0 %v443
  %2152 = vmatprep.subr.mxu0 0.0
  %2153 = vmatpush2.msra.mxu0 %v442
  %2154 = vmatprep.subr.mxu0 0.0
  %2155 = vmatpush2.msra.mxu0 %v441
  %2156 = vmatprep.subr.mxu0 0.0
  %2157 = vmatpush2.msra.mxu0 %v440
  %2158 = vmatprep.subr.mxu0 0.0
  %2159 = vmatpush2.msra.mxu0 %v439
  %2160 = vmatprep.subr.mxu0 0.0
  %2161 = vmatpush2.msra.mxu0 %v438
  %2162 = vmatprep.subr.mxu0 0.0
  %2163 = vmatpush2.msra.mxu0 %v437
  %2164 = vmatprep.mubr.f32.mxu0 %v41
  %2165 = vmatmul.mubr.f32.gmra.mxu0 %v40
  %v2166 = vpop.f32.mrf.mxu0
  %v2167 = vadd.f32 %v2097, %v2166
  %v2168 = vpop.f32.mrf.mxu0
  %2169 = vdwg.mxu0
  %2170 = vmatprep.subr.mxu0 0.0
  %2171 = vmatpush1.msra.mxu0 %v468
  %2172 = vmatprep.subr.mxu0 0.0
  %2173 = vmatpush1.msra.mxu0 %v467
  %2174 = vmatprep.subr.mxu0 0.0
  %2175 = vmatpush1.msra.mxu0 %v466
  %2176 = vmatprep.subr.mxu0 0.0
  %2177 = vmatpush1.msra.mxu0 %v465
  %2178 = vmatprep.subr.mxu0 0.0
  %2179 = vmatpush1.msra.mxu0 %v464
  %2180 = vmatprep.subr.mxu0 0.0
  %2181 = vmatpush1.msra.mxu0 %v463
  %2182 = vmatprep.subr.mxu0 0.0
  %2183 = vmatpush1.msra.mxu0 %v462
  %2184 = vmatprep.subr.mxu0 0.0
  %2185 = vmatpush1.msra.mxu0 %v461
  %2186 = vmatprep.subr.mxu0 0.0
  %2187 = vmatpush1.msra.mxu0 %v460
  %2188 = vmatprep.subr.mxu0 0.0
  %2189 = vmatpush1.msra.mxu0 %v459
  %2190 = vmatprep.subr.mxu0 0.0
  %2191 = vmatpush1.msra.mxu0 %v458
  %2192 = vmatprep.subr.mxu0 0.0
  %2193 = vmatpush1.msra.mxu0 %v457
  %2194 = vmatprep.subr.mxu0 0.0
  %2195 = vmatpush1.msra.mxu0 %v456
  %2196 = vmatprep.subr.mxu0 0.0
  %2197 = vmatpush1.msra.mxu0 %v455
  %2198 = vmatprep.subr.mxu0 0.0
  %2199 = vmatpush1.msra.mxu0 %v454
  %2200 = vmatprep.subr.mxu0 0.0
  %2201 = vmatpush1.msra.mxu0 %v453
  %2202 = vmatprep.subr.mxu0 0.0
  %2203 = vmatpush2.msra.mxu0 %v484
  %2204 = vmatprep.subr.mxu0 0.0
  %2205 = vmatpush2.msra.mxu0 %v483
  %2206 = vmatprep.subr.mxu0 0.0
  %2207 = vmatpush2.msra.mxu0 %v482
  %2208 = vmatprep.subr.mxu0 0.0
  %2209 = vmatpush2.msra.mxu0 %v481
  %2210 = vmatprep.subr.mxu0 0.0
  %2211 = vmatpush2.msra.mxu0 %v480
  %2212 = vmatprep.subr.mxu0 0.0
  %2213 = vmatpush2.msra.mxu0 %v479
  %2214 = vmatprep.subr.mxu0 0.0
  %2215 = vmatpush2.msra.mxu0 %v478
  %2216 = vmatprep.subr.mxu0 0.0
  %2217 = vmatpush2.msra.mxu0 %v477
  %2218 = vmatprep.subr.mxu0 0.0
  %2219 = vmatpush2.msra.mxu0 %v476
  %2220 = vmatprep.subr.mxu0 0.0
  %2221 = vmatpush2.msra.mxu0 %v475
  %2222 = vmatprep.subr.mxu0 0.0
  %2223 = vmatpush2.msra.mxu0 %v474
  %2224 = vmatprep.subr.mxu0 0.0
  %2225 = vmatpush2.msra.mxu0 %v473
  %2226 = vmatprep.subr.mxu0 0.0
  %2227 = vmatpush2.msra.mxu0 %v472
  %2228 = vmatprep.subr.mxu0 0.0
  %2229 = vmatpush2.msra.mxu0 %v471
  %2230 = vmatprep.subr.mxu0 0.0
  %2231 = vmatpush2.msra.mxu0 %v470
  %2232 = vmatprep.subr.mxu0 0.0
  %2233 = vmatpush2.msra.mxu0 %v469
  %2234 = vmatprep.mubr.f32.mxu0 %v43
  %2235 = vmatmul.mubr.f32.gmra.mxu0 %v42
  %v2236 = vpop.f32.mrf.mxu0
  %v2237 = vadd.f32 %v2167, %v2236
  %v2238 = vpop.f32.mrf.mxu0
  %2239 = vdwg.mxu0
  %2240 = vmatprep.subr.mxu0 0.0
  %2241 = vmatpush1.msra.mxu0 %v500
  %2242 = vmatprep.subr.mxu0 0.0
  %2243 = vmatpush1.msra.mxu0 %v499
  %2244 = vmatprep.subr.mxu0 0.0
  %2245 = vmatpush1.msra.mxu0 %v498
  %2246 = vmatprep.subr.mxu0 0.0
  %2247 = vmatpush1.msra.mxu0 %v497
  %2248 = vmatprep.subr.mxu0 0.0
  %2249 = vmatpush1.msra.mxu0 %v496
  %2250 = vmatprep.subr.mxu0 0.0
  %2251 = vmatpush1.msra.mxu0 %v495
  %2252 = vmatprep.subr.mxu0 0.0
  %2253 = vmatpush1.msra.mxu0 %v494
  %2254 = vmatprep.subr.mxu0 0.0
  %2255 = vmatpush1.msra.mxu0 %v493
  %2256 = vmatprep.subr.mxu0 0.0
  %2257 = vmatpush1.msra.mxu0 %v492
  %2258 = vmatprep.subr.mxu0 0.0
  %2259 = vmatpush1.msra.mxu0 %v491
  %2260 = vmatprep.subr.mxu0 0.0
  %2261 = vmatpush1.msra.mxu0 %v490
  %2262 = vmatprep.subr.mxu0 0.0
  %2263 = vmatpush1.msra.mxu0 %v489
  %2264 = vmatprep.subr.mxu0 0.0
  %2265 = vmatpush1.msra.mxu0 %v488
  %2266 = vmatprep.subr.mxu0 0.0
  %2267 = vmatpush1.msra.mxu0 %v487
  %2268 = vmatprep.subr.mxu0 0.0
  %2269 = vmatpush1.msra.mxu0 %v486
  %2270 = vmatprep.subr.mxu0 0.0
  %2271 = vmatpush1.msra.mxu0 %v485
  %2272 = vmatprep.subr.mxu0 0.0
  %2273 = vmatpush2.msra.mxu0 %v516
  %2274 = vmatprep.subr.mxu0 0.0
  %2275 = vmatpush2.msra.mxu0 %v515
  %2276 = vmatprep.subr.mxu0 0.0
  %2277 = vmatpush2.msra.mxu0 %v514
  %2278 = vmatprep.subr.mxu0 0.0
  %2279 = vmatpush2.msra.mxu0 %v513
  %2280 = vmatprep.subr.mxu0 0.0
  %2281 = vmatpush2.msra.mxu0 %v512
  %2282 = vmatprep.subr.mxu0 0.0
  %2283 = vmatpush2.msra.mxu0 %v511
  %2284 = vmatprep.subr.mxu0 0.0
  %2285 = vmatpush2.msra.mxu0 %v510
  %2286 = vmatprep.subr.mxu0 0.0
  %2287 = vmatpush2.msra.mxu0 %v509
  %2288 = vmatprep.subr.mxu0 0.0
  %2289 = vmatpush2.msra.mxu0 %v508
  %2290 = vmatprep.subr.mxu0 0.0
  %2291 = vmatpush2.msra.mxu0 %v507
  %2292 = vmatprep.subr.mxu0 0.0
  %2293 = vmatpush2.msra.mxu0 %v506
  %2294 = vmatprep.subr.mxu0 0.0
  %2295 = vmatpush2.msra.mxu0 %v505
  %2296 = vmatprep.subr.mxu0 0.0
  %2297 = vmatpush2.msra.mxu0 %v504
  %2298 = vmatprep.subr.mxu0 0.0
  %2299 = vmatpush2.msra.mxu0 %v503
  %2300 = vmatprep.subr.mxu0 0.0
  %2301 = vmatpush2.msra.mxu0 %v502
  %2302 = vmatprep.subr.mxu0 0.0
  %2303 = vmatpush2.msra.mxu0 %v501
  %2304 = vmatprep.mubr.f32.mxu0 %v45
  %2305 = vmatmul.mubr.f32.gmra.mxu0 %v44
  %v2306 = vpop.f32.mrf.mxu0
  %v2307 = vadd.f32 %v2237, %v2306
  %v2308 = vpop.f32.mrf.mxu0
  %2309 = vdwg.mxu0
  %2310 = vmatprep.subr.mxu0 0.0
  %2311 = vmatpush1.msra.mxu0 %v532
  %2312 = vmatprep.subr.mxu0 0.0
  %2313 = vmatpush1.msra.mxu0 %v531
  %2314 = vmatprep.subr.mxu0 0.0
  %2315 = vmatpush1.msra.mxu0 %v530
  %2316 = vmatprep.subr.mxu0 0.0
  %2317 = vmatpush1.msra.mxu0 %v529
  %2318 = vmatprep.subr.mxu0 0.0
  %2319 = vmatpush1.msra.mxu0 %v528
  %2320 = vmatprep.subr.mxu0 0.0
  %2321 = vmatpush1.msra.mxu0 %v527
  %2322 = vmatprep.subr.mxu0 0.0
  %2323 = vmatpush1.msra.mxu0 %v526
  %2324 = vmatprep.subr.mxu0 0.0
  %2325 = vmatpush1.msra.mxu0 %v525
  %2326 = vmatprep.subr.mxu0 0.0
  %2327 = vmatpush1.msra.mxu0 %v524
  %2328 = vmatprep.subr.mxu0 0.0
  %2329 = vmatpush1.msra.mxu0 %v523
  %2330 = vmatprep.subr.mxu0 0.0
  %2331 = vmatpush1.msra.mxu0 %v522
  %2332 = vmatprep.subr.mxu0 0.0
  %2333 = vmatpush1.msra.mxu0 %v521
  %2334 = vmatprep.subr.mxu0 0.0
  %2335 = vmatpush1.msra.mxu0 %v520
  %2336 = vmatprep.subr.mxu0 0.0
  %2337 = vmatpush1.msra.mxu0 %v519
  %2338 = vmatprep.subr.mxu0 0.0
  %2339 = vmatpush1.msra.mxu0 %v518
  %2340 = vmatprep.subr.mxu0 0.0
  %2341 = vmatpush1.msra.mxu0 %v517
  %2342 = vmatprep.subr.mxu0 0.0
  %2343 = vmatpush2.msra.mxu0 %v548
  %2344 = vmatprep.subr.mxu0 0.0
  %2345 = vmatpush2.msra.mxu0 %v547
  %2346 = vmatprep.subr.mxu0 0.0
  %2347 = vmatpush2.msra.mxu0 %v546
  %2348 = vmatprep.subr.mxu0 0.0
  %2349 = vmatpush2.msra.mxu0 %v545
  %2350 = vmatprep.subr.mxu0 0.0
  %2351 = vmatpush2.msra.mxu0 %v544
  %2352 = vmatprep.subr.mxu0 0.0
  %2353 = vmatpush2.msra.mxu0 %v543
  %2354 = vmatprep.subr.mxu0 0.0
  %2355 = vmatpush2.msra.mxu0 %v542
  %2356 = vmatprep.subr.mxu0 0.0
  %2357 = vmatpush2.msra.mxu0 %v541
  %2358 = vmatprep.subr.mxu0 0.0
  %2359 = vmatpush2.msra.mxu0 %v540
  %2360 = vmatprep.subr.mxu0 0.0
  %2361 = vmatpush2.msra.mxu0 %v539
  %2362 = vmatprep.subr.mxu0 0.0
  %2363 = vmatpush2.msra.mxu0 %v538
  %2364 = vmatprep.subr.mxu0 0.0
  %2365 = vmatpush2.msra.mxu0 %v537
  %2366 = vmatprep.subr.mxu0 0.0
  %2367 = vmatpush2.msra.mxu0 %v536
  %2368 = vmatprep.subr.mxu0 0.0
  %2369 = vmatpush2.msra.mxu0 %v535
  %2370 = vmatprep.subr.mxu0 0.0
  %2371 = vmatpush2.msra.mxu0 %v534
  %2372 = vmatprep.subr.mxu0 0.0
  %2373 = vmatpush2.msra.mxu0 %v533
  %2374 = vmatprep.mubr.f32.mxu0 %v47
  %2375 = vmatmul.mubr.f32.gmra.mxu0 %v46
  %v2376 = vpop.f32.mrf.mxu0
  %v2377 = vadd.f32 %v2307, %v2376
  %v2378 = vpop.f32.mrf.mxu0
  %2379 = vdwg.mxu0
  %2380 = vmatprep.subr.mxu0 0.0
  %2381 = vmatpush1.msra.mxu0 %v564
  %2382 = vmatprep.subr.mxu0 0.0
  %2383 = vmatpush1.msra.mxu0 %v563
  %2384 = vmatprep.subr.mxu0 0.0
  %2385 = vmatpush1.msra.mxu0 %v562
  %2386 = vmatprep.subr.mxu0 0.0
  %2387 = vmatpush1.msra.mxu0 %v561
  %2388 = vmatprep.subr.mxu0 0.0
  %2389 = vmatpush1.msra.mxu0 %v560
  %2390 = vmatprep.subr.mxu0 0.0
  %2391 = vmatpush1.msra.mxu0 %v559
  %2392 = vmatprep.subr.mxu0 0.0
  %2393 = vmatpush1.msra.mxu0 %v558
  %2394 = vmatprep.subr.mxu0 0.0
  %2395 = vmatpush1.msra.mxu0 %v557
  %2396 = vmatprep.subr.mxu0 0.0
  %2397 = vmatpush1.msra.mxu0 %v556
  %2398 = vmatprep.subr.mxu0 0.0
  %2399 = vmatpush1.msra.mxu0 %v555
  %2400 = vmatprep.subr.mxu0 0.0
  %2401 = vmatpush1.msra.mxu0 %v554
  %2402 = vmatprep.subr.mxu0 0.0
  %2403 = vmatpush1.msra.mxu0 %v553
  %2404 = vmatprep.subr.mxu0 0.0
  %2405 = vmatpush1.msra.mxu0 %v552
  %2406 = vmatprep.subr.mxu0 0.0
  %2407 = vmatpush1.msra.mxu0 %v551
  %2408 = vmatprep.subr.mxu0 0.0
  %2409 = vmatpush1.msra.mxu0 %v550
  %2410 = vmatprep.subr.mxu0 0.0
  %2411 = vmatpush1.msra.mxu0 %v549
  %2412 = vmatprep.subr.mxu0 0.0
  %2413 = vmatpush2.msra.mxu0 %v580
  %2414 = vmatprep.subr.mxu0 0.0
  %2415 = vmatpush2.msra.mxu0 %v579
  %2416 = vmatprep.subr.mxu0 0.0
  %2417 = vmatpush2.msra.mxu0 %v578
  %2418 = vmatprep.subr.mxu0 0.0
  %2419 = vmatpush2.msra.mxu0 %v577
  %2420 = vmatprep.subr.mxu0 0.0
  %2421 = vmatpush2.msra.mxu0 %v576
  %2422 = vmatprep.subr.mxu0 0.0
  %2423 = vmatpush2.msra.mxu0 %v575
  %2424 = vmatprep.subr.mxu0 0.0
  %2425 = vmatpush2.msra.mxu0 %v574
  %2426 = vmatprep.subr.mxu0 0.0
  %2427 = vmatpush2.msra.mxu0 %v573
  %2428 = vmatprep.subr.mxu0 0.0
  %2429 = vmatpush2.msra.mxu0 %v572
  %2430 = vmatprep.subr.mxu0 0.0
  %2431 = vmatpush2.msra.mxu0 %v571
  %2432 = vmatprep.subr.mxu0 0.0
  %2433 = vmatpush2.msra.mxu0 %v570
  %2434 = vmatprep.subr.mxu0 0.0
  %2435 = vmatpush2.msra.mxu0 %v569
  %2436 = vmatprep.subr.mxu0 0.0
  %2437 = vmatpush2.msra.mxu0 %v568
  %2438 = vmatprep.subr.mxu0 0.0
  %2439 = vmatpush2.msra.mxu0 %v567
  %2440 = vmatprep.subr.mxu0 0.0
  %2441 = vmatpush2.msra.mxu0 %v566
  %2442 = vmatprep.subr.mxu0 0.0
  %2443 = vmatpush2.msra.mxu0 %v565
  %2444 = vmatprep.mubr.f32.mxu0 %v49
  %2445 = vmatmul.mubr.f32.gmra.mxu0 %v48
  %v2446 = vpop.f32.mrf.mxu0
  %v2447 = vadd.f32 %v2377, %v2446
  %v2448 = vpop.f32.mrf.mxu0
  %2449 = vdwg.mxu0
  %2450 = vmatprep.subr.mxu0 0.0
  %2451 = vmatpush1.msra.mxu0 %v596
  %2452 = vmatprep.subr.mxu0 0.0
  %2453 = vmatpush1.msra.mxu0 %v595
  %2454 = vmatprep.subr.mxu0 0.0
  %2455 = vmatpush1.msra.mxu0 %v594
  %2456 = vmatprep.subr.mxu0 0.0
  %2457 = vmatpush1.msra.mxu0 %v593
  %2458 = vmatprep.subr.mxu0 0.0
  %2459 = vmatpush1.msra.mxu0 %v592
  %2460 = vmatprep.subr.mxu0 0.0
  %2461 = vmatpush1.msra.mxu0 %v591
  %2462 = vmatprep.subr.mxu0 0.0
  %2463 = vmatpush1.msra.mxu0 %v590
  %2464 = vmatprep.subr.mxu0 0.0
  %2465 = vmatpush1.msra.mxu0 %v589
  %2466 = vmatprep.subr.mxu0 0.0
  %2467 = vmatpush1.msra.mxu0 %v588
  %2468 = vmatprep.subr.mxu0 0.0
  %2469 = vmatpush1.msra.mxu0 %v587
  %2470 = vmatprep.subr.mxu0 0.0
  %2471 = vmatpush1.msra.mxu0 %v586
  %2472 = vmatprep.subr.mxu0 0.0
  %2473 = vmatpush1.msra.mxu0 %v585
  %2474 = vmatprep.subr.mxu0 0.0
  %2475 = vmatpush1.msra.mxu0 %v584
  %2476 = vmatprep.subr.mxu0 0.0
  %2477 = vmatpush1.msra.mxu0 %v583
  %2478 = vmatprep.subr.mxu0 0.0
  %2479 = vmatpush1.msra.mxu0 %v582
  %2480 = vmatprep.subr.mxu0 0.0
  %2481 = vmatpush1.msra.mxu0 %v581
  %2482 = vmatprep.subr.mxu0 0.0
  %2483 = vmatpush2.msra.mxu0 %v612
  %2484 = vmatprep.subr.mxu0 0.0
  %2485 = vmatpush2.msra.mxu0 %v611
  %2486 = vmatprep.subr.mxu0 0.0
  %2487 = vmatpush2.msra.mxu0 %v610
  %2488 = vmatprep.subr.mxu0 0.0
  %2489 = vmatpush2.msra.mxu0 %v609
  %2490 = vmatprep.subr.mxu0 0.0
  %2491 = vmatpush2.msra.mxu0 %v608
  %2492 = vmatprep.subr.mxu0 0.0
  %2493 = vmatpush2.msra.mxu0 %v607
  %2494 = vmatprep.subr.mxu0 0.0
  %2495 = vmatpush2.msra.mxu0 %v606
  %2496 = vmatprep.subr.mxu0 0.0
  %2497 = vmatpush2.msra.mxu0 %v605
  %2498 = vmatprep.subr.mxu0 0.0
  %2499 = vmatpush2.msra.mxu0 %v604
  %2500 = vmatprep.subr.mxu0 0.0
  %2501 = vmatpush2.msra.mxu0 %v603
  %2502 = vmatprep.subr.mxu0 0.0
  %2503 = vmatpush2.msra.mxu0 %v602
  %2504 = vmatprep.subr.mxu0 0.0
  %2505 = vmatpush2.msra.mxu0 %v601
  %2506 = vmatprep.subr.mxu0 0.0
  %2507 = vmatpush2.msra.mxu0 %v600
  %2508 = vmatprep.subr.mxu0 0.0
  %2509 = vmatpush2.msra.mxu0 %v599
  %2510 = vmatprep.subr.mxu0 0.0
  %2511 = vmatpush2.msra.mxu0 %v598
  %2512 = vmatprep.subr.mxu0 0.0
  %2513 = vmatpush2.msra.mxu0 %v597
  %2514 = vmatprep.mubr.f32.mxu0 %v51
  %2515 = vmatmul.mubr.f32.gmra.mxu0 %v50
  %v2516 = vpop.f32.mrf.mxu0
  %v2517 = vadd.f32 %v2447, %v2516
  %v2518 = vpop.f32.mrf.mxu0
  %2519 = vdwg.mxu0
  %2520 = vmatprep.subr.mxu0 0.0
  %2521 = vmatpush1.msra.mxu0 %v628
  %2522 = vmatprep.subr.mxu0 0.0
  %2523 = vmatpush1.msra.mxu0 %v627
  %2524 = vmatprep.subr.mxu0 0.0
  %2525 = vmatpush1.msra.mxu0 %v626
  %2526 = vmatprep.subr.mxu0 0.0
  %2527 = vmatpush1.msra.mxu0 %v625
  %2528 = vmatprep.subr.mxu0 0.0
  %2529 = vmatpush1.msra.mxu0 %v624
  %2530 = vmatprep.subr.mxu0 0.0
  %2531 = vmatpush1.msra.mxu0 %v623
  %2532 = vmatprep.subr.mxu0 0.0
  %2533 = vmatpush1.msra.mxu0 %v622
  %2534 = vmatprep.subr.mxu0 0.0
  %2535 = vmatpush1.msra.mxu0 %v621
  %2536 = vmatprep.subr.mxu0 0.0
  %2537 = vmatpush1.msra.mxu0 %v620
  %2538 = vmatprep.subr.mxu0 0.0
  %2539 = vmatpush1.msra.mxu0 %v619
  %2540 = vmatprep.subr.mxu0 0.0
  %2541 = vmatpush1.msra.mxu0 %v618
  %2542 = vmatprep.subr.mxu0 0.0
  %2543 = vmatpush1.msra.mxu0 %v617
  %2544 = vmatprep.subr.mxu0 0.0
  %2545 = vmatpush1.msra.mxu0 %v616
  %2546 = vmatprep.subr.mxu0 0.0
  %2547 = vmatpush1.msra.mxu0 %v615
  %2548 = vmatprep.subr.mxu0 0.0
  %2549 = vmatpush1.msra.mxu0 %v614
  %2550 = vmatprep.subr.mxu0 0.0
  %2551 = vmatpush1.msra.mxu0 %v613
  %2552 = vmatprep.subr.mxu0 0.0
  %2553 = vmatpush2.msra.mxu0 %v644
  %2554 = vmatprep.subr.mxu0 0.0
  %2555 = vmatpush2.msra.mxu0 %v643
  %2556 = vmatprep.subr.mxu0 0.0
  %2557 = vmatpush2.msra.mxu0 %v642
  %2558 = vmatprep.subr.mxu0 0.0
  %2559 = vmatpush2.msra.mxu0 %v641
  %2560 = vmatprep.subr.mxu0 0.0
  %2561 = vmatpush2.msra.mxu0 %v640
  %2562 = vmatprep.subr.mxu0 0.0
  %2563 = vmatpush2.msra.mxu0 %v639
  %2564 = vmatprep.subr.mxu0 0.0
  %2565 = vmatpush2.msra.mxu0 %v638
  %2566 = vmatprep.subr.mxu0 0.0
  %2567 = vmatpush2.msra.mxu0 %v637
  %2568 = vmatprep.subr.mxu0 0.0
  %2569 = vmatpush2.msra.mxu0 %v636
  %2570 = vmatprep.subr.mxu0 0.0
  %2571 = vmatpush2.msra.mxu0 %v635
  %2572 = vmatprep.subr.mxu0 0.0
  %2573 = vmatpush2.msra.mxu0 %v634
  %2574 = vmatprep.subr.mxu0 0.0
  %2575 = vmatpush2.msra.mxu0 %v633
  %2576 = vmatprep.subr.mxu0 0.0
  %2577 = vmatpush2.msra.mxu0 %v632
  %2578 = vmatprep.subr.mxu0 0.0
  %2579 = vmatpush2.msra.mxu0 %v631
  %2580 = vmatprep.subr.mxu0 0.0
  %2581 = vmatpush2.msra.mxu0 %v630
  %2582 = vmatprep.subr.mxu0 0.0
  %2583 = vmatpush2.msra.mxu0 %v629
  %2584 = vmatprep.mubr.f32.mxu0 %v53
  %2585 = vmatmul.mubr.f32.gmra.mxu0 %v52
  %v2586 = vpop.f32.mrf.mxu0
  %v2587 = vadd.f32 %v2517, %v2586
  %v2588 = vpop.f32.mrf.mxu0
  %2589 = vdwg.mxu0
  %2590 = vmatprep.subr.mxu0 0.0
  %2591 = vmatpush1.msra.mxu0 %v660
  %2592 = vmatprep.subr.mxu0 0.0
  %2593 = vmatpush1.msra.mxu0 %v659
  %2594 = vmatprep.subr.mxu0 0.0
  %2595 = vmatpush1.msra.mxu0 %v658
  %2596 = vmatprep.subr.mxu0 0.0
  %2597 = vmatpush1.msra.mxu0 %v657
  %2598 = vmatprep.subr.mxu0 0.0
  %2599 = vmatpush1.msra.mxu0 %v656
  %2600 = vmatprep.subr.mxu0 0.0
  %2601 = vmatpush1.msra.mxu0 %v655
  %2602 = vmatprep.subr.mxu0 0.0
  %2603 = vmatpush1.msra.mxu0 %v654
  %2604 = vmatprep.subr.mxu0 0.0
  %2605 = vmatpush1.msra.mxu0 %v653
  %2606 = vmatprep.subr.mxu0 0.0
  %2607 = vmatpush1.msra.mxu0 %v652
  %2608 = vmatprep.subr.mxu0 0.0
  %2609 = vmatpush1.msra.mxu0 %v651
  %2610 = vmatprep.subr.mxu0 0.0
  %2611 = vmatpush1.msra.mxu0 %v650
  %2612 = vmatprep.subr.mxu0 0.0
  %2613 = vmatpush1.msra.mxu0 %v649
  %2614 = vmatprep.subr.mxu0 0.0
  %2615 = vmatpush1.msra.mxu0 %v648
  %2616 = vmatprep.subr.mxu0 0.0
  %2617 = vmatpush1.msra.mxu0 %v647
  %2618 = vmatprep.subr.mxu0 0.0
  %2619 = vmatpush1.msra.mxu0 %v646
  %2620 = vmatprep.subr.mxu0 0.0
  %2621 = vmatpush1.msra.mxu0 %v645
  %2622 = vmatprep.subr.mxu0 0.0
  %2623 = vmatpush2.msra.mxu0 %v676
  %2624 = vmatprep.subr.mxu0 0.0
  %2625 = vmatpush2.msra.mxu0 %v675
  %2626 = vmatprep.subr.mxu0 0.0
  %2627 = vmatpush2.msra.mxu0 %v674
  %2628 = vmatprep.subr.mxu0 0.0
  %2629 = vmatpush2.msra.mxu0 %v673
  %2630 = vmatprep.subr.mxu0 0.0
  %2631 = vmatpush2.msra.mxu0 %v672
  %2632 = vmatprep.subr.mxu0 0.0
  %2633 = vmatpush2.msra.mxu0 %v671
  %2634 = vmatprep.subr.mxu0 0.0
  %2635 = vmatpush2.msra.mxu0 %v670
  %2636 = vmatprep.subr.mxu0 0.0
  %2637 = vmatpush2.msra.mxu0 %v669
  %2638 = vmatprep.subr.mxu0 0.0
  %2639 = vmatpush2.msra.mxu0 %v668
  %2640 = vmatprep.subr.mxu0 0.0
  %2641 = vmatpush2.msra.mxu0 %v667
  %2642 = vmatprep.subr.mxu0 0.0
  %2643 = vmatpush2.msra.mxu0 %v666
  %2644 = vmatprep.subr.mxu0 0.0
  %2645 = vmatpush2.msra.mxu0 %v665
  %2646 = vmatprep.subr.mxu0 0.0
  %2647 = vmatpush2.msra.mxu0 %v664
  %2648 = vmatprep.subr.mxu0 0.0
  %2649 = vmatpush2.msra.mxu0 %v663
  %2650 = vmatprep.subr.mxu0 0.0
  %2651 = vmatpush2.msra.mxu0 %v662
  %2652 = vmatprep.subr.mxu0 0.0
  %2653 = vmatpush2.msra.mxu0 %v661
  %2654 = vmatprep.mubr.f32.mxu0 %v55
  %2655 = vmatmul.mubr.f32.gmra.mxu0 %v54
  %v2656 = vpop.f32.mrf.mxu0
  %v2657 = vadd.f32 %v2587, %v2656
  %v2658 = vpop.f32.mrf.mxu0
  %2659 = vdwg.mxu0
  %2660 = vmatprep.subr.mxu0 0.0
  %2661 = vmatpush1.msra.mxu0 %v692
  %2662 = vmatprep.subr.mxu0 0.0
  %2663 = vmatpush1.msra.mxu0 %v691
  %2664 = vmatprep.subr.mxu0 0.0
  %2665 = vmatpush1.msra.mxu0 %v690
  %2666 = vmatprep.subr.mxu0 0.0
  %2667 = vmatpush1.msra.mxu0 %v689
  %2668 = vmatprep.subr.mxu0 0.0
  %2669 = vmatpush1.msra.mxu0 %v688
  %2670 = vmatprep.subr.mxu0 0.0
  %2671 = vmatpush1.msra.mxu0 %v687
  %2672 = vmatprep.subr.mxu0 0.0
  %2673 = vmatpush1.msra.mxu0 %v686
  %2674 = vmatprep.subr.mxu0 0.0
  %2675 = vmatpush1.msra.mxu0 %v685
  %2676 = vmatprep.subr.mxu0 0.0
  %2677 = vmatpush1.msra.mxu0 %v684
  %2678 = vmatprep.subr.mxu0 0.0
  %2679 = vmatpush1.msra.mxu0 %v683
  %2680 = vmatprep.subr.mxu0 0.0
  %2681 = vmatpush1.msra.mxu0 %v682
  %2682 = vmatprep.subr.mxu0 0.0
  %2683 = vmatpush1.msra.mxu0 %v681
  %2684 = vmatprep.subr.mxu0 0.0
  %2685 = vmatpush1.msra.mxu0 %v680
  %2686 = vmatprep.subr.mxu0 0.0
  %2687 = vmatpush1.msra.mxu0 %v679
  %2688 = vmatprep.subr.mxu0 0.0
  %2689 = vmatpush1.msra.mxu0 %v678
  %2690 = vmatprep.subr.mxu0 0.0
  %2691 = vmatpush1.msra.mxu0 %v677
  %2692 = vmatprep.subr.mxu0 0.0
  %2693 = vmatpush2.msra.mxu0 %v708
  %2694 = vmatprep.subr.mxu0 0.0
  %2695 = vmatpush2.msra.mxu0 %v707
  %2696 = vmatprep.subr.mxu0 0.0
  %2697 = vmatpush2.msra.mxu0 %v706
  %2698 = vmatprep.subr.mxu0 0.0
  %2699 = vmatpush2.msra.mxu0 %v705
  %2700 = vmatprep.subr.mxu0 0.0
  %2701 = vmatpush2.msra.mxu0 %v704
  %2702 = vmatprep.subr.mxu0 0.0
  %2703 = vmatpush2.msra.mxu0 %v703
  %2704 = vmatprep.subr.mxu0 0.0
  %2705 = vmatpush2.msra.mxu0 %v702
  %2706 = vmatprep.subr.mxu0 0.0
  %2707 = vmatpush2.msra.mxu0 %v701
  %2708 = vmatprep.subr.mxu0 0.0
  %2709 = vmatpush2.msra.mxu0 %v700
  %2710 = vmatprep.subr.mxu0 0.0
  %2711 = vmatpush2.msra.mxu0 %v699
  %2712 = vmatprep.subr.mxu0 0.0
  %2713 = vmatpush2.msra.mxu0 %v698
  %2714 = vmatprep.subr.mxu0 0.0
  %2715 = vmatpush2.msra.mxu0 %v697
  %2716 = vmatprep.subr.mxu0 0.0
  %2717 = vmatpush2.msra.mxu0 %v696
  %2718 = vmatprep.subr.mxu0 0.0
  %2719 = vmatpush2.msra.mxu0 %v695
  %2720 = vmatprep.subr.mxu0 0.0
  %2721 = vmatpush2.msra.mxu0 %v694
  %2722 = vmatprep.subr.mxu0 0.0
  %2723 = vmatpush2.msra.mxu0 %v693
  %2724 = vmatprep.mubr.f32.mxu0 %v57
  %2725 = vmatmul.mubr.f32.gmra.mxu0 %v56
  %v2726 = vpop.f32.mrf.mxu0
  %v2727 = vadd.f32 %v2657, %v2726
  %v2728 = vpop.f32.mrf.mxu0
  %2729 = vdwg.mxu0
  %2730 = vmatprep.subr.mxu0 0.0
  %2731 = vmatpush1.msra.mxu0 %v724
  %2732 = vmatprep.subr.mxu0 0.0
  %2733 = vmatpush1.msra.mxu0 %v723
  %2734 = vmatprep.subr.mxu0 0.0
  %2735 = vmatpush1.msra.mxu0 %v722
  %2736 = vmatprep.subr.mxu0 0.0
  %2737 = vmatpush1.msra.mxu0 %v721
  %2738 = vmatprep.subr.mxu0 0.0
  %2739 = vmatpush1.msra.mxu0 %v720
  %2740 = vmatprep.subr.mxu0 0.0
  %2741 = vmatpush1.msra.mxu0 %v719
  %2742 = vmatprep.subr.mxu0 0.0
  %2743 = vmatpush1.msra.mxu0 %v718
  %2744 = vmatprep.subr.mxu0 0.0
  %2745 = vmatpush1.msra.mxu0 %v717
  %2746 = vmatprep.subr.mxu0 0.0
  %2747 = vmatpush1.msra.mxu0 %v716
  %2748 = vmatprep.subr.mxu0 0.0
  %2749 = vmatpush1.msra.mxu0 %v715
  %2750 = vmatprep.subr.mxu0 0.0
  %2751 = vmatpush1.msra.mxu0 %v714
  %2752 = vmatprep.subr.mxu0 0.0
  %2753 = vmatpush1.msra.mxu0 %v713
  %2754 = vmatprep.subr.mxu0 0.0
  %2755 = vmatpush1.msra.mxu0 %v712
  %2756 = vmatprep.subr.mxu0 0.0
  %2757 = vmatpush1.msra.mxu0 %v711
  %2758 = vmatprep.subr.mxu0 0.0
  %2759 = vmatpush1.msra.mxu0 %v710
  %2760 = vmatprep.subr.mxu0 0.0
  %2761 = vmatpush1.msra.mxu0 %v709
  %2762 = vmatprep.subr.mxu0 0.0
  %2763 = vmatpush2.msra.mxu0 %v740
  %2764 = vmatprep.subr.mxu0 0.0
  %2765 = vmatpush2.msra.mxu0 %v739
  %2766 = vmatprep.subr.mxu0 0.0
  %2767 = vmatpush2.msra.mxu0 %v738
  %2768 = vmatprep.subr.mxu0 0.0
  %2769 = vmatpush2.msra.mxu0 %v737
  %2770 = vmatprep.subr.mxu0 0.0
  %2771 = vmatpush2.msra.mxu0 %v736
  %2772 = vmatprep.subr.mxu0 0.0
  %2773 = vmatpush2.msra.mxu0 %v735
  %2774 = vmatprep.subr.mxu0 0.0
  %2775 = vmatpush2.msra.mxu0 %v734
  %2776 = vmatprep.subr.mxu0 0.0
  %2777 = vmatpush2.msra.mxu0 %v733
  %2778 = vmatprep.subr.mxu0 0.0
  %2779 = vmatpush2.msra.mxu0 %v732
  %2780 = vmatprep.subr.mxu0 0.0
  %2781 = vmatpush2.msra.mxu0 %v731
  %2782 = vmatprep.subr.mxu0 0.0
  %2783 = vmatpush2.msra.mxu0 %v730
  %2784 = vmatprep.subr.mxu0 0.0
  %2785 = vmatpush2.msra.mxu0 %v729
  %2786 = vmatprep.subr.mxu0 0.0
  %2787 = vmatpush2.msra.mxu0 %v728
  %2788 = vmatprep.subr.mxu0 0.0
  %2789 = vmatpush2.msra.mxu0 %v727
  %2790 = vmatprep.subr.mxu0 0.0
  %2791 = vmatpush2.msra.mxu0 %v726
  %2792 = vmatprep.subr.mxu0 0.0
  %2793 = vmatpush2.msra.mxu0 %v725
  %2794 = vmatprep.mubr.f32.mxu0 %v59
  %2795 = vmatmul.mubr.f32.gmra.mxu0 %v58
  %v2796 = vpop.f32.mrf.mxu0
  %v2797 = vadd.f32 %v2727, %v2796
  %v2798 = vpop.f32.mrf.mxu0
  %2799 = vdwg.mxu0
  %2800 = vmatprep.subr.mxu0 0.0
  %2801 = vmatpush1.msra.mxu0 %v756
  %2802 = vmatprep.subr.mxu0 0.0
  %2803 = vmatpush1.msra.mxu0 %v755
  %2804 = vmatprep.subr.mxu0 0.0
  %2805 = vmatpush1.msra.mxu0 %v754
  %2806 = vmatprep.subr.mxu0 0.0
  %2807 = vmatpush1.msra.mxu0 %v753
  %2808 = vmatprep.subr.mxu0 0.0
  %2809 = vmatpush1.msra.mxu0 %v752
  %2810 = vmatprep.subr.mxu0 0.0
  %2811 = vmatpush1.msra.mxu0 %v751
  %2812 = vmatprep.subr.mxu0 0.0
  %2813 = vmatpush1.msra.mxu0 %v750
  %2814 = vmatprep.subr.mxu0 0.0
  %2815 = vmatpush1.msra.mxu0 %v749
  %2816 = vmatprep.subr.mxu0 0.0
  %2817 = vmatpush1.msra.mxu0 %v748
  %2818 = vmatprep.subr.mxu0 0.0
  %2819 = vmatpush1.msra.mxu0 %v747
  %2820 = vmatprep.subr.mxu0 0.0
  %2821 = vmatpush1.msra.mxu0 %v746
  %2822 = vmatprep.subr.mxu0 0.0
  %2823 = vmatpush1.msra.mxu0 %v745
  %2824 = vmatprep.subr.mxu0 0.0
  %2825 = vmatpush1.msra.mxu0 %v744
  %2826 = vmatprep.subr.mxu0 0.0
  %2827 = vmatpush1.msra.mxu0 %v743
  %2828 = vmatprep.subr.mxu0 0.0
  %2829 = vmatpush1.msra.mxu0 %v742
  %2830 = vmatprep.subr.mxu0 0.0
  %2831 = vmatpush1.msra.mxu0 %v741
  %2832 = vmatprep.subr.mxu0 0.0
  %2833 = vmatpush2.msra.mxu0 %v772
  %2834 = vmatprep.subr.mxu0 0.0
  %2835 = vmatpush2.msra.mxu0 %v771
  %2836 = vmatprep.subr.mxu0 0.0
  %2837 = vmatpush2.msra.mxu0 %v770
  %2838 = vmatprep.subr.mxu0 0.0
  %2839 = vmatpush2.msra.mxu0 %v769
  %2840 = vmatprep.subr.mxu0 0.0
  %2841 = vmatpush2.msra.mxu0 %v768
  %2842 = vmatprep.subr.mxu0 0.0
  %2843 = vmatpush2.msra.mxu0 %v767
  %2844 = vmatprep.subr.mxu0 0.0
  %2845 = vmatpush2.msra.mxu0 %v766
  %2846 = vmatprep.subr.mxu0 0.0
  %2847 = vmatpush2.msra.mxu0 %v765
  %2848 = vmatprep.subr.mxu0 0.0
  %2849 = vmatpush2.msra.mxu0 %v764
  %2850 = vmatprep.subr.mxu0 0.0
  %2851 = vmatpush2.msra.mxu0 %v763
  %2852 = vmatprep.subr.mxu0 0.0
  %2853 = vmatpush2.msra.mxu0 %v762
  %2854 = vmatprep.subr.mxu0 0.0
  %2855 = vmatpush2.msra.mxu0 %v761
  %2856 = vmatprep.subr.mxu0 0.0
  %2857 = vmatpush2.msra.mxu0 %v760
  %2858 = vmatprep.subr.mxu0 0.0
  %2859 = vmatpush2.msra.mxu0 %v759
  %2860 = vmatprep.subr.mxu0 0.0
  %2861 = vmatpush2.msra.mxu0 %v758
  %2862 = vmatprep.subr.mxu0 0.0
  %2863 = vmatpush2.msra.mxu0 %v757
  %2864 = vmatprep.mubr.f32.mxu0 %v61
  %2865 = vmatmul.mubr.f32.gmra.mxu0 %v60
  %v2866 = vpop.f32.mrf.mxu0
  %v2867 = vadd.f32 %v2797, %v2866
  %v2868 = vpop.f32.mrf.mxu0
  %2869 = vdwg.mxu0
  %2870 = vmatprep.subr.mxu0 0.0
  %2871 = vmatpush1.msra.mxu0 %v788
  %2872 = vmatprep.subr.mxu0 0.0
  %2873 = vmatpush1.msra.mxu0 %v787
  %2874 = vmatprep.subr.mxu0 0.0
  %2875 = vmatpush1.msra.mxu0 %v786
  %2876 = vmatprep.subr.mxu0 0.0
  %2877 = vmatpush1.msra.mxu0 %v785
  %2878 = vmatprep.subr.mxu0 0.0
  %2879 = vmatpush1.msra.mxu0 %v784
  %2880 = vmatprep.subr.mxu0 0.0
  %2881 = vmatpush1.msra.mxu0 %v783
  %2882 = vmatprep.subr.mxu0 0.0
  %2883 = vmatpush1.msra.mxu0 %v782
  %2884 = vmatprep.subr.mxu0 0.0
  %2885 = vmatpush1.msra.mxu0 %v781
  %2886 = vmatprep.subr.mxu0 0.0
  %2887 = vmatpush1.msra.mxu0 %v780
  %2888 = vmatprep.subr.mxu0 0.0
  %2889 = vmatpush1.msra.mxu0 %v779
  %2890 = vmatprep.subr.mxu0 0.0
  %2891 = vmatpush1.msra.mxu0 %v778
  %2892 = vmatprep.subr.mxu0 0.0
  %2893 = vmatpush1.msra.mxu0 %v777
  %2894 = vmatprep.subr.mxu0 0.0
  %2895 = vmatpush1.msra.mxu0 %v776
  %2896 = vmatprep.subr.mxu0 0.0
  %2897 = vmatpush1.msra.mxu0 %v775
  %2898 = vmatprep.subr.mxu0 0.0
  %2899 = vmatpush1.msra.mxu0 %v774
  %2900 = vmatprep.subr.mxu0 0.0
  %2901 = vmatpush1.msra.mxu0 %v773
  %2902 = vmatprep.subr.mxu0 0.0
  %2903 = vmatpush2.msra.mxu0 %v804
  %2904 = vmatprep.subr.mxu0 0.0
  %2905 = vmatpush2.msra.mxu0 %v803
  %2906 = vmatprep.subr.mxu0 0.0
  %2907 = vmatpush2.msra.mxu0 %v802
  %2908 = vmatprep.subr.mxu0 0.0
  %2909 = vmatpush2.msra.mxu0 %v801
  %2910 = vmatprep.subr.mxu0 0.0
  %2911 = vmatpush2.msra.mxu0 %v800
  %2912 = vmatprep.subr.mxu0 0.0
  %2913 = vmatpush2.msra.mxu0 %v799
  %2914 = vmatprep.subr.mxu0 0.0
  %2915 = vmatpush2.msra.mxu0 %v798
  %2916 = vmatprep.subr.mxu0 0.0
  %2917 = vmatpush2.msra.mxu0 %v797
  %2918 = vmatprep.subr.mxu0 0.0
  %2919 = vmatpush2.msra.mxu0 %v796
  %2920 = vmatprep.subr.mxu0 0.0
  %2921 = vmatpush2.msra.mxu0 %v795
  %2922 = vmatprep.subr.mxu0 0.0
  %2923 = vmatpush2.msra.mxu0 %v794
  %2924 = vmatprep.subr.mxu0 0.0
  %2925 = vmatpush2.msra.mxu0 %v793
  %2926 = vmatprep.subr.mxu0 0.0
  %2927 = vmatpush2.msra.mxu0 %v792
  %2928 = vmatprep.subr.mxu0 0.0
  %2929 = vmatpush2.msra.mxu0 %v791
  %2930 = vmatprep.subr.mxu0 0.0
  %2931 = vmatpush2.msra.mxu0 %v790
  %2932 = vmatprep.subr.mxu0 0.0
  %2933 = vmatpush2.msra.mxu0 %v789
  %2934 = vmatprep.mubr.f32.mxu0 %v63
  %2935 = vmatmul.mubr.f32.gmra.mxu0 %v62
  %v2936 = vpop.f32.mrf.mxu0
  %v2937 = vadd.f32 %v2867, %v2936
  %v2938 = vpop.f32.mrf.mxu0
  %2939 = vdwg.mxu0
  %2940 = vmatprep.subr.mxu0 0.0
  %2941 = vmatpush1.msra.mxu0 %v820
  %2942 = vmatprep.subr.mxu0 0.0
  %2943 = vmatpush1.msra.mxu0 %v819
  %2944 = vmatprep.subr.mxu0 0.0
  %2945 = vmatpush1.msra.mxu0 %v818
  %2946 = vmatprep.subr.mxu0 0.0
  %2947 = vmatpush1.msra.mxu0 %v817
  %2948 = vmatprep.subr.mxu0 0.0
  %2949 = vmatpush1.msra.mxu0 %v816
  %2950 = vmatprep.subr.mxu0 0.0
  %2951 = vmatpush1.msra.mxu0 %v815
  %2952 = vmatprep.subr.mxu0 0.0
  %2953 = vmatpush1.msra.mxu0 %v814
  %2954 = vmatprep.subr.mxu0 0.0
  %2955 = vmatpush1.msra.mxu0 %v813
  %2956 = vmatprep.subr.mxu0 0.0
  %2957 = vmatpush1.msra.mxu0 %v812
  %2958 = vmatprep.subr.mxu0 0.0
  %2959 = vmatpush1.msra.mxu0 %v811
  %2960 = vmatprep.subr.mxu0 0.0
  %2961 = vmatpush1.msra.mxu0 %v810
  %2962 = vmatprep.subr.mxu0 0.0
  %2963 = vmatpush1.msra.mxu0 %v809
  %2964 = vmatprep.subr.mxu0 0.0
  %2965 = vmatpush1.msra.mxu0 %v808
  %2966 = vmatprep.subr.mxu0 0.0
  %2967 = vmatpush1.msra.mxu0 %v807
  %2968 = vmatprep.subr.mxu0 0.0
  %2969 = vmatpush1.msra.mxu0 %v806
  %2970 = vmatprep.subr.mxu0 0.0
  %2971 = vmatpush1.msra.mxu0 %v805
  %2972 = vmatprep.subr.mxu0 0.0
  %2973 = vmatpush2.msra.mxu0 %v836
  %2974 = vmatprep.subr.mxu0 0.0
  %2975 = vmatpush2.msra.mxu0 %v835
  %2976 = vmatprep.subr.mxu0 0.0
  %2977 = vmatpush2.msra.mxu0 %v834
  %2978 = vmatprep.subr.mxu0 0.0
  %2979 = vmatpush2.msra.mxu0 %v833
  %2980 = vmatprep.subr.mxu0 0.0
  %2981 = vmatpush2.msra.mxu0 %v832
  %2982 = vmatprep.subr.mxu0 0.0
  %2983 = vmatpush2.msra.mxu0 %v831
  %2984 = vmatprep.subr.mxu0 0.0
  %2985 = vmatpush2.msra.mxu0 %v830
  %2986 = vmatprep.subr.mxu0 0.0
  %2987 = vmatpush2.msra.mxu0 %v829
  %2988 = vmatprep.subr.mxu0 0.0
  %2989 = vmatpush2.msra.mxu0 %v828
  %2990 = vmatprep.subr.mxu0 0.0
  %2991 = vmatpush2.msra.mxu0 %v827
  %2992 = vmatprep.subr.mxu0 0.0
  %2993 = vmatpush2.msra.mxu0 %v826
  %2994 = vmatprep.subr.mxu0 0.0
  %2995 = vmatpush2.msra.mxu0 %v825
  %2996 = vmatprep.subr.mxu0 0.0
  %2997 = vmatpush2.msra.mxu0 %v824
  %2998 = vmatprep.subr.mxu0 0.0
  %2999 = vmatpush2.msra.mxu0 %v823
  %3000 = vmatprep.subr.mxu0 0.0
  %3001 = vmatpush2.msra.mxu0 %v822
  %3002 = vmatprep.subr.mxu0 0.0
  %3003 = vmatpush2.msra.mxu0 %v821
  %3004 = vmatprep.mubr.f32.mxu0 %v65
  %3005 = vmatmul.mubr.f32.gmra.mxu0 %v64
  %v3006 = vpop.f32.mrf.mxu0
  %v3007 = vadd.f32 %v2937, %v3006
  %v3008 = vpop.f32.mrf.mxu0
  %3009 = vdwg.mxu0
  %3010 = vmatprep.subr.mxu0 0.0
  %3011 = vmatpush1.msra.mxu0 %v852
  %3012 = vmatprep.subr.mxu0 0.0
  %3013 = vmatpush1.msra.mxu0 %v851
  %3014 = vmatprep.subr.mxu0 0.0
  %3015 = vmatpush1.msra.mxu0 %v850
  %3016 = vmatprep.subr.mxu0 0.0
  %3017 = vmatpush1.msra.mxu0 %v849
  %3018 = vmatprep.subr.mxu0 0.0
  %3019 = vmatpush1.msra.mxu0 %v848
  %3020 = vmatprep.subr.mxu0 0.0
  %3021 = vmatpush1.msra.mxu0 %v847
  %3022 = vmatprep.subr.mxu0 0.0
  %3023 = vmatpush1.msra.mxu0 %v846
  %3024 = vmatprep.subr.mxu0 0.0
  %3025 = vmatpush1.msra.mxu0 %v845
  %3026 = vmatprep.subr.mxu0 0.0
  %3027 = vmatpush1.msra.mxu0 %v844
  %3028 = vmatprep.subr.mxu0 0.0
  %3029 = vmatpush1.msra.mxu0 %v843
  %3030 = vmatprep.subr.mxu0 0.0
  %3031 = vmatpush1.msra.mxu0 %v842
  %3032 = vmatprep.subr.mxu0 0.0
  %3033 = vmatpush1.msra.mxu0 %v841
  %3034 = vmatprep.subr.mxu0 0.0
  %3035 = vmatpush1.msra.mxu0 %v840
  %3036 = vmatprep.subr.mxu0 0.0
  %3037 = vmatpush1.msra.mxu0 %v839
  %3038 = vmatprep.subr.mxu0 0.0
  %3039 = vmatpush1.msra.mxu0 %v838
  %3040 = vmatprep.subr.mxu0 0.0
  %3041 = vmatpush1.msra.mxu0 %v837
  %3042 = vmatprep.subr.mxu0 0.0
  %3043 = vmatpush2.msra.mxu0 %v868
  %3044 = vmatprep.subr.mxu0 0.0
  %3045 = vmatpush2.msra.mxu0 %v867
  %3046 = vmatprep.subr.mxu0 0.0
  %3047 = vmatpush2.msra.mxu0 %v866
  %3048 = vmatprep.subr.mxu0 0.0
  %3049 = vmatpush2.msra.mxu0 %v865
  %3050 = vmatprep.subr.mxu0 0.0
  %3051 = vmatpush2.msra.mxu0 %v864
  %3052 = vmatprep.subr.mxu0 0.0
  %3053 = vmatpush2.msra.mxu0 %v863
  %3054 = vmatprep.subr.mxu0 0.0
  %3055 = vmatpush2.msra.mxu0 %v862
  %3056 = vmatprep.subr.mxu0 0.0
  %3057 = vmatpush2.msra.mxu0 %v861
  %3058 = vmatprep.subr.mxu0 0.0
  %3059 = vmatpush2.msra.mxu0 %v860
  %3060 = vmatprep.subr.mxu0 0.0
  %3061 = vmatpush2.msra.mxu0 %v859
  %3062 = vmatprep.subr.mxu0 0.0
  %3063 = vmatpush2.msra.mxu0 %v858
  %3064 = vmatprep.subr.mxu0 0.0
  %3065 = vmatpush2.msra.mxu0 %v857
  %3066 = vmatprep.subr.mxu0 0.0
  %3067 = vmatpush2.msra.mxu0 %v856
  %3068 = vmatprep.subr.mxu0 0.0
  %3069 = vmatpush2.msra.mxu0 %v855
  %3070 = vmatprep.subr.mxu0 0.0
  %3071 = vmatpush2.msra.mxu0 %v854
  %3072 = vmatprep.subr.mxu0 0.0
  %3073 = vmatpush2.msra.mxu0 %v853
  %3074 = vmatprep.mubr.f32.mxu0 %v67
  %3075 = vmatmul.mubr.f32.gmra.mxu0 %v66
  %v3076 = vpop.f32.mrf.mxu0
  %v3077 = vadd.f32 %v3007, %v3076
  %v3078 = vpop.f32.mrf.mxu0
  %3079 = vdwg.mxu0
  %3080 = vmatprep.subr.mxu0 0.0
  %3081 = vmatpush1.msra.mxu0 %v884
  %3082 = vmatprep.subr.mxu0 0.0
  %3083 = vmatpush1.msra.mxu0 %v883
  %3084 = vmatprep.subr.mxu0 0.0
  %3085 = vmatpush1.msra.mxu0 %v882
  %3086 = vmatprep.subr.mxu0 0.0
  %3087 = vmatpush1.msra.mxu0 %v881
  %3088 = vmatprep.subr.mxu0 0.0
  %3089 = vmatpush1.msra.mxu0 %v880
  %3090 = vmatprep.subr.mxu0 0.0
  %3091 = vmatpush1.msra.mxu0 %v879
  %3092 = vmatprep.subr.mxu0 0.0
  %3093 = vmatpush1.msra.mxu0 %v878
  %3094 = vmatprep.subr.mxu0 0.0
  %3095 = vmatpush1.msra.mxu0 %v877
  %3096 = vmatprep.subr.mxu0 0.0
  %3097 = vmatpush1.msra.mxu0 %v876
  %3098 = vmatprep.subr.mxu0 0.0
  %3099 = vmatpush1.msra.mxu0 %v875
  %3100 = vmatprep.subr.mxu0 0.0
  %3101 = vmatpush1.msra.mxu0 %v874
  %3102 = vmatprep.subr.mxu0 0.0
  %3103 = vmatpush1.msra.mxu0 %v873
  %3104 = vmatprep.subr.mxu0 0.0
  %3105 = vmatpush1.msra.mxu0 %v872
  %3106 = vmatprep.subr.mxu0 0.0
  %3107 = vmatpush1.msra.mxu0 %v871
  %3108 = vmatprep.subr.mxu0 0.0
  %3109 = vmatpush1.msra.mxu0 %v870
  %3110 = vmatprep.subr.mxu0 0.0
  %3111 = vmatpush1.msra.mxu0 %v869
  %3112 = vmatprep.subr.mxu0 0.0
  %3113 = vmatpush2.msra.mxu0 %v900
  %3114 = vmatprep.subr.mxu0 0.0
  %3115 = vmatpush2.msra.mxu0 %v899
  %3116 = vmatprep.subr.mxu0 0.0
  %3117 = vmatpush2.msra.mxu0 %v898
  %3118 = vmatprep.subr.mxu0 0.0
  %3119 = vmatpush2.msra.mxu0 %v897
  %3120 = vmatprep.subr.mxu0 0.0
  %3121 = vmatpush2.msra.mxu0 %v896
  %3122 = vmatprep.subr.mxu0 0.0
  %3123 = vmatpush2.msra.mxu0 %v895
  %3124 = vmatprep.subr.mxu0 0.0
  %3125 = vmatpush2.msra.mxu0 %v894
  %3126 = vmatprep.subr.mxu0 0.0
  %3127 = vmatpush2.msra.mxu0 %v893
  %3128 = vmatprep.subr.mxu0 0.0
  %3129 = vmatpush2.msra.mxu0 %v892
  %3130 = vmatprep.subr.mxu0 0.0
  %3131 = vmatpush2.msra.mxu0 %v891
  %3132 = vmatprep.subr.mxu0 0.0
  %3133 = vmatpush2.msra.mxu0 %v890
  %3134 = vmatprep.subr.mxu0 0.0
  %3135 = vmatpush2.msra.mxu0 %v889
  %3136 = vmatprep.subr.mxu0 0.0
  %3137 = vmatpush2.msra.mxu0 %v888
  %3138 = vmatprep.subr.mxu0 0.0
  %3139 = vmatpush2.msra.mxu0 %v887
  %3140 = vmatprep.subr.mxu0 0.0
  %3141 = vmatpush2.msra.mxu0 %v886
  %3142 = vmatprep.subr.mxu0 0.0
  %3143 = vmatpush2.msra.mxu0 %v885
  %3144 = vmatprep.mubr.f32.mxu0 %v69
  %3145 = vmatmul.mubr.f32.gmra.mxu0 %v68
  %v3146 = vpop.f32.mrf.mxu0
  %v3147 = vadd.f32 %v3077, %v3146
  %v3148 = vpop.f32.mrf.mxu0
  %3149 = vdwg.mxu0
  %3150 = vmatprep.subr.mxu0 0.0
  %3151 = vmatpush1.msra.mxu0 %v916
  %3152 = vmatprep.subr.mxu0 0.0
  %3153 = vmatpush1.msra.mxu0 %v915
  %3154 = vmatprep.subr.mxu0 0.0
  %3155 = vmatpush1.msra.mxu0 %v914
  %3156 = vmatprep.subr.mxu0 0.0
  %3157 = vmatpush1.msra.mxu0 %v913
  %3158 = vmatprep.subr.mxu0 0.0
  %3159 = vmatpush1.msra.mxu0 %v912
  %3160 = vmatprep.subr.mxu0 0.0
  %3161 = vmatpush1.msra.mxu0 %v911
  %3162 = vmatprep.subr.mxu0 0.0
  %3163 = vmatpush1.msra.mxu0 %v910
  %3164 = vmatprep.subr.mxu0 0.0
  %3165 = vmatpush1.msra.mxu0 %v909
  %3166 = vmatprep.subr.mxu0 0.0
  %3167 = vmatpush1.msra.mxu0 %v908
  %3168 = vmatprep.subr.mxu0 0.0
  %3169 = vmatpush1.msra.mxu0 %v907
  %3170 = vmatprep.subr.mxu0 0.0
  %3171 = vmatpush1.msra.mxu0 %v906
  %3172 = vmatprep.subr.mxu0 0.0
  %3173 = vmatpush1.msra.mxu0 %v905
  %3174 = vmatprep.subr.mxu0 0.0
  %3175 = vmatpush1.msra.mxu0 %v904
  %3176 = vmatprep.subr.mxu0 0.0
  %3177 = vmatpush1.msra.mxu0 %v903
  %3178 = vmatprep.subr.mxu0 0.0
  %3179 = vmatpush1.msra.mxu0 %v902
  %3180 = vmatprep.subr.mxu0 0.0
  %3181 = vmatpush1.msra.mxu0 %v901
  %3182 = vmatprep.subr.mxu0 0.0
  %3183 = vmatpush2.msra.mxu0 %v932
  %3184 = vmatprep.subr.mxu0 0.0
  %3185 = vmatpush2.msra.mxu0 %v931
  %3186 = vmatprep.subr.mxu0 0.0
  %3187 = vmatpush2.msra.mxu0 %v930
  %3188 = vmatprep.subr.mxu0 0.0
  %3189 = vmatpush2.msra.mxu0 %v929
  %3190 = vmatprep.subr.mxu0 0.0
  %3191 = vmatpush2.msra.mxu0 %v928
  %3192 = vmatprep.subr.mxu0 0.0
  %3193 = vmatpush2.msra.mxu0 %v927
  %3194 = vmatprep.subr.mxu0 0.0
  %3195 = vmatpush2.msra.mxu0 %v926
  %3196 = vmatprep.subr.mxu0 0.0
  %3197 = vmatpush2.msra.mxu0 %v925
  %3198 = vmatprep.subr.mxu0 0.0
  %3199 = vmatpush2.msra.mxu0 %v924
  %3200 = vmatprep.subr.mxu0 0.0
  %3201 = vmatpush2.msra.mxu0 %v923
  %3202 = vmatprep.subr.mxu0 0.0
  %3203 = vmatpush2.msra.mxu0 %v922
  %3204 = vmatprep.subr.mxu0 0.0
  %3205 = vmatpush2.msra.mxu0 %v921
  %3206 = vmatprep.subr.mxu0 0.0
  %3207 = vmatpush2.msra.mxu0 %v920
  %3208 = vmatprep.subr.mxu0 0.0
  %3209 = vmatpush2.msra.mxu0 %v919
  %3210 = vmatprep.subr.mxu0 0.0
  %3211 = vmatpush2.msra.mxu0 %v918
  %3212 = vmatprep.subr.mxu0 0.0
  %3213 = vmatpush2.msra.mxu0 %v917
  %3214 = vmatprep.mubr.f32.mxu0 %v71
  %3215 = vmatmul.mubr.f32.gmra.mxu0 %v70
  %v3216 = vpop.f32.mrf.mxu0
  %v3217 = vadd.f32 %v3147, %v3216
  %v3218 = vpop.f32.mrf.mxu0
  %3219 = vdwg.mxu0
  %3220 = vmatprep.subr.mxu0 0.0
  %3221 = vmatpush1.msra.mxu0 %v948
  %3222 = vmatprep.subr.mxu0 0.0
  %3223 = vmatpush1.msra.mxu0 %v947
  %3224 = vmatprep.subr.mxu0 0.0
  %3225 = vmatpush1.msra.mxu0 %v946
  %3226 = vmatprep.subr.mxu0 0.0
  %3227 = vmatpush1.msra.mxu0 %v945
  %3228 = vmatprep.subr.mxu0 0.0
  %3229 = vmatpush1.msra.mxu0 %v944
  %3230 = vmatprep.subr.mxu0 0.0
  %3231 = vmatpush1.msra.mxu0 %v943
  %3232 = vmatprep.subr.mxu0 0.0
  %3233 = vmatpush1.msra.mxu0 %v942
  %3234 = vmatprep.subr.mxu0 0.0
  %3235 = vmatpush1.msra.mxu0 %v941
  %3236 = vmatprep.subr.mxu0 0.0
  %3237 = vmatpush1.msra.mxu0 %v940
  %3238 = vmatprep.subr.mxu0 0.0
  %3239 = vmatpush1.msra.mxu0 %v939
  %3240 = vmatprep.subr.mxu0 0.0
  %3241 = vmatpush1.msra.mxu0 %v938
  %3242 = vmatprep.subr.mxu0 0.0
  %3243 = vmatpush1.msra.mxu0 %v937
  %3244 = vmatprep.subr.mxu0 0.0
  %3245 = vmatpush1.msra.mxu0 %v936
  %3246 = vmatprep.subr.mxu0 0.0
  %3247 = vmatpush1.msra.mxu0 %v935
  %3248 = vmatprep.subr.mxu0 0.0
  %3249 = vmatpush1.msra.mxu0 %v934
  %3250 = vmatprep.subr.mxu0 0.0
  %3251 = vmatpush1.msra.mxu0 %v933
  %3252 = vmatprep.subr.mxu0 0.0
  %3253 = vmatpush2.msra.mxu0 %v964
  %3254 = vmatprep.subr.mxu0 0.0
  %3255 = vmatpush2.msra.mxu0 %v963
  %3256 = vmatprep.subr.mxu0 0.0
  %3257 = vmatpush2.msra.mxu0 %v962
  %3258 = vmatprep.subr.mxu0 0.0
  %3259 = vmatpush2.msra.mxu0 %v961
  %3260 = vmatprep.subr.mxu0 0.0
  %3261 = vmatpush2.msra.mxu0 %v960
  %3262 = vmatprep.subr.mxu0 0.0
  %3263 = vmatpush2.msra.mxu0 %v959
  %3264 = vmatprep.subr.mxu0 0.0
  %3265 = vmatpush2.msra.mxu0 %v958
  %3266 = vmatprep.subr.mxu0 0.0
  %3267 = vmatpush2.msra.mxu0 %v957
  %3268 = vmatprep.subr.mxu0 0.0
  %3269 = vmatpush2.msra.mxu0 %v956
  %3270 = vmatprep.subr.mxu0 0.0
  %3271 = vmatpush2.msra.mxu0 %v955
  %3272 = vmatprep.subr.mxu0 0.0
  %3273 = vmatpush2.msra.mxu0 %v954
  %3274 = vmatprep.subr.mxu0 0.0
  %3275 = vmatpush2.msra.mxu0 %v953
  %3276 = vmatprep.subr.mxu0 0.0
  %3277 = vmatpush2.msra.mxu0 %v952
  %3278 = vmatprep.subr.mxu0 0.0
  %3279 = vmatpush2.msra.mxu0 %v951
  %3280 = vmatprep.subr.mxu0 0.0
  %3281 = vmatpush2.msra.mxu0 %v950
  %3282 = vmatprep.subr.mxu0 0.0
  %3283 = vmatpush2.msra.mxu0 %v949
  %3284 = vmatprep.mubr.f32.mxu0 %v73
  %3285 = vmatmul.mubr.f32.gmra.mxu0 %v72
  %v3286 = vpop.f32.mrf.mxu0
  %v3287 = vadd.f32 %v3217, %v3286
  %v3288 = vpop.f32.mrf.mxu0
  %3289 = vdwg.mxu0
  %3290 = vmatprep.subr.mxu0 0.0
  %3291 = vmatpush1.msra.mxu0 %v980
  %3292 = vmatprep.subr.mxu0 0.0
  %3293 = vmatpush1.msra.mxu0 %v979
  %3294 = vmatprep.subr.mxu0 0.0
  %3295 = vmatpush1.msra.mxu0 %v978
  %3296 = vmatprep.subr.mxu0 0.0
  %3297 = vmatpush1.msra.mxu0 %v977
  %3298 = vmatprep.subr.mxu0 0.0
  %3299 = vmatpush1.msra.mxu0 %v976
  %3300 = vmatprep.subr.mxu0 0.0
  %3301 = vmatpush1.msra.mxu0 %v975
  %3302 = vmatprep.subr.mxu0 0.0
  %3303 = vmatpush1.msra.mxu0 %v974
  %3304 = vmatprep.subr.mxu0 0.0
  %3305 = vmatpush1.msra.mxu0 %v973
  %3306 = vmatprep.subr.mxu0 0.0
  %3307 = vmatpush1.msra.mxu0 %v972
  %3308 = vmatprep.subr.mxu0 0.0
  %3309 = vmatpush1.msra.mxu0 %v971
  %3310 = vmatprep.subr.mxu0 0.0
  %3311 = vmatpush1.msra.mxu0 %v970
  %3312 = vmatprep.subr.mxu0 0.0
  %3313 = vmatpush1.msra.mxu0 %v969
  %3314 = vmatprep.subr.mxu0 0.0
  %3315 = vmatpush1.msra.mxu0 %v968
  %3316 = vmatprep.subr.mxu0 0.0
  %3317 = vmatpush1.msra.mxu0 %v967
  %3318 = vmatprep.subr.mxu0 0.0
  %3319 = vmatpush1.msra.mxu0 %v966
  %3320 = vmatprep.subr.mxu0 0.0
  %3321 = vmatpush1.msra.mxu0 %v965
  %3322 = vmatprep.subr.mxu0 0.0
  %3323 = vmatpush2.msra.mxu0 %v996
  %3324 = vmatprep.subr.mxu0 0.0
  %3325 = vmatpush2.msra.mxu0 %v995
  %3326 = vmatprep.subr.mxu0 0.0
  %3327 = vmatpush2.msra.mxu0 %v994
  %3328 = vmatprep.subr.mxu0 0.0
  %3329 = vmatpush2.msra.mxu0 %v993
  %3330 = vmatprep.subr.mxu0 0.0
  %3331 = vmatpush2.msra.mxu0 %v992
  %3332 = vmatprep.subr.mxu0 0.0
  %3333 = vmatpush2.msra.mxu0 %v991
  %3334 = vmatprep.subr.mxu0 0.0
  %3335 = vmatpush2.msra.mxu0 %v990
  %3336 = vmatprep.subr.mxu0 0.0
  %3337 = vmatpush2.msra.mxu0 %v989
  %3338 = vmatprep.subr.mxu0 0.0
  %3339 = vmatpush2.msra.mxu0 %v988
  %3340 = vmatprep.subr.mxu0 0.0
  %3341 = vmatpush2.msra.mxu0 %v987
  %3342 = vmatprep.subr.mxu0 0.0
  %3343 = vmatpush2.msra.mxu0 %v986
  %3344 = vmatprep.subr.mxu0 0.0
  %3345 = vmatpush2.msra.mxu0 %v985
  %3346 = vmatprep.subr.mxu0 0.0
  %3347 = vmatpush2.msra.mxu0 %v984
  %3348 = vmatprep.subr.mxu0 0.0
  %3349 = vmatpush2.msra.mxu0 %v983
  %3350 = vmatprep.subr.mxu0 0.0
  %3351 = vmatpush2.msra.mxu0 %v982
  %3352 = vmatprep.subr.mxu0 0.0
  %3353 = vmatpush2.msra.mxu0 %v981
  %3354 = vmatprep.mubr.f32.mxu0 %v75
  %3355 = vmatmul.mubr.f32.gmra.mxu0 %v74
  %v3356 = vpop.f32.mrf.mxu0
  %v3357 = vadd.f32 %v3287, %v3356
  %v3358 = vpop.f32.mrf.mxu0
  %3359 = vdwg.mxu0
  %3360 = vmatprep.subr.mxu0 0.0
  %3361 = vmatpush1.msra.mxu0 %v1012
  %3362 = vmatprep.subr.mxu0 0.0
  %3363 = vmatpush1.msra.mxu0 %v1011
  %3364 = vmatprep.subr.mxu0 0.0
  %3365 = vmatpush1.msra.mxu0 %v1010
  %3366 = vmatprep.subr.mxu0 0.0
  %3367 = vmatpush1.msra.mxu0 %v1009
  %3368 = vmatprep.subr.mxu0 0.0
  %3369 = vmatpush1.msra.mxu0 %v1008
  %3370 = vmatprep.subr.mxu0 0.0
  %3371 = vmatpush1.msra.mxu0 %v1007
  %3372 = vmatprep.subr.mxu0 0.0
  %3373 = vmatpush1.msra.mxu0 %v1006
  %3374 = vmatprep.subr.mxu0 0.0
  %3375 = vmatpush1.msra.mxu0 %v1005
  %3376 = vmatprep.subr.mxu0 0.0
  %3377 = vmatpush1.msra.mxu0 %v1004
  %3378 = vmatprep.subr.mxu0 0.0
  %3379 = vmatpush1.msra.mxu0 %v1003
  %3380 = vmatprep.subr.mxu0 0.0
  %3381 = vmatpush1.msra.mxu0 %v1002
  %3382 = vmatprep.subr.mxu0 0.0
  %3383 = vmatpush1.msra.mxu0 %v1001
  %3384 = vmatprep.subr.mxu0 0.0
  %3385 = vmatpush1.msra.mxu0 %v1000
  %3386 = vmatprep.subr.mxu0 0.0
  %3387 = vmatpush1.msra.mxu0 %v999
  %3388 = vmatprep.subr.mxu0 0.0
  %3389 = vmatpush1.msra.mxu0 %v998
  %3390 = vmatprep.subr.mxu0 0.0
  %3391 = vmatpush1.msra.mxu0 %v997
  %3392 = vmatprep.subr.mxu0 0.0
  %3393 = vmatpush2.msra.mxu0 %v1028
  %3394 = vmatprep.subr.mxu0 0.0
  %3395 = vmatpush2.msra.mxu0 %v1027
  %3396 = vmatprep.subr.mxu0 0.0
  %3397 = vmatpush2.msra.mxu0 %v1026
  %3398 = vmatprep.subr.mxu0 0.0
  %3399 = vmatpush2.msra.mxu0 %v1025
  %3400 = vmatprep.subr.mxu0 0.0
  %3401 = vmatpush2.msra.mxu0 %v1024
  %3402 = vmatprep.subr.mxu0 0.0
  %3403 = vmatpush2.msra.mxu0 %v1023
  %3404 = vmatprep.subr.mxu0 0.0
  %3405 = vmatpush2.msra.mxu0 %v1022
  %3406 = vmatprep.subr.mxu0 0.0
  %3407 = vmatpush2.msra.mxu0 %v1021
  %3408 = vmatprep.subr.mxu0 0.0
  %3409 = vmatpush2.msra.mxu0 %v1020
  %3410 = vmatprep.subr.mxu0 0.0
  %3411 = vmatpush2.msra.mxu0 %v1019
  %3412 = vmatprep.subr.mxu0 0.0
  %3413 = vmatpush2.msra.mxu0 %v1018
  %3414 = vmatprep.subr.mxu0 0.0
  %3415 = vmatpush2.msra.mxu0 %v1017
  %3416 = vmatprep.subr.mxu0 0.0
  %3417 = vmatpush2.msra.mxu0 %v1016
  %3418 = vmatprep.subr.mxu0 0.0
  %3419 = vmatpush2.msra.mxu0 %v1015
  %3420 = vmatprep.subr.mxu0 0.0
  %3421 = vmatpush2.msra.mxu0 %v1014
  %3422 = vmatprep.subr.mxu0 0.0
  %3423 = vmatpush2.msra.mxu0 %v1013
  %3424 = vmatprep.mubr.f32.mxu0 %v77
  %3425 = vmatmul.mubr.f32.gmra.mxu0 %v76
  %v3426 = vpop.f32.mrf.mxu0
  %v3427 = vadd.f32 %v3357, %v3426
  %v3428 = vpop.f32.mrf.mxu0
  %3429 = vdwg.mxu0
  %3430 = vmatprep.subr.mxu0 0.0
  %3431 = vmatpush1.msra.mxu0 %v1044
  %3432 = vmatprep.subr.mxu0 0.0
  %3433 = vmatpush1.msra.mxu0 %v1043
  %3434 = vmatprep.subr.mxu0 0.0
  %3435 = vmatpush1.msra.mxu0 %v1042
  %3436 = vmatprep.subr.mxu0 0.0
  %3437 = vmatpush1.msra.mxu0 %v1041
  %3438 = vmatprep.subr.mxu0 0.0
  %3439 = vmatpush1.msra.mxu0 %v1040
  %3440 = vmatprep.subr.mxu0 0.0
  %3441 = vmatpush1.msra.mxu0 %v1039
  %3442 = vmatprep.subr.mxu0 0.0
  %3443 = vmatpush1.msra.mxu0 %v1038
  %3444 = vmatprep.subr.mxu0 0.0
  %3445 = vmatpush1.msra.mxu0 %v1037
  %3446 = vmatprep.subr.mxu0 0.0
  %3447 = vmatpush1.msra.mxu0 %v1036
  %3448 = vmatprep.subr.mxu0 0.0
  %3449 = vmatpush1.msra.mxu0 %v1035
  %3450 = vmatprep.subr.mxu0 0.0
  %3451 = vmatpush1.msra.mxu0 %v1034
  %3452 = vmatprep.subr.mxu0 0.0
  %3453 = vmatpush1.msra.mxu0 %v1033
  %3454 = vmatprep.subr.mxu0 0.0
  %3455 = vmatpush1.msra.mxu0 %v1032
  %3456 = vmatprep.subr.mxu0 0.0
  %3457 = vmatpush1.msra.mxu0 %v1031
  %3458 = vmatprep.subr.mxu0 0.0
  %3459 = vmatpush1.msra.mxu0 %v1030
  %3460 = vmatprep.subr.mxu0 0.0
  %3461 = vmatpush1.msra.mxu0 %v1029
  %3462 = vmatprep.subr.mxu0 0.0
  %3463 = vmatpush2.msra.mxu0 %v1060
  %3464 = vmatprep.subr.mxu0 0.0
  %3465 = vmatpush2.msra.mxu0 %v1059
  %3466 = vmatprep.subr.mxu0 0.0
  %3467 = vmatpush2.msra.mxu0 %v1058
  %3468 = vmatprep.subr.mxu0 0.0
  %3469 = vmatpush2.msra.mxu0 %v1057
  %3470 = vmatprep.subr.mxu0 0.0
  %3471 = vmatpush2.msra.mxu0 %v1056
  %3472 = vmatprep.subr.mxu0 0.0
  %3473 = vmatpush2.msra.mxu0 %v1055
  %3474 = vmatprep.subr.mxu0 0.0
  %3475 = vmatpush2.msra.mxu0 %v1054
  %3476 = vmatprep.subr.mxu0 0.0
  %3477 = vmatpush2.msra.mxu0 %v1053
  %3478 = vmatprep.subr.mxu0 0.0
  %3479 = vmatpush2.msra.mxu0 %v1052
  %3480 = vmatprep.subr.mxu0 0.0
  %3481 = vmatpush2.msra.mxu0 %v1051
  %3482 = vmatprep.subr.mxu0 0.0
  %3483 = vmatpush2.msra.mxu0 %v1050
  %3484 = vmatprep.subr.mxu0 0.0
  %3485 = vmatpush2.msra.mxu0 %v1049
  %3486 = vmatprep.subr.mxu0 0.0
  %3487 = vmatpush2.msra.mxu0 %v1048
  %3488 = vmatprep.subr.mxu0 0.0
  %3489 = vmatpush2.msra.mxu0 %v1047
  %3490 = vmatprep.subr.mxu0 0.0
  %3491 = vmatpush2.msra.mxu0 %v1046
  %3492 = vmatprep.subr.mxu0 0.0
  %3493 = vmatpush2.msra.mxu0 %v1045
  %3494 = vmatprep.mubr.f32.mxu0 %v79
  %3495 = vmatmul.mubr.f32.gmra.mxu0 %v78
  %v3496 = vpop.f32.mrf.mxu0
  %v3497 = vadd.f32 %v3427, %v3496
  %v3498 = vpop.f32.mrf.mxu0
  %3499 = vdwg.mxu0
  %3500 = vmatprep.subr.mxu0 0.0
  %3501 = vmatpush1.msra.mxu0 %v1076
  %3502 = vmatprep.subr.mxu0 0.0
  %3503 = vmatpush1.msra.mxu0 %v1075
  %3504 = vmatprep.subr.mxu0 0.0
  %3505 = vmatpush1.msra.mxu0 %v1074
  %3506 = vmatprep.subr.mxu0 0.0
  %3507 = vmatpush1.msra.mxu0 %v1073
  %3508 = vmatprep.subr.mxu0 0.0
  %3509 = vmatpush1.msra.mxu0 %v1072
  %3510 = vmatprep.subr.mxu0 0.0
  %3511 = vmatpush1.msra.mxu0 %v1071
  %3512 = vmatprep.subr.mxu0 0.0
  %3513 = vmatpush1.msra.mxu0 %v1070
  %3514 = vmatprep.subr.mxu0 0.0
  %3515 = vmatpush1.msra.mxu0 %v1069
  %3516 = vmatprep.subr.mxu0 0.0
  %3517 = vmatpush1.msra.mxu0 %v1068
  %3518 = vmatprep.subr.mxu0 0.0
  %3519 = vmatpush1.msra.mxu0 %v1067
  %3520 = vmatprep.subr.mxu0 0.0
  %3521 = vmatpush1.msra.mxu0 %v1066
  %3522 = vmatprep.subr.mxu0 0.0
  %3523 = vmatpush1.msra.mxu0 %v1065
  %3524 = vmatprep.subr.mxu0 0.0
  %3525 = vmatpush1.msra.mxu0 %v1064
  %3526 = vmatprep.subr.mxu0 0.0
  %3527 = vmatpush1.msra.mxu0 %v1063
  %3528 = vmatprep.subr.mxu0 0.0
  %3529 = vmatpush1.msra.mxu0 %v1062
  %3530 = vmatprep.subr.mxu0 0.0
  %3531 = vmatpush1.msra.mxu0 %v1061
  %3532 = vmatprep.subr.mxu0 0.0
  %3533 = vmatpush2.msra.mxu0 %v1092
  %3534 = vmatprep.subr.mxu0 0.0
  %3535 = vmatpush2.msra.mxu0 %v1091
  %3536 = vmatprep.subr.mxu0 0.0
  %3537 = vmatpush2.msra.mxu0 %v1090
  %3538 = vmatprep.subr.mxu0 0.0
  %3539 = vmatpush2.msra.mxu0 %v1089
  %3540 = vmatprep.subr.mxu0 0.0
  %3541 = vmatpush2.msra.mxu0 %v1088
  %3542 = vmatprep.subr.mxu0 0.0
  %3543 = vmatpush2.msra.mxu0 %v1087
  %3544 = vmatprep.subr.mxu0 0.0
  %3545 = vmatpush2.msra.mxu0 %v1086
  %3546 = vmatprep.subr.mxu0 0.0
  %3547 = vmatpush2.msra.mxu0 %v1085
  %3548 = vmatprep.subr.mxu0 0.0
  %3549 = vmatpush2.msra.mxu0 %v1084
  %3550 = vmatprep.subr.mxu0 0.0
  %3551 = vmatpush2.msra.mxu0 %v1083
  %3552 = vmatprep.subr.mxu0 0.0
  %3553 = vmatpush2.msra.mxu0 %v1082
  %3554 = vmatprep.subr.mxu0 0.0
  %3555 = vmatpush2.msra.mxu0 %v1081
  %3556 = vmatprep.subr.mxu0 0.0
  %3557 = vmatpush2.msra.mxu0 %v1080
  %3558 = vmatprep.subr.mxu0 0.0
  %3559 = vmatpush2.msra.mxu0 %v1079
  %3560 = vmatprep.subr.mxu0 0.0
  %3561 = vmatpush2.msra.mxu0 %v1078
  %3562 = vmatprep.subr.mxu0 0.0
  %3563 = vmatpush2.msra.mxu0 %v1077
  %3564 = vmatprep.mubr.f32.mxu0 %v81
  %3565 = vmatmul.mubr.f32.gmra.mxu0 %v80
  %v3566 = vpop.f32.mrf.mxu0
  %v3567 = vadd.f32 %v3497, %v3566
  %v3568 = vpop.f32.mrf.mxu0
  %3569 = vdwg.mxu0
  %3570 = vmatprep.subr.mxu0 0.0
  %3571 = vmatpush1.msra.mxu0 %v1108
  %3572 = vmatprep.subr.mxu0 0.0
  %3573 = vmatpush1.msra.mxu0 %v1107
  %3574 = vmatprep.subr.mxu0 0.0
  %3575 = vmatpush1.msra.mxu0 %v1106
  %3576 = vmatprep.subr.mxu0 0.0
  %3577 = vmatpush1.msra.mxu0 %v1105
  %3578 = vmatprep.subr.mxu0 0.0
  %3579 = vmatpush1.msra.mxu0 %v1104
  %3580 = vmatprep.subr.mxu0 0.0
  %3581 = vmatpush1.msra.mxu0 %v1103
  %3582 = vmatprep.subr.mxu0 0.0
  %3583 = vmatpush1.msra.mxu0 %v1102
  %3584 = vmatprep.subr.mxu0 0.0
  %3585 = vmatpush1.msra.mxu0 %v1101
  %3586 = vmatprep.subr.mxu0 0.0
  %3587 = vmatpush1.msra.mxu0 %v1100
  %3588 = vmatprep.subr.mxu0 0.0
  %3589 = vmatpush1.msra.mxu0 %v1099
  %3590 = vmatprep.subr.mxu0 0.0
  %3591 = vmatpush1.msra.mxu0 %v1098
  %3592 = vmatprep.subr.mxu0 0.0
  %3593 = vmatpush1.msra.mxu0 %v1097
  %3594 = vmatprep.subr.mxu0 0.0
  %3595 = vmatpush1.msra.mxu0 %v1096
  %3596 = vmatprep.subr.mxu0 0.0
  %3597 = vmatpush1.msra.mxu0 %v1095
  %3598 = vmatprep.subr.mxu0 0.0
  %3599 = vmatpush1.msra.mxu0 %v1094
  %3600 = vmatprep.subr.mxu0 0.0
  %3601 = vmatpush1.msra.mxu0 %v1093
  %3602 = vmatprep.subr.mxu0 0.0
  %3603 = vmatpush2.msra.mxu0 %v1124
  %3604 = vmatprep.subr.mxu0 0.0
  %3605 = vmatpush2.msra.mxu0 %v1123
  %3606 = vmatprep.subr.mxu0 0.0
  %3607 = vmatpush2.msra.mxu0 %v1122
  %3608 = vmatprep.subr.mxu0 0.0
  %3609 = vmatpush2.msra.mxu0 %v1121
  %3610 = vmatprep.subr.mxu0 0.0
  %3611 = vmatpush2.msra.mxu0 %v1120
  %3612 = vmatprep.subr.mxu0 0.0
  %3613 = vmatpush2.msra.mxu0 %v1119
  %3614 = vmatprep.subr.mxu0 0.0
  %3615 = vmatpush2.msra.mxu0 %v1118
  %3616 = vmatprep.subr.mxu0 0.0
  %3617 = vmatpush2.msra.mxu0 %v1117
  %3618 = vmatprep.subr.mxu0 0.0
  %3619 = vmatpush2.msra.mxu0 %v1116
  %3620 = vmatprep.subr.mxu0 0.0
  %3621 = vmatpush2.msra.mxu0 %v1115
  %3622 = vmatprep.subr.mxu0 0.0
  %3623 = vmatpush2.msra.mxu0 %v1114
  %3624 = vmatprep.subr.mxu0 0.0
  %3625 = vmatpush2.msra.mxu0 %v1113
  %3626 = vmatprep.subr.mxu0 0.0
  %3627 = vmatpush2.msra.mxu0 %v1112
  %3628 = vmatprep.subr.mxu0 0.0
  %3629 = vmatpush2.msra.mxu0 %v1111
  %3630 = vmatprep.subr.mxu0 0.0
  %3631 = vmatpush2.msra.mxu0 %v1110
  %3632 = vmatprep.subr.mxu0 0.0
  %3633 = vmatpush2.msra.mxu0 %v1109
  %3634 = vmatprep.mubr.f32.mxu0 %v83
  %3635 = vmatmul.mubr.f32.gmra.mxu0 %v82
  %v3636 = vpop.f32.mrf.mxu0
  %v3637 = vadd.f32 %v3567, %v3636
  %v3638 = vpop.f32.mrf.mxu0
  %3639 = vdwg.mxu0
  %3640 = vmatprep.subr.mxu0 0.0
  %3641 = vmatpush1.msra.mxu0 %v1140
  %3642 = vmatprep.subr.mxu0 0.0
  %3643 = vmatpush1.msra.mxu0 %v1139
  %3644 = vmatprep.subr.mxu0 0.0
  %3645 = vmatpush1.msra.mxu0 %v1138
  %3646 = vmatprep.subr.mxu0 0.0
  %3647 = vmatpush1.msra.mxu0 %v1137
  %3648 = vmatprep.subr.mxu0 0.0
  %3649 = vmatpush1.msra.mxu0 %v1136
  %3650 = vmatprep.subr.mxu0 0.0
  %3651 = vmatpush1.msra.mxu0 %v1135
  %3652 = vmatprep.subr.mxu0 0.0
  %3653 = vmatpush1.msra.mxu0 %v1134
  %3654 = vmatprep.subr.mxu0 0.0
  %3655 = vmatpush1.msra.mxu0 %v1133
  %3656 = vmatprep.subr.mxu0 0.0
  %3657 = vmatpush1.msra.mxu0 %v1132
  %3658 = vmatprep.subr.mxu0 0.0
  %3659 = vmatpush1.msra.mxu0 %v1131
  %3660 = vmatprep.subr.mxu0 0.0
  %3661 = vmatpush1.msra.mxu0 %v1130
  %3662 = vmatprep.subr.mxu0 0.0
  %3663 = vmatpush1.msra.mxu0 %v1129
  %3664 = vmatprep.subr.mxu0 0.0
  %3665 = vmatpush1.msra.mxu0 %v1128
  %3666 = vmatprep.subr.mxu0 0.0
  %3667 = vmatpush1.msra.mxu0 %v1127
  %3668 = vmatprep.subr.mxu0 0.0
  %3669 = vmatpush1.msra.mxu0 %v1126
  %3670 = vmatprep.subr.mxu0 0.0
  %3671 = vmatpush1.msra.mxu0 %v1125
  %3672 = vmatprep.subr.mxu0 0.0
  %3673 = vmatpush2.msra.mxu0 %v1156
  %3674 = vmatprep.subr.mxu0 0.0
  %3675 = vmatpush2.msra.mxu0 %v1155
  %3676 = vmatprep.subr.mxu0 0.0
  %3677 = vmatpush2.msra.mxu0 %v1154
  %3678 = vmatprep.subr.mxu0 0.0
  %3679 = vmatpush2.msra.mxu0 %v1153
  %3680 = vmatprep.subr.mxu0 0.0
  %3681 = vmatpush2.msra.mxu0 %v1152
  %3682 = vmatprep.subr.mxu0 0.0
  %3683 = vmatpush2.msra.mxu0 %v1151
  %3684 = vmatprep.subr.mxu0 0.0
  %3685 = vmatpush2.msra.mxu0 %v1150
  %3686 = vmatprep.subr.mxu0 0.0
  %3687 = vmatpush2.msra.mxu0 %v1149
  %3688 = vmatprep.subr.mxu0 0.0
  %3689 = vmatpush2.msra.mxu0 %v1148
  %3690 = vmatprep.subr.mxu0 0.0
  %3691 = vmatpush2.msra.mxu0 %v1147
  %3692 = vmatprep.subr.mxu0 0.0
  %3693 = vmatpush2.msra.mxu0 %v1146
  %3694 = vmatprep.subr.mxu0 0.0
  %3695 = vmatpush2.msra.mxu0 %v1145
  %3696 = vmatprep.subr.mxu0 0.0
  %3697 = vmatpush2.msra.mxu0 %v1144
  %3698 = vmatprep.subr.mxu0 0.0
  %3699 = vmatpush2.msra.mxu0 %v1143
  %3700 = vmatprep.subr.mxu0 0.0
  %3701 = vmatpush2.msra.mxu0 %v1142
  %3702 = vmatprep.subr.mxu0 0.0
  %3703 = vmatpush2.msra.mxu0 %v1141
  %3704 = vmatprep.mubr.f32.mxu0 %v85
  %3705 = vmatmul.mubr.f32.gmra.mxu0 %v84
  %v3706 = vpop.f32.mrf.mxu0
  %v3707 = vadd.f32 %v3637, %v3706
  %v3708 = vpop.f32.mrf.mxu0
  %3709 = vdwg.mxu0
  %3710 = vmatprep.subr.mxu0 0.0
  %3711 = vmatpush1.msra.mxu0 %v1172
  %3712 = vmatprep.subr.mxu0 0.0
  %3713 = vmatpush1.msra.mxu0 %v1171
  %3714 = vmatprep.subr.mxu0 0.0
  %3715 = vmatpush1.msra.mxu0 %v1170
  %3716 = vmatprep.subr.mxu0 0.0
  %3717 = vmatpush1.msra.mxu0 %v1169
  %3718 = vmatprep.subr.mxu0 0.0
  %3719 = vmatpush1.msra.mxu0 %v1168
  %3720 = vmatprep.subr.mxu0 0.0
  %3721 = vmatpush1.msra.mxu0 %v1167
  %3722 = vmatprep.subr.mxu0 0.0
  %3723 = vmatpush1.msra.mxu0 %v1166
  %3724 = vmatprep.subr.mxu0 0.0
  %3725 = vmatpush1.msra.mxu0 %v1165
  %3726 = vmatprep.subr.mxu0 0.0
  %3727 = vmatpush1.msra.mxu0 %v1164
  %3728 = vmatprep.subr.mxu0 0.0
  %3729 = vmatpush1.msra.mxu0 %v1163
  %3730 = vmatprep.subr.mxu0 0.0
  %3731 = vmatpush1.msra.mxu0 %v1162
  %3732 = vmatprep.subr.mxu0 0.0
  %3733 = vmatpush1.msra.mxu0 %v1161
  %3734 = vmatprep.subr.mxu0 0.0
  %3735 = vmatpush1.msra.mxu0 %v1160
  %3736 = vmatprep.subr.mxu0 0.0
  %3737 = vmatpush1.msra.mxu0 %v1159
  %3738 = vmatprep.subr.mxu0 0.0
  %3739 = vmatpush1.msra.mxu0 %v1158
  %3740 = vmatprep.subr.mxu0 0.0
  %3741 = vmatpush1.msra.mxu0 %v1157
  %3742 = vmatprep.subr.mxu0 0.0
  %3743 = vmatpush2.msra.mxu0 %v1188
  %3744 = vmatprep.subr.mxu0 0.0
  %3745 = vmatpush2.msra.mxu0 %v1187
  %3746 = vmatprep.subr.mxu0 0.0
  %3747 = vmatpush2.msra.mxu0 %v1186
  %3748 = vmatprep.subr.mxu0 0.0
  %3749 = vmatpush2.msra.mxu0 %v1185
  %3750 = vmatprep.subr.mxu0 0.0
  %3751 = vmatpush2.msra.mxu0 %v1184
  %3752 = vmatprep.subr.mxu0 0.0
  %3753 = vmatpush2.msra.mxu0 %v1183
  %3754 = vmatprep.subr.mxu0 0.0
  %3755 = vmatpush2.msra.mxu0 %v1182
  %3756 = vmatprep.subr.mxu0 0.0
  %3757 = vmatpush2.msra.mxu0 %v1181
  %3758 = vmatprep.subr.mxu0 0.0
  %3759 = vmatpush2.msra.mxu0 %v1180
  %3760 = vmatprep.subr.mxu0 0.0
  %3761 = vmatpush2.msra.mxu0 %v1179
  %3762 = vmatprep.subr.mxu0 0.0
  %3763 = vmatpush2.msra.mxu0 %v1178
  %3764 = vmatprep.subr.mxu0 0.0
  %3765 = vmatpush2.msra.mxu0 %v1177
  %3766 = vmatprep.subr.mxu0 0.0
  %3767 = vmatpush2.msra.mxu0 %v1176
  %3768 = vmatprep.subr.mxu0 0.0
  %3769 = vmatpush2.msra.mxu0 %v1175
  %3770 = vmatprep.subr.mxu0 0.0
  %3771 = vmatpush2.msra.mxu0 %v1174
  %3772 = vmatprep.subr.mxu0 0.0
  %3773 = vmatpush2.msra.mxu0 %v1173
  %3774 = vmatprep.mubr.f32.mxu0 %v87
  %3775 = vmatmul.mubr.f32.gmra.mxu0 %v86
  %v3776 = vpop.f32.mrf.mxu0
  %v3777 = vadd.f32 %v3707, %v3776
  %v3778 = vpop.f32.mrf.mxu0
  %3779 = vdwg.mxu0
  %3780 = vmatprep.subr.mxu0 0.0
  %3781 = vmatpush1.msra.mxu0 %v1204
  %3782 = vmatprep.subr.mxu0 0.0
  %3783 = vmatpush1.msra.mxu0 %v1203
  %3784 = vmatprep.subr.mxu0 0.0
  %3785 = vmatpush1.msra.mxu0 %v1202
  %3786 = vmatprep.subr.mxu0 0.0
  %3787 = vmatpush1.msra.mxu0 %v1201
  %3788 = vmatprep.subr.mxu0 0.0
  %3789 = vmatpush1.msra.mxu0 %v1200
  %3790 = vmatprep.subr.mxu0 0.0
  %3791 = vmatpush1.msra.mxu0 %v1199
  %3792 = vmatprep.subr.mxu0 0.0
  %3793 = vmatpush1.msra.mxu0 %v1198
  %3794 = vmatprep.subr.mxu0 0.0
  %3795 = vmatpush1.msra.mxu0 %v1197
  %3796 = vmatprep.subr.mxu0 0.0
  %3797 = vmatpush1.msra.mxu0 %v1196
  %3798 = vmatprep.subr.mxu0 0.0
  %3799 = vmatpush1.msra.mxu0 %v1195
  %3800 = vmatprep.subr.mxu0 0.0
  %3801 = vmatpush1.msra.mxu0 %v1194
  %3802 = vmatprep.subr.mxu0 0.0
  %3803 = vmatpush1.msra.mxu0 %v1193
  %3804 = vmatprep.subr.mxu0 0.0
  %3805 = vmatpush1.msra.mxu0 %v1192
  %3806 = vmatprep.subr.mxu0 0.0
  %3807 = vmatpush1.msra.mxu0 %v1191
  %3808 = vmatprep.subr.mxu0 0.0
  %3809 = vmatpush1.msra.mxu0 %v1190
  %3810 = vmatprep.subr.mxu0 0.0
  %3811 = vmatpush1.msra.mxu0 %v1189
  %3812 = vmatprep.subr.mxu0 0.0
  %3813 = vmatpush2.msra.mxu0 %v1220
  %3814 = vmatprep.subr.mxu0 0.0
  %3815 = vmatpush2.msra.mxu0 %v1219
  %3816 = vmatprep.subr.mxu0 0.0
  %3817 = vmatpush2.msra.mxu0 %v1218
  %3818 = vmatprep.subr.mxu0 0.0
  %3819 = vmatpush2.msra.mxu0 %v1217
  %3820 = vmatprep.subr.mxu0 0.0
  %3821 = vmatpush2.msra.mxu0 %v1216
  %3822 = vmatprep.subr.mxu0 0.0
  %3823 = vmatpush2.msra.mxu0 %v1215
  %3824 = vmatprep.subr.mxu0 0.0
  %3825 = vmatpush2.msra.mxu0 %v1214
  %3826 = vmatprep.subr.mxu0 0.0
  %3827 = vmatpush2.msra.mxu0 %v1213
  %3828 = vmatprep.subr.mxu0 0.0
  %3829 = vmatpush2.msra.mxu0 %v1212
  %3830 = vmatprep.subr.mxu0 0.0
  %3831 = vmatpush2.msra.mxu0 %v1211
  %3832 = vmatprep.subr.mxu0 0.0
  %3833 = vmatpush2.msra.mxu0 %v1210
  %3834 = vmatprep.subr.mxu0 0.0
  %3835 = vmatpush2.msra.mxu0 %v1209
  %3836 = vmatprep.subr.mxu0 0.0
  %3837 = vmatpush2.msra.mxu0 %v1208
  %3838 = vmatprep.subr.mxu0 0.0
  %3839 = vmatpush2.msra.mxu0 %v1207
  %3840 = vmatprep.subr.mxu0 0.0
  %3841 = vmatpush2.msra.mxu0 %v1206
  %3842 = vmatprep.subr.mxu0 0.0
  %3843 = vmatpush2.msra.mxu0 %v1205
  %3844 = vmatprep.mubr.f32.mxu0 %v89
  %3845 = vmatmul.mubr.f32.gmra.mxu0 %v88
  %v3846 = vpop.f32.mrf.mxu0
  %v3847 = vadd.f32 %v3777, %v3846
  %v3848 = vpop.f32.mrf.mxu0
  %3849 = vdwg.mxu0
  %3850 = vmatprep.subr.mxu0 0.0
  %3851 = vmatpush1.msra.mxu0 %v1236
  %3852 = vmatprep.subr.mxu0 0.0
  %3853 = vmatpush1.msra.mxu0 %v1235
  %3854 = vmatprep.subr.mxu0 0.0
  %3855 = vmatpush1.msra.mxu0 %v1234
  %3856 = vmatprep.subr.mxu0 0.0
  %3857 = vmatpush1.msra.mxu0 %v1233
  %3858 = vmatprep.subr.mxu0 0.0
  %3859 = vmatpush1.msra.mxu0 %v1232
  %3860 = vmatprep.subr.mxu0 0.0
  %3861 = vmatpush1.msra.mxu0 %v1231
  %3862 = vmatprep.subr.mxu0 0.0
  %3863 = vmatpush1.msra.mxu0 %v1230
  %3864 = vmatprep.subr.mxu0 0.0
  %3865 = vmatpush1.msra.mxu0 %v1229
  %3866 = vmatprep.subr.mxu0 0.0
  %3867 = vmatpush1.msra.mxu0 %v1228
  %3868 = vmatprep.subr.mxu0 0.0
  %3869 = vmatpush1.msra.mxu0 %v1227
  %3870 = vmatprep.subr.mxu0 0.0
  %3871 = vmatpush1.msra.mxu0 %v1226
  %3872 = vmatprep.subr.mxu0 0.0
  %3873 = vmatpush1.msra.mxu0 %v1225
  %3874 = vmatprep.subr.mxu0 0.0
  %3875 = vmatpush1.msra.mxu0 %v1224
  %3876 = vmatprep.subr.mxu0 0.0
  %3877 = vmatpush1.msra.mxu0 %v1223
  %3878 = vmatprep.subr.mxu0 0.0
  %3879 = vmatpush1.msra.mxu0 %v1222
  %3880 = vmatprep.subr.mxu0 0.0
  %3881 = vmatpush1.msra.mxu0 %v1221
  %3882 = vmatprep.subr.mxu0 0.0
  %3883 = vmatpush2.msra.mxu0 %v1252
  %3884 = vmatprep.subr.mxu0 0.0
  %3885 = vmatpush2.msra.mxu0 %v1251
  %3886 = vmatprep.subr.mxu0 0.0
  %3887 = vmatpush2.msra.mxu0 %v1250
  %3888 = vmatprep.subr.mxu0 0.0
  %3889 = vmatpush2.msra.mxu0 %v1249
  %3890 = vmatprep.subr.mxu0 0.0
  %3891 = vmatpush2.msra.mxu0 %v1248
  %3892 = vmatprep.subr.mxu0 0.0
  %3893 = vmatpush2.msra.mxu0 %v1247
  %3894 = vmatprep.subr.mxu0 0.0
  %3895 = vmatpush2.msra.mxu0 %v1246
  %3896 = vmatprep.subr.mxu0 0.0
  %3897 = vmatpush2.msra.mxu0 %v1245
  %3898 = vmatprep.subr.mxu0 0.0
  %3899 = vmatpush2.msra.mxu0 %v1244
  %3900 = vmatprep.subr.mxu0 0.0
  %3901 = vmatpush2.msra.mxu0 %v1243
  %3902 = vmatprep.subr.mxu0 0.0
  %3903 = vmatpush2.msra.mxu0 %v1242
  %3904 = vmatprep.subr.mxu0 0.0
  %3905 = vmatpush2.msra.mxu0 %v1241
  %3906 = vmatprep.subr.mxu0 0.0
  %3907 = vmatpush2.msra.mxu0 %v1240
  %3908 = vmatprep.subr.mxu0 0.0
  %3909 = vmatpush2.msra.mxu0 %v1239
  %3910 = vmatprep.subr.mxu0 0.0
  %3911 = vmatpush2.msra.mxu0 %v1238
  %3912 = vmatprep.subr.mxu0 0.0
  %3913 = vmatpush2.msra.mxu0 %v1237
  %3914 = vmatprep.mubr.f32.mxu0 %v91
  %3915 = vmatmul.mubr.f32.gmra.mxu0 %v90
  %v3916 = vpop.f32.mrf.mxu0
  %v3917 = vadd.f32 %v3847, %v3916
  %v3918 = vpop.f32.mrf.mxu0
  %3919 = vdwg.mxu0
  %3920 = vmatprep.subr.mxu0 0.0
  %3921 = vmatpush1.msra.mxu0 %v1268
  %3922 = vmatprep.subr.mxu0 0.0
  %3923 = vmatpush1.msra.mxu0 %v1267
  %3924 = vmatprep.subr.mxu0 0.0
  %3925 = vmatpush1.msra.mxu0 %v1266
  %3926 = vmatprep.subr.mxu0 0.0
  %3927 = vmatpush1.msra.mxu0 %v1265
  %3928 = vmatprep.subr.mxu0 0.0
  %3929 = vmatpush1.msra.mxu0 %v1264
  %3930 = vmatprep.subr.mxu0 0.0
  %3931 = vmatpush1.msra.mxu0 %v1263
  %3932 = vmatprep.subr.mxu0 0.0
  %3933 = vmatpush1.msra.mxu0 %v1262
  %3934 = vmatprep.subr.mxu0 0.0
  %3935 = vmatpush1.msra.mxu0 %v1261
  %3936 = vmatprep.subr.mxu0 0.0
  %3937 = vmatpush1.msra.mxu0 %v1260
  %3938 = vmatprep.subr.mxu0 0.0
  %3939 = vmatpush1.msra.mxu0 %v1259
  %3940 = vmatprep.subr.mxu0 0.0
  %3941 = vmatpush1.msra.mxu0 %v1258
  %3942 = vmatprep.subr.mxu0 0.0
  %3943 = vmatpush1.msra.mxu0 %v1257
  %3944 = vmatprep.subr.mxu0 0.0
  %3945 = vmatpush1.msra.mxu0 %v1256
  %3946 = vmatprep.subr.mxu0 0.0
  %3947 = vmatpush1.msra.mxu0 %v1255
  %3948 = vmatprep.subr.mxu0 0.0
  %3949 = vmatpush1.msra.mxu0 %v1254
  %3950 = vmatprep.subr.mxu0 0.0
  %3951 = vmatpush1.msra.mxu0 %v1253
  %3952 = vmatprep.subr.mxu0 0.0
  %3953 = vmatpush2.msra.mxu0 %v1284
  %3954 = vmatprep.subr.mxu0 0.0
  %3955 = vmatpush2.msra.mxu0 %v1283
  %3956 = vmatprep.subr.mxu0 0.0
  %3957 = vmatpush2.msra.mxu0 %v1282
  %3958 = vmatprep.subr.mxu0 0.0
  %3959 = vmatpush2.msra.mxu0 %v1281
  %3960 = vmatprep.subr.mxu0 0.0
  %3961 = vmatpush2.msra.mxu0 %v1280
  %3962 = vmatprep.subr.mxu0 0.0
  %3963 = vmatpush2.msra.mxu0 %v1279
  %3964 = vmatprep.subr.mxu0 0.0
  %3965 = vmatpush2.msra.mxu0 %v1278
  %3966 = vmatprep.subr.mxu0 0.0
  %3967 = vmatpush2.msra.mxu0 %v1277
  %3968 = vmatprep.subr.mxu0 0.0
  %3969 = vmatpush2.msra.mxu0 %v1276
  %3970 = vmatprep.subr.mxu0 0.0
  %3971 = vmatpush2.msra.mxu0 %v1275
  %3972 = vmatprep.subr.mxu0 0.0
  %3973 = vmatpush2.msra.mxu0 %v1274
  %3974 = vmatprep.subr.mxu0 0.0
  %3975 = vmatpush2.msra.mxu0 %v1273
  %3976 = vmatprep.subr.mxu0 0.0
  %3977 = vmatpush2.msra.mxu0 %v1272
  %3978 = vmatprep.subr.mxu0 0.0
  %3979 = vmatpush2.msra.mxu0 %v1271
  %3980 = vmatprep.subr.mxu0 0.0
  %3981 = vmatpush2.msra.mxu0 %v1270
  %3982 = vmatprep.subr.mxu0 0.0
  %3983 = vmatpush2.msra.mxu0 %v1269
  %3984 = vmatprep.mubr.f32.mxu0 %v93
  %3985 = vmatmul.mubr.f32.gmra.mxu0 %v92
  %v3986 = vpop.f32.mrf.mxu0
  %v3987 = vadd.f32 %v3917, %v3986
  %v3988 = vpop.f32.mrf.mxu0
  %3989 = vdwg.mxu0
  %3990 = vmatprep.subr.mxu0 0.0
  %3991 = vmatpush1.msra.mxu0 %v1300
  %3992 = vmatprep.subr.mxu0 0.0
  %3993 = vmatpush1.msra.mxu0 %v1299
  %3994 = vmatprep.subr.mxu0 0.0
  %3995 = vmatpush1.msra.mxu0 %v1298
  %3996 = vmatprep.subr.mxu0 0.0
  %3997 = vmatpush1.msra.mxu0 %v1297
  %3998 = vmatprep.subr.mxu0 0.0
  %3999 = vmatpush1.msra.mxu0 %v1296
  %4000 = vmatprep.subr.mxu0 0.0
  %4001 = vmatpush1.msra.mxu0 %v1295
  %4002 = vmatprep.subr.mxu0 0.0
  %4003 = vmatpush1.msra.mxu0 %v1294
  %4004 = vmatprep.subr.mxu0 0.0
  %4005 = vmatpush1.msra.mxu0 %v1293
  %4006 = vmatprep.subr.mxu0 0.0
  %4007 = vmatpush1.msra.mxu0 %v1292
  %4008 = vmatprep.subr.mxu0 0.0
  %4009 = vmatpush1.msra.mxu0 %v1291
  %4010 = vmatprep.subr.mxu0 0.0
  %4011 = vmatpush1.msra.mxu0 %v1290
  %4012 = vmatprep.subr.mxu0 0.0
  %4013 = vmatpush1.msra.mxu0 %v1289
  %4014 = vmatprep.subr.mxu0 0.0
  %4015 = vmatpush1.msra.mxu0 %v1288
  %4016 = vmatprep.subr.mxu0 0.0
  %4017 = vmatpush1.msra.mxu0 %v1287
  %4018 = vmatprep.subr.mxu0 0.0
  %4019 = vmatpush1.msra.mxu0 %v1286
  %4020 = vmatprep.subr.mxu0 0.0
  %4021 = vmatpush1.msra.mxu0 %v1285
  %4022 = vmatprep.subr.mxu0 0.0
  %4023 = vmatpush2.msra.mxu0 %v1316
  %4024 = vmatprep.subr.mxu0 0.0
  %4025 = vmatpush2.msra.mxu0 %v1315
  %4026 = vmatprep.subr.mxu0 0.0
  %4027 = vmatpush2.msra.mxu0 %v1314
  %4028 = vmatprep.subr.mxu0 0.0
  %4029 = vmatpush2.msra.mxu0 %v1313
  %4030 = vmatprep.subr.mxu0 0.0
  %4031 = vmatpush2.msra.mxu0 %v1312
  %4032 = vmatprep.subr.mxu0 0.0
  %4033 = vmatpush2.msra.mxu0 %v1311
  %4034 = vmatprep.subr.mxu0 0.0
  %4035 = vmatpush2.msra.mxu0 %v1310
  %4036 = vmatprep.subr.mxu0 0.0
  %4037 = vmatpush2.msra.mxu0 %v1309
  %4038 = vmatprep.subr.mxu0 0.0
  %4039 = vmatpush2.msra.mxu0 %v1308
  %4040 = vmatprep.subr.mxu0 0.0
  %4041 = vmatpush2.msra.mxu0 %v1307
  %4042 = vmatprep.subr.mxu0 0.0
  %4043 = vmatpush2.msra.mxu0 %v1306
  %4044 = vmatprep.subr.mxu0 0.0
  %4045 = vmatpush2.msra.mxu0 %v1305
  %4046 = vmatprep.subr.mxu0 0.0
  %4047 = vmatpush2.msra.mxu0 %v1304
  %4048 = vmatprep.subr.mxu0 0.0
  %4049 = vmatpush2.msra.mxu0 %v1303
  %4050 = vmatprep.subr.mxu0 0.0
  %4051 = vmatpush2.msra.mxu0 %v1302
  %4052 = vmatprep.subr.mxu0 0.0
  %4053 = vmatpush2.msra.mxu0 %v1301
  %4054 = vmatprep.mubr.f32.mxu0 %v95
  %4055 = vmatmul.mubr.f32.gmra.mxu0 %v94
  %v4056 = vpop.f32.mrf.mxu0
  %v4057 = vadd.f32 %v3987, %v4056
  %v4058 = vpop.f32.mrf.mxu0
  %4059 = vdwg.mxu0
  %4060 = vmatprep.subr.mxu0 0.0
  %4061 = vmatpush1.msra.mxu0 %v1332
  %4062 = vmatprep.subr.mxu0 0.0
  %4063 = vmatpush1.msra.mxu0 %v1331
  %4064 = vmatprep.subr.mxu0 0.0
  %4065 = vmatpush1.msra.mxu0 %v1330
  %4066 = vmatprep.subr.mxu0 0.0
  %4067 = vmatpush1.msra.mxu0 %v1329
  %4068 = vmatprep.subr.mxu0 0.0
  %4069 = vmatpush1.msra.mxu0 %v1328
  %4070 = vmatprep.subr.mxu0 0.0
  %4071 = vmatpush1.msra.mxu0 %v1327
  %4072 = vmatprep.subr.mxu0 0.0
  %4073 = vmatpush1.msra.mxu0 %v1326
  %4074 = vmatprep.subr.mxu0 0.0
  %4075 = vmatpush1.msra.mxu0 %v1325
  %4076 = vmatprep.subr.mxu0 0.0
  %4077 = vmatpush1.msra.mxu0 %v1324
  %4078 = vmatprep.subr.mxu0 0.0
  %4079 = vmatpush1.msra.mxu0 %v1323
  %4080 = vmatprep.subr.mxu0 0.0
  %4081 = vmatpush1.msra.mxu0 %v1322
  %4082 = vmatprep.subr.mxu0 0.0
  %4083 = vmatpush1.msra.mxu0 %v1321
  %4084 = vmatprep.subr.mxu0 0.0
  %4085 = vmatpush1.msra.mxu0 %v1320
  %4086 = vmatprep.subr.mxu0 0.0
  %4087 = vmatpush1.msra.mxu0 %v1319
  %4088 = vmatprep.subr.mxu0 0.0
  %4089 = vmatpush1.msra.mxu0 %v1318
  %4090 = vmatprep.subr.mxu0 0.0
  %4091 = vmatpush1.msra.mxu0 %v1317
  %4092 = vmatprep.subr.mxu0 0.0
  %4093 = vmatpush2.msra.mxu0 %v1348
  %4094 = vmatprep.subr.mxu0 0.0
  %4095 = vmatpush2.msra.mxu0 %v1347
  %4096 = vmatprep.subr.mxu0 0.0
  %4097 = vmatpush2.msra.mxu0 %v1346
  %4098 = vmatprep.subr.mxu0 0.0
  %4099 = vmatpush2.msra.mxu0 %v1345
  %4100 = vmatprep.subr.mxu0 0.0
  %4101 = vmatpush2.msra.mxu0 %v1344
  %4102 = vmatprep.subr.mxu0 0.0
  %4103 = vmatpush2.msra.mxu0 %v1343
  %4104 = vmatprep.subr.mxu0 0.0
  %4105 = vmatpush2.msra.mxu0 %v1342
  %4106 = vmatprep.subr.mxu0 0.0
  %4107 = vmatpush2.msra.mxu0 %v1341
  %4108 = vmatprep.subr.mxu0 0.0
  %4109 = vmatpush2.msra.mxu0 %v1340
  %4110 = vmatprep.subr.mxu0 0.0
  %4111 = vmatpush2.msra.mxu0 %v1339
  %4112 = vmatprep.subr.mxu0 0.0
  %4113 = vmatpush2.msra.mxu0 %v1338
  %4114 = vmatprep.subr.mxu0 0.0
  %4115 = vmatpush2.msra.mxu0 %v1337
  %4116 = vmatprep.subr.mxu0 0.0
  %4117 = vmatpush2.msra.mxu0 %v1336
  %4118 = vmatprep.subr.mxu0 0.0
  %4119 = vmatpush2.msra.mxu0 %v1335
  %4120 = vmatprep.subr.mxu0 0.0
  %4121 = vmatpush2.msra.mxu0 %v1334
  %4122 = vmatprep.subr.mxu0 0.0
  %4123 = vmatpush2.msra.mxu0 %v1333
  %4124 = vmatprep.mubr.f32.mxu0 %v97
  %4125 = vmatmul.mubr.f32.gmra.mxu0 %v96
  %v4126 = vpop.f32.mrf.mxu0
  %v4127 = vadd.f32 %v4057, %v4126
  %v4128 = vpop.f32.mrf.mxu0
  %4129 = vdwg.mxu0
  %4130 = vmatprep.subr.mxu0 0.0
  %4131 = vmatpush1.msra.mxu0 %v1364
  %4132 = vmatprep.subr.mxu0 0.0
  %4133 = vmatpush1.msra.mxu0 %v1363
  %4134 = vmatprep.subr.mxu0 0.0
  %4135 = vmatpush1.msra.mxu0 %v1362
  %4136 = vmatprep.subr.mxu0 0.0
  %4137 = vmatpush1.msra.mxu0 %v1361
  %4138 = vmatprep.subr.mxu0 0.0
  %4139 = vmatpush1.msra.mxu0 %v1360
  %4140 = vmatprep.subr.mxu0 0.0
  %4141 = vmatpush1.msra.mxu0 %v1359
  %4142 = vmatprep.subr.mxu0 0.0
  %4143 = vmatpush1.msra.mxu0 %v1358
  %4144 = vmatprep.subr.mxu0 0.0
  %4145 = vmatpush1.msra.mxu0 %v1357
  %4146 = vmatprep.subr.mxu0 0.0
  %4147 = vmatpush1.msra.mxu0 %v1356
  %4148 = vmatprep.subr.mxu0 0.0
  %4149 = vmatpush1.msra.mxu0 %v1355
  %4150 = vmatprep.subr.mxu0 0.0
  %4151 = vmatpush1.msra.mxu0 %v1354
  %4152 = vmatprep.subr.mxu0 0.0
  %4153 = vmatpush1.msra.mxu0 %v1353
  %4154 = vmatprep.subr.mxu0 0.0
  %4155 = vmatpush1.msra.mxu0 %v1352
  %4156 = vmatprep.subr.mxu0 0.0
  %4157 = vmatpush1.msra.mxu0 %v1351
  %4158 = vmatprep.subr.mxu0 0.0
  %4159 = vmatpush1.msra.mxu0 %v1350
  %4160 = vmatprep.subr.mxu0 0.0
  %4161 = vmatpush1.msra.mxu0 %v1349
  %4162 = vmatprep.subr.mxu0 0.0
  %4163 = vmatpush2.msra.mxu0 %v1380
  %4164 = vmatprep.subr.mxu0 0.0
  %4165 = vmatpush2.msra.mxu0 %v1379
  %4166 = vmatprep.subr.mxu0 0.0
  %4167 = vmatpush2.msra.mxu0 %v1378
  %4168 = vmatprep.subr.mxu0 0.0
  %4169 = vmatpush2.msra.mxu0 %v1377
  %4170 = vmatprep.subr.mxu0 0.0
  %4171 = vmatpush2.msra.mxu0 %v1376
  %4172 = vmatprep.subr.mxu0 0.0
  %4173 = vmatpush2.msra.mxu0 %v1375
  %4174 = vmatprep.subr.mxu0 0.0
  %4175 = vmatpush2.msra.mxu0 %v1374
  %4176 = vmatprep.subr.mxu0 0.0
  %4177 = vmatpush2.msra.mxu0 %v1373
  %4178 = vmatprep.subr.mxu0 0.0
  %4179 = vmatpush2.msra.mxu0 %v1372
  %4180 = vmatprep.subr.mxu0 0.0
  %4181 = vmatpush2.msra.mxu0 %v1371
  %4182 = vmatprep.subr.mxu0 0.0
  %4183 = vmatpush2.msra.mxu0 %v1370
  %4184 = vmatprep.subr.mxu0 0.0
  %4185 = vmatpush2.msra.mxu0 %v1369
  %4186 = vmatprep.subr.mxu0 0.0
  %4187 = vmatpush2.msra.mxu0 %v1368
  %4188 = vmatprep.subr.mxu0 0.0
  %4189 = vmatpush2.msra.mxu0 %v1367
  %4190 = vmatprep.subr.mxu0 0.0
  %4191 = vmatpush2.msra.mxu0 %v1366
  %4192 = vmatprep.subr.mxu0 0.0
  %4193 = vmatpush2.msra.mxu0 %v1365
  %4194 = vmatprep.mubr.f32.mxu0 %v99
  %4195 = vmatmul.mubr.f32.gmra.mxu0 %v98
  %v4196 = vpop.f32.mrf.mxu0
  %v4197 = vadd.f32 %v4127, %v4196
  %v4198 = vpop.f32.mrf.mxu0
  %4199 = vdwg.mxu0
  %4200 = vmatprep.subr.mxu0 0.0
  %4201 = vmatpush1.msra.mxu0 0.0
  %4202 = vmatprep.subr.mxu0 0.0
  %4203 = vmatpush1.msra.mxu0 0.0
  %4204 = vmatprep.subr.mxu0 0.0
  %4205 = vmatpush1.msra.mxu0 0.0
  %4206 = vmatprep.subr.mxu0 0.0
  %4207 = vmatpush1.msra.mxu0 0.0
  %4208 = vmatprep.subr.mxu0 0.0
  %4209 = vmatpush1.msra.mxu0 0.0
  %4210 = vmatprep.subr.mxu0 0.0
  %4211 = vmatpush1.msra.mxu0 0.0
  %4212 = vmatprep.subr.mxu0 0.0
  %4213 = vmatpush1.msra.mxu0 0.0
  %4214 = vmatprep.subr.mxu0 0.0
  %4215 = vmatpush1.msra.mxu0 0.0
  %4216 = vmatprep.subr.mxu0 0.0
  %4217 = vmatpush1.msra.mxu0 %v1388
  %4218 = vmatprep.subr.mxu0 0.0
  %4219 = vmatpush1.msra.mxu0 %v1387
  %4220 = vmatprep.subr.mxu0 0.0
  %4221 = vmatpush1.msra.mxu0 %v1386
  %4222 = vmatprep.subr.mxu0 0.0
  %4223 = vmatpush1.msra.mxu0 %v1385
  %4224 = vmatprep.subr.mxu0 0.0
  %4225 = vmatpush1.msra.mxu0 %v1384
  %4226 = vmatprep.subr.mxu0 0.0
  %4227 = vmatpush1.msra.mxu0 %v1383
  %4228 = vmatprep.subr.mxu0 0.0
  %4229 = vmatpush1.msra.mxu0 %v1382
  %4230 = vmatprep.subr.mxu0 0.0
  %4231 = vmatpush1.msra.mxu0 %v1381
  %4232 = vmatprep.subr.mxu0 0.0
  %4233 = vmatpush2.msra.mxu0 0.0
  %4234 = vmatprep.subr.mxu0 0.0
  %4235 = vmatpush2.msra.mxu0 0.0
  %4236 = vmatprep.subr.mxu0 0.0
  %4237 = vmatpush2.msra.mxu0 0.0
  %4238 = vmatprep.subr.mxu0 0.0
  %4239 = vmatpush2.msra.mxu0 0.0
  %4240 = vmatprep.subr.mxu0 0.0
  %4241 = vmatpush2.msra.mxu0 0.0
  %4242 = vmatprep.subr.mxu0 0.0
  %4243 = vmatpush2.msra.mxu0 0.0
  %4244 = vmatprep.subr.mxu0 0.0
  %4245 = vmatpush2.msra.mxu0 0.0
  %4246 = vmatprep.subr.mxu0 0.0
  %4247 = vmatpush2.msra.mxu0 0.0
  %4248 = vmatprep.subr.mxu0 0.0
  %4249 = vmatpush2.msra.mxu0 0.0
  %4250 = vmatprep.subr.mxu0 0.0
  %4251 = vmatpush2.msra.mxu0 0.0
  %4252 = vmatprep.subr.mxu0 0.0
  %4253 = vmatpush2.msra.mxu0 0.0
  %4254 = vmatprep.subr.mxu0 0.0
  %4255 = vmatpush2.msra.mxu0 0.0
  %4256 = vmatprep.subr.mxu0 0.0
  %4257 = vmatpush2.msra.mxu0 0.0
  %4258 = vmatprep.subr.mxu0 0.0
  %4259 = vmatpush2.msra.mxu0 0.0
  %4260 = vmatprep.subr.mxu0 0.0
  %4261 = vmatpush2.msra.mxu0 0.0
  %4262 = vmatprep.subr.mxu0 0.0
  %4263 = vmatpush2.msra.mxu0 0.0
  %4264 = vmatprep.mubr.f32.mxu0 0.0
  %4265 = vmatmul.mubr.f32.gmra.mxu0 %v1398
  %v4266 = vpop.f32.mrf.mxu0
  %v4267 = vadd.f32 %v4197, %v4266
  %v4268 = vpop.f32.mrf.mxu0
  %4269 = vdwg.mxu0
  %v4270 = vmax.f32 %v4267, 0.0
  %v4271 = vld [vmem:[%s3] sm:$0xff]
  %v4272 = vld [vmem:[%s3 + $0x8] sm:$0xff]
  %v4273 = vld [vmem:[%s3 + $0x10] sm:$0xff]
  %v4274 = vld [vmem:[%s3 + $0x18] sm:$0xff]
  %v4275 = vld [vmem:[%s4] sm:$0x1]
  %v4277 = vlaneseq
  %v4278 = vshrl.u32 %v4277, 7
  %v4279 = vsub.s32 0, %v4278
  %v4280 = vrot.slane %v4275, %v4279
  %vm4282 = vcmask 261120
  %v4284 = vsel %vm4282, %v4270, 0
  %4286 = vmatprep.subr.mxu0 0.0
  %4287 = vmatpush1.msra.mxu0 0.0
  %4288 = vmatprep.subr.mxu0 0.0
  %4289 = vmatpush1.msra.mxu0 0.0
  %4290 = vmatprep.subr.mxu0 0.0
  %4291 = vmatpush1.msra.mxu0 0.0
  %4292 = vmatprep.subr.mxu0 0.0
  %4293 = vmatpush1.msra.mxu0 0.0
  %4294 = vmatprep.subr.mxu0 0.0
  %4295 = vmatpush1.msra.mxu0 0.0
  %4296 = vmatprep.subr.mxu0 0.0
  %4297 = vmatpush1.msra.mxu0 0.0
  %4298 = vmatprep.subr.mxu0 0.0
  %4299 = vmatpush1.msra.mxu0 0.0
  %4300 = vmatprep.subr.mxu0 0.0
  %4301 = vmatpush1.msra.mxu0 0.0
  %4302 = vmatprep.subr.mxu0 0.0
  %4303 = vmatpush1.msra.mxu0 0.0
  %4304 = vmatprep.subr.mxu0 0.0
  %4305 = vmatpush1.msra.mxu0 0.0
  %4306 = vmatprep.subr.mxu0 0.0
  %4307 = vmatpush1.msra.mxu0 0.0
  %4308 = vmatprep.subr.mxu0 0.0
  %4309 = vmatpush1.msra.mxu0 0.0
  %4310 = vmatprep.subr.mxu0 0.0
  %4311 = vmatpush1.msra.mxu0 %v4274
  %4312 = vmatprep.subr.mxu0 0.0
  %4313 = vmatpush1.msra.mxu0 %v4273
  %4314 = vmatprep.subr.mxu0 0.0
  %4315 = vmatpush1.msra.mxu0 %v4272
  %4316 = vmatprep.subr.mxu0 0.0
  %4317 = vmatpush1.msra.mxu0 %v4271
  %4318 = vmatprep.subr.mxu0 0.0
  %4319 = vmatpush2.msra.mxu0 0.0
  %4320 = vmatprep.subr.mxu0 0.0
  %4321 = vmatpush2.msra.mxu0 0.0
  %4322 = vmatprep.subr.mxu0 0.0
  %4323 = vmatpush2.msra.mxu0 0.0
  %4324 = vmatprep.subr.mxu0 0.0
  %4325 = vmatpush2.msra.mxu0 0.0
  %4326 = vmatprep.subr.mxu0 0.0
  %4327 = vmatpush2.msra.mxu0 0.0
  %4328 = vmatprep.subr.mxu0 0.0
  %4329 = vmatpush2.msra.mxu0 0.0
  %4330 = vmatprep.subr.mxu0 0.0
  %4331 = vmatpush2.msra.mxu0 0.0
  %4332 = vmatprep.subr.mxu0 0.0
  %4333 = vmatpush2.msra.mxu0 0.0
  %4334 = vmatprep.subr.mxu0 0.0
  %4335 = vmatpush2.msra.mxu0 0.0
  %4336 = vmatprep.subr.mxu0 0.0
  %4337 = vmatpush2.msra.mxu0 0.0
  %4338 = vmatprep.subr.mxu0 0.0
  %4339 = vmatpush2.msra.mxu0 0.0
  %4340 = vmatprep.subr.mxu0 0.0
  %4341 = vmatpush2.msra.mxu0 0.0
  %4342 = vmatprep.subr.mxu0 0.0
  %4343 = vmatpush2.msra.mxu0 0.0
  %4344 = vmatprep.subr.mxu0 0.0
  %4345 = vmatpush2.msra.mxu0 0.0
  %4346 = vmatprep.subr.mxu0 0.0
  %4347 = vmatpush2.msra.mxu0 0.0
  %4348 = vmatprep.subr.mxu0 0.0
  %4349 = vmatpush2.msra.mxu0 0.0
  %4350 = vmatprep.mubr.f32.mxu0 0.0
  %4351 = vmatmul.mubr.f32.gmra.mxu0 %v4284
  %v4352 = vpop.f32.mrf.mxu0
  %v4353 = vadd.f32 %v4280, %v4352
  %v4354 = vpop.f32.mrf.mxu0
  %4355 = vdwg.mxu0
  %4356 = vst [vmem:[%s5] sm:$0xff] %v4353
  // Predicated region
  $region22: #{encoder_forward.9} parent=0 // pred_check
    _
  $region23: #{encoder_forward.9} parent=0 // pred_check_branch
    %4358 = sbr.rel (0) target = $region25
  $region24: #{encoder_forward.9} parent=0 // pred_region
    _
  $region25: #{encoder_forward.9} parent=0 // pred_fallthru
    _
  // Predicated region
  $region26: #{encoder_forward.9} parent=0 // pred_check
    _
  $region27: #{encoder_forward.9} parent=0 // pred_check_branch
    %4360 = sbr.rel (0) target = $region29
  $region28: #{encoder_forward.9} parent=0 // pred_region
    _
  $region29: #{encoder_forward.9} parent=0 // pred_fallthru
    _

</llo_original>
